<compile_context>
chip_gen: v6e
topology: v6e:2x2x1
jax: 0.10.0
libtpu: 0.0.40
codegen_flags: <defaults>
</compile_context>

<pallas_src>
import math
from functools import partial

import jax
import jax.numpy as jnp
from jax.experimental import pallas as pl
from jax.experimental.pallas import tpu as pltpu


# ----------------------------------------------------------------------------
# In-kernel helpers (operate on loaded jnp arrays).
# ----------------------------------------------------------------------------
def _layer_norm(x, gamma, beta, eps=1e-5):
    mu = jnp.mean(x, axis=-1, keepdims=True)
    var = jnp.mean((x - mu) ** 2, axis=-1, keepdims=True)
    return (x - mu) * jax.lax.rsqrt(var + eps) * gamma + beta


def _ffn(x, w1, b1, w2, b2):
    # Linear -> ReLU -> Linear (dropout is identity in eval mode).
    cdt = w1.dtype
    h = jnp.dot(x.astype(cdt), w1, preferred_element_type=jnp.float32) + b1
    h = jnp.maximum(h, 0.0)
    return jnp.dot(h.astype(cdt), w2, preferred_element_type=jnp.float32) + b2


def _attention_core(q3, k3, v3, mask, num_heads, cdt, need_weights=False):
    """Batched multi-head score/softmax/PV.

    q3/k3/v3 : (NB, S, E) f32, q3 already scaled by 1/sqrt(head_dim).
    Returns (ctx (NB, S, E) f32, attw (NB, S, S) f32 head-averaged or None).
    """
    nb, s_len, e_dim = q3.shape
    hd = e_dim // num_heads
    heads = []
    attw = jnp.zeros((nb, s_len, s_len), jnp.float32) if need_weights else None
    for h in range(num_heads):                    # static loop; lane slices are static
        lo, hi = h * hd, (h + 1) * hd
        qh = q3[:, :, lo:hi].astype(cdt)          # (NB, S, hd)
        kh = k3[:, :, lo:hi].astype(cdt)
        vh = v3[:, :, lo:hi].astype(cdt)
        s = jnp.einsum("bqd,bkd->bqk", qh, kh,
                       preferred_element_type=jnp.float32)   # (NB, S, S) f32
        s = jnp.where(mask[None], -1e30, s)                  # causal mask (f32)
        s = s - jnp.max(s, axis=-1, keepdims=True)
        p = jnp.exp(s)
        p = p * pl.reciprocal(jnp.sum(p, axis=-1, keepdims=True), approx=True)
        if need_weights:
            attw = attw + p
        heads.append(jnp.einsum("bqk,bkd->bqd", p.astype(cdt), vh,
                                preferred_element_type=jnp.float32))
    ctx = jnp.concatenate(heads, axis=-1)          # (NB, S, E) head concat
    if need_weights:
        attw = attw * (1.0 / num_heads)            # torch averages over heads
    return ctx, attw


# ----------------------------------------------------------------------------
# The fused Pallas kernel: one grid step == TB batch elements.
# ----------------------------------------------------------------------------
def _sakt_kernel(num_heads, tb, s_len, e_dim, *refs):
    (x_ref, e_ref,
     enc_wqkv, enc_bqkv, enc_wo, enc_bo,
     dec_wqkv, dec_bqkv, dec_wo, dec_bo,
     mul_wqk, mul_bqk, mul_wv, mul_bv, mul_wo, mul_bo,
     fe_w1, fe_b1, fe_w2, fe_b2,
     fd_w1, fd_b1, fd_w2, fd_b2,
     ln_g, ln_b, pred_w, pred_b,
     logits_ref, attw_ref) = refs

    m = tb * s_len
    hd = e_dim // num_heads
    scale = 1.0 / math.sqrt(hd)
    cdt = enc_wqkv.dtype

    x = x_ref[...].reshape(m, e_dim)        # decoder-side input embeddings (f32)
    e = e_ref[...].reshape(m, e_dim)        # encoder-side input embeddings (f32)

    row = jax.lax.broadcasted_iota(jnp.int32, (s_len, s_len), 0)
    col = jax.lax.broadcasted_iota(jnp.int32, (s_len, s_len), 1)
    mask = col > row                        # future_mask: True above diagonal

    g = ln_g[...]
    b = ln_b[...]

    # --- encoder & decoder self-attention (fused QKV; one batched attention core) --
    enc_qkv = jnp.dot(e.astype(cdt), enc_wqkv[...],
                      preferred_element_type=jnp.float32) + enc_bqkv[...]   # (M, 3E)
    dec_qkv = jnp.dot(x.astype(cdt), dec_wqkv[...],
                      preferred_element_type=jnp.float32) + dec_bqkv[...]   # (M, 3E)
    qkv = jnp.concatenate([enc_qkv, dec_qkv], axis=0)                       # (2M, 3E)
    q3 = (qkv[:, :e_dim] * scale).reshape(2 * tb, s_len, e_dim)  # scale after bias
    k3 = qkv[:, e_dim:2 * e_dim].reshape(2 * tb, s_len, e_dim)
    v3 = qkv[:, 2 * e_dim:].reshape(2 * tb, s_len, e_dim)
    ctx, _ = _attention_core(q3, k3, v3, mask, num_heads, cdt)
    ctx = ctx.reshape(2 * m, e_dim)
    enc_att = jnp.dot(ctx[:m].astype(cdt), enc_wo[...],
                      preferred_element_type=jnp.float32) + enc_bo[...]
    dec_att = jnp.dot(ctx[m:].astype(cdt), dec_wo[...],
                      preferred_element_type=jnp.float32) + dec_bo[...]

    # Both branches use ffn_enc and the shared layer_norm (as in the torch module),
    # so stack them along sublanes and run the FFN + LN once on a (2*TB*S, E) tile.
    stacked = jnp.concatenate([enc_att, dec_att], axis=0)       # (2M, E)
    resid = jnp.concatenate([e, x], axis=0)
    stacked = _ffn(stacked, fe_w1[...], fe_b1[...], fe_w2[...], fe_b2[...])
    stacked = _layer_norm(stacked + resid, g, b)
    enc = stacked[:m]
    dec = stacked[m:]

    # --- cross attention: query/key = encoder branch, value = decoder branch -------
    qk = jnp.dot(enc.astype(cdt), mul_wqk[...],
                 preferred_element_type=jnp.float32) + mul_bqk[...]         # (M, 2E)
    v = jnp.dot(dec.astype(cdt), mul_wv[...],
                preferred_element_type=jnp.float32) + mul_bv[...]           # (M, E)
    cq3 = (qk[:, :e_dim] * scale).reshape(tb, s_len, e_dim)
    ck3 = qk[:, e_dim:].reshape(tb, s_len, e_dim)
    cv3 = v.reshape(tb, s_len, e_dim)
    cctx, attw = _attention_core(cq3, ck3, cv3, mask, num_heads, cdt,
                                 need_weights=True)
    out = jnp.dot(cctx.reshape(m, e_dim).astype(cdt), mul_wo[...],
                  preferred_element_type=jnp.float32) + mul_bo[...]
    out = _layer_norm(out + dec, g, b)

    # --- final FFN + layer norm -----------------------------------------------------
    y = _ffn(out, fd_w1[...], fd_b1[...], fd_w2[...], fd_b2[...])
    y = _layer_norm(y + out, g, b)

    # --- prediction head: VPU multiply + lane reduction (no N=1 matmul/store) -------
    y3 = y.reshape(tb, s_len, e_dim)
    logits = jnp.sum(y3 * pred_w[...][None], axis=-1) + pred_b[...]     # (TB, S)
    logits_ref[...] = logits
    attw_ref[...] = attw


# ----------------------------------------------------------------------------
# Wrapper-side packing / tiling decisions.
# ----------------------------------------------------------------------------
def _build_inputs(content, qa, question_ids, parts, params):
    """Embedding gathers + sums (plain-JAX glue outside the kernel)."""
    s_len = content.shape[1]
    x = (params["content_emb"][content]
         + params["pos_emb"][jnp.arange(s_len)][None]
         + params["qa_emb"][qa])
    e = params["e_emb"][question_ids] + params["part_emb"][parts]
    return x.astype(jnp.float32), e.astype(jnp.float32)


def _pack_weights(p, e_dim, matmul_dtype=jnp.bfloat16):
    """Torch-layout params -> kernel layout (matmul weights pre-transposed, bf16)."""
    f32 = jnp.float32
    packed = []
    # Self-attention branches: fused (E, 3E) QKV projection.
    for name in ("enc", "dec"):
        in_w = p[name + "_in_w"].astype(f32)           # (3E, E) rows = [q; k; v]
        in_b = p[name + "_in_b"].astype(f32)           # (3E,)
        packed += [
            in_w.T.astype(matmul_dtype),                       # wqkv (E, 3E)
            in_b.reshape(1, 3 * e_dim),                        # bqkv (1, 3E)
            p[name + "_out_w"].astype(f32).T.astype(matmul_dtype),   # wo (E, E)
            p[name + "_out_b"].astype(f32).reshape(1, e_dim),        # bo (1, E)
        ]
    # Cross attention: fused (E, 2E) QK + separate (E, E) V projections.
    in_w = p["mul_in_w"].astype(f32)
    in_b = p["mul_in_b"].astype(f32)
    packed += [
        in_w[: 2 * e_dim].T.astype(matmul_dtype),              # wqk (E, 2E)
        in_b[: 2 * e_dim].reshape(1, 2 * e_dim),               # bqk (1, 2E)
        in_w[2 * e_dim:].T.astype(matmul_dtype),               # wv  (E, E)
        in_b[2 * e_dim:].reshape(1, e_dim),                    # bv  (1, E)
        p["mul_out_w"].astype(f32).T.astype(matmul_dtype),     # wo  (E, E)
        p["mul_out_b"].astype(f32).reshape(1, e_dim),          # bo  (1, E)
    ]
    for name in ("ffn_enc", "ffn_dec"):
        packed += [
            p[name + "_lr1_w"].astype(f32).T.astype(matmul_dtype),
            p[name + "_lr1_b"].astype(f32).reshape(1, e_dim),
            p[name + "_lr2_w"].astype(f32).T.astype(matmul_dtype),
            p[name + "_lr2_b"].astype(f32).reshape(1, e_dim),
        ]
    packed += [
        p["ln_w"].astype(f32).reshape(1, e_dim),
        p["ln_b"].astype(f32).reshape(1, e_dim),
        p["pred_w"].astype(f32).reshape(1, e_dim),      # used as a VPU row vector
        p["pred_b"].astype(f32).reshape(1, 1),
    ]
    return packed


def _pick_batch_tile(batch, s_len, e_dim, vmem_budget_bytes=12 << 20):
    """Largest divisor of `batch` whose double-buffered blocks fit a conservative
    VMEM budget (safe on v7x 64 MiB and v5e's 16 MiB scoped default), preferring a
    grid of >= 2 steps so both v7x TensorCores get work."""
    divisors = [d for d in range(1, batch + 1) if batch % d == 0]

    def block_bytes(tb):
        # x + e inputs, attw + logits outputs, all f32, double-buffered.
        return 2 * 4 * (2 * tb * s_len * e_dim + tb * s_len * s_len + tb * s_len)

    ok = [d for d in divisors
          if d * s_len <= 512 and block_bytes(d) <= vmem_budget_bytes]
    tb = max(ok) if ok else 1
    if batch // tb < 2:
        smaller = [d for d in ok if batch // d >= 2]
        if smaller:
            tb = max(smaller)
    return tb


def sakt_forward(content, qa, question_ids, parts, params, num_heads=8,
                 batch_tile=None, matmul_dtype=jnp.bfloat16):
    x, e = _build_inputs(content, qa, question_ids, parts, params)
    batch, s_len, e_dim = x.shape
    assert e_dim % num_heads == 0
    if batch_tile is None:
        batch_tile = _pick_batch_tile(batch, s_len, e_dim)
    assert batch % batch_tile == 0
    num_steps = batch // batch_tile

    weights = _pack_weights(params, e_dim, matmul_dtype)

    def _full_spec(arr):
        nd = arr.ndim
        return pl.BlockSpec(arr.shape, lambda g, _nd=nd: (0,) * _nd)

    in_specs = [
        pl.BlockSpec((batch_tile, s_len, e_dim), lambda g: (g, 0, 0)),
        pl.BlockSpec((batch_tile, s_len, e_dim), lambda g: (g, 0, 0)),
    ] + [_full_spec(w) for w in weights]

    # Outputs carry the grid axis explicitly so block dims always equal full dims.
    out_specs = [
        pl.BlockSpec((pl.Squeezed(), batch_tile, s_len), lambda g: (g, 0, 0)),
        pl.BlockSpec((pl.Squeezed(), batch_tile, s_len, s_len),
                     lambda g: (g, 0, 0, 0)),
    ]
    out_shape = (
        jax.ShapeDtypeStruct((num_steps, batch_tile, s_len), jnp.float32),
        jax.ShapeDtypeStruct((num_steps, batch_tile, s_len, s_len), jnp.float32),
    )

    logits, attw = pl.pallas_call(
        partial(_sakt_kernel, num_heads, batch_tile, s_len, e_dim),
        out_shape=out_shape,
        grid_spec=pltpu.PrefetchScalarGridSpec(
            num_scalar_prefetch=0,
            grid=(num_steps,),
            in_specs=in_specs,
            out_specs=out_specs,
        ),
        compiler_params=pltpu.CompilerParams(
            dimension_semantics=("parallel",)),
    )(x, e, *weights)
    return logits.reshape(batch, s_len), attw.reshape(batch, s_len, s_len)


# ----------------------------------------------------------------------------
# Independent pure-JAX (f32) reference implementing the torch math directly.
# ----------------------------------------------------------------------------
def _ref_ln(v, w, b, eps=1e-5):
    mu = v.mean(-1, keepdims=True)
    var = ((v - mu) ** 2).mean(-1, keepdims=True)
    return (v - mu) / jnp.sqrt(var + eps) * w + b


def _ref_mha(q, k, v, in_w, in_b, out_w, out_b, mask, num_heads):
    s_len, e_dim = q.shape
    hd = e_dim // num_heads
    qp = (q @ in_w[:e_dim].T + in_b[:e_dim]) * (1.0 / math.sqrt(hd))
    kp = k @ in_w[e_dim:2 * e_dim].T + in_b[e_dim:2 * e_dim]
    vp = v @ in_w[2 * e_dim:].T + in_b[2 * e_dim:]
    qh = qp.reshape(s_len, num_heads, hd).transpose(1, 0, 2)
    kh = kp.reshape(s_len, num_heads, hd).transpose(1, 0, 2)
    vh = vp.reshape(s_len, num_heads, hd).transpose(1, 0, 2)
    scores = jnp.einsum("hqd,hkd->hqk", qh, kh)
    scores = jnp.where(mask[None], -jnp.inf, scores)
    p = jax.nn.softmax(scores, axis=-1)
    ctx = jnp.einsum("hqk,hkd->hqd", p, vh).transpose(1, 0, 2).reshape(s_len, e_dim)
    return ctx @ out_w.T + out_b, jnp.mean(p, axis=0)


def ref_forward(x, e, p, num_heads):
    s_len = x.shape[1]
    mask = jnp.triu(jnp.ones((s_len, s_len), dtype=bool), k=1)

    def ffn(v, pre):
        h = jnp.maximum(v @ p[pre + "_lr1_w"].T + p[pre + "_lr1_b"], 0.0)
        return h @ p[pre + "_lr2_w"].T + p[pre + "_lr2_b"]

    def ln(v):
        return _ref_ln(v, p["ln_w"], p["ln_b"])

    def per_batch(xb, eb):
        att_enc, _ = _ref_mha(eb, eb, eb, p["enc_in_w"], p["enc_in_b"],
                              p["enc_out_w"], p["enc_out_b"], mask, num_heads)
        att_enc = ln(ffn(att_enc, "ffn_enc") + eb)
        att_dec, _ = _ref_mha(xb, xb, xb, p["dec_in_w"], p["dec_in_b"],
                              p["dec_out_w"], p["dec_out_b"], mask, num_heads)
        att_dec = ln(ffn(att_dec, "ffn_enc") + xb)      # torch reuses ffn_enc here
        out, attw = _ref_mha(att_enc, att_enc, att_dec, p["mul_in_w"], p["mul_in_b"],
                             p["mul_out_w"], p["mul_out_b"], mask, num_heads)
        out = ln(out + att_dec)
        y = ln(ffn(out, "ffn_dec") + out)
        logits = y @ p["pred_w"].T + p["pred_b"]
        return logits[:, 0], attw

    return jax.vmap(per_batch)(x, e)


# ----------------------------------------------------------------------------
# Deterministic parameter initialization (torch-style layouts; synthetic values).
# ----------------------------------------------------------------------------
def init_params(key, n_skill, max_seq, e_dim):
    keys = iter(jax.random.split(key, 64))

    def nrm(shape, scale=0.05):
        return jax.random.normal(next(keys), shape, jnp.float32) * scale

    p = {}
    p["content_emb"] = nrm((n_skill + 1, e_dim), 0.3)
    p["qa_emb"] = nrm((4, e_dim), 0.3)
    p["pos_emb"] = nrm((max_seq - 1, e_dim), 0.3)
    p["e_emb"] = nrm((n_skill + 1, e_dim), 0.3)
    p["part_emb"] = nrm((8, e_dim), 0.3)
    for name in ("enc", "dec", "mul"):                 # nn.MultiheadAttention params
        p[name + "_in_w"] = nrm((3 * e_dim, e_dim))
        p[name + "_in_b"] = nrm((3 * e_dim,))
        p[name + "_out_w"] = nrm((e_dim, e_dim))
        p[name + "_out_b"] = nrm((e_dim,))
    for name in ("ffn_enc", "ffn_dec"):                # FFN(Linear/ReLU/Linear)
        p[name + "_lr1_w"] = nrm((e_dim, e_dim))
        p[name + "_lr1_b"] = nrm((e_dim,))
        p[name + "_lr2_w"] = nrm((e_dim, e_dim))
        p[name + "_lr2_b"] = nrm((e_dim,))
    p["ln_w"] = jnp.ones((e_dim,), jnp.float32)
    p["ln_b"] = jnp.zeros((e_dim,), jnp.float32)
    p["pred_w"] = nrm((1, e_dim))
    p["pred_b"] = nrm((1,))
    # TODO(synk): ffn_dec_self1 exists in SAKTModel.__init__ but is unused in forward; omitted.
    return p


if __name__ == "__main__":
    B, S, E, H = 2, 8, 64, 8
    n_skill, max_seq = 50, 100

    key = jax.random.PRNGKey(0)
    kp, kc, kq, kqi, kpart = jax.random.split(key, 5)
    params = init_params(kp, n_skill, max_seq, E)

    content = jax.random.randint(kc, (B, S), 0, n_skill + 1, dtype=jnp.int32)
    qa = jax.random.randint(kq, (B, S), 0, 4, dtype=jnp.int32)
    question_ids = jax.random.randint(kqi, (B, S), 0, n_skill + 1, dtype=jnp.int32)
    parts = jax.random.randint(kpart, (B, S), 0, 8, dtype=jnp.int32)

    logits, attw = sakt_forward(content, qa, question_ids, parts, params, num_heads=H)
    jax.block_until_ready((logits, attw))

    # correctness check against an independent f32 reference (bf16-MXU tolerance)
    x, e = _build_inputs(content, qa, question_ids, parts, params)
    ref_logits, ref_attw = ref_forward(x, e, params, H)
    assert logits.shape == (B, S) and attw.shape == (B, S, S)
    assert jnp.allclose(logits, ref_logits, atol=3e-2, rtol=3e-2)
    assert jnp.allclose(attw, ref_attw, atol=3e-2, rtol=3e-2)

    # also exercise the multi-batch-per-grid-step path explicitly
    logits2, attw2 = sakt_forward(content, qa, question_ids, parts, params,
                                  num_heads=H, batch_tile=2)
    jax.block_until_ready((logits2, attw2))
    assert jnp.allclose(logits2, ref_logits, atol=3e-2, rtol=3e-2)
    assert jnp.allclose(attw2, ref_attw, atol=3e-2, rtol=3e-2)

    print("KERNEL_OK")
</pallas_src>

<mosaic_0001>
module attributes {stable_mosaic.version = 11 : i64} {
  func.func @_sakt_kernel(%arg0: i32, %arg1: memref<1x8x64xf32, #tpu.memory_space<vmem>>, %arg2: memref<1x8x64xf32, #tpu.memory_space<vmem>>, %arg3: memref<64x192xbf16, #tpu.memory_space<vmem>>, %arg4: memref<1x192xf32, #tpu.memory_space<vmem>>, %arg5: memref<64x64xbf16, #tpu.memory_space<vmem>>, %arg6: memref<1x64xf32, #tpu.memory_space<vmem>>, %arg7: memref<64x192xbf16, #tpu.memory_space<vmem>>, %arg8: memref<1x192xf32, #tpu.memory_space<vmem>>, %arg9: memref<64x64xbf16, #tpu.memory_space<vmem>>, %arg10: memref<1x64xf32, #tpu.memory_space<vmem>>, %arg11: memref<64x128xbf16, #tpu.memory_space<vmem>>, %arg12: memref<1x128xf32, #tpu.memory_space<vmem>>, %arg13: memref<64x64xbf16, #tpu.memory_space<vmem>>, %arg14: memref<1x64xf32, #tpu.memory_space<vmem>>, %arg15: memref<64x64xbf16, #tpu.memory_space<vmem>>, %arg16: memref<1x64xf32, #tpu.memory_space<vmem>>, %arg17: memref<64x64xbf16, #tpu.memory_space<vmem>>, %arg18: memref<1x64xf32, #tpu.memory_space<vmem>>, %arg19: memref<64x64xbf16, #tpu.memory_space<vmem>>, %arg20: memref<1x64xf32, #tpu.memory_space<vmem>>, %arg21: memref<64x64xbf16, #tpu.memory_space<vmem>>, %arg22: memref<1x64xf32, #tpu.memory_space<vmem>>, %arg23: memref<64x64xbf16, #tpu.memory_space<vmem>>, %arg24: memref<1x64xf32, #tpu.memory_space<vmem>>, %arg25: memref<1x64xf32, #tpu.memory_space<vmem>>, %arg26: memref<1x64xf32, #tpu.memory_space<vmem>>, %arg27: memref<1x64xf32, #tpu.memory_space<vmem>>, %arg28: memref<1x1xf32, #tpu.memory_space<vmem>>, %arg29: memref<1x1x8xf32, #tpu.memory_space<vmem>>, %arg30: memref<1x1x8x8xf32, #tpu.memory_space<vmem>>) attributes {dimension_semantics = [#tpu.dimension_semantics<parallel>], iteration_bounds = array<i64: 2>, scalar_prefetch = 0 : i64, scratch_operands = 0 : i64, tpu.core_type = #tpu.core_type<tc>, window_params = [{transform_indices = @transform_0, window_bounds = array<i64: 1, 8, 64>}, {transform_indices = @transform_1, window_bounds = array<i64: 1, 8, 64>}, {pipeline_mode = #tpu.pipeline_mode<synchronous>, transform_indices = @transform_2, window_bounds = array<i64: 64, 192>}, {pipeline_mode = #tpu.pipeline_mode<synchronous>, transform_indices = @transform_3, window_bounds = array<i64: 1, 192>}, {pipeline_mode = #tpu.pipeline_mode<synchronous>, transform_indices = @transform_4, window_bounds = array<i64: 64, 64>}, {pipeline_mode = #tpu.pipeline_mode<synchronous>, transform_indices = @transform_5, window_bounds = array<i64: 1, 64>}, {pipeline_mode = #tpu.pipeline_mode<synchronous>, transform_indices = @transform_6, window_bounds = array<i64: 64, 192>}, {pipeline_mode = #tpu.pipeline_mode<synchronous>, transform_indices = @transform_7, window_bounds = array<i64: 1, 192>}, {pipeline_mode = #tpu.pipeline_mode<synchronous>, transform_indices = @transform_8, window_bounds = array<i64: 64, 64>}, {pipeline_mode = #tpu.pipeline_mode<synchronous>, transform_indices = @transform_9, window_bounds = array<i64: 1, 64>}, {pipeline_mode = #tpu.pipeline_mode<synchronous>, transform_indices = @transform_10, window_bounds = array<i64: 64, 128>}, {pipeline_mode = #tpu.pipeline_mode<synchronous>, transform_indices = @transform_11, window_bounds = array<i64: 1, 128>}, {pipeline_mode = #tpu.pipeline_mode<synchronous>, transform_indices = @transform_12, window_bounds = array<i64: 64, 64>}, {pipeline_mode = #tpu.pipeline_mode<synchronous>, transform_indices = @transform_13, window_bounds = array<i64: 1, 64>}, {pipeline_mode = #tpu.pipeline_mode<synchronous>, transform_indices = @transform_14, window_bounds = array<i64: 64, 64>}, {pipeline_mode = #tpu.pipeline_mode<synchronous>, transform_indices = @transform_15, window_bounds = array<i64: 1, 64>}, {pipeline_mode = #tpu.pipeline_mode<synchronous>, transform_indices = @transform_16, window_bounds = array<i64: 64, 64>}, {pipeline_mode = #tpu.pipeline_mode<synchronous>, transform_indices = @transform_17, window_bounds = array<i64: 1, 64>}, {pipeline_mode = #tpu.pipeline_mode<synchronous>, transform_indices = @transform_18, window_bounds = array<i64: 64, 64>}, {pipeline_mode = #tpu.pipeline_mode<synchronous>, transform_indices = @transform_19, window_bounds = array<i64: 1, 64>}, {pipeline_mode = #tpu.pipeline_mode<synchronous>, transform_indices = @transform_20, window_bounds = array<i64: 64, 64>}, {pipeline_mode = #tpu.pipeline_mode<synchronous>, transform_indices = @transform_21, window_bounds = array<i64: 1, 64>}, {pipeline_mode = #tpu.pipeline_mode<synchronous>, transform_indices = @transform_22, window_bounds = array<i64: 64, 64>}, {pipeline_mode = #tpu.pipeline_mode<synchronous>, transform_indices = @transform_23, window_bounds = array<i64: 1, 64>}, {pipeline_mode = #tpu.pipeline_mode<synchronous>, transform_indices = @transform_24, window_bounds = array<i64: 1, 64>}, {pipeline_mode = #tpu.pipeline_mode<synchronous>, transform_indices = @transform_25, window_bounds = array<i64: 1, 64>}, {pipeline_mode = #tpu.pipeline_mode<synchronous>, transform_indices = @transform_26, window_bounds = array<i64: 1, 64>}, {pipeline_mode = #tpu.pipeline_mode<synchronous>, transform_indices = @transform_27, window_bounds = array<i64: 1, 1>}, {transform_indices = @transform_28, window_bounds = array<i64: 1, 1, 8>}, {transform_indices = @transform_29, window_bounds = array<i64: 1, 1, 8, 8>}]} {
    %c0 = arith.constant 0 : index
    %c0_0 = arith.constant 0 : index
    %c0_1 = arith.constant 0 : index
    %0 = vector.load %arg1[%c0, %c0_0, %c0_1] : memref<1x8x64xf32, #tpu.memory_space<vmem>>, vector<1x8x64xf32>
    %1 = vector.shape_cast %0 : vector<1x8x64xf32> to vector<8x64xf32>
    %c0_2 = arith.constant 0 : index
    %c0_3 = arith.constant 0 : index
    %c0_4 = arith.constant 0 : index
    %2 = vector.load %arg2[%c0_2, %c0_3, %c0_4] : memref<1x8x64xf32, #tpu.memory_space<vmem>>, vector<1x8x64xf32>
    %3 = vector.shape_cast %2 : vector<1x8x64xf32> to vector<8x64xf32>
    %4 = tpu.iota {dimensions = array<i32: 0>} : vector<8x8xi32>
    %5 = tpu.iota {dimensions = array<i32: 1>} : vector<8x8xi32>
    %6 = arith.cmpi sgt, %5, %4 : vector<8x8xi32>
    %c0_5 = arith.constant 0 : index
    %c0_6 = arith.constant 0 : index
    %7 = vector.load %arg25[%c0_5, %c0_6] : memref<1x64xf32, #tpu.memory_space<vmem>>, vector<1x64xf32>
    %c0_7 = arith.constant 0 : index
    %c0_8 = arith.constant 0 : index
    %8 = vector.load %arg26[%c0_7, %c0_8] : memref<1x64xf32, #tpu.memory_space<vmem>>, vector<1x64xf32>
    %9 = arith.truncf %3 : vector<8x64xf32> to vector<8x64xbf16>
    %c0_9 = arith.constant 0 : index
    %c0_10 = arith.constant 0 : index
    %10 = vector.load %arg3[%c0_9, %c0_10] : memref<64x192xbf16, #tpu.memory_space<vmem>>, vector<64x192xbf16>
    %cst = arith.constant dense<0.000000e+00> : vector<8x192xf32>
    %11 = tpu.matmul %9, %10, %cst {dimension_numbers = #tpu.dot_dimension_numbers<[1], [0], [0], [1], [0, 0, 1, 1], [], []>} : vector<8x64xbf16>, vector<64x192xbf16>, vector<8x192xf32> -> vector<8x192xf32>
    %c0_11 = arith.constant 0 : index
    %c0_12 = arith.constant 0 : index
    %12 = vector.load %arg4[%c0_11, %c0_12] : memref<1x192xf32, #tpu.memory_space<vmem>>, vector<1x192xf32>
    %13 = vector.broadcast %12 : vector<1x192xf32> to vector<8x192xf32>
    %14 = arith.addf %11, %13 : vector<8x192xf32>
    %15 = arith.truncf %1 : vector<8x64xf32> to vector<8x64xbf16>
    %c0_13 = arith.constant 0 : index
    %c0_14 = arith.constant 0 : index
    %16 = vector.load %arg7[%c0_13, %c0_14] : memref<64x192xbf16, #tpu.memory_space<vmem>>, vector<64x192xbf16>
    %cst_15 = arith.constant dense<0.000000e+00> : vector<8x192xf32>
    %17 = tpu.matmul %15, %16, %cst_15 {dimension_numbers = #tpu.dot_dimension_numbers<[1], [0], [0], [1], [0, 0, 1, 1], [], []>} : vector<8x64xbf16>, vector<64x192xbf16>, vector<8x192xf32> -> vector<8x192xf32>
    %c0_16 = arith.constant 0 : index
    %c0_17 = arith.constant 0 : index
    %18 = vector.load %arg8[%c0_16, %c0_17] : memref<1x192xf32, #tpu.memory_space<vmem>>, vector<1x192xf32>
    %19 = vector.broadcast %18 : vector<1x192xf32> to vector<8x192xf32>
    %20 = arith.addf %17, %19 : vector<8x192xf32>
    %21 = tpu.concatenate %14, %20 in 0 : vector<8x192xf32>, vector<8x192xf32> -> vector<16x192xf32>
    %22 = vector.extract_strided_slice %21 {offsets = [0, 0], sizes = [16, 64], strides = [1, 1]} : vector<16x192xf32> to vector<16x64xf32>
    %cst_18 = arith.constant 0.353553385 : f32
    %23 = vector.broadcast %cst_18 : f32 to vector<16x64xf32>
    %24 = arith.mulf %22, %23 : vector<16x64xf32>
    %25 = vector.shape_cast %24 : vector<16x64xf32> to vector<2x8x64xf32>
    %26 = vector.extract_strided_slice %21 {offsets = [0, 64], sizes = [16, 64], strides = [1, 1]} : vector<16x192xf32> to vector<16x64xf32>
    %27 = vector.shape_cast %26 : vector<16x64xf32> to vector<2x8x64xf32>
    %28 = vector.extract_strided_slice %21 {offsets = [0, 128], sizes = [16, 64], strides = [1, 1]} : vector<16x192xf32> to vector<16x64xf32>
    %29 = vector.shape_cast %28 : vector<16x64xf32> to vector<2x8x64xf32>
    %30 = vector.extract_strided_slice %25 {offsets = [0, 0, 0], sizes = [2, 8, 8], strides = [1, 1, 1]} : vector<2x8x64xf32> to vector<2x8x8xf32>
    %31 = arith.truncf %30 : vector<2x8x8xf32> to vector<2x8x8xbf16>
    %32 = vector.extract_strided_slice %27 {offsets = [0, 0, 0], sizes = [2, 8, 8], strides = [1, 1, 1]} : vector<2x8x64xf32> to vector<2x8x8xf32>
    %33 = arith.truncf %32 : vector<2x8x8xf32> to vector<2x8x8xbf16>
    %34 = vector.extract_strided_slice %29 {offsets = [0, 0, 0], sizes = [2, 8, 8], strides = [1, 1, 1]} : vector<2x8x64xf32> to vector<2x8x8xf32>
    %35 = arith.truncf %34 : vector<2x8x8xf32> to vector<2x8x8xbf16>
    "tpu.trace_start"() <{level = 10 : i32, message = "bqd,bkd->bqk"}> : () -> ()
    %cst_19 = arith.constant dense<0.000000e+00> : vector<2x8x8xf32>
    %36 = tpu.matmul %31, %33, %cst_19 {dimension_numbers = #tpu.dot_dimension_numbers<[2], [2], [1], [1], [0, 0, 0, 1, 1, 1], [0], [0]>} : vector<2x8x8xbf16>, vector<2x8x8xbf16>, vector<2x8x8xf32> -> vector<2x8x8xf32>
    "tpu.trace_stop"() : () -> ()
    %37 = vector.shape_cast %6 : vector<8x8xi1> to vector<1x8x8xi1>
    %cst_20 = arith.constant -1.000000e+30 : f32
    %38 = vector.shape_cast %37 : vector<1x8x8xi1> to vector<1x8x8xi1>
    %39 = vector.broadcast %38 : vector<1x8x8xi1> to vector<2x8x8xi1>
    %40 = vector.broadcast %cst_20 : f32 to vector<2x8x8xf32>
    %41 = arith.select %39, %40, %36 : vector<2x8x8xi1>, vector<2x8x8xf32>
    %cst_21 = arith.constant dense<0xFF800000> : vector<2x8xf32>
    %42 = vector.multi_reduction <maximumf>, %41, %cst_21 [2] : vector<2x8x8xf32> to vector<2x8xf32>
    %43 = vector.shape_cast %42 : vector<2x8xf32> to vector<2x8x1xf32>
    %44 = vector.broadcast %43 : vector<2x8x1xf32> to vector<2x8x8xf32>
    %45 = arith.subf %41, %44 : vector<2x8x8xf32>
    %46 = math.exp %45 : vector<2x8x8xf32>
    %cst_22 = arith.constant dense<0.000000e+00> : vector<2x8xf32>
    %47 = vector.multi_reduction <add>, %46, %cst_22 [2] : vector<2x8x8xf32> to vector<2x8xf32>
    %48 = vector.shape_cast %47 : vector<2x8xf32> to vector<2x8x1xf32>
    %49 = tpu.reciprocal %48 {approx = true} : vector<2x8x1xf32> -> vector<2x8x1xf32>
    %50 = vector.broadcast %49 : vector<2x8x1xf32> to vector<2x8x8xf32>
    %51 = arith.mulf %46, %50 : vector<2x8x8xf32>
    %52 = arith.truncf %51 : vector<2x8x8xf32> to vector<2x8x8xbf16>
    "tpu.trace_start"() <{level = 10 : i32, message = "bqk,bkd->bqd"}> : () -> ()
    %cst_23 = arith.constant dense<0.000000e+00> : vector<2x8x8xf32>
    %53 = tpu.matmul %52, %35, %cst_23 {dimension_numbers = #tpu.dot_dimension_numbers<[2], [1], [1], [2], [0, 0, 0, 1, 1, 2], [0], [0]>} : vector<2x8x8xbf16>, vector<2x8x8xbf16>, vector<2x8x8xf32> -> vector<2x8x8xf32>
    "tpu.trace_stop"() : () -> ()
    %54 = vector.extract_strided_slice %25 {offsets = [0, 0, 8], sizes = [2, 8, 8], strides = [1, 1, 1]} : vector<2x8x64xf32> to vector<2x8x8xf32>
    %55 = arith.truncf %54 : vector<2x8x8xf32> to vector<2x8x8xbf16>
    %56 = vector.extract_strided_slice %27 {offsets = [0, 0, 8], sizes = [2, 8, 8], strides = [1, 1, 1]} : vector<2x8x64xf32> to vector<2x8x8xf32>
    %57 = arith.truncf %56 : vector<2x8x8xf32> to vector<2x8x8xbf16>
    %58 = vector.extract_strided_slice %29 {offsets = [0, 0, 8], sizes = [2, 8, 8], strides = [1, 1, 1]} : vector<2x8x64xf32> to vector<2x8x8xf32>
    %59 = arith.truncf %58 : vector<2x8x8xf32> to vector<2x8x8xbf16>
    "tpu.trace_start"() <{level = 10 : i32, message = "bqd,bkd->bqk"}> : () -> ()
    %cst_24 = arith.constant dense<0.000000e+00> : vector<2x8x8xf32>
    %60 = tpu.matmul %55, %57, %cst_24 {dimension_numbers = #tpu.dot_dimension_numbers<[2], [2], [1], [1], [0, 0, 0, 1, 1, 1], [0], [0]>} : vector<2x8x8xbf16>, vector<2x8x8xbf16>, vector<2x8x8xf32> -> vector<2x8x8xf32>
    "tpu.trace_stop"() : () -> ()
    %61 = vector.shape_cast %6 : vector<8x8xi1> to vector<1x8x8xi1>
    %cst_25 = arith.constant -1.000000e+30 : f32
    %62 = vector.shape_cast %61 : vector<1x8x8xi1> to vector<1x8x8xi1>
    %63 = vector.broadcast %62 : vector<1x8x8xi1> to vector<2x8x8xi1>
    %64 = vector.broadcast %cst_25 : f32 to vector<2x8x8xf32>
    %65 = arith.select %63, %64, %60 : vector<2x8x8xi1>, vector<2x8x8xf32>
    %cst_26 = arith.constant dense<0xFF800000> : vector<2x8xf32>
    %66 = vector.multi_reduction <maximumf>, %65, %cst_26 [2] : vector<2x8x8xf32> to vector<2x8xf32>
    %67 = vector.shape_cast %66 : vector<2x8xf32> to vector<2x8x1xf32>
    %68 = vector.broadcast %67 : vector<2x8x1xf32> to vector<2x8x8xf32>
    %69 = arith.subf %65, %68 : vector<2x8x8xf32>
    %70 = math.exp %69 : vector<2x8x8xf32>
    %cst_27 = arith.constant dense<0.000000e+00> : vector<2x8xf32>
    %71 = vector.multi_reduction <add>, %70, %cst_27 [2] : vector<2x8x8xf32> to vector<2x8xf32>
    %72 = vector.shape_cast %71 : vector<2x8xf32> to vector<2x8x1xf32>
    %73 = tpu.reciprocal %72 {approx = true} : vector<2x8x1xf32> -> vector<2x8x1xf32>
    %74 = vector.broadcast %73 : vector<2x8x1xf32> to vector<2x8x8xf32>
    %75 = arith.mulf %70, %74 : vector<2x8x8xf32>
    %76 = arith.truncf %75 : vector<2x8x8xf32> to vector<2x8x8xbf16>
    "tpu.trace_start"() <{level = 10 : i32, message = "bqk,bkd->bqd"}> : () -> ()
    %cst_28 = arith.constant dense<0.000000e+00> : vector<2x8x8xf32>
    %77 = tpu.matmul %76, %59, %cst_28 {dimension_numbers = #tpu.dot_dimension_numbers<[2], [1], [1], [2], [0, 0, 0, 1, 1, 2], [0], [0]>} : vector<2x8x8xbf16>, vector<2x8x8xbf16>, vector<2x8x8xf32> -> vector<2x8x8xf32>
    "tpu.trace_stop"() : () -> ()
    %78 = vector.extract_strided_slice %25 {offsets = [0, 0, 16], sizes = [2, 8, 8], strides = [1, 1, 1]} : vector<2x8x64xf32> to vector<2x8x8xf32>
    %79 = arith.truncf %78 : vector<2x8x8xf32> to vector<2x8x8xbf16>
    %80 = vector.extract_strided_slice %27 {offsets = [0, 0, 16], sizes = [2, 8, 8], strides = [1, 1, 1]} : vector<2x8x64xf32> to vector<2x8x8xf32>
    %81 = arith.truncf %80 : vector<2x8x8xf32> to vector<2x8x8xbf16>
    %82 = vector.extract_strided_slice %29 {offsets = [0, 0, 16], sizes = [2, 8, 8], strides = [1, 1, 1]} : vector<2x8x64xf32> to vector<2x8x8xf32>
    %83 = arith.truncf %82 : vector<2x8x8xf32> to vector<2x8x8xbf16>
    "tpu.trace_start"() <{level = 10 : i32, message = "bqd,bkd->bqk"}> : () -> ()
    %cst_29 = arith.constant dense<0.000000e+00> : vector<2x8x8xf32>
    %84 = tpu.matmul %79, %81, %cst_29 {dimension_numbers = #tpu.dot_dimension_numbers<[2], [2], [1], [1], [0, 0, 0, 1, 1, 1], [0], [0]>} : vector<2x8x8xbf16>, vector<2x8x8xbf16>, vector<2x8x8xf32> -> vector<2x8x8xf32>
    "tpu.trace_stop"() : () -> ()
    %85 = vector.shape_cast %6 : vector<8x8xi1> to vector<1x8x8xi1>
    %cst_30 = arith.constant -1.000000e+30 : f32
    %86 = vector.shape_cast %85 : vector<1x8x8xi1> to vector<1x8x8xi1>
    %87 = vector.broadcast %86 : vector<1x8x8xi1> to vector<2x8x8xi1>
    %88 = vector.broadcast %cst_30 : f32 to vector<2x8x8xf32>
    %89 = arith.select %87, %88, %84 : vector<2x8x8xi1>, vector<2x8x8xf32>
    %cst_31 = arith.constant dense<0xFF800000> : vector<2x8xf32>
    %90 = vector.multi_reduction <maximumf>, %89, %cst_31 [2] : vector<2x8x8xf32> to vector<2x8xf32>
    %91 = vector.shape_cast %90 : vector<2x8xf32> to vector<2x8x1xf32>
    %92 = vector.broadcast %91 : vector<2x8x1xf32> to vector<2x8x8xf32>
    %93 = arith.subf %89, %92 : vector<2x8x8xf32>
    %94 = math.exp %93 : vector<2x8x8xf32>
    %cst_32 = arith.constant dense<0.000000e+00> : vector<2x8xf32>
    %95 = vector.multi_reduction <add>, %94, %cst_32 [2] : vector<2x8x8xf32> to vector<2x8xf32>
    %96 = vector.shape_cast %95 : vector<2x8xf32> to vector<2x8x1xf32>
    %97 = tpu.reciprocal %96 {approx = true} : vector<2x8x1xf32> -> vector<2x8x1xf32>
    %98 = vector.broadcast %97 : vector<2x8x1xf32> to vector<2x8x8xf32>
    %99 = arith.mulf %94, %98 : vector<2x8x8xf32>
    %100 = arith.truncf %99 : vector<2x8x8xf32> to vector<2x8x8xbf16>
    "tpu.trace_start"() <{level = 10 : i32, message = "bqk,bkd->bqd"}> : () -> ()
    %cst_33 = arith.constant dense<0.000000e+00> : vector<2x8x8xf32>
    %101 = tpu.matmul %100, %83, %cst_33 {dimension_numbers = #tpu.dot_dimension_numbers<[2], [1], [1], [2], [0, 0, 0, 1, 1, 2], [0], [0]>} : vector<2x8x8xbf16>, vector<2x8x8xbf16>, vector<2x8x8xf32> -> vector<2x8x8xf32>
    "tpu.trace_stop"() : () -> ()
    %102 = vector.extract_strided_slice %25 {offsets = [0, 0, 24], sizes = [2, 8, 8], strides = [1, 1, 1]} : vector<2x8x64xf32> to vector<2x8x8xf32>
    %103 = arith.truncf %102 : vector<2x8x8xf32> to vector<2x8x8xbf16>
    %104 = vector.extract_strided_slice %27 {offsets = [0, 0, 24], sizes = [2, 8, 8], strides = [1, 1, 1]} : vector<2x8x64xf32> to vector<2x8x8xf32>
    %105 = arith.truncf %104 : vector<2x8x8xf32> to vector<2x8x8xbf16>
    %106 = vector.extract_strided_slice %29 {offsets = [0, 0, 24], sizes = [2, 8, 8], strides = [1, 1, 1]} : vector<2x8x64xf32> to vector<2x8x8xf32>
    %107 = arith.truncf %106 : vector<2x8x8xf32> to vector<2x8x8xbf16>
    "tpu.trace_start"() <{level = 10 : i32, message = "bqd,bkd->bqk"}> : () -> ()
    %cst_34 = arith.constant dense<0.000000e+00> : vector<2x8x8xf32>
    %108 = tpu.matmul %103, %105, %cst_34 {dimension_numbers = #tpu.dot_dimension_numbers<[2], [2], [1], [1], [0, 0, 0, 1, 1, 1], [0], [0]>} : vector<2x8x8xbf16>, vector<2x8x8xbf16>, vector<2x8x8xf32> -> vector<2x8x8xf32>
    "tpu.trace_stop"() : () -> ()
    %109 = vector.shape_cast %6 : vector<8x8xi1> to vector<1x8x8xi1>
    %cst_35 = arith.constant -1.000000e+30 : f32
    %110 = vector.shape_cast %109 : vector<1x8x8xi1> to vector<1x8x8xi1>
    %111 = vector.broadcast %110 : vector<1x8x8xi1> to vector<2x8x8xi1>
    %112 = vector.broadcast %cst_35 : f32 to vector<2x8x8xf32>
    %113 = arith.select %111, %112, %108 : vector<2x8x8xi1>, vector<2x8x8xf32>
    %cst_36 = arith.constant dense<0xFF800000> : vector<2x8xf32>
    %114 = vector.multi_reduction <maximumf>, %113, %cst_36 [2] : vector<2x8x8xf32> to vector<2x8xf32>
    %115 = vector.shape_cast %114 : vector<2x8xf32> to vector<2x8x1xf32>
    %116 = vector.broadcast %115 : vector<2x8x1xf32> to vector<2x8x8xf32>
    %117 = arith.subf %113, %116 : vector<2x8x8xf32>
    %118 = math.exp %117 : vector<2x8x8xf32>
    %cst_37 = arith.constant dense<0.000000e+00> : vector<2x8xf32>
    %119 = vector.multi_reduction <add>, %118, %cst_37 [2] : vector<2x8x8xf32> to vector<2x8xf32>
    %120 = vector.shape_cast %119 : vector<2x8xf32> to vector<2x8x1xf32>
    %121 = tpu.reciprocal %120 {approx = true} : vector<2x8x1xf32> -> vector<2x8x1xf32>
    %122 = vector.broadcast %121 : vector<2x8x1xf32> to vector<2x8x8xf32>
    %123 = arith.mulf %118, %122 : vector<2x8x8xf32>
    %124 = arith.truncf %123 : vector<2x8x8xf32> to vector<2x8x8xbf16>
    "tpu.trace_start"() <{level = 10 : i32, message = "bqk,bkd->bqd"}> : () -> ()
    %cst_38 = arith.constant dense<0.000000e+00> : vector<2x8x8xf32>
    %125 = tpu.matmul %124, %107, %cst_38 {dimension_numbers = #tpu.dot_dimension_numbers<[2], [1], [1], [2], [0, 0, 0, 1, 1, 2], [0], [0]>} : vector<2x8x8xbf16>, vector<2x8x8xbf16>, vector<2x8x8xf32> -> vector<2x8x8xf32>
    "tpu.trace_stop"() : () -> ()
    %126 = vector.extract_strided_slice %25 {offsets = [0, 0, 32], sizes = [2, 8, 8], strides = [1, 1, 1]} : vector<2x8x64xf32> to vector<2x8x8xf32>
    %127 = arith.truncf %126 : vector<2x8x8xf32> to vector<2x8x8xbf16>
    %128 = vector.extract_strided_slice %27 {offsets = [0, 0, 32], sizes = [2, 8, 8], strides = [1, 1, 1]} : vector<2x8x64xf32> to vector<2x8x8xf32>
    %129 = arith.truncf %128 : vector<2x8x8xf32> to vector<2x8x8xbf16>
    %130 = vector.extract_strided_slice %29 {offsets = [0, 0, 32], sizes = [2, 8, 8], strides = [1, 1, 1]} : vector<2x8x64xf32> to vector<2x8x8xf32>
    %131 = arith.truncf %130 : vector<2x8x8xf32> to vector<2x8x8xbf16>
    "tpu.trace_start"() <{level = 10 : i32, message = "bqd,bkd->bqk"}> : () -> ()
    %cst_39 = arith.constant dense<0.000000e+00> : vector<2x8x8xf32>
    %132 = tpu.matmul %127, %129, %cst_39 {dimension_numbers = #tpu.dot_dimension_numbers<[2], [2], [1], [1], [0, 0, 0, 1, 1, 1], [0], [0]>} : vector<2x8x8xbf16>, vector<2x8x8xbf16>, vector<2x8x8xf32> -> vector<2x8x8xf32>
    "tpu.trace_stop"() : () -> ()
    %133 = vector.shape_cast %6 : vector<8x8xi1> to vector<1x8x8xi1>
    %cst_40 = arith.constant -1.000000e+30 : f32
    %134 = vector.shape_cast %133 : vector<1x8x8xi1> to vector<1x8x8xi1>
    %135 = vector.broadcast %134 : vector<1x8x8xi1> to vector<2x8x8xi1>
    %136 = vector.broadcast %cst_40 : f32 to vector<2x8x8xf32>
    %137 = arith.select %135, %136, %132 : vector<2x8x8xi1>, vector<2x8x8xf32>
    %cst_41 = arith.constant dense<0xFF800000> : vector<2x8xf32>
    %138 = vector.multi_reduction <maximumf>, %137, %cst_41 [2] : vector<2x8x8xf32> to vector<2x8xf32>
    %139 = vector.shape_cast %138 : vector<2x8xf32> to vector<2x8x1xf32>
    %140 = vector.broadcast %139 : vector<2x8x1xf32> to vector<2x8x8xf32>
    %141 = arith.subf %137, %140 : vector<2x8x8xf32>
    %142 = math.exp %141 : vector<2x8x8xf32>
    %cst_42 = arith.constant dense<0.000000e+00> : vector<2x8xf32>
    %143 = vector.multi_reduction <add>, %142, %cst_42 [2] : vector<2x8x8xf32> to vector<2x8xf32>
    %144 = vector.shape_cast %143 : vector<2x8xf32> to vector<2x8x1xf32>
    %145 = tpu.reciprocal %144 {approx = true} : vector<2x8x1xf32> -> vector<2x8x1xf32>
    %146 = vector.broadcast %145 : vector<2x8x1xf32> to vector<2x8x8xf32>
    %147 = arith.mulf %142, %146 : vector<2x8x8xf32>
    %148 = arith.truncf %147 : vector<2x8x8xf32> to vector<2x8x8xbf16>
    "tpu.trace_start"() <{level = 10 : i32, message = "bqk,bkd->bqd"}> : () -> ()
    %cst_43 = arith.constant dense<0.000000e+00> : vector<2x8x8xf32>
    %149 = tpu.matmul %148, %131, %cst_43 {dimension_numbers = #tpu.dot_dimension_numbers<[2], [1], [1], [2], [0, 0, 0, 1, 1, 2], [0], [0]>} : vector<2x8x8xbf16>, vector<2x8x8xbf16>, vector<2x8x8xf32> -> vector<2x8x8xf32>
    "tpu.trace_stop"() : () -> ()
    %150 = vector.extract_strided_slice %25 {offsets = [0, 0, 40], sizes = [2, 8, 8], strides = [1, 1, 1]} : vector<2x8x64xf32> to vector<2x8x8xf32>
    %151 = arith.truncf %150 : vector<2x8x8xf32> to vector<2x8x8xbf16>
    %152 = vector.extract_strided_slice %27 {offsets = [0, 0, 40], sizes = [2, 8, 8], strides = [1, 1, 1]} : vector<2x8x64xf32> to vector<2x8x8xf32>
    %153 = arith.truncf %152 : vector<2x8x8xf32> to vector<2x8x8xbf16>
    %154 = vector.extract_strided_slice %29 {offsets = [0, 0, 40], sizes = [2, 8, 8], strides = [1, 1, 1]} : vector<2x8x64xf32> to vector<2x8x8xf32>
    %155 = arith.truncf %154 : vector<2x8x8xf32> to vector<2x8x8xbf16>
    "tpu.trace_start"() <{level = 10 : i32, message = "bqd,bkd->bqk"}> : () -> ()
    %cst_44 = arith.constant dense<0.000000e+00> : vector<2x8x8xf32>
    %156 = tpu.matmul %151, %153, %cst_44 {dimension_numbers = #tpu.dot_dimension_numbers<[2], [2], [1], [1], [0, 0, 0, 1, 1, 1], [0], [0]>} : vector<2x8x8xbf16>, vector<2x8x8xbf16>, vector<2x8x8xf32> -> vector<2x8x8xf32>
    "tpu.trace_stop"() : () -> ()
    %157 = vector.shape_cast %6 : vector<8x8xi1> to vector<1x8x8xi1>
    %cst_45 = arith.constant -1.000000e+30 : f32
    %158 = vector.shape_cast %157 : vector<1x8x8xi1> to vector<1x8x8xi1>
    %159 = vector.broadcast %158 : vector<1x8x8xi1> to vector<2x8x8xi1>
    %160 = vector.broadcast %cst_45 : f32 to vector<2x8x8xf32>
    %161 = arith.select %159, %160, %156 : vector<2x8x8xi1>, vector<2x8x8xf32>
    %cst_46 = arith.constant dense<0xFF800000> : vector<2x8xf32>
    %162 = vector.multi_reduction <maximumf>, %161, %cst_46 [2] : vector<2x8x8xf32> to vector<2x8xf32>
    %163 = vector.shape_cast %162 : vector<2x8xf32> to vector<2x8x1xf32>
    %164 = vector.broadcast %163 : vector<2x8x1xf32> to vector<2x8x8xf32>
    %165 = arith.subf %161, %164 : vector<2x8x8xf32>
    %166 = math.exp %165 : vector<2x8x8xf32>
    %cst_47 = arith.constant dense<0.000000e+00> : vector<2x8xf32>
    %167 = vector.multi_reduction <add>, %166, %cst_47 [2] : vector<2x8x8xf32> to vector<2x8xf32>
    %168 = vector.shape_cast %167 : vector<2x8xf32> to vector<2x8x1xf32>
    %169 = tpu.reciprocal %168 {approx = true} : vector<2x8x1xf32> -> vector<2x8x1xf32>
    %170 = vector.broadcast %169 : vector<2x8x1xf32> to vector<2x8x8xf32>
    %171 = arith.mulf %166, %170 : vector<2x8x8xf32>
    %172 = arith.truncf %171 : vector<2x8x8xf32> to vector<2x8x8xbf16>
    "tpu.trace_start"() <{level = 10 : i32, message = "bqk,bkd->bqd"}> : () -> ()
    %cst_48 = arith.constant dense<0.000000e+00> : vector<2x8x8xf32>
    %173 = tpu.matmul %172, %155, %cst_48 {dimension_numbers = #tpu.dot_dimension_numbers<[2], [1], [1], [2], [0, 0, 0, 1, 1, 2], [0], [0]>} : vector<2x8x8xbf16>, vector<2x8x8xbf16>, vector<2x8x8xf32> -> vector<2x8x8xf32>
    "tpu.trace_stop"() : () -> ()
    %174 = vector.extract_strided_slice %25 {offsets = [0, 0, 48], sizes = [2, 8, 8], strides = [1, 1, 1]} : vector<2x8x64xf32> to vector<2x8x8xf32>
    %175 = arith.truncf %174 : vector<2x8x8xf32> to vector<2x8x8xbf16>
    %176 = vector.extract_strided_slice %27 {offsets = [0, 0, 48], sizes = [2, 8, 8], strides = [1, 1, 1]} : vector<2x8x64xf32> to vector<2x8x8xf32>
    %177 = arith.truncf %176 : vector<2x8x8xf32> to vector<2x8x8xbf16>
    %178 = vector.extract_strided_slice %29 {offsets = [0, 0, 48], sizes = [2, 8, 8], strides = [1, 1, 1]} : vector<2x8x64xf32> to vector<2x8x8xf32>
    %179 = arith.truncf %178 : vector<2x8x8xf32> to vector<2x8x8xbf16>
    "tpu.trace_start"() <{level = 10 : i32, message = "bqd,bkd->bqk"}> : () -> ()
    %cst_49 = arith.constant dense<0.000000e+00> : vector<2x8x8xf32>
    %180 = tpu.matmul %175, %177, %cst_49 {dimension_numbers = #tpu.dot_dimension_numbers<[2], [2], [1], [1], [0, 0, 0, 1, 1, 1], [0], [0]>} : vector<2x8x8xbf16>, vector<2x8x8xbf16>, vector<2x8x8xf32> -> vector<2x8x8xf32>
    "tpu.trace_stop"() : () -> ()
    %181 = vector.shape_cast %6 : vector<8x8xi1> to vector<1x8x8xi1>
    %cst_50 = arith.constant -1.000000e+30 : f32
    %182 = vector.shape_cast %181 : vector<1x8x8xi1> to vector<1x8x8xi1>
    %183 = vector.broadcast %182 : vector<1x8x8xi1> to vector<2x8x8xi1>
    %184 = vector.broadcast %cst_50 : f32 to vector<2x8x8xf32>
    %185 = arith.select %183, %184, %180 : vector<2x8x8xi1>, vector<2x8x8xf32>
    %cst_51 = arith.constant dense<0xFF800000> : vector<2x8xf32>
    %186 = vector.multi_reduction <maximumf>, %185, %cst_51 [2] : vector<2x8x8xf32> to vector<2x8xf32>
    %187 = vector.shape_cast %186 : vector<2x8xf32> to vector<2x8x1xf32>
    %188 = vector.broadcast %187 : vector<2x8x1xf32> to vector<2x8x8xf32>
    %189 = arith.subf %185, %188 : vector<2x8x8xf32>
    %190 = math.exp %189 : vector<2x8x8xf32>
    %cst_52 = arith.constant dense<0.000000e+00> : vector<2x8xf32>
    %191 = vector.multi_reduction <add>, %190, %cst_52 [2] : vector<2x8x8xf32> to vector<2x8xf32>
    %192 = vector.shape_cast %191 : vector<2x8xf32> to vector<2x8x1xf32>
    %193 = tpu.reciprocal %192 {approx = true} : vector<2x8x1xf32> -> vector<2x8x1xf32>
    %194 = vector.broadcast %193 : vector<2x8x1xf32> to vector<2x8x8xf32>
    %195 = arith.mulf %190, %194 : vector<2x8x8xf32>
    %196 = arith.truncf %195 : vector<2x8x8xf32> to vector<2x8x8xbf16>
    "tpu.trace_start"() <{level = 10 : i32, message = "bqk,bkd->bqd"}> : () -> ()
    %cst_53 = arith.constant dense<0.000000e+00> : vector<2x8x8xf32>
    %197 = tpu.matmul %196, %179, %cst_53 {dimension_numbers = #tpu.dot_dimension_numbers<[2], [1], [1], [2], [0, 0, 0, 1, 1, 2], [0], [0]>} : vector<2x8x8xbf16>, vector<2x8x8xbf16>, vector<2x8x8xf32> -> vector<2x8x8xf32>
    "tpu.trace_stop"() : () -> ()
    %198 = vector.extract_strided_slice %25 {offsets = [0, 0, 56], sizes = [2, 8, 8], strides = [1, 1, 1]} : vector<2x8x64xf32> to vector<2x8x8xf32>
    %199 = arith.truncf %198 : vector<2x8x8xf32> to vector<2x8x8xbf16>
    %200 = vector.extract_strided_slice %27 {offsets = [0, 0, 56], sizes = [2, 8, 8], strides = [1, 1, 1]} : vector<2x8x64xf32> to vector<2x8x8xf32>
    %201 = arith.truncf %200 : vector<2x8x8xf32> to vector<2x8x8xbf16>
    %202 = vector.extract_strided_slice %29 {offsets = [0, 0, 56], sizes = [2, 8, 8], strides = [1, 1, 1]} : vector<2x8x64xf32> to vector<2x8x8xf32>
    %203 = arith.truncf %202 : vector<2x8x8xf32> to vector<2x8x8xbf16>
    "tpu.trace_start"() <{level = 10 : i32, message = "bqd,bkd->bqk"}> : () -> ()
    %cst_54 = arith.constant dense<0.000000e+00> : vector<2x8x8xf32>
    %204 = tpu.matmul %199, %201, %cst_54 {dimension_numbers = #tpu.dot_dimension_numbers<[2], [2], [1], [1], [0, 0, 0, 1, 1, 1], [0], [0]>} : vector<2x8x8xbf16>, vector<2x8x8xbf16>, vector<2x8x8xf32> -> vector<2x8x8xf32>
    "tpu.trace_stop"() : () -> ()
    %205 = vector.shape_cast %6 : vector<8x8xi1> to vector<1x8x8xi1>
    %cst_55 = arith.constant -1.000000e+30 : f32
    %206 = vector.shape_cast %205 : vector<1x8x8xi1> to vector<1x8x8xi1>
    %207 = vector.broadcast %206 : vector<1x8x8xi1> to vector<2x8x8xi1>
    %208 = vector.broadcast %cst_55 : f32 to vector<2x8x8xf32>
    %209 = arith.select %207, %208, %204 : vector<2x8x8xi1>, vector<2x8x8xf32>
    %cst_56 = arith.constant dense<0xFF800000> : vector<2x8xf32>
    %210 = vector.multi_reduction <maximumf>, %209, %cst_56 [2] : vector<2x8x8xf32> to vector<2x8xf32>
    %211 = vector.shape_cast %210 : vector<2x8xf32> to vector<2x8x1xf32>
    %212 = vector.broadcast %211 : vector<2x8x1xf32> to vector<2x8x8xf32>
    %213 = arith.subf %209, %212 : vector<2x8x8xf32>
    %214 = math.exp %213 : vector<2x8x8xf32>
    %cst_57 = arith.constant dense<0.000000e+00> : vector<2x8xf32>
    %215 = vector.multi_reduction <add>, %214, %cst_57 [2] : vector<2x8x8xf32> to vector<2x8xf32>
    %216 = vector.shape_cast %215 : vector<2x8xf32> to vector<2x8x1xf32>
    %217 = tpu.reciprocal %216 {approx = true} : vector<2x8x1xf32> -> vector<2x8x1xf32>
    %218 = vector.broadcast %217 : vector<2x8x1xf32> to vector<2x8x8xf32>
    %219 = arith.mulf %214, %218 : vector<2x8x8xf32>
    %220 = arith.truncf %219 : vector<2x8x8xf32> to vector<2x8x8xbf16>
    "tpu.trace_start"() <{level = 10 : i32, message = "bqk,bkd->bqd"}> : () -> ()
    %cst_58 = arith.constant dense<0.000000e+00> : vector<2x8x8xf32>
    %221 = tpu.matmul %220, %203, %cst_58 {dimension_numbers = #tpu.dot_dimension_numbers<[2], [1], [1], [2], [0, 0, 0, 1, 1, 2], [0], [0]>} : vector<2x8x8xbf16>, vector<2x8x8xbf16>, vector<2x8x8xf32> -> vector<2x8x8xf32>
    "tpu.trace_stop"() : () -> ()
    %222 = tpu.concatenate %53, %77, %101, %125, %149, %173, %197, %221 in 2 : vector<2x8x8xf32>, vector<2x8x8xf32>, vector<2x8x8xf32>, vector<2x8x8xf32>, vector<2x8x8xf32>, vector<2x8x8xf32>, vector<2x8x8xf32>, vector<2x8x8xf32> -> vector<2x8x64xf32>
    %223 = vector.shape_cast %222 : vector<2x8x64xf32> to vector<16x64xf32>
    %224 = vector.extract_strided_slice %223 {offsets = [0, 0], sizes = [8, 64], strides = [1, 1]} : vector<16x64xf32> to vector<8x64xf32>
    %225 = arith.truncf %224 : vector<8x64xf32> to vector<8x64xbf16>
    %c0_59 = arith.constant 0 : index
    %c0_60 = arith.constant 0 : index
    %226 = vector.load %arg5[%c0_59, %c0_60] : memref<64x64xbf16, #tpu.memory_space<vmem>>, vector<64x64xbf16>
    %cst_61 = arith.constant dense<0.000000e+00> : vector<8x64xf32>
    %227 = tpu.matmul %225, %226, %cst_61 {dimension_numbers = #tpu.dot_dimension_numbers<[1], [0], [0], [1], [0, 0, 1, 1], [], []>} : vector<8x64xbf16>, vector<64x64xbf16>, vector<8x64xf32> -> vector<8x64xf32>
    %c0_62 = arith.constant 0 : index
    %c0_63 = arith.constant 0 : index
    %228 = vector.load %arg6[%c0_62, %c0_63] : memref<1x64xf32, #tpu.memory_space<vmem>>, vector<1x64xf32>
    %229 = vector.broadcast %228 : vector<1x64xf32> to vector<8x64xf32>
    %230 = arith.addf %227, %229 : vector<8x64xf32>
    %231 = vector.extract_strided_slice %223 {offsets = [8, 0], sizes = [8, 64], strides = [1, 1]} : vector<16x64xf32> to vector<8x64xf32>
    %232 = arith.truncf %231 : vector<8x64xf32> to vector<8x64xbf16>
    %c0_64 = arith.constant 0 : index
    %c0_65 = arith.constant 0 : index
    %233 = vector.load %arg9[%c0_64, %c0_65] : memref<64x64xbf16, #tpu.memory_space<vmem>>, vector<64x64xbf16>
    %cst_66 = arith.constant dense<0.000000e+00> : vector<8x64xf32>
    %234 = tpu.matmul %232, %233, %cst_66 {dimension_numbers = #tpu.dot_dimension_numbers<[1], [0], [0], [1], [0, 0, 1, 1], [], []>} : vector<8x64xbf16>, vector<64x64xbf16>, vector<8x64xf32> -> vector<8x64xf32>
    %c0_67 = arith.constant 0 : index
    %c0_68 = arith.constant 0 : index
    %235 = vector.load %arg10[%c0_67, %c0_68] : memref<1x64xf32, #tpu.memory_space<vmem>>, vector<1x64xf32>
    %236 = vector.broadcast %235 : vector<1x64xf32> to vector<8x64xf32>
    %237 = arith.addf %234, %236 : vector<8x64xf32>
    %238 = tpu.concatenate %230, %237 in 0 : vector<8x64xf32>, vector<8x64xf32> -> vector<16x64xf32>
    %239 = tpu.concatenate %3, %1 in 0 : vector<8x64xf32>, vector<8x64xf32> -> vector<16x64xf32>
    %c0_69 = arith.constant 0 : index
    %c0_70 = arith.constant 0 : index
    %240 = vector.load %arg17[%c0_69, %c0_70] : memref<64x64xbf16, #tpu.memory_space<vmem>>, vector<64x64xbf16>
    %c0_71 = arith.constant 0 : index
    %c0_72 = arith.constant 0 : index
    %241 = vector.load %arg18[%c0_71, %c0_72] : memref<1x64xf32, #tpu.memory_space<vmem>>, vector<1x64xf32>
    %c0_73 = arith.constant 0 : index
    %c0_74 = arith.constant 0 : index
    %242 = vector.load %arg19[%c0_73, %c0_74] : memref<64x64xbf16, #tpu.memory_space<vmem>>, vector<64x64xbf16>
    %c0_75 = arith.constant 0 : index
    %c0_76 = arith.constant 0 : index
    %243 = vector.load %arg20[%c0_75, %c0_76] : memref<1x64xf32, #tpu.memory_space<vmem>>, vector<1x64xf32>
    %244 = arith.truncf %238 : vector<16x64xf32> to vector<16x64xbf16>
    %cst_77 = arith.constant dense<0.000000e+00> : vector<16x64xf32>
    %245 = tpu.matmul %244, %240, %cst_77 {dimension_numbers = #tpu.dot_dimension_numbers<[1], [0], [0], [1], [0, 0, 1, 1], [], []>} : vector<16x64xbf16>, vector<64x64xbf16>, vector<16x64xf32> -> vector<16x64xf32>
    %246 = vector.broadcast %241 : vector<1x64xf32> to vector<16x64xf32>
    %247 = arith.addf %245, %246 : vector<16x64xf32>
    %cst_78 = arith.constant 0.000000e+00 : f32
    %248 = vector.broadcast %cst_78 : f32 to vector<16x64xf32>
    %249 = arith.maximumf %247, %248 : vector<16x64xf32>
    %250 = arith.truncf %249 : vector<16x64xf32> to vector<16x64xbf16>
    %cst_79 = arith.constant dense<0.000000e+00> : vector<16x64xf32>
    %251 = tpu.matmul %250, %242, %cst_79 {dimension_numbers = #tpu.dot_dimension_numbers<[1], [0], [0], [1], [0, 0, 1, 1], [], []>} : vector<16x64xbf16>, vector<64x64xbf16>, vector<16x64xf32> -> vector<16x64xf32>
    %252 = vector.broadcast %243 : vector<1x64xf32> to vector<16x64xf32>
    %253 = arith.addf %251, %252 : vector<16x64xf32>
    %254 = arith.addf %253, %239 : vector<16x64xf32>
    %cst_80 = arith.constant dense<0.000000e+00> : vector<16xf32>
    %255 = vector.multi_reduction <add>, %254, %cst_80 [1] : vector<16x64xf32> to vector<16xf32>
    %256 = vector.shape_cast %255 : vector<16xf32> to vector<16x1xf32>
    %cst_81 = arith.constant 6.400000e+01 : f32
    %257 = vector.broadcast %cst_81 : f32 to vector<16x1xf32>
    %258 = arith.divf %256, %257 : vector<16x1xf32>
    %259 = vector.broadcast %258 : vector<16x1xf32> to vector<16x64xf32>
    %260 = arith.subf %254, %259 : vector<16x64xf32>
    %261 = arith.mulf %260, %260 : vector<16x64xf32>
    %cst_82 = arith.constant dense<0.000000e+00> : vector<16xf32>
    %262 = vector.multi_reduction <add>, %261, %cst_82 [1] : vector<16x64xf32> to vector<16xf32>
    %263 = vector.shape_cast %262 : vector<16xf32> to vector<16x1xf32>
    %cst_83 = arith.constant 6.400000e+01 : f32
    %264 = vector.broadcast %cst_83 : f32 to vector<16x1xf32>
    %265 = arith.divf %263, %264 : vector<16x1xf32>
    %266 = vector.broadcast %258 : vector<16x1xf32> to vector<16x64xf32>
    %267 = arith.subf %254, %266 : vector<16x64xf32>
    %cst_84 = arith.constant 9.99999974E-6 : f32
    %268 = vector.broadcast %cst_84 : f32 to vector<16x1xf32>
    %269 = arith.addf %265, %268 : vector<16x1xf32>
    %270 = math.rsqrt %269 : vector<16x1xf32>
    %271 = vector.broadcast %270 : vector<16x1xf32> to vector<16x64xf32>
    %272 = arith.mulf %267, %271 : vector<16x64xf32>
    %273 = vector.broadcast %7 : vector<1x64xf32> to vector<16x64xf32>
    %274 = arith.mulf %272, %273 : vector<16x64xf32>
    %275 = vector.broadcast %8 : vector<1x64xf32> to vector<16x64xf32>
    %276 = arith.addf %274, %275 : vector<16x64xf32>
    %277 = vector.extract_strided_slice %276 {offsets = [0, 0], sizes = [8, 64], strides = [1, 1]} : vector<16x64xf32> to vector<8x64xf32>
    %278 = vector.extract_strided_slice %276 {offsets = [8, 0], sizes = [8, 64], strides = [1, 1]} : vector<16x64xf32> to vector<8x64xf32>
    %279 = arith.truncf %277 : vector<8x64xf32> to vector<8x64xbf16>
    %c0_85 = arith.constant 0 : index
    %c0_86 = arith.constant 0 : index
    %280 = vector.load %arg11[%c0_85, %c0_86] : memref<64x128xbf16, #tpu.memory_space<vmem>>, vector<64x128xbf16>
    %cst_87 = arith.constant dense<0.000000e+00> : vector<8x128xf32>
    %281 = tpu.matmul %279, %280, %cst_87 {dimension_numbers = #tpu.dot_dimension_numbers<[1], [0], [0], [1], [0, 0, 1, 1], [], []>} : vector<8x64xbf16>, vector<64x128xbf16>, vector<8x128xf32> -> vector<8x128xf32>
    %c0_88 = arith.constant 0 : index
    %c0_89 = arith.constant 0 : index
    %282 = vector.load %arg12[%c0_88, %c0_89] : memref<1x128xf32, #tpu.memory_space<vmem>>, vector<1x128xf32>
    %283 = vector.broadcast %282 : vector<1x128xf32> to vector<8x128xf32>
    %284 = arith.addf %281, %283 : vector<8x128xf32>
    %285 = arith.truncf %278 : vector<8x64xf32> to vector<8x64xbf16>
    %c0_90 = arith.constant 0 : index
    %c0_91 = arith.constant 0 : index
    %286 = vector.load %arg13[%c0_90, %c0_91] : memref<64x64xbf16, #tpu.memory_space<vmem>>, vector<64x64xbf16>
    %cst_92 = arith.constant dense<0.000000e+00> : vector<8x64xf32>
    %287 = tpu.matmul %285, %286, %cst_92 {dimension_numbers = #tpu.dot_dimension_numbers<[1], [0], [0], [1], [0, 0, 1, 1], [], []>} : vector<8x64xbf16>, vector<64x64xbf16>, vector<8x64xf32> -> vector<8x64xf32>
    %c0_93 = arith.constant 0 : index
    %c0_94 = arith.constant 0 : index
    %288 = vector.load %arg14[%c0_93, %c0_94] : memref<1x64xf32, #tpu.memory_space<vmem>>, vector<1x64xf32>
    %289 = vector.broadcast %288 : vector<1x64xf32> to vector<8x64xf32>
    %290 = arith.addf %287, %289 : vector<8x64xf32>
    %291 = vector.extract_strided_slice %284 {offsets = [0, 0], sizes = [8, 64], strides = [1, 1]} : vector<8x128xf32> to vector<8x64xf32>
    %cst_95 = arith.constant 0.353553385 : f32
    %292 = vector.broadcast %cst_95 : f32 to vector<8x64xf32>
    %293 = arith.mulf %291, %292 : vector<8x64xf32>
    %294 = vector.shape_cast %293 : vector<8x64xf32> to vector<1x8x64xf32>
    %295 = vector.extract_strided_slice %284 {offsets = [0, 64], sizes = [8, 64], strides = [1, 1]} : vector<8x128xf32> to vector<8x64xf32>
    %296 = vector.shape_cast %295 : vector<8x64xf32> to vector<1x8x64xf32>
    %297 = vector.shape_cast %290 : vector<8x64xf32> to vector<1x8x64xf32>
    %cst_96 = arith.constant 0.000000e+00 : f32
    %298 = vector.broadcast %cst_96 : f32 to vector<1x8x8xf32>
    %299 = vector.extract_strided_slice %294 {offsets = [0, 0, 0], sizes = [1, 8, 8], strides = [1, 1, 1]} : vector<1x8x64xf32> to vector<1x8x8xf32>
    %300 = arith.truncf %299 : vector<1x8x8xf32> to vector<1x8x8xbf16>
    %301 = vector.extract_strided_slice %296 {offsets = [0, 0, 0], sizes = [1, 8, 8], strides = [1, 1, 1]} : vector<1x8x64xf32> to vector<1x8x8xf32>
    %302 = arith.truncf %301 : vector<1x8x8xf32> to vector<1x8x8xbf16>
    %303 = vector.extract_strided_slice %297 {offsets = [0, 0, 0], sizes = [1, 8, 8], strides = [1, 1, 1]} : vector<1x8x64xf32> to vector<1x8x8xf32>
    %304 = arith.truncf %303 : vector<1x8x8xf32> to vector<1x8x8xbf16>
    "tpu.trace_start"() <{level = 10 : i32, message = "bqd,bkd->bqk"}> : () -> ()
    %cst_97 = arith.constant dense<0.000000e+00> : vector<1x8x8xf32>
    %305 = tpu.matmul %300, %302, %cst_97 {dimension_numbers = #tpu.dot_dimension_numbers<[2], [2], [1], [1], [0, 0, 0, 1, 1, 1], [0], [0]>} : vector<1x8x8xbf16>, vector<1x8x8xbf16>, vector<1x8x8xf32> -> vector<1x8x8xf32>
    "tpu.trace_stop"() : () -> ()
    %306 = vector.shape_cast %6 : vector<8x8xi1> to vector<1x8x8xi1>
    %cst_98 = arith.constant -1.000000e+30 : f32
    %307 = vector.broadcast %cst_98 : f32 to vector<1x8x8xf32>
    %308 = arith.select %306, %307, %305 : vector<1x8x8xi1>, vector<1x8x8xf32>
    %cst_99 = arith.constant dense<0xFF800000> : vector<1x8xf32>
    %309 = vector.multi_reduction <maximumf>, %308, %cst_99 [2] : vector<1x8x8xf32> to vector<1x8xf32>
    %310 = vector.shape_cast %309 : vector<1x8xf32> to vector<1x8x1xf32>
    %311 = vector.broadcast %310 : vector<1x8x1xf32> to vector<1x8x8xf32>
    %312 = arith.subf %308, %311 : vector<1x8x8xf32>
    %313 = math.exp %312 : vector<1x8x8xf32>
    %cst_100 = arith.constant dense<0.000000e+00> : vector<1x8xf32>
    %314 = vector.multi_reduction <add>, %313, %cst_100 [2] : vector<1x8x8xf32> to vector<1x8xf32>
    %315 = vector.shape_cast %314 : vector<1x8xf32> to vector<1x8x1xf32>
    %316 = tpu.reciprocal %315 {approx = true} : vector<1x8x1xf32> -> vector<1x8x1xf32>
    %317 = vector.broadcast %316 : vector<1x8x1xf32> to vector<1x8x8xf32>
    %318 = arith.mulf %313, %317 : vector<1x8x8xf32>
    %319 = arith.addf %298, %318 : vector<1x8x8xf32>
    %320 = arith.truncf %318 : vector<1x8x8xf32> to vector<1x8x8xbf16>
    "tpu.trace_start"() <{level = 10 : i32, message = "bqk,bkd->bqd"}> : () -> ()
    %cst_101 = arith.constant dense<0.000000e+00> : vector<1x8x8xf32>
    %321 = tpu.matmul %320, %304, %cst_101 {dimension_numbers = #tpu.dot_dimension_numbers<[2], [1], [1], [2], [0, 0, 0, 1, 1, 2], [0], [0]>} : vector<1x8x8xbf16>, vector<1x8x8xbf16>, vector<1x8x8xf32> -> vector<1x8x8xf32>
    "tpu.trace_stop"() : () -> ()
    %322 = vector.extract_strided_slice %294 {offsets = [0, 0, 8], sizes = [1, 8, 8], strides = [1, 1, 1]} : vector<1x8x64xf32> to vector<1x8x8xf32>
    %323 = arith.truncf %322 : vector<1x8x8xf32> to vector<1x8x8xbf16>
    %324 = vector.extract_strided_slice %296 {offsets = [0, 0, 8], sizes = [1, 8, 8], strides = [1, 1, 1]} : vector<1x8x64xf32> to vector<1x8x8xf32>
    %325 = arith.truncf %324 : vector<1x8x8xf32> to vector<1x8x8xbf16>
    %326 = vector.extract_strided_slice %297 {offsets = [0, 0, 8], sizes = [1, 8, 8], strides = [1, 1, 1]} : vector<1x8x64xf32> to vector<1x8x8xf32>
    %327 = arith.truncf %326 : vector<1x8x8xf32> to vector<1x8x8xbf16>
    "tpu.trace_start"() <{level = 10 : i32, message = "bqd,bkd->bqk"}> : () -> ()
    %cst_102 = arith.constant dense<0.000000e+00> : vector<1x8x8xf32>
    %328 = tpu.matmul %323, %325, %cst_102 {dimension_numbers = #tpu.dot_dimension_numbers<[2], [2], [1], [1], [0, 0, 0, 1, 1, 1], [0], [0]>} : vector<1x8x8xbf16>, vector<1x8x8xbf16>, vector<1x8x8xf32> -> vector<1x8x8xf32>
    "tpu.trace_stop"() : () -> ()
    %329 = vector.shape_cast %6 : vector<8x8xi1> to vector<1x8x8xi1>
    %cst_103 = arith.constant -1.000000e+30 : f32
    %330 = vector.broadcast %cst_103 : f32 to vector<1x8x8xf32>
    %331 = arith.select %329, %330, %328 : vector<1x8x8xi1>, vector<1x8x8xf32>
    %cst_104 = arith.constant dense<0xFF800000> : vector<1x8xf32>
    %332 = vector.multi_reduction <maximumf>, %331, %cst_104 [2] : vector<1x8x8xf32> to vector<1x8xf32>
    %333 = vector.shape_cast %332 : vector<1x8xf32> to vector<1x8x1xf32>
    %334 = vector.broadcast %333 : vector<1x8x1xf32> to vector<1x8x8xf32>
    %335 = arith.subf %331, %334 : vector<1x8x8xf32>
    %336 = math.exp %335 : vector<1x8x8xf32>
    %cst_105 = arith.constant dense<0.000000e+00> : vector<1x8xf32>
    %337 = vector.multi_reduction <add>, %336, %cst_105 [2] : vector<1x8x8xf32> to vector<1x8xf32>
    %338 = vector.shape_cast %337 : vector<1x8xf32> to vector<1x8x1xf32>
    %339 = tpu.reciprocal %338 {approx = true} : vector<1x8x1xf32> -> vector<1x8x1xf32>
    %340 = vector.broadcast %339 : vector<1x8x1xf32> to vector<1x8x8xf32>
    %341 = arith.mulf %336, %340 : vector<1x8x8xf32>
    %342 = arith.addf %319, %341 : vector<1x8x8xf32>
    %343 = arith.truncf %341 : vector<1x8x8xf32> to vector<1x8x8xbf16>
    "tpu.trace_start"() <{level = 10 : i32, message = "bqk,bkd->bqd"}> : () -> ()
    %cst_106 = arith.constant dense<0.000000e+00> : vector<1x8x8xf32>
    %344 = tpu.matmul %343, %327, %cst_106 {dimension_numbers = #tpu.dot_dimension_numbers<[2], [1], [1], [2], [0, 0, 0, 1, 1, 2], [0], [0]>} : vector<1x8x8xbf16>, vector<1x8x8xbf16>, vector<1x8x8xf32> -> vector<1x8x8xf32>
    "tpu.trace_stop"() : () -> ()
    %345 = vector.extract_strided_slice %294 {offsets = [0, 0, 16], sizes = [1, 8, 8], strides = [1, 1, 1]} : vector<1x8x64xf32> to vector<1x8x8xf32>
    %346 = arith.truncf %345 : vector<1x8x8xf32> to vector<1x8x8xbf16>
    %347 = vector.extract_strided_slice %296 {offsets = [0, 0, 16], sizes = [1, 8, 8], strides = [1, 1, 1]} : vector<1x8x64xf32> to vector<1x8x8xf32>
    %348 = arith.truncf %347 : vector<1x8x8xf32> to vector<1x8x8xbf16>
    %349 = vector.extract_strided_slice %297 {offsets = [0, 0, 16], sizes = [1, 8, 8], strides = [1, 1, 1]} : vector<1x8x64xf32> to vector<1x8x8xf32>
    %350 = arith.truncf %349 : vector<1x8x8xf32> to vector<1x8x8xbf16>
    "tpu.trace_start"() <{level = 10 : i32, message = "bqd,bkd->bqk"}> : () -> ()
    %cst_107 = arith.constant dense<0.000000e+00> : vector<1x8x8xf32>
    %351 = tpu.matmul %346, %348, %cst_107 {dimension_numbers = #tpu.dot_dimension_numbers<[2], [2], [1], [1], [0, 0, 0, 1, 1, 1], [0], [0]>} : vector<1x8x8xbf16>, vector<1x8x8xbf16>, vector<1x8x8xf32> -> vector<1x8x8xf32>
    "tpu.trace_stop"() : () -> ()
    %352 = vector.shape_cast %6 : vector<8x8xi1> to vector<1x8x8xi1>
    %cst_108 = arith.constant -1.000000e+30 : f32
    %353 = vector.broadcast %cst_108 : f32 to vector<1x8x8xf32>
    %354 = arith.select %352, %353, %351 : vector<1x8x8xi1>, vector<1x8x8xf32>
    %cst_109 = arith.constant dense<0xFF800000> : vector<1x8xf32>
    %355 = vector.multi_reduction <maximumf>, %354, %cst_109 [2] : vector<1x8x8xf32> to vector<1x8xf32>
    %356 = vector.shape_cast %355 : vector<1x8xf32> to vector<1x8x1xf32>
    %357 = vector.broadcast %356 : vector<1x8x1xf32> to vector<1x8x8xf32>
    %358 = arith.subf %354, %357 : vector<1x8x8xf32>
    %359 = math.exp %358 : vector<1x8x8xf32>
    %cst_110 = arith.constant dense<0.000000e+00> : vector<1x8xf32>
    %360 = vector.multi_reduction <add>, %359, %cst_110 [2] : vector<1x8x8xf32> to vector<1x8xf32>
    %361 = vector.shape_cast %360 : vector<1x8xf32> to vector<1x8x1xf32>
    %362 = tpu.reciprocal %361 {approx = true} : vector<1x8x1xf32> -> vector<1x8x1xf32>
    %363 = vector.broadcast %362 : vector<1x8x1xf32> to vector<1x8x8xf32>
    %364 = arith.mulf %359, %363 : vector<1x8x8xf32>
    %365 = arith.addf %342, %364 : vector<1x8x8xf32>
    %366 = arith.truncf %364 : vector<1x8x8xf32> to vector<1x8x8xbf16>
    "tpu.trace_start"() <{level = 10 : i32, message = "bqk,bkd->bqd"}> : () -> ()
    %cst_111 = arith.constant dense<0.000000e+00> : vector<1x8x8xf32>
    %367 = tpu.matmul %366, %350, %cst_111 {dimension_numbers = #tpu.dot_dimension_numbers<[2], [1], [1], [2], [0, 0, 0, 1, 1, 2], [0], [0]>} : vector<1x8x8xbf16>, vector<1x8x8xbf16>, vector<1x8x8xf32> -> vector<1x8x8xf32>
    "tpu.trace_stop"() : () -> ()
    %368 = vector.extract_strided_slice %294 {offsets = [0, 0, 24], sizes = [1, 8, 8], strides = [1, 1, 1]} : vector<1x8x64xf32> to vector<1x8x8xf32>
    %369 = arith.truncf %368 : vector<1x8x8xf32> to vector<1x8x8xbf16>
    %370 = vector.extract_strided_slice %296 {offsets = [0, 0, 24], sizes = [1, 8, 8], strides = [1, 1, 1]} : vector<1x8x64xf32> to vector<1x8x8xf32>
    %371 = arith.truncf %370 : vector<1x8x8xf32> to vector<1x8x8xbf16>
    %372 = vector.extract_strided_slice %297 {offsets = [0, 0, 24], sizes = [1, 8, 8], strides = [1, 1, 1]} : vector<1x8x64xf32> to vector<1x8x8xf32>
    %373 = arith.truncf %372 : vector<1x8x8xf32> to vector<1x8x8xbf16>
    "tpu.trace_start"() <{level = 10 : i32, message = "bqd,bkd->bqk"}> : () -> ()
    %cst_112 = arith.constant dense<0.000000e+00> : vector<1x8x8xf32>
    %374 = tpu.matmul %369, %371, %cst_112 {dimension_numbers = #tpu.dot_dimension_numbers<[2], [2], [1], [1], [0, 0, 0, 1, 1, 1], [0], [0]>} : vector<1x8x8xbf16>, vector<1x8x8xbf16>, vector<1x8x8xf32> -> vector<1x8x8xf32>
    "tpu.trace_stop"() : () -> ()
    %375 = vector.shape_cast %6 : vector<8x8xi1> to vector<1x8x8xi1>
    %cst_113 = arith.constant -1.000000e+30 : f32
    %376 = vector.broadcast %cst_113 : f32 to vector<1x8x8xf32>
    %377 = arith.select %375, %376, %374 : vector<1x8x8xi1>, vector<1x8x8xf32>
    %cst_114 = arith.constant dense<0xFF800000> : vector<1x8xf32>
    %378 = vector.multi_reduction <maximumf>, %377, %cst_114 [2] : vector<1x8x8xf32> to vector<1x8xf32>
    %379 = vector.shape_cast %378 : vector<1x8xf32> to vector<1x8x1xf32>
    %380 = vector.broadcast %379 : vector<1x8x1xf32> to vector<1x8x8xf32>
    %381 = arith.subf %377, %380 : vector<1x8x8xf32>
    %382 = math.exp %381 : vector<1x8x8xf32>
    %cst_115 = arith.constant dense<0.000000e+00> : vector<1x8xf32>
    %383 = vector.multi_reduction <add>, %382, %cst_115 [2] : vector<1x8x8xf32> to vector<1x8xf32>
    %384 = vector.shape_cast %383 : vector<1x8xf32> to vector<1x8x1xf32>
    %385 = tpu.reciprocal %384 {approx = true} : vector<1x8x1xf32> -> vector<1x8x1xf32>
    %386 = vector.broadcast %385 : vector<1x8x1xf32> to vector<1x8x8xf32>
    %387 = arith.mulf %382, %386 : vector<1x8x8xf32>
    %388 = arith.addf %365, %387 : vector<1x8x8xf32>
    %389 = arith.truncf %387 : vector<1x8x8xf32> to vector<1x8x8xbf16>
    "tpu.trace_start"() <{level = 10 : i32, message = "bqk,bkd->bqd"}> : () -> ()
    %cst_116 = arith.constant dense<0.000000e+00> : vector<1x8x8xf32>
    %390 = tpu.matmul %389, %373, %cst_116 {dimension_numbers = #tpu.dot_dimension_numbers<[2], [1], [1], [2], [0, 0, 0, 1, 1, 2], [0], [0]>} : vector<1x8x8xbf16>, vector<1x8x8xbf16>, vector<1x8x8xf32> -> vector<1x8x8xf32>
    "tpu.trace_stop"() : () -> ()
    %391 = vector.extract_strided_slice %294 {offsets = [0, 0, 32], sizes = [1, 8, 8], strides = [1, 1, 1]} : vector<1x8x64xf32> to vector<1x8x8xf32>
    %392 = arith.truncf %391 : vector<1x8x8xf32> to vector<1x8x8xbf16>
    %393 = vector.extract_strided_slice %296 {offsets = [0, 0, 32], sizes = [1, 8, 8], strides = [1, 1, 1]} : vector<1x8x64xf32> to vector<1x8x8xf32>
    %394 = arith.truncf %393 : vector<1x8x8xf32> to vector<1x8x8xbf16>
    %395 = vector.extract_strided_slice %297 {offsets = [0, 0, 32], sizes = [1, 8, 8], strides = [1, 1, 1]} : vector<1x8x64xf32> to vector<1x8x8xf32>
    %396 = arith.truncf %395 : vector<1x8x8xf32> to vector<1x8x8xbf16>
    "tpu.trace_start"() <{level = 10 : i32, message = "bqd,bkd->bqk"}> : () -> ()
    %cst_117 = arith.constant dense<0.000000e+00> : vector<1x8x8xf32>
    %397 = tpu.matmul %392, %394, %cst_117 {dimension_numbers = #tpu.dot_dimension_numbers<[2], [2], [1], [1], [0, 0, 0, 1, 1, 1], [0], [0]>} : vector<1x8x8xbf16>, vector<1x8x8xbf16>, vector<1x8x8xf32> -> vector<1x8x8xf32>
    "tpu.trace_stop"() : () -> ()
    %398 = vector.shape_cast %6 : vector<8x8xi1> to vector<1x8x8xi1>
    %cst_118 = arith.constant -1.000000e+30 : f32
    %399 = vector.broadcast %cst_118 : f32 to vector<1x8x8xf32>
    %400 = arith.select %398, %399, %397 : vector<1x8x8xi1>, vector<1x8x8xf32>
    %cst_119 = arith.constant dense<0xFF800000> : vector<1x8xf32>
    %401 = vector.multi_reduction <maximumf>, %400, %cst_119 [2] : vector<1x8x8xf32> to vector<1x8xf32>
    %402 = vector.shape_cast %401 : vector<1x8xf32> to vector<1x8x1xf32>
    %403 = vector.broadcast %402 : vector<1x8x1xf32> to vector<1x8x8xf32>
    %404 = arith.subf %400, %403 : vector<1x8x8xf32>
    %405 = math.exp %404 : vector<1x8x8xf32>
    %cst_120 = arith.constant dense<0.000000e+00> : vector<1x8xf32>
    %406 = vector.multi_reduction <add>, %405, %cst_120 [2] : vector<1x8x8xf32> to vector<1x8xf32>
    %407 = vector.shape_cast %406 : vector<1x8xf32> to vector<1x8x1xf32>
    %408 = tpu.reciprocal %407 {approx = true} : vector<1x8x1xf32> -> vector<1x8x1xf32>
    %409 = vector.broadcast %408 : vector<1x8x1xf32> to vector<1x8x8xf32>
    %410 = arith.mulf %405, %409 : vector<1x8x8xf32>
    %411 = arith.addf %388, %410 : vector<1x8x8xf32>
    %412 = arith.truncf %410 : vector<1x8x8xf32> to vector<1x8x8xbf16>
    "tpu.trace_start"() <{level = 10 : i32, message = "bqk,bkd->bqd"}> : () -> ()
    %cst_121 = arith.constant dense<0.000000e+00> : vector<1x8x8xf32>
    %413 = tpu.matmul %412, %396, %cst_121 {dimension_numbers = #tpu.dot_dimension_numbers<[2], [1], [1], [2], [0, 0, 0, 1, 1, 2], [0], [0]>} : vector<1x8x8xbf16>, vector<1x8x8xbf16>, vector<1x8x8xf32> -> vector<1x8x8xf32>
    "tpu.trace_stop"() : () -> ()
    %414 = vector.extract_strided_slice %294 {offsets = [0, 0, 40], sizes = [1, 8, 8], strides = [1, 1, 1]} : vector<1x8x64xf32> to vector<1x8x8xf32>
    %415 = arith.truncf %414 : vector<1x8x8xf32> to vector<1x8x8xbf16>
    %416 = vector.extract_strided_slice %296 {offsets = [0, 0, 40], sizes = [1, 8, 8], strides = [1, 1, 1]} : vector<1x8x64xf32> to vector<1x8x8xf32>
    %417 = arith.truncf %416 : vector<1x8x8xf32> to vector<1x8x8xbf16>
    %418 = vector.extract_strided_slice %297 {offsets = [0, 0, 40], sizes = [1, 8, 8], strides = [1, 1, 1]} : vector<1x8x64xf32> to vector<1x8x8xf32>
    %419 = arith.truncf %418 : vector<1x8x8xf32> to vector<1x8x8xbf16>
    "tpu.trace_start"() <{level = 10 : i32, message = "bqd,bkd->bqk"}> : () -> ()
    %cst_122 = arith.constant dense<0.000000e+00> : vector<1x8x8xf32>
    %420 = tpu.matmul %415, %417, %cst_122 {dimension_numbers = #tpu.dot_dimension_numbers<[2], [2], [1], [1], [0, 0, 0, 1, 1, 1], [0], [0]>} : vector<1x8x8xbf16>, vector<1x8x8xbf16>, vector<1x8x8xf32> -> vector<1x8x8xf32>
    "tpu.trace_stop"() : () -> ()
    %421 = vector.shape_cast %6 : vector<8x8xi1> to vector<1x8x8xi1>
    %cst_123 = arith.constant -1.000000e+30 : f32
    %422 = vector.broadcast %cst_123 : f32 to vector<1x8x8xf32>
    %423 = arith.select %421, %422, %420 : vector<1x8x8xi1>, vector<1x8x8xf32>
    %cst_124 = arith.constant dense<0xFF800000> : vector<1x8xf32>
    %424 = vector.multi_reduction <maximumf>, %423, %cst_124 [2] : vector<1x8x8xf32> to vector<1x8xf32>
    %425 = vector.shape_cast %424 : vector<1x8xf32> to vector<1x8x1xf32>
    %426 = vector.broadcast %425 : vector<1x8x1xf32> to vector<1x8x8xf32>
    %427 = arith.subf %423, %426 : vector<1x8x8xf32>
    %428 = math.exp %427 : vector<1x8x8xf32>
    %cst_125 = arith.constant dense<0.000000e+00> : vector<1x8xf32>
    %429 = vector.multi_reduction <add>, %428, %cst_125 [2] : vector<1x8x8xf32> to vector<1x8xf32>
    %430 = vector.shape_cast %429 : vector<1x8xf32> to vector<1x8x1xf32>
    %431 = tpu.reciprocal %430 {approx = true} : vector<1x8x1xf32> -> vector<1x8x1xf32>
    %432 = vector.broadcast %431 : vector<1x8x1xf32> to vector<1x8x8xf32>
    %433 = arith.mulf %428, %432 : vector<1x8x8xf32>
    %434 = arith.addf %411, %433 : vector<1x8x8xf32>
    %435 = arith.truncf %433 : vector<1x8x8xf32> to vector<1x8x8xbf16>
    "tpu.trace_start"() <{level = 10 : i32, message = "bqk,bkd->bqd"}> : () -> ()
    %cst_126 = arith.constant dense<0.000000e+00> : vector<1x8x8xf32>
    %436 = tpu.matmul %435, %419, %cst_126 {dimension_numbers = #tpu.dot_dimension_numbers<[2], [1], [1], [2], [0, 0, 0, 1, 1, 2], [0], [0]>} : vector<1x8x8xbf16>, vector<1x8x8xbf16>, vector<1x8x8xf32> -> vector<1x8x8xf32>
    "tpu.trace_stop"() : () -> ()
    %437 = vector.extract_strided_slice %294 {offsets = [0, 0, 48], sizes = [1, 8, 8], strides = [1, 1, 1]} : vector<1x8x64xf32> to vector<1x8x8xf32>
    %438 = arith.truncf %437 : vector<1x8x8xf32> to vector<1x8x8xbf16>
    %439 = vector.extract_strided_slice %296 {offsets = [0, 0, 48], sizes = [1, 8, 8], strides = [1, 1, 1]} : vector<1x8x64xf32> to vector<1x8x8xf32>
    %440 = arith.truncf %439 : vector<1x8x8xf32> to vector<1x8x8xbf16>
    %441 = vector.extract_strided_slice %297 {offsets = [0, 0, 48], sizes = [1, 8, 8], strides = [1, 1, 1]} : vector<1x8x64xf32> to vector<1x8x8xf32>
    %442 = arith.truncf %441 : vector<1x8x8xf32> to vector<1x8x8xbf16>
    "tpu.trace_start"() <{level = 10 : i32, message = "bqd,bkd->bqk"}> : () -> ()
    %cst_127 = arith.constant dense<0.000000e+00> : vector<1x8x8xf32>
    %443 = tpu.matmul %438, %440, %cst_127 {dimension_numbers = #tpu.dot_dimension_numbers<[2], [2], [1], [1], [0, 0, 0, 1, 1, 1], [0], [0]>} : vector<1x8x8xbf16>, vector<1x8x8xbf16>, vector<1x8x8xf32> -> vector<1x8x8xf32>
    "tpu.trace_stop"() : () -> ()
    %444 = vector.shape_cast %6 : vector<8x8xi1> to vector<1x8x8xi1>
    %cst_128 = arith.constant -1.000000e+30 : f32
    %445 = vector.broadcast %cst_128 : f32 to vector<1x8x8xf32>
    %446 = arith.select %444, %445, %443 : vector<1x8x8xi1>, vector<1x8x8xf32>
    %cst_129 = arith.constant dense<0xFF800000> : vector<1x8xf32>
    %447 = vector.multi_reduction <maximumf>, %446, %cst_129 [2] : vector<1x8x8xf32> to vector<1x8xf32>
    %448 = vector.shape_cast %447 : vector<1x8xf32> to vector<1x8x1xf32>
    %449 = vector.broadcast %448 : vector<1x8x1xf32> to vector<1x8x8xf32>
    %450 = arith.subf %446, %449 : vector<1x8x8xf32>
    %451 = math.exp %450 : vector<1x8x8xf32>
    %cst_130 = arith.constant dense<0.000000e+00> : vector<1x8xf32>
    %452 = vector.multi_reduction <add>, %451, %cst_130 [2] : vector<1x8x8xf32> to vector<1x8xf32>
    %453 = vector.shape_cast %452 : vector<1x8xf32> to vector<1x8x1xf32>
    %454 = tpu.reciprocal %453 {approx = true} : vector<1x8x1xf32> -> vector<1x8x1xf32>
    %455 = vector.broadcast %454 : vector<1x8x1xf32> to vector<1x8x8xf32>
    %456 = arith.mulf %451, %455 : vector<1x8x8xf32>
    %457 = arith.addf %434, %456 : vector<1x8x8xf32>
    %458 = arith.truncf %456 : vector<1x8x8xf32> to vector<1x8x8xbf16>
    "tpu.trace_start"() <{level = 10 : i32, message = "bqk,bkd->bqd"}> : () -> ()
    %cst_131 = arith.constant dense<0.000000e+00> : vector<1x8x8xf32>
    %459 = tpu.matmul %458, %442, %cst_131 {dimension_numbers = #tpu.dot_dimension_numbers<[2], [1], [1], [2], [0, 0, 0, 1, 1, 2], [0], [0]>} : vector<1x8x8xbf16>, vector<1x8x8xbf16>, vector<1x8x8xf32> -> vector<1x8x8xf32>
    "tpu.trace_stop"() : () -> ()
    %460 = vector.extract_strided_slice %294 {offsets = [0, 0, 56], sizes = [1, 8, 8], strides = [1, 1, 1]} : vector<1x8x64xf32> to vector<1x8x8xf32>
    %461 = arith.truncf %460 : vector<1x8x8xf32> to vector<1x8x8xbf16>
    %462 = vector.extract_strided_slice %296 {offsets = [0, 0, 56], sizes = [1, 8, 8], strides = [1, 1, 1]} : vector<1x8x64xf32> to vector<1x8x8xf32>
    %463 = arith.truncf %462 : vector<1x8x8xf32> to vector<1x8x8xbf16>
    %464 = vector.extract_strided_slice %297 {offsets = [0, 0, 56], sizes = [1, 8, 8], strides = [1, 1, 1]} : vector<1x8x64xf32> to vector<1x8x8xf32>
    %465 = arith.truncf %464 : vector<1x8x8xf32> to vector<1x8x8xbf16>
    "tpu.trace_start"() <{level = 10 : i32, message = "bqd,bkd->bqk"}> : () -> ()
    %cst_132 = arith.constant dense<0.000000e+00> : vector<1x8x8xf32>
    %466 = tpu.matmul %461, %463, %cst_132 {dimension_numbers = #tpu.dot_dimension_numbers<[2], [2], [1], [1], [0, 0, 0, 1, 1, 1], [0], [0]>} : vector<1x8x8xbf16>, vector<1x8x8xbf16>, vector<1x8x8xf32> -> vector<1x8x8xf32>
    "tpu.trace_stop"() : () -> ()
    %467 = vector.shape_cast %6 : vector<8x8xi1> to vector<1x8x8xi1>
    %cst_133 = arith.constant -1.000000e+30 : f32
    %468 = vector.broadcast %cst_133 : f32 to vector<1x8x8xf32>
    %469 = arith.select %467, %468, %466 : vector<1x8x8xi1>, vector<1x8x8xf32>
    %cst_134 = arith.constant dense<0xFF800000> : vector<1x8xf32>
    %470 = vector.multi_reduction <maximumf>, %469, %cst_134 [2] : vector<1x8x8xf32> to vector<1x8xf32>
    %471 = vector.shape_cast %470 : vector<1x8xf32> to vector<1x8x1xf32>
    %472 = vector.broadcast %471 : vector<1x8x1xf32> to vector<1x8x8xf32>
    %473 = arith.subf %469, %472 : vector<1x8x8xf32>
    %474 = math.exp %473 : vector<1x8x8xf32>
    %cst_135 = arith.constant dense<0.000000e+00> : vector<1x8xf32>
    %475 = vector.multi_reduction <add>, %474, %cst_135 [2] : vector<1x8x8xf32> to vector<1x8xf32>
    %476 = vector.shape_cast %475 : vector<1x8xf32> to vector<1x8x1xf32>
    %477 = tpu.reciprocal %476 {approx = true} : vector<1x8x1xf32> -> vector<1x8x1xf32>
    %478 = vector.broadcast %477 : vector<1x8x1xf32> to vector<1x8x8xf32>
    %479 = arith.mulf %474, %478 : vector<1x8x8xf32>
    %480 = arith.addf %457, %479 : vector<1x8x8xf32>
    %481 = arith.truncf %479 : vector<1x8x8xf32> to vector<1x8x8xbf16>
    "tpu.trace_start"() <{level = 10 : i32, message = "bqk,bkd->bqd"}> : () -> ()
    %cst_136 = arith.constant dense<0.000000e+00> : vector<1x8x8xf32>
    %482 = tpu.matmul %481, %465, %cst_136 {dimension_numbers = #tpu.dot_dimension_numbers<[2], [1], [1], [2], [0, 0, 0, 1, 1, 2], [0], [0]>} : vector<1x8x8xbf16>, vector<1x8x8xbf16>, vector<1x8x8xf32> -> vector<1x8x8xf32>
    "tpu.trace_stop"() : () -> ()
    %483 = tpu.concatenate %321, %344, %367, %390, %413, %436, %459, %482 in 2 : vector<1x8x8xf32>, vector<1x8x8xf32>, vector<1x8x8xf32>, vector<1x8x8xf32>, vector<1x8x8xf32>, vector<1x8x8xf32>, vector<1x8x8xf32>, vector<1x8x8xf32> -> vector<1x8x64xf32>
    %cst_137 = arith.constant 1.250000e-01 : f32
    %484 = vector.broadcast %cst_137 : f32 to vector<1x8x8xf32>
    %485 = arith.mulf %480, %484 : vector<1x8x8xf32>
    %486 = vector.shape_cast %483 : vector<1x8x64xf32> to vector<8x64xf32>
    %487 = arith.truncf %486 : vector<8x64xf32> to vector<8x64xbf16>
    %c0_138 = arith.constant 0 : index
    %c0_139 = arith.constant 0 : index
    %488 = vector.load %arg15[%c0_138, %c0_139] : memref<64x64xbf16, #tpu.memory_space<vmem>>, vector<64x64xbf16>
    %cst_140 = arith.constant dense<0.000000e+00> : vector<8x64xf32>
    %489 = tpu.matmul %487, %488, %cst_140 {dimension_numbers = #tpu.dot_dimension_numbers<[1], [0], [0], [1], [0, 0, 1, 1], [], []>} : vector<8x64xbf16>, vector<64x64xbf16>, vector<8x64xf32> -> vector<8x64xf32>
    %c0_141 = arith.constant 0 : index
    %c0_142 = arith.constant 0 : index
    %490 = vector.load %arg16[%c0_141, %c0_142] : memref<1x64xf32, #tpu.memory_space<vmem>>, vector<1x64xf32>
    %491 = vector.broadcast %490 : vector<1x64xf32> to vector<8x64xf32>
    %492 = arith.addf %489, %491 : vector<8x64xf32>
    %493 = arith.addf %492, %278 : vector<8x64xf32>
    %cst_143 = arith.constant dense<0.000000e+00> : vector<8xf32>
    %494 = vector.multi_reduction <add>, %493, %cst_143 [1] : vector<8x64xf32> to vector<8xf32>
    %495 = vector.shape_cast %494 : vector<8xf32> to vector<8x1xf32>
    %cst_144 = arith.constant 6.400000e+01 : f32
    %496 = vector.broadcast %cst_144 : f32 to vector<8x1xf32>
    %497 = arith.divf %495, %496 : vector<8x1xf32>
    %498 = vector.broadcast %497 : vector<8x1xf32> to vector<8x64xf32>
    %499 = arith.subf %493, %498 : vector<8x64xf32>
    %500 = arith.mulf %499, %499 : vector<8x64xf32>
    %cst_145 = arith.constant dense<0.000000e+00> : vector<8xf32>
    %501 = vector.multi_reduction <add>, %500, %cst_145 [1] : vector<8x64xf32> to vector<8xf32>
    %502 = vector.shape_cast %501 : vector<8xf32> to vector<8x1xf32>
    %cst_146 = arith.constant 6.400000e+01 : f32
    %503 = vector.broadcast %cst_146 : f32 to vector<8x1xf32>
    %504 = arith.divf %502, %503 : vector<8x1xf32>
    %505 = vector.broadcast %497 : vector<8x1xf32> to vector<8x64xf32>
    %506 = arith.subf %493, %505 : vector<8x64xf32>
    %cst_147 = arith.constant 9.99999974E-6 : f32
    %507 = vector.broadcast %cst_147 : f32 to vector<8x1xf32>
    %508 = arith.addf %504, %507 : vector<8x1xf32>
    %509 = math.rsqrt %508 : vector<8x1xf32>
    %510 = vector.broadcast %509 : vector<8x1xf32> to vector<8x64xf32>
    %511 = arith.mulf %506, %510 : vector<8x64xf32>
    %512 = vector.broadcast %7 : vector<1x64xf32> to vector<8x64xf32>
    %513 = arith.mulf %511, %512 : vector<8x64xf32>
    %514 = vector.broadcast %8 : vector<1x64xf32> to vector<8x64xf32>
    %515 = arith.addf %513, %514 : vector<8x64xf32>
    %c0_148 = arith.constant 0 : index
    %c0_149 = arith.constant 0 : index
    %516 = vector.load %arg21[%c0_148, %c0_149] : memref<64x64xbf16, #tpu.memory_space<vmem>>, vector<64x64xbf16>
    %c0_150 = arith.constant 0 : index
    %c0_151 = arith.constant 0 : index
    %517 = vector.load %arg22[%c0_150, %c0_151] : memref<1x64xf32, #tpu.memory_space<vmem>>, vector<1x64xf32>
    %c0_152 = arith.constant 0 : index
    %c0_153 = arith.constant 0 : index
    %518 = vector.load %arg23[%c0_152, %c0_153] : memref<64x64xbf16, #tpu.memory_space<vmem>>, vector<64x64xbf16>
    %c0_154 = arith.constant 0 : index
    %c0_155 = arith.constant 0 : index
    %519 = vector.load %arg24[%c0_154, %c0_155] : memref<1x64xf32, #tpu.memory_space<vmem>>, vector<1x64xf32>
    %520 = arith.truncf %515 : vector<8x64xf32> to vector<8x64xbf16>
    %cst_156 = arith.constant dense<0.000000e+00> : vector<8x64xf32>
    %521 = tpu.matmul %520, %516, %cst_156 {dimension_numbers = #tpu.dot_dimension_numbers<[1], [0], [0], [1], [0, 0, 1, 1], [], []>} : vector<8x64xbf16>, vector<64x64xbf16>, vector<8x64xf32> -> vector<8x64xf32>
    %522 = vector.broadcast %517 : vector<1x64xf32> to vector<8x64xf32>
    %523 = arith.addf %521, %522 : vector<8x64xf32>
    %cst_157 = arith.constant 0.000000e+00 : f32
    %524 = vector.broadcast %cst_157 : f32 to vector<8x64xf32>
    %525 = arith.maximumf %523, %524 : vector<8x64xf32>
    %526 = arith.truncf %525 : vector<8x64xf32> to vector<8x64xbf16>
    %cst_158 = arith.constant dense<0.000000e+00> : vector<8x64xf32>
    %527 = tpu.matmul %526, %518, %cst_158 {dimension_numbers = #tpu.dot_dimension_numbers<[1], [0], [0], [1], [0, 0, 1, 1], [], []>} : vector<8x64xbf16>, vector<64x64xbf16>, vector<8x64xf32> -> vector<8x64xf32>
    %528 = vector.broadcast %519 : vector<1x64xf32> to vector<8x64xf32>
    %529 = arith.addf %527, %528 : vector<8x64xf32>
    %530 = arith.addf %529, %515 : vector<8x64xf32>
    %cst_159 = arith.constant dense<0.000000e+00> : vector<8xf32>
    %531 = vector.multi_reduction <add>, %530, %cst_159 [1] : vector<8x64xf32> to vector<8xf32>
    %532 = vector.shape_cast %531 : vector<8xf32> to vector<8x1xf32>
    %cst_160 = arith.constant 6.400000e+01 : f32
    %533 = vector.broadcast %cst_160 : f32 to vector<8x1xf32>
    %534 = arith.divf %532, %533 : vector<8x1xf32>
    %535 = vector.broadcast %534 : vector<8x1xf32> to vector<8x64xf32>
    %536 = arith.subf %530, %535 : vector<8x64xf32>
    %537 = arith.mulf %536, %536 : vector<8x64xf32>
    %cst_161 = arith.constant dense<0.000000e+00> : vector<8xf32>
    %538 = vector.multi_reduction <add>, %537, %cst_161 [1] : vector<8x64xf32> to vector<8xf32>
    %539 = vector.shape_cast %538 : vector<8xf32> to vector<8x1xf32>
    %cst_162 = arith.constant 6.400000e+01 : f32
    %540 = vector.broadcast %cst_162 : f32 to vector<8x1xf32>
    %541 = arith.divf %539, %540 : vector<8x1xf32>
    %542 = vector.broadcast %534 : vector<8x1xf32> to vector<8x64xf32>
    %543 = arith.subf %530, %542 : vector<8x64xf32>
    %cst_163 = arith.constant 9.99999974E-6 : f32
    %544 = vector.broadcast %cst_163 : f32 to vector<8x1xf32>
    %545 = arith.addf %541, %544 : vector<8x1xf32>
    %546 = math.rsqrt %545 : vector<8x1xf32>
    %547 = vector.broadcast %546 : vector<8x1xf32> to vector<8x64xf32>
    %548 = arith.mulf %543, %547 : vector<8x64xf32>
    %549 = vector.broadcast %7 : vector<1x64xf32> to vector<8x64xf32>
    %550 = arith.mulf %548, %549 : vector<8x64xf32>
    %551 = vector.broadcast %8 : vector<1x64xf32> to vector<8x64xf32>
    %552 = arith.addf %550, %551 : vector<8x64xf32>
    %553 = vector.shape_cast %552 : vector<8x64xf32> to vector<1x8x64xf32>
    %c0_164 = arith.constant 0 : index
    %c0_165 = arith.constant 0 : index
    %554 = vector.load %arg27[%c0_164, %c0_165] : memref<1x64xf32, #tpu.memory_space<vmem>>, vector<1x64xf32>
    %555 = vector.shape_cast %554 : vector<1x64xf32> to vector<1x1x64xf32>
    %556 = vector.broadcast %555 : vector<1x1x64xf32> to vector<1x8x64xf32>
    %557 = arith.mulf %553, %556 : vector<1x8x64xf32>
    %cst_166 = arith.constant dense<0.000000e+00> : vector<1x8xf32>
    %558 = vector.multi_reduction <add>, %557, %cst_166 [2] : vector<1x8x64xf32> to vector<1x8xf32>
    %c0_167 = arith.constant 0 : index
    %c0_168 = arith.constant 0 : index
    %559 = vector.load %arg28[%c0_167, %c0_168] : memref<1x1xf32, #tpu.memory_space<vmem>>, vector<1x1xf32>
    %560 = vector.broadcast %559 : vector<1x1xf32> to vector<1x8xf32>
    %561 = arith.addf %558, %560 : vector<1x8xf32>
    %c0_169 = arith.constant 0 : index
    %c0_170 = arith.constant 0 : index
    %c0_171 = arith.constant 0 : index
    %562 = vector.load %arg29[%c0_169, %c0_170, %c0_171] : memref<1x1x8xf32, #tpu.memory_space<vmem>>, vector<1x1x8xf32>
    %563 = vector.shape_cast %562 : vector<1x1x8xf32> to vector<1x8xf32>
    %564 = vector.shape_cast %561 : vector<1x8xf32> to vector<1x1x8xf32>
    tpu.vector_store %arg29[%c0_169, %c0_170, %c0_171], %564 {strides = array<i32>} : memref<1x1x8xf32, #tpu.memory_space<vmem>>, vector<1x1x8xf32>,
    %c0_172 = arith.constant 0 : index
    %c0_173 = arith.constant 0 : index
    %c0_174 = arith.constant 0 : index
    %c0_175 = arith.constant 0 : index
    %565 = vector.load %arg30[%c0_172, %c0_173, %c0_174, %c0_175] : memref<1x1x8x8xf32, #tpu.memory_space<vmem>>, vector<1x1x8x8xf32>
    %566 = vector.shape_cast %565 : vector<1x1x8x8xf32> to vector<1x8x8xf32>
    %567 = vector.shape_cast %485 : vector<1x8x8xf32> to vector<1x1x8x8xf32>
    tpu.vector_store %arg30[%c0_172, %c0_173, %c0_174, %c0_175], %567 {strides = array<i32>} : memref<1x1x8x8xf32, #tpu.memory_space<vmem>>, vector<1x1x8x8xf32>,
    return
  }
  func.func @transform_0(%arg0: i32) -> (i32, i32, i32) {
    %c0_i32 = arith.constant 0 : i32
    %c0_i32_0 = arith.constant 0 : i32
    %c0_i32_1 = arith.constant 0 : i32
    return %arg0, %c0_i32, %c0_i32_0 : i32, i32, i32
  }
  func.func @transform_1(%arg0: i32) -> (i32, i32, i32) {
    %c0_i32 = arith.constant 0 : i32
    %c0_i32_0 = arith.constant 0 : i32
    %c0_i32_1 = arith.constant 0 : i32
    return %arg0, %c0_i32, %c0_i32_0 : i32, i32, i32
  }
  func.func @transform_2(%arg0: i32) -> (i32, i32) {
    %c0_i32 = arith.constant 0 : i32
    %c0_i32_0 = arith.constant 0 : i32
    %c0_i32_1 = arith.constant 0 : i32
    return %c0_i32, %c0_i32_0 : i32, i32
  }
  func.func @transform_3(%arg0: i32) -> (i32, i32) {
    %c0_i32 = arith.constant 0 : i32
    %c0_i32_0 = arith.constant 0 : i32
    %c0_i32_1 = arith.constant 0 : i32
    return %c0_i32, %c0_i32_0 : i32, i32
  }
  func.func @transform_4(%arg0: i32) -> (i32, i32) {
    %c0_i32 = arith.constant 0 : i32
    %c0_i32_0 = arith.constant 0 : i32
    %c0_i32_1 = arith.constant 0 : i32
    return %c0_i32, %c0_i32_0 : i32, i32
  }
  func.func @transform_5(%arg0: i32) -> (i32, i32) {
    %c0_i32 = arith.constant 0 : i32
    %c0_i32_0 = arith.constant 0 : i32
    %c0_i32_1 = arith.constant 0 : i32
    return %c0_i32, %c0_i32_0 : i32, i32
  }
  func.func @transform_6(%arg0: i32) -> (i32, i32) {
    %c0_i32 = arith.constant 0 : i32
    %c0_i32_0 = arith.constant 0 : i32
    %c0_i32_1 = arith.constant 0 : i32
    return %c0_i32, %c0_i32_0 : i32, i32
  }
  func.func @transform_7(%arg0: i32) -> (i32, i32) {
    %c0_i32 = arith.constant 0 : i32
    %c0_i32_0 = arith.constant 0 : i32
    %c0_i32_1 = arith.constant 0 : i32
    return %c0_i32, %c0_i32_0 : i32, i32
  }
  func.func @transform_8(%arg0: i32) -> (i32, i32) {
    %c0_i32 = arith.constant 0 : i32
    %c0_i32_0 = arith.constant 0 : i32
    %c0_i32_1 = arith.constant 0 : i32
    return %c0_i32, %c0_i32_0 : i32, i32
  }
  func.func @transform_9(%arg0: i32) -> (i32, i32) {
    %c0_i32 = arith.constant 0 : i32
    %c0_i32_0 = arith.constant 0 : i32
    %c0_i32_1 = arith.constant 0 : i32
    return %c0_i32, %c0_i32_0 : i32, i32
  }
  func.func @transform_10(%arg0: i32) -> (i32, i32) {
    %c0_i32 = arith.constant 0 : i32
    %c0_i32_0 = arith.constant 0 : i32
    %c0_i32_1 = arith.constant 0 : i32
    return %c0_i32, %c0_i32_0 : i32, i32
  }
  func.func @transform_11(%arg0: i32) -> (i32, i32) {
    %c0_i32 = arith.constant 0 : i32
    %c0_i32_0 = arith.constant 0 : i32
    %c0_i32_1 = arith.constant 0 : i32
    return %c0_i32, %c0_i32_0 : i32, i32
  }
  func.func @transform_12(%arg0: i32) -> (i32, i32) {
    %c0_i32 = arith.constant 0 : i32
    %c0_i32_0 = arith.constant 0 : i32
    %c0_i32_1 = arith.constant 0 : i32
    return %c0_i32, %c0_i32_0 : i32, i32
  }
  func.func @transform_13(%arg0: i32) -> (i32, i32) {
    %c0_i32 = arith.constant 0 : i32
    %c0_i32_0 = arith.constant 0 : i32
    %c0_i32_1 = arith.constant 0 : i32
    return %c0_i32, %c0_i32_0 : i32, i32
  }
  func.func @transform_14(%arg0: i32) -> (i32, i32) {
    %c0_i32 = arith.constant 0 : i32
    %c0_i32_0 = arith.constant 0 : i32
    %c0_i32_1 = arith.constant 0 : i32
    return %c0_i32, %c0_i32_0 : i32, i32
  }
  func.func @transform_15(%arg0: i32) -> (i32, i32) {
    %c0_i32 = arith.constant 0 : i32
    %c0_i32_0 = arith.constant 0 : i32
    %c0_i32_1 = arith.constant 0 : i32
    return %c0_i32, %c0_i32_0 : i32, i32
  }
  func.func @transform_16(%arg0: i32) -> (i32, i32) {
    %c0_i32 = arith.constant 0 : i32
    %c0_i32_0 = arith.constant 0 : i32
    %c0_i32_1 = arith.constant 0 : i32
    return %c0_i32, %c0_i32_0 : i32, i32
  }
  func.func @transform_17(%arg0: i32) -> (i32, i32) {
    %c0_i32 = arith.constant 0 : i32
    %c0_i32_0 = arith.constant 0 : i32
    %c0_i32_1 = arith.constant 0 : i32
    return %c0_i32, %c0_i32_0 : i32, i32
  }
  func.func @transform_18(%arg0: i32) -> (i32, i32) {
    %c0_i32 = arith.constant 0 : i32
    %c0_i32_0 = arith.constant 0 : i32
    %c0_i32_1 = arith.constant 0 : i32
    return %c0_i32, %c0_i32_0 : i32, i32
  }
  func.func @transform_19(%arg0: i32) -> (i32, i32) {
    %c0_i32 = arith.constant 0 : i32
    %c0_i32_0 = arith.constant 0 : i32
    %c0_i32_1 = arith.constant 0 : i32
    return %c0_i32, %c0_i32_0 : i32, i32
  }
  func.func @transform_20(%arg0: i32) -> (i32, i32) {
    %c0_i32 = arith.constant 0 : i32
    %c0_i32_0 = arith.constant 0 : i32
    %c0_i32_1 = arith.constant 0 : i32
    return %c0_i32, %c0_i32_0 : i32, i32
  }
  func.func @transform_21(%arg0: i32) -> (i32, i32) {
    %c0_i32 = arith.constant 0 : i32
    %c0_i32_0 = arith.constant 0 : i32
    %c0_i32_1 = arith.constant 0 : i32
    return %c0_i32, %c0_i32_0 : i32, i32
  }
  func.func @transform_22(%arg0: i32) -> (i32, i32) {
    %c0_i32 = arith.constant 0 : i32
    %c0_i32_0 = arith.constant 0 : i32
    %c0_i32_1 = arith.constant 0 : i32
    return %c0_i32, %c0_i32_0 : i32, i32
  }
  func.func @transform_23(%arg0: i32) -> (i32, i32) {
    %c0_i32 = arith.constant 0 : i32
    %c0_i32_0 = arith.constant 0 : i32
    %c0_i32_1 = arith.constant 0 : i32
    return %c0_i32, %c0_i32_0 : i32, i32
  }
  func.func @transform_24(%arg0: i32) -> (i32, i32) {
    %c0_i32 = arith.constant 0 : i32
    %c0_i32_0 = arith.constant 0 : i32
    %c0_i32_1 = arith.constant 0 : i32
    return %c0_i32, %c0_i32_0 : i32, i32
  }
  func.func @transform_25(%arg0: i32) -> (i32, i32) {
    %c0_i32 = arith.constant 0 : i32
    %c0_i32_0 = arith.constant 0 : i32
    %c0_i32_1 = arith.constant 0 : i32
    return %c0_i32, %c0_i32_0 : i32, i32
  }
  func.func @transform_26(%arg0: i32) -> (i32, i32) {
    %c0_i32 = arith.constant 0 : i32
    %c0_i32_0 = arith.constant 0 : i32
    %c0_i32_1 = arith.constant 0 : i32
    return %c0_i32, %c0_i32_0 : i32, i32
  }
  func.func @transform_27(%arg0: i32) -> (i32, i32) {
    %c0_i32 = arith.constant 0 : i32
    %c0_i32_0 = arith.constant 0 : i32
    %c0_i32_1 = arith.constant 0 : i32
    return %c0_i32, %c0_i32_0 : i32, i32
  }
  func.func @transform_28(%arg0: i32) -> (i32, i32, i32) {
    %c0_i32 = arith.constant 0 : i32
    %c0_i32_0 = arith.constant 0 : i32
    %c0_i32_1 = arith.constant 0 : i32
    return %arg0, %c0_i32, %c0_i32_0 : i32, i32, i32
  }
  func.func @transform_29(%arg0: i32) -> (i32, i32, i32, i32) {
    %c0_i32 = arith.constant 0 : i32
    %c0_i32_0 = arith.constant 0 : i32
    %c0_i32_1 = arith.constant 0 : i32
    %c0_i32_2 = arith.constant 0 : i32
    return %arg0, %c0_i32, %c0_i32_0, %c0_i32_1 : i32, i32, i32, i32
  }
}

</mosaic_0001>

<llo_original>
// kernel: tpu_custom_call.1
$region0: #{tpu_custom_call.1}
  #allocation0 [shape = 'u32[]', space=smem, size = 0x4, offset = 0x4, fixed_abs, tag = 'smem constant byte address 0x4 - core index']
  #allocation1 [shape = 'u32[144,128]{1,0:T(1,128)}', space=vmem, size = 0x12000, scoped, tag = 'internal scratch']
  #allocation2 [shape = 'f32[1,1]{1,0:T(1,128)S(1)}', space=vmem, size = 0x200, scoped, tag = 'scoped memory for tpu_custom_call.1']
  %s0 = inlined_call_operand.smem [shape: u32[30], index: -1, kind: input, shape index: {}]
  %s1 = sld [smem:[%s0]]
  %s2 = scalar_lea.smem %s0, 1
  %s3 = sld [smem:[%s2]]
  %s4 = scalar_lea.smem %s0, 2
  %s5 = sld [smem:[%s4]]
  %s6 = scalar_lea.smem %s0, 3
  %s7 = sld [smem:[%s6]]
  %s8 = scalar_lea.smem %s0, 4
  %s9 = sld [smem:[%s8]]
  %s10 = scalar_lea.smem %s0, 5
  %s11 = sld [smem:[%s10]]
  %s12 = scalar_lea.smem %s0, 6
  %s13 = sld [smem:[%s12]]
  %s14 = scalar_lea.smem %s0, 7
  %s15 = sld [smem:[%s14]]
  %s16 = scalar_lea.smem %s0, 8
  %s17 = sld [smem:[%s16]]
  %s18 = scalar_lea.smem %s0, 9
  %s19 = sld [smem:[%s18]]
  %s20 = scalar_lea.smem %s0, 10
  %s21 = sld [smem:[%s20]]
  %s22 = scalar_lea.smem %s0, 11
  %s23 = sld [smem:[%s22]]
  %s24 = scalar_lea.smem %s0, 12
  %s25 = sld [smem:[%s24]]
  %s26 = scalar_lea.smem %s0, 13
  %s27 = sld [smem:[%s26]]
  %s28 = scalar_lea.smem %s0, 14
  %s29 = sld [smem:[%s28]]
  %s30 = scalar_lea.smem %s0, 15
  %s31 = sld [smem:[%s30]]
  %s32 = scalar_lea.smem %s0, 16
  %s33 = sld [smem:[%s32]]
  %s34 = scalar_lea.smem %s0, 17
  %s35 = sld [smem:[%s34]]
  %s36 = scalar_lea.smem %s0, 18
  %s37 = sld [smem:[%s36]]
  %s38 = scalar_lea.smem %s0, 19
  %s39 = sld [smem:[%s38]]
  %s40 = scalar_lea.smem %s0, 20
  %s41 = sld [smem:[%s40]]
  %s42 = scalar_lea.smem %s0, 21
  %s43 = sld [smem:[%s42]]
  %s44 = scalar_lea.smem %s0, 22
  %s45 = sld [smem:[%s44]]
  %s46 = scalar_lea.smem %s0, 23
  %s47 = sld [smem:[%s46]]
  %s48 = scalar_lea.smem %s0, 24
  %s49 = sld [smem:[%s48]]
  %s50 = scalar_lea.smem %s0, 25
  %s51 = sld [smem:[%s50]]
  %s52 = scalar_lea.smem %s0, 26
  %s53 = sld [smem:[%s52]]
  %s54 = scalar_lea.smem %s0, 27
  %s55 = sld [smem:[%s54]]
  %s56 = scalar_lea.smem %s0, 28
  %s57 = sld [smem:[%s56]]
  %s58 = scalar_lea.smem %s0, 29
  %s59 = sld [smem:[%s58]]
  %60 = xla_tuple %s57, %s59
  %s61 = sld [smem:[#allocation0]]
  $region229: #{tpu_custom_call.1} parent=0
    _
  %s63 = ssub.s32 1, %s61
  %s64 = scalar_select 0, %s63, %s61
  %v65 = vstv %s55
  %66 = vst [vmem:[#allocation2] sm:$0x1] %v65
  $region1: #{tpu_custom_call.1} parent=0
    #allocation3 [shape = 'u8[8192]{0}', space=vmem, size = 0x2000, scoped, tag = 'input window, operand 0']
    #allocation4 [shape = 's32[2]{0}', space=sflag, size = 0x8, scoped, tag = 'scoped memory for tpu_custom_call.1']
    #allocation5 [shape = 's32[2]{0}', space=sflag, size = 0x8, scoped, tag = 'scoped memory for tpu_custom_call.1']
    #allocation6 [shape = 'u8[8192]{0}', space=vmem, size = 0x2000, scoped, tag = 'input window, operand 1']
    #allocation7 [shape = 's32[2]{0}', space=sflag, size = 0x8, scoped, tag = 'scoped memory for tpu_custom_call.1']
    #allocation8 [shape = 'u8[32768]{0}', space=vmem, size = 0x8000, scoped, tag = 'input window, operand 2, single buffered']
    #allocation9 [shape = 'u8[16384]{0}', space=vmem, size = 0x4000, scoped, tag = 'input window, operand 4, single buffered']
    #allocation10 [shape = 's32[1]{0}', space=sflag, size = 0x4, scoped, tag = 'scoped memory for tpu_custom_call.1']
    #allocation11 [shape = 'u8[512]{0}', space=vmem, size = 0x400, scoped, tag = 'input window, operand 5, single buffered']
    #allocation12 [shape = 'u8[32768]{0}', space=vmem, size = 0x8000, scoped, tag = 'input window, operand 6, single buffered']
    #allocation13 [shape = 's32[1]{0}', space=sflag, size = 0x4, scoped, tag = 'scoped memory for tpu_custom_call.1']
    #allocation14 [shape = 'u8[1024]{0}', space=vmem, size = 0x400, scoped, tag = 'input window, operand 7, single buffered']
    #allocation15 [shape = 'u8[16384]{0}', space=vmem, size = 0x4000, scoped, tag = 'input window, operand 8, single buffered']
    #allocation16 [shape = 's32[1]{0}', space=sflag, size = 0x4, scoped, tag = 'scoped memory for tpu_custom_call.1']
    #allocation17 [shape = 'u8[512]{0}', space=vmem, size = 0x400, scoped, tag = 'input window, operand 9, single buffered']
    #allocation18 [shape = 'u8[16384]{0}', space=vmem, size = 0x4000, scoped, tag = 'input window, operand 10, single buffered']
    #allocation19 [shape = 's32[1]{0}', space=sflag, size = 0x4, scoped, tag = 'scoped memory for tpu_custom_call.1']
    #allocation20 [shape = 'u8[512]{0}', space=vmem, size = 0x400, scoped, tag = 'input window, operand 11, single buffered']
    #allocation21 [shape = 'u8[16384]{0}', space=vmem, size = 0x4000, scoped, tag = 'input window, operand 12, single buffered']
    #allocation22 [shape = 's32[1]{0}', space=sflag, size = 0x4, scoped, tag = 'scoped memory for tpu_custom_call.1']
    #allocation23 [shape = 'u8[512]{0}', space=vmem, size = 0x400, scoped, tag = 'input window, operand 13, single buffered']
    #allocation24 [shape = 'u8[16384]{0}', space=vmem, size = 0x4000, scoped, tag = 'input window, operand 14, single buffered']
    #allocation25 [shape = 's32[1]{0}', space=sflag, size = 0x4, scoped, tag = 'scoped memory for tpu_custom_call.1']
    #allocation26 [shape = 'u8[512]{0}', space=vmem, size = 0x400, scoped, tag = 'input window, operand 15, single buffered']
    #allocation27 [shape = 'u8[16384]{0}', space=vmem, size = 0x4000, scoped, tag = 'input window, operand 16, single buffered']
    #allocation28 [shape = 's32[1]{0}', space=sflag, size = 0x4, scoped, tag = 'scoped memory for tpu_custom_call.1']
    #allocation29 [shape = 'u8[512]{0}', space=vmem, size = 0x400, scoped, tag = 'input window, operand 17, single buffered']
    #allocation30 [shape = 'u8[16384]{0}', space=vmem, size = 0x4000, scoped, tag = 'input window, operand 20, single buffered']
    #allocation31 [shape = 's32[1]{0}', space=sflag, size = 0x4, scoped, tag = 'scoped memory for tpu_custom_call.1']
    #allocation32 [shape = 'u8[16384]{0}', space=vmem, size = 0x4000, scoped, tag = 'input window, operand 22, single buffered']
    #allocation33 [shape = 'u8[1024]{0}', space=vmem, size = 0x400, scoped, tag = 'output window, operand 0']
    #allocation34 [shape = 'u8[8192]{0}', space=vmem, size = 0x2000, scoped, tag = 'output window, operand 1']
    #allocation35 [shape = 's32[2]{0}', space=sflag, size = 0x8, scoped, tag = 'scoped memory for tpu_custom_call.1']
    %67 = vsyncpa [#allocation4], 0
    %s68 = scalar_lea.sflag [#allocation4], 1
    %69 = vsyncpa %s68, 0
    %70 = vsyncpa [#allocation7], 0
    %s71 = scalar_lea.sflag [#allocation7], 1
    %72 = vsyncpa %s71, 0
    %73 = vsyncpa [#allocation10], 0
    %74 = vsyncpa [#allocation13], 0
    %75 = vsyncpa [#allocation16], 0
    %76 = vsyncpa [#allocation19], 0
    %77 = vsyncpa [#allocation22], 0
    %78 = vsyncpa [#allocation25], 0
    %79 = vsyncpa [#allocation28], 0
    %80 = vsyncpa [#allocation31], 0
    %81 = vsyncpa [#allocation5], 0
    %s82 = scalar_lea.sflag [#allocation5], 1
    %83 = vsyncpa %s82, 0
    %84 = vsyncpa [#allocation35], 0
    %s85 = scalar_lea.sflag [#allocation35], 1
    %86 = vsyncpa %s85, 0
    loop: start=0, step=1, limit=4
    $region2: #{tpu_custom_call.1} parent=1 // loop_pre_header
      _
    $region3: #{tpu_custom_call.1} parent=1 // loop_header
      %s88 = sphi 0, %s92
      %p89 = scmp.ge.s32.totalorder %s88, 4
      %s98 = sphi 0, %s100
      %s101 = sphi 0, %s98
      %s102 = sphi 0, %s101
      %s118 = sphi 0, %s102
      %s124 = sphi 0, %s126
      %s127 = sphi 0, %s124
      %s128 = sphi 0, %s127
      %s144 = sphi 0, %s128
      %s148 = sphi 0, %s148
      %s150 = sphi 0, %s148
      %s151 = sphi 0, %s150
      %s165 = sphi 0, %s151
      %s169 = sphi 0, %s169
      %s171 = sphi 0, %s169
      %s172 = sphi 0, %s171
      %s186 = sphi 0, %s172
      %s190 = sphi 0, %s190
      %s192 = sphi 0, %s190
      %s193 = sphi 0, %s192
      %s207 = sphi 0, %s193
      %s211 = sphi 0, %s211
      %s213 = sphi 0, %s211
      %s214 = sphi 0, %s213
      %s228 = sphi 0, %s214
      %s232 = sphi 0, %s232
      %s234 = sphi 0, %s232
      %s235 = sphi 0, %s234
      %s249 = sphi 0, %s235
      %s253 = sphi 0, %s253
      %s255 = sphi 0, %s253
      %s256 = sphi 0, %s255
      %s270 = sphi 0, %s256
      %s274 = sphi 0, %s274
      %s276 = sphi 0, %s274
      %s277 = sphi 0, %s276
      %s291 = sphi 0, %s277
      %s295 = sphi 0, %s295
      %s297 = sphi 0, %s295
      %s298 = sphi 0, %s297
      %s312 = sphi 0, %s298
      %s316 = sphi 0, %s316
      %s318 = sphi 0, %s316
      %s319 = sphi 0, %s318
      %s333 = sphi 0, %s319
      %s337 = sphi 0, %s337
      %s339 = sphi 0, %s337
      %s340 = sphi 0, %s339
      %s354 = sphi 0, %s340
      %s358 = sphi 0, %s358
      %s360 = sphi 0, %s358
      %s361 = sphi 0, %s360
      %s375 = sphi 0, %s361
      %s379 = sphi 0, %s379
      %s381 = sphi 0, %s379
      %s382 = sphi 0, %s381
      %s396 = sphi 0, %s382
      %s400 = sphi 0, %s400
      %s402 = sphi 0, %s400
      %s403 = sphi 0, %s402
      %s417 = sphi 0, %s403
      %s421 = sphi 0, %s421
      %s423 = sphi 0, %s421
      %s424 = sphi 0, %s423
      %s438 = sphi 0, %s424
      %s442 = sphi 0, %s442
      %s444 = sphi 0, %s442
      %s445 = sphi 0, %s444
      %s459 = sphi 0, %s445
      %s463 = sphi 0, %s463
      %s465 = sphi 0, %s463
      %s466 = sphi 0, %s465
      %s480 = sphi 0, %s466
      %s484 = sphi 0, %s484
      %s486 = sphi 0, %s484
      %s487 = sphi 0, %s486
      %s501 = sphi 0, %s487
      %s505 = sphi 0, %s505
      %s507 = sphi 0, %s505
      %s508 = sphi 0, %s507
      %s522 = sphi 0, %s508
      %s526 = sphi 0, %s526
      %s528 = sphi 0, %s526
      %s529 = sphi 0, %s528
      %s543 = sphi 0, %s529
      %s547 = sphi 0, %s547
      %s549 = sphi 0, %s547
      %s550 = sphi 0, %s549
      %s564 = sphi 0, %s550
      %s568 = sphi 0, %s568
      %s570 = sphi 0, %s568
      %s571 = sphi 0, %s570
      %s585 = sphi 0, %s571
      %s589 = sphi 0, %s589
      %s591 = sphi 0, %s589
      %s592 = sphi 0, %s591
      %s606 = sphi 0, %s592
      %s610 = sphi 0, %s610
      %s612 = sphi 0, %s610
      %s613 = sphi 0, %s612
      %s627 = sphi 0, %s613
      %s631 = sphi 0, %s631
      %s633 = sphi 0, %s631
      %s634 = sphi 0, %s633
      %s648 = sphi 0, %s634
      %s652 = sphi 0, %s652
      %s654 = sphi 0, %s652
      %s655 = sphi 0, %s654
      %s669 = sphi 0, %s655
      %s673 = sphi 0, %s673
      %s675 = sphi 0, %s673
      %s676 = sphi 0, %s675
      %s690 = sphi 0, %s676
      %s696 = sphi 0, %s698
      %s699 = sphi 0, %s696
      %s700 = sphi 0, %s699
      %s716 = sphi 0, %s700
      %s722 = sphi 0, %s724
      %s725 = sphi 0, %s722
      %s726 = sphi 0, %s725
      %s742 = sphi 0, %s726
    $region4: #{tpu_custom_call.1} parent=1 // loop_header_branch
      %91 = sbr.rel (%p89) target = $region8
    $region5: #{tpu_custom_call.1} parent=1 // loop_body
      %s93 = ssub.s32 %s88, 1
      %s94 = ssub.s32 %s88, 2
      %s95 = sadd.s32 %s88, 1
      %s96 = ssub.s32 %s88, %s95
      %p97 = scmp.eq.s32.totalorder %s96, 0
      %s99 = sadd.s32 %s98, 1
      %s100 = scalar_select %p97, %s98, %s99
      %p103 = pneg %p97
      %p104 = scmp.eq.s32.totalorder %s88, 1
      %p105 = por %p103, %p104
      %p106 = scmp.ne.s32.totalorder %s98, %s101
      %p107 = scmp.eq.s32.totalorder %s88, 0
      %p108 = por %p106, %p107
      %p109 = scmp.ne.s32.totalorder %s98, %s101
      %p110 = scmp.eq.s32.totalorder %s93, 1
      %p111 = por %p109, %p110
      %p112 = scmp.ne.s32.totalorder %s101, %s102
      %p113 = scmp.eq.s32.totalorder %s93, 0
      %p114 = por %p112, %p113
      %p115 = scmp.ne.s32.totalorder %s101, %s102
      %p116 = scmp.eq.s32.totalorder %s94, 1
      %p117 = por %p115, %p116
      %p119 = scmp.ne.s32.totalorder %s102, %s118
      %p120 = scmp.eq.s32.totalorder %s94, 0
      %p121 = por %p119, %p120
      %s122 = ssub.s32 %s88, %s95
      %p123 = scmp.eq.s32.totalorder %s122, 0
      %s125 = sadd.s32 %s124, 1
      %s126 = scalar_select %p123, %s124, %s125
      %p129 = pneg %p123
      %p130 = scmp.eq.s32.totalorder %s88, 1
      %p131 = por %p129, %p130
      %p132 = scmp.ne.s32.totalorder %s124, %s127
      %p133 = scmp.eq.s32.totalorder %s88, 0
      %p134 = por %p132, %p133
      %p135 = scmp.ne.s32.totalorder %s124, %s127
      %p136 = scmp.eq.s32.totalorder %s93, 1
      %p137 = por %p135, %p136
      %p138 = scmp.ne.s32.totalorder %s127, %s128
      %p139 = scmp.eq.s32.totalorder %s93, 0
      %p140 = por %p138, %p139
      %p141 = scmp.ne.s32.totalorder %s127, %s128
      %p142 = scmp.eq.s32.totalorder %s94, 1
      %p143 = por %p141, %p142
      %p145 = scmp.ne.s32.totalorder %s128, %s144
      %p146 = scmp.eq.s32.totalorder %s94, 0
      %p147 = por %p145, %p146
      %s149 = sadd.s32 %s148, 1
      %p152 = scmp.eq.s32.totalorder %s88, 1
      %p153 = scmp.ne.s32.totalorder %s148, %s150
      %p154 = scmp.eq.s32.totalorder %s88, 0
      %p155 = por %p153, %p154
      %p156 = scmp.ne.s32.totalorder %s148, %s150
      %p157 = scmp.eq.s32.totalorder %s93, 1
      %p158 = por %p156, %p157
      %p159 = scmp.ne.s32.totalorder %s150, %s151
      %p160 = scmp.eq.s32.totalorder %s93, 0
      %p161 = por %p159, %p160
      %p162 = scmp.ne.s32.totalorder %s150, %s151
      %p163 = scmp.eq.s32.totalorder %s94, 1
      %p164 = por %p162, %p163
      %p166 = scmp.ne.s32.totalorder %s151, %s165
      %p167 = scmp.eq.s32.totalorder %s94, 0
      %p168 = por %p166, %p167
      %s170 = sadd.s32 %s169, 1
      %p173 = scmp.eq.s32.totalorder %s88, 1
      %p174 = scmp.ne.s32.totalorder %s169, %s171
      %p175 = scmp.eq.s32.totalorder %s88, 0
      %p176 = por %p174, %p175
      %p177 = scmp.ne.s32.totalorder %s169, %s171
      %p178 = scmp.eq.s32.totalorder %s93, 1
      %p179 = por %p177, %p178
      %p180 = scmp.ne.s32.totalorder %s171, %s172
      %p181 = scmp.eq.s32.totalorder %s93, 0
      %p182 = por %p180, %p181
      %p183 = scmp.ne.s32.totalorder %s171, %s172
      %p184 = scmp.eq.s32.totalorder %s94, 1
      %p185 = por %p183, %p184
      %p187 = scmp.ne.s32.totalorder %s172, %s186
      %p188 = scmp.eq.s32.totalorder %s94, 0
      %p189 = por %p187, %p188
      %s191 = sadd.s32 %s190, 1
      %p194 = scmp.eq.s32.totalorder %s88, 1
      %p195 = scmp.ne.s32.totalorder %s190, %s192
      %p196 = scmp.eq.s32.totalorder %s88, 0
      %p197 = por %p195, %p196
      %p198 = scmp.ne.s32.totalorder %s190, %s192
      %p199 = scmp.eq.s32.totalorder %s93, 1
      %p200 = por %p198, %p199
      %p201 = scmp.ne.s32.totalorder %s192, %s193
      %p202 = scmp.eq.s32.totalorder %s93, 0
      %p203 = por %p201, %p202
      %p204 = scmp.ne.s32.totalorder %s192, %s193
      %p205 = scmp.eq.s32.totalorder %s94, 1
      %p206 = por %p204, %p205
      %p208 = scmp.ne.s32.totalorder %s193, %s207
      %p209 = scmp.eq.s32.totalorder %s94, 0
      %p210 = por %p208, %p209
      %s212 = sadd.s32 %s211, 1
      %p215 = scmp.eq.s32.totalorder %s88, 1
      %p216 = scmp.ne.s32.totalorder %s211, %s213
      %p217 = scmp.eq.s32.totalorder %s88, 0
      %p218 = por %p216, %p217
      %p219 = scmp.ne.s32.totalorder %s211, %s213
      %p220 = scmp.eq.s32.totalorder %s93, 1
      %p221 = por %p219, %p220
      %p222 = scmp.ne.s32.totalorder %s213, %s214
      %p223 = scmp.eq.s32.totalorder %s93, 0
      %p224 = por %p222, %p223
      %p225 = scmp.ne.s32.totalorder %s213, %s214
      %p226 = scmp.eq.s32.totalorder %s94, 1
      %p227 = por %p225, %p226
      %p229 = scmp.ne.s32.totalorder %s214, %s228
      %p230 = scmp.eq.s32.totalorder %s94, 0
      %p231 = por %p229, %p230
      %s233 = sadd.s32 %s232, 1
      %p236 = scmp.eq.s32.totalorder %s88, 1
      %p237 = scmp.ne.s32.totalorder %s232, %s234
      %p238 = scmp.eq.s32.totalorder %s88, 0
      %p239 = por %p237, %p238
      %p240 = scmp.ne.s32.totalorder %s232, %s234
      %p241 = scmp.eq.s32.totalorder %s93, 1
      %p242 = por %p240, %p241
      %p243 = scmp.ne.s32.totalorder %s234, %s235
      %p244 = scmp.eq.s32.totalorder %s93, 0
      %p245 = por %p243, %p244
      %p246 = scmp.ne.s32.totalorder %s234, %s235
      %p247 = scmp.eq.s32.totalorder %s94, 1
      %p248 = por %p246, %p247
      %p250 = scmp.ne.s32.totalorder %s235, %s249
      %p251 = scmp.eq.s32.totalorder %s94, 0
      %p252 = por %p250, %p251
      %s254 = sadd.s32 %s253, 1
      %p257 = scmp.eq.s32.totalorder %s88, 1
      %p258 = scmp.ne.s32.totalorder %s253, %s255
      %p259 = scmp.eq.s32.totalorder %s88, 0
      %p260 = por %p258, %p259
      %p261 = scmp.ne.s32.totalorder %s253, %s255
      %p262 = scmp.eq.s32.totalorder %s93, 1
      %p263 = por %p261, %p262
      %p264 = scmp.ne.s32.totalorder %s255, %s256
      %p265 = scmp.eq.s32.totalorder %s93, 0
      %p266 = por %p264, %p265
      %p267 = scmp.ne.s32.totalorder %s255, %s256
      %p268 = scmp.eq.s32.totalorder %s94, 1
      %p269 = por %p267, %p268
      %p271 = scmp.ne.s32.totalorder %s256, %s270
      %p272 = scmp.eq.s32.totalorder %s94, 0
      %p273 = por %p271, %p272
      %s275 = sadd.s32 %s274, 1
      %p278 = scmp.eq.s32.totalorder %s88, 1
      %p279 = scmp.ne.s32.totalorder %s274, %s276
      %p280 = scmp.eq.s32.totalorder %s88, 0
      %p281 = por %p279, %p280
      %p282 = scmp.ne.s32.totalorder %s274, %s276
      %p283 = scmp.eq.s32.totalorder %s93, 1
      %p284 = por %p282, %p283
      %p285 = scmp.ne.s32.totalorder %s276, %s277
      %p286 = scmp.eq.s32.totalorder %s93, 0
      %p287 = por %p285, %p286
      %p288 = scmp.ne.s32.totalorder %s276, %s277
      %p289 = scmp.eq.s32.totalorder %s94, 1
      %p290 = por %p288, %p289
      %p292 = scmp.ne.s32.totalorder %s277, %s291
      %p293 = scmp.eq.s32.totalorder %s94, 0
      %p294 = por %p292, %p293
      %s296 = sadd.s32 %s295, 1
      %p299 = scmp.eq.s32.totalorder %s88, 1
      %p300 = scmp.ne.s32.totalorder %s295, %s297
      %p301 = scmp.eq.s32.totalorder %s88, 0
      %p302 = por %p300, %p301
      %p303 = scmp.ne.s32.totalorder %s295, %s297
      %p304 = scmp.eq.s32.totalorder %s93, 1
      %p305 = por %p303, %p304
      %p306 = scmp.ne.s32.totalorder %s297, %s298
      %p307 = scmp.eq.s32.totalorder %s93, 0
      %p308 = por %p306, %p307
      %p309 = scmp.ne.s32.totalorder %s297, %s298
      %p310 = scmp.eq.s32.totalorder %s94, 1
      %p311 = por %p309, %p310
      %p313 = scmp.ne.s32.totalorder %s298, %s312
      %p314 = scmp.eq.s32.totalorder %s94, 0
      %p315 = por %p313, %p314
      %s317 = sadd.s32 %s316, 1
      %p320 = scmp.eq.s32.totalorder %s88, 1
      %p321 = scmp.ne.s32.totalorder %s316, %s318
      %p322 = scmp.eq.s32.totalorder %s88, 0
      %p323 = por %p321, %p322
      %p324 = scmp.ne.s32.totalorder %s316, %s318
      %p325 = scmp.eq.s32.totalorder %s93, 1
      %p326 = por %p324, %p325
      %p327 = scmp.ne.s32.totalorder %s318, %s319
      %p328 = scmp.eq.s32.totalorder %s93, 0
      %p329 = por %p327, %p328
      %p330 = scmp.ne.s32.totalorder %s318, %s319
      %p331 = scmp.eq.s32.totalorder %s94, 1
      %p332 = por %p330, %p331
      %p334 = scmp.ne.s32.totalorder %s319, %s333
      %p335 = scmp.eq.s32.totalorder %s94, 0
      %p336 = por %p334, %p335
      %s338 = sadd.s32 %s337, 1
      %p341 = scmp.eq.s32.totalorder %s88, 1
      %p342 = scmp.ne.s32.totalorder %s337, %s339
      %p343 = scmp.eq.s32.totalorder %s88, 0
      %p344 = por %p342, %p343
      %p345 = scmp.ne.s32.totalorder %s337, %s339
      %p346 = scmp.eq.s32.totalorder %s93, 1
      %p347 = por %p345, %p346
      %p348 = scmp.ne.s32.totalorder %s339, %s340
      %p349 = scmp.eq.s32.totalorder %s93, 0
      %p350 = por %p348, %p349
      %p351 = scmp.ne.s32.totalorder %s339, %s340
      %p352 = scmp.eq.s32.totalorder %s94, 1
      %p353 = por %p351, %p352
      %p355 = scmp.ne.s32.totalorder %s340, %s354
      %p356 = scmp.eq.s32.totalorder %s94, 0
      %p357 = por %p355, %p356
      %s359 = sadd.s32 %s358, 1
      %p362 = scmp.eq.s32.totalorder %s88, 1
      %p363 = scmp.ne.s32.totalorder %s358, %s360
      %p364 = scmp.eq.s32.totalorder %s88, 0
      %p365 = por %p363, %p364
      %p366 = scmp.ne.s32.totalorder %s358, %s360
      %p367 = scmp.eq.s32.totalorder %s93, 1
      %p368 = por %p366, %p367
      %p369 = scmp.ne.s32.totalorder %s360, %s361
      %p370 = scmp.eq.s32.totalorder %s93, 0
      %p371 = por %p369, %p370
      %p372 = scmp.ne.s32.totalorder %s360, %s361
      %p373 = scmp.eq.s32.totalorder %s94, 1
      %p374 = por %p372, %p373
      %p376 = scmp.ne.s32.totalorder %s361, %s375
      %p377 = scmp.eq.s32.totalorder %s94, 0
      %p378 = por %p376, %p377
      %s380 = sadd.s32 %s379, 1
      %p383 = scmp.eq.s32.totalorder %s88, 1
      %p384 = scmp.ne.s32.totalorder %s379, %s381
      %p385 = scmp.eq.s32.totalorder %s88, 0
      %p386 = por %p384, %p385
      %p387 = scmp.ne.s32.totalorder %s379, %s381
      %p388 = scmp.eq.s32.totalorder %s93, 1
      %p389 = por %p387, %p388
      %p390 = scmp.ne.s32.totalorder %s381, %s382
      %p391 = scmp.eq.s32.totalorder %s93, 0
      %p392 = por %p390, %p391
      %p393 = scmp.ne.s32.totalorder %s381, %s382
      %p394 = scmp.eq.s32.totalorder %s94, 1
      %p395 = por %p393, %p394
      %p397 = scmp.ne.s32.totalorder %s382, %s396
      %p398 = scmp.eq.s32.totalorder %s94, 0
      %p399 = por %p397, %p398
      %s401 = sadd.s32 %s400, 1
      %p404 = scmp.eq.s32.totalorder %s88, 1
      %p405 = scmp.ne.s32.totalorder %s400, %s402
      %p406 = scmp.eq.s32.totalorder %s88, 0
      %p407 = por %p405, %p406
      %p408 = scmp.ne.s32.totalorder %s400, %s402
      %p409 = scmp.eq.s32.totalorder %s93, 1
      %p410 = por %p408, %p409
      %p411 = scmp.ne.s32.totalorder %s402, %s403
      %p412 = scmp.eq.s32.totalorder %s93, 0
      %p413 = por %p411, %p412
      %p414 = scmp.ne.s32.totalorder %s402, %s403
      %p415 = scmp.eq.s32.totalorder %s94, 1
      %p416 = por %p414, %p415
      %p418 = scmp.ne.s32.totalorder %s403, %s417
      %p419 = scmp.eq.s32.totalorder %s94, 0
      %p420 = por %p418, %p419
      %s422 = sadd.s32 %s421, 1
      %p425 = scmp.eq.s32.totalorder %s88, 1
      %p426 = scmp.ne.s32.totalorder %s421, %s423
      %p427 = scmp.eq.s32.totalorder %s88, 0
      %p428 = por %p426, %p427
      %p429 = scmp.ne.s32.totalorder %s421, %s423
      %p430 = scmp.eq.s32.totalorder %s93, 1
      %p431 = por %p429, %p430
      %p432 = scmp.ne.s32.totalorder %s423, %s424
      %p433 = scmp.eq.s32.totalorder %s93, 0
      %p434 = por %p432, %p433
      %p435 = scmp.ne.s32.totalorder %s423, %s424
      %p436 = scmp.eq.s32.totalorder %s94, 1
      %p437 = por %p435, %p436
      %p439 = scmp.ne.s32.totalorder %s424, %s438
      %p440 = scmp.eq.s32.totalorder %s94, 0
      %p441 = por %p439, %p440
      %s443 = sadd.s32 %s442, 1
      %p446 = scmp.eq.s32.totalorder %s88, 1
      %p447 = scmp.ne.s32.totalorder %s442, %s444
      %p448 = scmp.eq.s32.totalorder %s88, 0
      %p449 = por %p447, %p448
      %p450 = scmp.ne.s32.totalorder %s442, %s444
      %p451 = scmp.eq.s32.totalorder %s93, 1
      %p452 = por %p450, %p451
      %p453 = scmp.ne.s32.totalorder %s444, %s445
      %p454 = scmp.eq.s32.totalorder %s93, 0
      %p455 = por %p453, %p454
      %p456 = scmp.ne.s32.totalorder %s444, %s445
      %p457 = scmp.eq.s32.totalorder %s94, 1
      %p458 = por %p456, %p457
      %p460 = scmp.ne.s32.totalorder %s445, %s459
      %p461 = scmp.eq.s32.totalorder %s94, 0
      %p462 = por %p460, %p461
      %s464 = sadd.s32 %s463, 1
      %p467 = scmp.eq.s32.totalorder %s88, 1
      %p468 = scmp.ne.s32.totalorder %s463, %s465
      %p469 = scmp.eq.s32.totalorder %s88, 0
      %p470 = por %p468, %p469
      %p471 = scmp.ne.s32.totalorder %s463, %s465
      %p472 = scmp.eq.s32.totalorder %s93, 1
      %p473 = por %p471, %p472
      %p474 = scmp.ne.s32.totalorder %s465, %s466
      %p475 = scmp.eq.s32.totalorder %s93, 0
      %p476 = por %p474, %p475
      %p477 = scmp.ne.s32.totalorder %s465, %s466
      %p478 = scmp.eq.s32.totalorder %s94, 1
      %p479 = por %p477, %p478
      %p481 = scmp.ne.s32.totalorder %s466, %s480
      %p482 = scmp.eq.s32.totalorder %s94, 0
      %p483 = por %p481, %p482
      %s485 = sadd.s32 %s484, 1
      %p488 = scmp.eq.s32.totalorder %s88, 1
      %p489 = scmp.ne.s32.totalorder %s484, %s486
      %p490 = scmp.eq.s32.totalorder %s88, 0
      %p491 = por %p489, %p490
      %p492 = scmp.ne.s32.totalorder %s484, %s486
      %p493 = scmp.eq.s32.totalorder %s93, 1
      %p494 = por %p492, %p493
      %p495 = scmp.ne.s32.totalorder %s486, %s487
      %p496 = scmp.eq.s32.totalorder %s93, 0
      %p497 = por %p495, %p496
      %p498 = scmp.ne.s32.totalorder %s486, %s487
      %p499 = scmp.eq.s32.totalorder %s94, 1
      %p500 = por %p498, %p499
      %p502 = scmp.ne.s32.totalorder %s487, %s501
      %p503 = scmp.eq.s32.totalorder %s94, 0
      %p504 = por %p502, %p503
      %s506 = sadd.s32 %s505, 1
      %p509 = scmp.eq.s32.totalorder %s88, 1
      %p510 = scmp.ne.s32.totalorder %s505, %s507
      %p511 = scmp.eq.s32.totalorder %s88, 0
      %p512 = por %p510, %p511
      %p513 = scmp.ne.s32.totalorder %s505, %s507
      %p514 = scmp.eq.s32.totalorder %s93, 1
      %p515 = por %p513, %p514
      %p516 = scmp.ne.s32.totalorder %s507, %s508
      %p517 = scmp.eq.s32.totalorder %s93, 0
      %p518 = por %p516, %p517
      %p519 = scmp.ne.s32.totalorder %s507, %s508
      %p520 = scmp.eq.s32.totalorder %s94, 1
      %p521 = por %p519, %p520
      %p523 = scmp.ne.s32.totalorder %s508, %s522
      %p524 = scmp.eq.s32.totalorder %s94, 0
      %p525 = por %p523, %p524
      %s527 = sadd.s32 %s526, 1
      %p530 = scmp.eq.s32.totalorder %s88, 1
      %p531 = scmp.ne.s32.totalorder %s526, %s528
      %p532 = scmp.eq.s32.totalorder %s88, 0
      %p533 = por %p531, %p532
      %p534 = scmp.ne.s32.totalorder %s526, %s528
      %p535 = scmp.eq.s32.totalorder %s93, 1
      %p536 = por %p534, %p535
      %p537 = scmp.ne.s32.totalorder %s528, %s529
      %p538 = scmp.eq.s32.totalorder %s93, 0
      %p539 = por %p537, %p538
      %p540 = scmp.ne.s32.totalorder %s528, %s529
      %p541 = scmp.eq.s32.totalorder %s94, 1
      %p542 = por %p540, %p541
      %p544 = scmp.ne.s32.totalorder %s529, %s543
      %p545 = scmp.eq.s32.totalorder %s94, 0
      %p546 = por %p544, %p545
      %s548 = sadd.s32 %s547, 1
      %p551 = scmp.eq.s32.totalorder %s88, 1
      %p552 = scmp.ne.s32.totalorder %s547, %s549
      %p553 = scmp.eq.s32.totalorder %s88, 0
      %p554 = por %p552, %p553
      %p555 = scmp.ne.s32.totalorder %s547, %s549
      %p556 = scmp.eq.s32.totalorder %s93, 1
      %p557 = por %p555, %p556
      %p558 = scmp.ne.s32.totalorder %s549, %s550
      %p559 = scmp.eq.s32.totalorder %s93, 0
      %p560 = por %p558, %p559
      %p561 = scmp.ne.s32.totalorder %s549, %s550
      %p562 = scmp.eq.s32.totalorder %s94, 1
      %p563 = por %p561, %p562
      %p565 = scmp.ne.s32.totalorder %s550, %s564
      %p566 = scmp.eq.s32.totalorder %s94, 0
      %p567 = por %p565, %p566
      %s569 = sadd.s32 %s568, 1
      %p572 = scmp.eq.s32.totalorder %s88, 1
      %p573 = scmp.ne.s32.totalorder %s568, %s570
      %p574 = scmp.eq.s32.totalorder %s88, 0
      %p575 = por %p573, %p574
      %p576 = scmp.ne.s32.totalorder %s568, %s570
      %p577 = scmp.eq.s32.totalorder %s93, 1
      %p578 = por %p576, %p577
      %p579 = scmp.ne.s32.totalorder %s570, %s571
      %p580 = scmp.eq.s32.totalorder %s93, 0
      %p581 = por %p579, %p580
      %p582 = scmp.ne.s32.totalorder %s570, %s571
      %p583 = scmp.eq.s32.totalorder %s94, 1
      %p584 = por %p582, %p583
      %p586 = scmp.ne.s32.totalorder %s571, %s585
      %p587 = scmp.eq.s32.totalorder %s94, 0
      %p588 = por %p586, %p587
      %s590 = sadd.s32 %s589, 1
      %p593 = scmp.eq.s32.totalorder %s88, 1
      %p594 = scmp.ne.s32.totalorder %s589, %s591
      %p595 = scmp.eq.s32.totalorder %s88, 0
      %p596 = por %p594, %p595
      %p597 = scmp.ne.s32.totalorder %s589, %s591
      %p598 = scmp.eq.s32.totalorder %s93, 1
      %p599 = por %p597, %p598
      %p600 = scmp.ne.s32.totalorder %s591, %s592
      %p601 = scmp.eq.s32.totalorder %s93, 0
      %p602 = por %p600, %p601
      %p603 = scmp.ne.s32.totalorder %s591, %s592
      %p604 = scmp.eq.s32.totalorder %s94, 1
      %p605 = por %p603, %p604
      %p607 = scmp.ne.s32.totalorder %s592, %s606
      %p608 = scmp.eq.s32.totalorder %s94, 0
      %p609 = por %p607, %p608
      %s611 = sadd.s32 %s610, 1
      %p614 = scmp.eq.s32.totalorder %s88, 1
      %p615 = scmp.ne.s32.totalorder %s610, %s612
      %p616 = scmp.eq.s32.totalorder %s88, 0
      %p617 = por %p615, %p616
      %p618 = scmp.ne.s32.totalorder %s610, %s612
      %p619 = scmp.eq.s32.totalorder %s93, 1
      %p620 = por %p618, %p619
      %p621 = scmp.ne.s32.totalorder %s612, %s613
      %p622 = scmp.eq.s32.totalorder %s93, 0
      %p623 = por %p621, %p622
      %p624 = scmp.ne.s32.totalorder %s612, %s613
      %p625 = scmp.eq.s32.totalorder %s94, 1
      %p626 = por %p624, %p625
      %p628 = scmp.ne.s32.totalorder %s613, %s627
      %p629 = scmp.eq.s32.totalorder %s94, 0
      %p630 = por %p628, %p629
      %s632 = sadd.s32 %s631, 1
      %p635 = scmp.eq.s32.totalorder %s88, 1
      %p636 = scmp.ne.s32.totalorder %s631, %s633
      %p637 = scmp.eq.s32.totalorder %s88, 0
      %p638 = por %p636, %p637
      %p639 = scmp.ne.s32.totalorder %s631, %s633
      %p640 = scmp.eq.s32.totalorder %s93, 1
      %p641 = por %p639, %p640
      %p642 = scmp.ne.s32.totalorder %s633, %s634
      %p643 = scmp.eq.s32.totalorder %s93, 0
      %p644 = por %p642, %p643
      %p645 = scmp.ne.s32.totalorder %s633, %s634
      %p646 = scmp.eq.s32.totalorder %s94, 1
      %p647 = por %p645, %p646
      %p649 = scmp.ne.s32.totalorder %s634, %s648
      %p650 = scmp.eq.s32.totalorder %s94, 0
      %p651 = por %p649, %p650
      %s653 = sadd.s32 %s652, 1
      %p656 = scmp.eq.s32.totalorder %s88, 1
      %p657 = scmp.ne.s32.totalorder %s652, %s654
      %p658 = scmp.eq.s32.totalorder %s88, 0
      %p659 = por %p657, %p658
      %p660 = scmp.ne.s32.totalorder %s652, %s654
      %p661 = scmp.eq.s32.totalorder %s93, 1
      %p662 = por %p660, %p661
      %p663 = scmp.ne.s32.totalorder %s654, %s655
      %p664 = scmp.eq.s32.totalorder %s93, 0
      %p665 = por %p663, %p664
      %p666 = scmp.ne.s32.totalorder %s654, %s655
      %p667 = scmp.eq.s32.totalorder %s94, 1
      %p668 = por %p666, %p667
      %p670 = scmp.ne.s32.totalorder %s655, %s669
      %p671 = scmp.eq.s32.totalorder %s94, 0
      %p672 = por %p670, %p671
      %s674 = sadd.s32 %s673, 1
      %p677 = scmp.eq.s32.totalorder %s88, 1
      %p678 = scmp.ne.s32.totalorder %s673, %s675
      %p679 = scmp.eq.s32.totalorder %s88, 0
      %p680 = por %p678, %p679
      %p681 = scmp.ne.s32.totalorder %s673, %s675
      %p682 = scmp.eq.s32.totalorder %s93, 1
      %p683 = por %p681, %p682
      %p684 = scmp.ne.s32.totalorder %s675, %s676
      %p685 = scmp.eq.s32.totalorder %s93, 0
      %p686 = por %p684, %p685
      %p687 = scmp.ne.s32.totalorder %s675, %s676
      %p688 = scmp.eq.s32.totalorder %s94, 1
      %p689 = por %p687, %p688
      %p691 = scmp.ne.s32.totalorder %s676, %s690
      %p692 = scmp.eq.s32.totalorder %s94, 0
      %p693 = por %p691, %p692
      %s694 = ssub.s32 %s88, %s95
      %p695 = scmp.eq.s32.totalorder %s694, 0
      %s697 = sadd.s32 %s696, 1
      %s698 = scalar_select %p695, %s696, %s697
      %p701 = pneg %p695
      %p702 = scmp.eq.s32.totalorder %s88, 1
      %p703 = por %p701, %p702
      %p704 = scmp.ne.s32.totalorder %s696, %s699
      %p705 = scmp.eq.s32.totalorder %s88, 0
      %p706 = por %p704, %p705
      %p707 = scmp.ne.s32.totalorder %s696, %s699
      %p708 = scmp.eq.s32.totalorder %s93, 1
      %p709 = por %p707, %p708
      %p710 = scmp.ne.s32.totalorder %s699, %s700
      %p711 = scmp.eq.s32.totalorder %s93, 0
      %p712 = por %p710, %p711
      %p713 = scmp.ne.s32.totalorder %s699, %s700
      %p714 = scmp.eq.s32.totalorder %s94, 1
      %p715 = por %p713, %p714
      %p717 = scmp.ne.s32.totalorder %s700, %s716
      %p718 = scmp.eq.s32.totalorder %s94, 0
      %p719 = por %p717, %p718
      %s720 = ssub.s32 %s88, %s95
      %p721 = scmp.eq.s32.totalorder %s720, 0
      %s723 = sadd.s32 %s722, 1
      %s724 = scalar_select %p721, %s722, %s723
      %p727 = pneg %p721
      %p728 = scmp.eq.s32.totalorder %s88, 1
      %p729 = por %p727, %p728
      %p730 = scmp.ne.s32.totalorder %s722, %s725
      %p731 = scmp.eq.s32.totalorder %s88, 0
      %p732 = por %p730, %p731
      %p733 = scmp.ne.s32.totalorder %s722, %s725
      %p734 = scmp.eq.s32.totalorder %s93, 1
      %p735 = por %p733, %p734
      %p736 = scmp.ne.s32.totalorder %s725, %s726
      %p737 = scmp.eq.s32.totalorder %s93, 0
      %p738 = por %p736, %p737
      %p739 = scmp.ne.s32.totalorder %s725, %s726
      %p740 = scmp.eq.s32.totalorder %s94, 1
      %p741 = por %p739, %p740
      %p743 = scmp.ne.s32.totalorder %s726, %s742
      %p744 = scmp.eq.s32.totalorder %s94, 0
      %p745 = por %p743, %p744
      %p746 = scmp.le.s32.totalorder 1, %s88
      %p747 = scmp.lt.s32.totalorder %s88, 3
      %p748 = pnand %p746, %p747
      %p749 = pneg %p748
      // Predicated region
      $region9: #{tpu_custom_call.1} parent=5 // pred_check
        _
      $region10: #{tpu_custom_call.1} parent=5 // pred_check_branch
        %751 = sbr.rel (%p748) target = $region12
      $region11: #{tpu_custom_call.1} parent=5 // pred_region
        %s752 = ssub.s32 %s88, 1
        // Predicated region
        $region13: #{tpu_custom_call.1} parent=11 // pred_check
          %p753 = pneg %p161
        $region14: #{tpu_custom_call.1} parent=11 // pred_check_branch
          %755 = sbr.rel (%p753) target = $region16
        $region15: #{tpu_custom_call.1} parent=11 // pred_region
          %s757 = ssub.s32 1024, 1024
          %758 = vsyncadd [#allocation7], %s757
          %s759 = sshll.u32 [#allocation8], 4
          %s760 = int_to_ptr.vmem [resolvable:$true] %s759
          %765 = dma.hbm_to_vmem [thread:$0]  %s5, 1024, %s760, [#allocation7], 128, 128, 8
        $region16: #{tpu_custom_call.1} parent=11 // pred_fallthru
          _
        // Predicated region
        $region17: #{tpu_custom_call.1} parent=11 // pred_check
          %p766 = pneg %p182
        $region18: #{tpu_custom_call.1} parent=11 // pred_check_branch
          %768 = sbr.rel (%p766) target = $region20
        $region19: #{tpu_custom_call.1} parent=11 // pred_region
          _
        $region20: #{tpu_custom_call.1} parent=11 // pred_fallthru
          _
        // Predicated region
        $region21: #{tpu_custom_call.1} parent=11 // pred_check
          %p769 = pneg %p203
        $region22: #{tpu_custom_call.1} parent=11 // pred_check_branch
          %771 = sbr.rel (%p769) target = $region24
        $region23: #{tpu_custom_call.1} parent=11 // pred_region
          %s773 = ssub.s32 512, 512
          %774 = vsyncadd [#allocation10], %s773
          %s775 = sshll.u32 [#allocation9], 4
          %s776 = int_to_ptr.vmem [resolvable:$true] %s775
          %781 = dma.hbm_to_vmem [thread:$0]  %s9, 512, %s776, [#allocation10], 64, 64, 4
        $region24: #{tpu_custom_call.1} parent=11 // pred_fallthru
          _
        // Predicated region
        $region25: #{tpu_custom_call.1} parent=11 // pred_check
          %p782 = pneg %p224
        $region26: #{tpu_custom_call.1} parent=11 // pred_check_branch
          %784 = sbr.rel (%p782) target = $region28
        $region27: #{tpu_custom_call.1} parent=11 // pred_region
          %s786 = ssub.s32 16, 16
          %787 = vsyncadd [#allocation10], %s786
          %s789 = sshll.u32 [#allocation11], 4
          %s790 = int_to_ptr.vmem [resolvable:$true] %s789
          %792 = dma.hbm_to_vmem [thread:$0]  %s11, 16, %s790, [#allocation10]
        $region28: #{tpu_custom_call.1} parent=11 // pred_fallthru
          _
        // Predicated region
        $region29: #{tpu_custom_call.1} parent=11 // pred_check
          %p793 = pneg %p245
        $region30: #{tpu_custom_call.1} parent=11 // pred_check_branch
          %795 = sbr.rel (%p793) target = $region32
        $region31: #{tpu_custom_call.1} parent=11 // pred_region
          %s797 = ssub.s32 1024, 1024
          %798 = vsyncadd [#allocation13], %s797
          %s799 = sshll.u32 [#allocation12], 4
          %s800 = int_to_ptr.vmem [resolvable:$true] %s799
          %805 = dma.hbm_to_vmem [thread:$0]  %s13, 1024, %s800, [#allocation13], 128, 128, 8
        $region32: #{tpu_custom_call.1} parent=11 // pred_fallthru
          _
        // Predicated region
        $region33: #{tpu_custom_call.1} parent=11 // pred_check
          %p806 = pneg %p266
        $region34: #{tpu_custom_call.1} parent=11 // pred_check_branch
          %808 = sbr.rel (%p806) target = $region36
        $region35: #{tpu_custom_call.1} parent=11 // pred_region
          %s810 = ssub.s32 32, 32
          %811 = vsyncadd [#allocation13], %s810
          %s813 = sshll.u32 [#allocation14], 4
          %s814 = int_to_ptr.vmem [resolvable:$true] %s813
          %816 = dma.hbm_to_vmem [thread:$0]  %s15, 32, %s814, [#allocation13]
        $region36: #{tpu_custom_call.1} parent=11 // pred_fallthru
          _
        // Predicated region
        $region37: #{tpu_custom_call.1} parent=11 // pred_check
          %p817 = pneg %p287
        $region38: #{tpu_custom_call.1} parent=11 // pred_check_branch
          %819 = sbr.rel (%p817) target = $region40
        $region39: #{tpu_custom_call.1} parent=11 // pred_region
          %s821 = ssub.s32 512, 512
          %822 = vsyncadd [#allocation16], %s821
          %s823 = sshll.u32 [#allocation15], 4
          %s824 = int_to_ptr.vmem [resolvable:$true] %s823
          %829 = dma.hbm_to_vmem [thread:$0]  %s17, 512, %s824, [#allocation16], 64, 64, 4
        $region40: #{tpu_custom_call.1} parent=11 // pred_fallthru
          _
        // Predicated region
        $region41: #{tpu_custom_call.1} parent=11 // pred_check
          %p830 = pneg %p308
        $region42: #{tpu_custom_call.1} parent=11 // pred_check_branch
          %832 = sbr.rel (%p830) target = $region44
        $region43: #{tpu_custom_call.1} parent=11 // pred_region
          %s834 = ssub.s32 16, 16
          %835 = vsyncadd [#allocation16], %s834
          %s837 = sshll.u32 [#allocation17], 4
          %s838 = int_to_ptr.vmem [resolvable:$true] %s837
          %840 = dma.hbm_to_vmem [thread:$0]  %s19, 16, %s838, [#allocation16]
        $region44: #{tpu_custom_call.1} parent=11 // pred_fallthru
          _
        // Predicated region
        $region45: #{tpu_custom_call.1} parent=11 // pred_check
          %p841 = pneg %p329
        $region46: #{tpu_custom_call.1} parent=11 // pred_check_branch
          %843 = sbr.rel (%p841) target = $region48
        $region47: #{tpu_custom_call.1} parent=11 // pred_region
          %s845 = ssub.s32 512, 512
          %846 = vsyncadd [#allocation19], %s845
          %s847 = sshll.u32 [#allocation18], 4
          %s848 = int_to_ptr.vmem [resolvable:$true] %s847
          %853 = dma.hbm_to_vmem [thread:$0]  %s21, 512, %s848, [#allocation19], 64, 64, 4
        $region48: #{tpu_custom_call.1} parent=11 // pred_fallthru
          _
        // Predicated region
        $region49: #{tpu_custom_call.1} parent=11 // pred_check
          %p854 = pneg %p350
        $region50: #{tpu_custom_call.1} parent=11 // pred_check_branch
          %856 = sbr.rel (%p854) target = $region52
        $region51: #{tpu_custom_call.1} parent=11 // pred_region
          %s858 = ssub.s32 16, 16
          %859 = vsyncadd [#allocation19], %s858
          %s861 = sshll.u32 [#allocation20], 4
          %s862 = int_to_ptr.vmem [resolvable:$true] %s861
          %864 = dma.hbm_to_vmem [thread:$0]  %s23, 16, %s862, [#allocation19]
        $region52: #{tpu_custom_call.1} parent=11 // pred_fallthru
          _
        // Predicated region
        $region53: #{tpu_custom_call.1} parent=11 // pred_check
          %p865 = pneg %p371
        $region54: #{tpu_custom_call.1} parent=11 // pred_check_branch
          %867 = sbr.rel (%p865) target = $region56
        $region55: #{tpu_custom_call.1} parent=11 // pred_region
          %s869 = ssub.s32 512, 512
          %870 = vsyncadd [#allocation22], %s869
          %s871 = sshll.u32 [#allocation21], 4
          %s872 = int_to_ptr.vmem [resolvable:$true] %s871
          %877 = dma.hbm_to_vmem [thread:$0]  %s25, 512, %s872, [#allocation22], 64, 64, 4
        $region56: #{tpu_custom_call.1} parent=11 // pred_fallthru
          _
        // Predicated region
        $region57: #{tpu_custom_call.1} parent=11 // pred_check
          %p878 = pneg %p392
        $region58: #{tpu_custom_call.1} parent=11 // pred_check_branch
          %880 = sbr.rel (%p878) target = $region60
        $region59: #{tpu_custom_call.1} parent=11 // pred_region
          %s882 = ssub.s32 16, 16
          %883 = vsyncadd [#allocation22], %s882
          %s885 = sshll.u32 [#allocation23], 4
          %s886 = int_to_ptr.vmem [resolvable:$true] %s885
          %888 = dma.hbm_to_vmem [thread:$0]  %s27, 16, %s886, [#allocation22]
        $region60: #{tpu_custom_call.1} parent=11 // pred_fallthru
          _
        // Predicated region
        $region61: #{tpu_custom_call.1} parent=11 // pred_check
          %p889 = pneg %p413
        $region62: #{tpu_custom_call.1} parent=11 // pred_check_branch
          %891 = sbr.rel (%p889) target = $region64
        $region63: #{tpu_custom_call.1} parent=11 // pred_region
          %s893 = ssub.s32 512, 512
          %894 = vsyncadd [#allocation25], %s893
          %s895 = sshll.u32 [#allocation24], 4
          %s896 = int_to_ptr.vmem [resolvable:$true] %s895
          %901 = dma.hbm_to_vmem [thread:$0]  %s29, 512, %s896, [#allocation25], 64, 64, 4
        $region64: #{tpu_custom_call.1} parent=11 // pred_fallthru
          _
        // Predicated region
        $region65: #{tpu_custom_call.1} parent=11 // pred_check
          %p902 = pneg %p434
        $region66: #{tpu_custom_call.1} parent=11 // pred_check_branch
          %904 = sbr.rel (%p902) target = $region68
        $region67: #{tpu_custom_call.1} parent=11 // pred_region
          %s906 = ssub.s32 16, 16
          %907 = vsyncadd [#allocation25], %s906
          %s909 = sshll.u32 [#allocation26], 4
          %s910 = int_to_ptr.vmem [resolvable:$true] %s909
          %912 = dma.hbm_to_vmem [thread:$0]  %s31, 16, %s910, [#allocation25]
        $region68: #{tpu_custom_call.1} parent=11 // pred_fallthru
          _
        // Predicated region
        $region69: #{tpu_custom_call.1} parent=11 // pred_check
          %p913 = pneg %p455
        $region70: #{tpu_custom_call.1} parent=11 // pred_check_branch
          %915 = sbr.rel (%p913) target = $region72
        $region71: #{tpu_custom_call.1} parent=11 // pred_region
          %s917 = ssub.s32 512, 512
          %918 = vsyncadd [#allocation28], %s917
          %s919 = sshll.u32 [#allocation27], 4
          %s920 = int_to_ptr.vmem [resolvable:$true] %s919
          %925 = dma.hbm_to_vmem [thread:$0]  %s33, 512, %s920, [#allocation28], 64, 64, 4
        $region72: #{tpu_custom_call.1} parent=11 // pred_fallthru
          _
        // Predicated region
        $region73: #{tpu_custom_call.1} parent=11 // pred_check
          %p926 = pneg %p476
        $region74: #{tpu_custom_call.1} parent=11 // pred_check_branch
          %928 = sbr.rel (%p926) target = $region76
        $region75: #{tpu_custom_call.1} parent=11 // pred_region
          %s930 = ssub.s32 16, 16
          %931 = vsyncadd [#allocation28], %s930
          %s933 = sshll.u32 [#allocation29], 4
          %s934 = int_to_ptr.vmem [resolvable:$true] %s933
          %936 = dma.hbm_to_vmem [thread:$0]  %s35, 16, %s934, [#allocation28]
        $region76: #{tpu_custom_call.1} parent=11 // pred_fallthru
          _
        // Predicated region
        $region77: #{tpu_custom_call.1} parent=11 // pred_check
          %p937 = pneg %p497
        $region78: #{tpu_custom_call.1} parent=11 // pred_check_branch
          %939 = sbr.rel (%p937) target = $region80
        $region79: #{tpu_custom_call.1} parent=11 // pred_region
          _
        $region80: #{tpu_custom_call.1} parent=11 // pred_fallthru
          _
        // Predicated region
        $region81: #{tpu_custom_call.1} parent=11 // pred_check
          %p940 = pneg %p518
        $region82: #{tpu_custom_call.1} parent=11 // pred_check_branch
          %942 = sbr.rel (%p940) target = $region84
        $region83: #{tpu_custom_call.1} parent=11 // pred_region
          _
        $region84: #{tpu_custom_call.1} parent=11 // pred_fallthru
          _
        // Predicated region
        $region85: #{tpu_custom_call.1} parent=11 // pred_check
          %p943 = pneg %p539
        $region86: #{tpu_custom_call.1} parent=11 // pred_check_branch
          %945 = sbr.rel (%p943) target = $region88
        $region87: #{tpu_custom_call.1} parent=11 // pred_region
          %s947 = ssub.s32 512, 512
          %948 = vsyncadd [#allocation31], %s947
          %s949 = sshll.u32 [#allocation30], 4
          %s950 = int_to_ptr.vmem [resolvable:$true] %s949
          %955 = dma.hbm_to_vmem [thread:$0]  %s41, 512, %s950, [#allocation31], 64, 64, 4
        $region88: #{tpu_custom_call.1} parent=11 // pred_fallthru
          _
        // Predicated region
        $region89: #{tpu_custom_call.1} parent=11 // pred_check
          %p956 = pneg %p560
        $region90: #{tpu_custom_call.1} parent=11 // pred_check_branch
          %958 = sbr.rel (%p956) target = $region92
        $region91: #{tpu_custom_call.1} parent=11 // pred_region
          _
        $region92: #{tpu_custom_call.1} parent=11 // pred_fallthru
          _
        // Predicated region
        $region93: #{tpu_custom_call.1} parent=11 // pred_check
          %p959 = pneg %p581
        $region94: #{tpu_custom_call.1} parent=11 // pred_check_branch
          %961 = sbr.rel (%p959) target = $region96
        $region95: #{tpu_custom_call.1} parent=11 // pred_region
          %s963 = ssub.s32 512, 512
          %964 = vsyncadd [#allocation31], %s963
          %s965 = sshll.u32 [#allocation32], 4
          %s966 = int_to_ptr.vmem [resolvable:$true] %s965
          %971 = dma.hbm_to_vmem [thread:$0]  %s45, 512, %s966, [#allocation31], 64, 64, 4
        $region96: #{tpu_custom_call.1} parent=11 // pred_fallthru
          _
        // Predicated region
        $region97: #{tpu_custom_call.1} parent=11 // pred_check
          %p972 = pneg %p602
        $region98: #{tpu_custom_call.1} parent=11 // pred_check_branch
          %974 = sbr.rel (%p972) target = $region100
        $region99: #{tpu_custom_call.1} parent=11 // pred_region
          _
        $region100: #{tpu_custom_call.1} parent=11 // pred_fallthru
          _
        // Predicated region
        $region101: #{tpu_custom_call.1} parent=11 // pred_check
          %p975 = pneg %p623
        $region102: #{tpu_custom_call.1} parent=11 // pred_check_branch
          %977 = sbr.rel (%p975) target = $region104
        $region103: #{tpu_custom_call.1} parent=11 // pred_region
          _
        $region104: #{tpu_custom_call.1} parent=11 // pred_fallthru
          _
        // Predicated region
        $region105: #{tpu_custom_call.1} parent=11 // pred_check
          %p978 = pneg %p644
        $region106: #{tpu_custom_call.1} parent=11 // pred_check_branch
          %980 = sbr.rel (%p978) target = $region108
        $region107: #{tpu_custom_call.1} parent=11 // pred_region
          _
        $region108: #{tpu_custom_call.1} parent=11 // pred_fallthru
          _
        // Predicated region
        $region109: #{tpu_custom_call.1} parent=11 // pred_check
          %p981 = pneg %p665
        $region110: #{tpu_custom_call.1} parent=11 // pred_check_branch
          %983 = sbr.rel (%p981) target = $region112
        $region111: #{tpu_custom_call.1} parent=11 // pred_region
          _
        $region112: #{tpu_custom_call.1} parent=11 // pred_fallthru
          _
        // Predicated region
        $region113: #{tpu_custom_call.1} parent=11 // pred_check
          %p984 = pneg %p686
        $region114: #{tpu_custom_call.1} parent=11 // pred_check_branch
          %986 = sbr.rel (%p984) target = $region116
        $region115: #{tpu_custom_call.1} parent=11 // pred_region
          _
        $region116: #{tpu_custom_call.1} parent=11 // pred_fallthru
          _
      $region12: #{tpu_custom_call.1} parent=5 // pred_fallthru
        _
      %p987 = scmp.lt.s32.totalorder %s88, 2
      // Predicated region
      $region117: #{tpu_custom_call.1} parent=5 // pred_check
        %p988 = pneg %p987
      $region118: #{tpu_custom_call.1} parent=5 // pred_check_branch
        %990 = sbr.rel (%p988) target = $region120
      $region119: #{tpu_custom_call.1} parent=5 // pred_region
        // Predicated region
        $region121: #{tpu_custom_call.1} parent=119 // pred_check
          %p991 = pneg %p108
        $region122: #{tpu_custom_call.1} parent=119 // pred_check_branch
          %993 = sbr.rel (%p991) target = $region124
        $region123: #{tpu_custom_call.1} parent=119 // pred_region
          %s994 = sand.u32 %s98, 1
          %s995 = scalar_lea.sflag [#allocation4], %s994
          %s996 = sand.u32 %s98, 1
          %s997 = smul.addr %s996, 8
          %s998 = scalar_lea.vmem [#allocation3], %s997
          %s1000 = ssub.s32 128, 128
          %1001 = vsyncadd %s995, %s1000
          %s1002 = smul.addr %s88, 128
          %s1003 = scalar_lea.hbm %s1, %s1002
          %s1005 = sshll.u32 %s998, 4
          %s1006 = int_to_ptr.vmem [resolvable:$true] %s1005
          %1008 = dma.hbm_to_vmem [thread:$0]  %s1003, 128, %s1006, %s995
        $region124: #{tpu_custom_call.1} parent=119 // pred_fallthru
          _
        // Predicated region
        $region125: #{tpu_custom_call.1} parent=119 // pred_check
          %p1009 = pneg %p134
        $region126: #{tpu_custom_call.1} parent=119 // pred_check_branch
          %1011 = sbr.rel (%p1009) target = $region128
        $region127: #{tpu_custom_call.1} parent=119 // pred_region
          %s1012 = sand.u32 %s88, 1
          %s1013 = scalar_lea.sflag [#allocation7], %s1012
          %s1014 = sand.u32 %s124, 1
          %s1015 = smul.addr %s1014, 8
          %s1016 = scalar_lea.vmem [#allocation6], %s1015
          %s1018 = ssub.s32 128, 128
          %1019 = vsyncadd %s1013, %s1018
          %s1020 = smul.addr %s88, 128
          %s1021 = scalar_lea.hbm %s3, %s1020
          %s1023 = sshll.u32 %s1016, 4
          %s1024 = int_to_ptr.vmem [resolvable:$true] %s1023
          %1026 = dma.hbm_to_vmem [thread:$0]  %s1021, 128, %s1024, %s1013
        $region128: #{tpu_custom_call.1} parent=119 // pred_fallthru
          _
      $region120: #{tpu_custom_call.1} parent=5 // pred_fallthru
        _
      %p1027 = scmp.le.s32.totalorder 1, %s88
      %p1028 = scmp.lt.s32.totalorder %s88, 3
      %p1029 = pnand %p1027, %p1028
      %p1030 = pneg %p1029
      // Predicated region
      $region129: #{tpu_custom_call.1} parent=5 // pred_check
        _
      $region130: #{tpu_custom_call.1} parent=5 // pred_check_branch
        %1032 = sbr.rel (%p1029) target = $region132
      $region131: #{tpu_custom_call.1} parent=5 // pred_region
        %s1033 = ssub.s32 %s88, 1
        %s1034 = sand.u32 %s101, 1
        %s1035 = scalar_lea.sflag [#allocation4], %s1034
        %s1036 = sand.u32 %s101, 1
        %s1037 = smul.addr %s1036, 8
        %s1038 = scalar_lea.vmem [#allocation3], %s1037
        // Predicated region
        $region133: #{tpu_custom_call.1} parent=131 // pred_check
          %p1039 = pneg %p114
        $region134: #{tpu_custom_call.1} parent=131 // pred_check_branch
          %1041 = sbr.rel (%p1039) target = $region136
        $region135: #{tpu_custom_call.1} parent=131 // pred_region
          %1042 = dma.done %s1035, 128
        $region136: #{tpu_custom_call.1} parent=131 // pred_fallthru
          _
        %s1043 = sand.u32 %s93, 1
        %s1044 = scalar_lea.sflag [#allocation7], %s1043
        %s1045 = sand.u32 %s127, 1
        %s1046 = smul.addr %s1045, 8
        %s1047 = scalar_lea.vmem [#allocation6], %s1046
        // Predicated region
        $region137: #{tpu_custom_call.1} parent=131 // pred_check
          %p1048 = pneg %p140
        $region138: #{tpu_custom_call.1} parent=131 // pred_check_branch
          %1050 = sbr.rel (%p1048) target = $region140
        $region139: #{tpu_custom_call.1} parent=131 // pred_region
          %1051 = dma.done %s1044, 128
        $region140: #{tpu_custom_call.1} parent=131 // pred_fallthru
          _
        // Predicated region
        $region141: #{tpu_custom_call.1} parent=131 // pred_check
          %p1052 = pneg %p161
        $region142: #{tpu_custom_call.1} parent=131 // pred_check_branch
          %1054 = sbr.rel (%p1052) target = $region144
        $region143: #{tpu_custom_call.1} parent=131 // pred_region
          %1055 = dma.done [#allocation7], 1024
        $region144: #{tpu_custom_call.1} parent=131 // pred_fallthru
          _
        // Predicated region
        $region145: #{tpu_custom_call.1} parent=131 // pred_check
          %p1056 = pneg %p203
        $region146: #{tpu_custom_call.1} parent=131 // pred_check_branch
          %1058 = sbr.rel (%p1056) target = $region148
        $region147: #{tpu_custom_call.1} parent=131 // pred_region
          %1059 = dma.done [#allocation10], 512
        $region148: #{tpu_custom_call.1} parent=131 // pred_fallthru
          _
        // Predicated region
        $region149: #{tpu_custom_call.1} parent=131 // pred_check
          %p1060 = pneg %p224
        $region150: #{tpu_custom_call.1} parent=131 // pred_check_branch
          %1062 = sbr.rel (%p1060) target = $region152
        $region151: #{tpu_custom_call.1} parent=131 // pred_region
          %1063 = dma.done [#allocation10], 16
        $region152: #{tpu_custom_call.1} parent=131 // pred_fallthru
          _
        // Predicated region
        $region153: #{tpu_custom_call.1} parent=131 // pred_check
          %p1064 = pneg %p245
        $region154: #{tpu_custom_call.1} parent=131 // pred_check_branch
          %1066 = sbr.rel (%p1064) target = $region156
        $region155: #{tpu_custom_call.1} parent=131 // pred_region
          %1067 = dma.done [#allocation13], 1024
        $region156: #{tpu_custom_call.1} parent=131 // pred_fallthru
          _
        // Predicated region
        $region157: #{tpu_custom_call.1} parent=131 // pred_check
          %p1068 = pneg %p266
        $region158: #{tpu_custom_call.1} parent=131 // pred_check_branch
          %1070 = sbr.rel (%p1068) target = $region160
        $region159: #{tpu_custom_call.1} parent=131 // pred_region
          %1071 = dma.done [#allocation13], 32
        $region160: #{tpu_custom_call.1} parent=131 // pred_fallthru
          _
        // Predicated region
        $region161: #{tpu_custom_call.1} parent=131 // pred_check
          %p1072 = pneg %p287
        $region162: #{tpu_custom_call.1} parent=131 // pred_check_branch
          %1074 = sbr.rel (%p1072) target = $region164
        $region163: #{tpu_custom_call.1} parent=131 // pred_region
          %1075 = dma.done [#allocation16], 512
        $region164: #{tpu_custom_call.1} parent=131 // pred_fallthru
          _
        // Predicated region
        $region165: #{tpu_custom_call.1} parent=131 // pred_check
          %p1076 = pneg %p308
        $region166: #{tpu_custom_call.1} parent=131 // pred_check_branch
          %1078 = sbr.rel (%p1076) target = $region168
        $region167: #{tpu_custom_call.1} parent=131 // pred_region
          %1079 = dma.done [#allocation16], 16
        $region168: #{tpu_custom_call.1} parent=131 // pred_fallthru
          _
        // Predicated region
        $region169: #{tpu_custom_call.1} parent=131 // pred_check
          %p1080 = pneg %p329
        $region170: #{tpu_custom_call.1} parent=131 // pred_check_branch
          %1082 = sbr.rel (%p1080) target = $region172
        $region171: #{tpu_custom_call.1} parent=131 // pred_region
          %1083 = dma.done [#allocation19], 512
        $region172: #{tpu_custom_call.1} parent=131 // pred_fallthru
          _
        // Predicated region
        $region173: #{tpu_custom_call.1} parent=131 // pred_check
          %p1084 = pneg %p350
        $region174: #{tpu_custom_call.1} parent=131 // pred_check_branch
          %1086 = sbr.rel (%p1084) target = $region176
        $region175: #{tpu_custom_call.1} parent=131 // pred_region
          %1087 = dma.done [#allocation19], 16
        $region176: #{tpu_custom_call.1} parent=131 // pred_fallthru
          _
        // Predicated region
        $region177: #{tpu_custom_call.1} parent=131 // pred_check
          %p1088 = pneg %p371
        $region178: #{tpu_custom_call.1} parent=131 // pred_check_branch
          %1090 = sbr.rel (%p1088) target = $region180
        $region179: #{tpu_custom_call.1} parent=131 // pred_region
          %1091 = dma.done [#allocation22], 512
        $region180: #{tpu_custom_call.1} parent=131 // pred_fallthru
          _
        // Predicated region
        $region181: #{tpu_custom_call.1} parent=131 // pred_check
          %p1092 = pneg %p392
        $region182: #{tpu_custom_call.1} parent=131 // pred_check_branch
          %1094 = sbr.rel (%p1092) target = $region184
        $region183: #{tpu_custom_call.1} parent=131 // pred_region
          %1095 = dma.done [#allocation22], 16
        $region184: #{tpu_custom_call.1} parent=131 // pred_fallthru
          _
        // Predicated region
        $region185: #{tpu_custom_call.1} parent=131 // pred_check
          %p1096 = pneg %p413
        $region186: #{tpu_custom_call.1} parent=131 // pred_check_branch
          %1098 = sbr.rel (%p1096) target = $region188
        $region187: #{tpu_custom_call.1} parent=131 // pred_region
          %1099 = dma.done [#allocation25], 512
        $region188: #{tpu_custom_call.1} parent=131 // pred_fallthru
          _
        // Predicated region
        $region189: #{tpu_custom_call.1} parent=131 // pred_check
          %p1100 = pneg %p434
        $region190: #{tpu_custom_call.1} parent=131 // pred_check_branch
          %1102 = sbr.rel (%p1100) target = $region192
        $region191: #{tpu_custom_call.1} parent=131 // pred_region
          %1103 = dma.done [#allocation25], 16
        $region192: #{tpu_custom_call.1} parent=131 // pred_fallthru
          _
        // Predicated region
        $region193: #{tpu_custom_call.1} parent=131 // pred_check
          %p1104 = pneg %p455
        $region194: #{tpu_custom_call.1} parent=131 // pred_check_branch
          %1106 = sbr.rel (%p1104) target = $region196
        $region195: #{tpu_custom_call.1} parent=131 // pred_region
          %1107 = dma.done [#allocation28], 512
        $region196: #{tpu_custom_call.1} parent=131 // pred_fallthru
          _
        // Predicated region
        $region197: #{tpu_custom_call.1} parent=131 // pred_check
          %p1108 = pneg %p476
        $region198: #{tpu_custom_call.1} parent=131 // pred_check_branch
          %1110 = sbr.rel (%p1108) target = $region200
        $region199: #{tpu_custom_call.1} parent=131 // pred_region
          %1111 = dma.done [#allocation28], 16
        $region200: #{tpu_custom_call.1} parent=131 // pred_fallthru
          _
        // Predicated region
        $region201: #{tpu_custom_call.1} parent=131 // pred_check
          %p1112 = pneg %p539
        $region202: #{tpu_custom_call.1} parent=131 // pred_check_branch
          %1114 = sbr.rel (%p1112) target = $region204
        $region203: #{tpu_custom_call.1} parent=131 // pred_region
          %1115 = dma.done [#allocation31], 512
        $region204: #{tpu_custom_call.1} parent=131 // pred_fallthru
          _
        // Predicated region
        $region205: #{tpu_custom_call.1} parent=131 // pred_check
          %p1116 = pneg %p581
        $region206: #{tpu_custom_call.1} parent=131 // pred_check_branch
          %1118 = sbr.rel (%p1116) target = $region208
        $region207: #{tpu_custom_call.1} parent=131 // pred_region
          %1119 = dma.done [#allocation31], 512
        $region208: #{tpu_custom_call.1} parent=131 // pred_fallthru
          _
        %s1120 = sand.u32 %s101, 1
        %s1121 = scalar_lea.sflag [#allocation4], %s1120
        %s1122 = sand.u32 %s101, 1
        %s1123 = smul.addr %s1122, 8
        %s1124 = scalar_lea.vmem [#allocation3], %s1123
        %p1125 = pneg %p114
        %p1126 = pneg %p111
        %s1127 = sand.u32 %s93, 1
        %s1128 = scalar_lea.sflag [#allocation7], %s1127
        %s1129 = sand.u32 %s127, 1
        %s1130 = smul.addr %s1129, 8
        %s1131 = scalar_lea.vmem [#allocation6], %s1130
        %p1132 = pneg %p140
        %p1133 = pneg %p137
        %p1134 = pneg %p161
        %p1135 = pneg %p158
        %p1136 = pneg %p182
        %p1137 = pneg %p179
        %p1138 = pneg %p203
        %p1139 = pneg %p200
        %p1140 = pneg %p224
        %p1141 = pneg %p221
        %p1142 = pneg %p245
        %p1143 = pneg %p242
        %p1144 = pneg %p266
        %p1145 = pneg %p263
        %p1146 = pneg %p287
        %p1147 = pneg %p284
        %p1148 = pneg %p308
        %p1149 = pneg %p305
        %p1150 = pneg %p329
        %p1151 = pneg %p326
        %p1152 = pneg %p350
        %p1153 = pneg %p347
        %p1154 = pneg %p371
        %p1155 = pneg %p368
        %p1156 = pneg %p392
        %p1157 = pneg %p389
        %p1158 = pneg %p413
        %p1159 = pneg %p410
        %p1160 = pneg %p434
        %p1161 = pneg %p431
        %p1162 = pneg %p455
        %p1163 = pneg %p452
        %p1164 = pneg %p476
        %p1165 = pneg %p473
        %p1166 = pneg %p497
        %p1167 = pneg %p494
        %p1168 = pneg %p518
        %p1169 = pneg %p515
        %p1170 = pneg %p539
        %p1171 = pneg %p536
        %p1172 = pneg %p560
        %p1173 = pneg %p557
        %p1174 = pneg %p581
        %p1175 = pneg %p578
        %p1176 = pneg %p602
        %p1177 = pneg %p599
        %p1178 = pneg %p623
        %p1179 = pneg %p620
        %p1180 = pneg %p644
        %p1181 = pneg %p641
        %p1182 = pneg %p665
        %p1183 = pneg %p662
        %p1184 = pneg %p686
        %p1185 = pneg %p683
        %p1186 = pneg %p712
        %p1187 = pneg %p709
        %s1188 = sand.u32 %s699, 1
        %s1189 = scalar_lea.sflag [#allocation5], %s1188
        %s1190 = sand.u32 %s699, 1
        %s1191 = scalar_lea.vmem [#allocation33], %s1190
        %p1192 = pneg %p738
        %p1193 = pneg %p735
        %s1194 = sand.u32 %s725, 1
        %s1195 = scalar_lea.sflag [#allocation35], %s1194
        %s1196 = sand.u32 %s725, 1
        %s1197 = smul.addr %s1196, 8
        %s1198 = scalar_lea.vmem [#allocation34], %s1197
        %v1200 = vld [vmem:[%s1038] sm:$0xff]
        %v1201 = vld [vmem:[%s1047] sm:$0xff]
        %v1202 = vlaneseq
        %v1203 = vshrl.u32 %v1202, 7
        %v1204 = vlaneseq
        %v1205 = vand.u32 %v1204, 127
        %vm1206 = vcmp.gt.s32.totalorder %v1205, %v1203
        %v1207 = vld [vmem:[%s49] sm:$0x1]
        %v1208 = vld [vmem:[%s51] sm:$0x1]
        %v1209 = vpack.c.bf16 %v1201, %v1201
        %v1210 = vld [vmem:[#allocation8] sm:$0xff]
        %v1211 = vld [vmem:[#allocation8 + $0x8] sm:$0xff]
        %v1212 = vld [vmem:[#allocation8 + $0x10] sm:$0xff]
        %v1213 = vld [vmem:[#allocation8 + $0x18] sm:$0xff]
        %v1214 = vld [vmem:[#allocation8 + $0x20] sm:$0xff]
        %v1215 = vld [vmem:[#allocation8 + $0x28] sm:$0xff]
        %v1216 = vld [vmem:[#allocation8 + $0x30] sm:$0xff]
        %v1217 = vld [vmem:[#allocation8 + $0x38] sm:$0xff]
        %v1218 = vld [vmem:[%s7] sm:$0x3]
        %v1220 = vlaneseq
        %v1221 = vshrl.u32 %v1220, 7
        %v1222 = vsub.s32 0, %v1221
        %v1223 = vrot.slane %v1218, %v1222
        %v1224 = vlaneseq
        %v1225 = vshrl.u32 %v1224, 7
        %v1226 = vsub.s32 1, %v1225
        %v1227 = vrot.slane %v1218, %v1226
        %v1238 = vunpack.c.l.b16 %v1210
        %v1239 = vunpack.c.h.b16 %v1210
        %v1240 = vunpack.c.l.b16 %v1211
        %v1241 = vunpack.c.h.b16 %v1211
        %v1242 = vunpack.c.l.b16 %v1212
        %v1243 = vunpack.c.h.b16 %v1212
        %v1244 = vunpack.c.l.b16 %v1213
        %v1245 = vunpack.c.h.b16 %v1213
        %v1246 = vunpack.c.l.b16 %v1214
        %v1247 = vunpack.c.h.b16 %v1214
        %v1248 = vunpack.c.l.b16 %v1215
        %v1249 = vunpack.c.h.b16 %v1215
        %v1250 = vunpack.c.l.b16 %v1216
        %v1251 = vunpack.c.h.b16 %v1216
        %v1252 = vunpack.c.l.b16 %v1217
        %v1253 = vunpack.c.h.b16 %v1217
        %v1254 = vpack.c.b16 %v1240, %v1238
        %v1255 = vpack.c.b16 %v1241, %v1239
        %v1256 = vpack.c.b16 %v1244, %v1242
        %v1257 = vpack.c.b16 %v1245, %v1243
        %v1258 = vpack.c.b16 %v1248, %v1246
        %v1259 = vpack.c.b16 %v1249, %v1247
        %v1260 = vpack.c.b16 %v1252, %v1250
        %v1261 = vpack.c.b16 %v1253, %v1251
        %vm1270 = vcmask 523264
        %v1272 = vsel %vm1270, %v1209, 0
        %1274 = vmatprep.subr.bf16.mxu0 0
        %1275 = vmatpush1.bf16.msra.mxu0 0
        %1276 = vmatprep.subr.bf16.mxu0 0
        %1277 = vmatpush1.bf16.msra.mxu0 0
        %1278 = vmatprep.subr.bf16.mxu0 0
        %1279 = vmatpush1.bf16.msra.mxu0 0
        %1280 = vmatprep.subr.bf16.mxu0 0
        %1281 = vmatpush1.bf16.msra.mxu0 0
        %1282 = vmatprep.subr.bf16.mxu0 %v1261
        %1283 = vmatpush1.bf16.msra.mxu0 %v1260
        %1284 = vmatprep.subr.bf16.mxu0 %v1259
        %1285 = vmatpush1.bf16.msra.mxu0 %v1258
        %1286 = vmatprep.subr.bf16.mxu0 %v1257
        %1287 = vmatpush1.bf16.msra.mxu0 %v1256
        %1288 = vmatprep.subr.bf16.mxu0 %v1255
        %1289 = vmatpush1.bf16.msra.mxu0 %v1254
        %1290 = vmatprep.subr.bf16.mxu0 0
        %1291 = vmatpush2.bf16.msra.mxu0 0
        %1292 = vmatprep.subr.bf16.mxu0 0
        %1293 = vmatpush2.bf16.msra.mxu0 0
        %1294 = vmatprep.subr.bf16.mxu0 0
        %1295 = vmatpush2.bf16.msra.mxu0 0
        %1296 = vmatprep.subr.bf16.mxu0 0
        %1297 = vmatpush2.bf16.msra.mxu0 0
        %1298 = vmatprep.subr.bf16.mxu0 0
        %1299 = vmatpush2.bf16.msra.mxu0 0
        %1300 = vmatprep.subr.bf16.mxu0 0
        %1301 = vmatpush2.bf16.msra.mxu0 0
        %1302 = vmatprep.subr.bf16.mxu0 0
        %1303 = vmatpush2.bf16.msra.mxu0 0
        %1304 = vmatprep.subr.bf16.mxu0 0
        %1305 = vmatpush2.bf16.msra.mxu0 0
        %1306 = vmatprep.mubr.bf16.mxu0 0
        %1307 = vmatmul.mubr.bf16.gmra.mxu0 %v1272
        %v1308 = vpop.f32.mrf.mxu0
        %v1309 = vadd.f32 %v1223, %v1308
        %v1310 = vpop.f32.mrf.mxu0
        %v1311 = vadd.f32 %v1227, %v1310
        %v1312 = vpop.f32.mrf.mxu0
        %v1313 = vpop.f32.mrf.mxu0
        %1314 = vdwg.mxu0
        %v1315 = vpack.c.bf16 %v1200, %v1200
        %v1316 = vld [vmem:[#allocation12] sm:$0xff]
        %v1317 = vld [vmem:[#allocation12 + $0x8] sm:$0xff]
        %v1318 = vld [vmem:[#allocation12 + $0x10] sm:$0xff]
        %v1319 = vld [vmem:[#allocation12 + $0x18] sm:$0xff]
        %v1320 = vld [vmem:[#allocation12 + $0x20] sm:$0xff]
        %v1321 = vld [vmem:[#allocation12 + $0x28] sm:$0xff]
        %v1322 = vld [vmem:[#allocation12 + $0x30] sm:$0xff]
        %v1323 = vld [vmem:[#allocation12 + $0x38] sm:$0xff]
        %v1324 = vld [vmem:[#allocation14] sm:$0x3]
        %v1326 = vlaneseq
        %v1327 = vshrl.u32 %v1326, 7
        %v1328 = vsub.s32 0, %v1327
        %v1329 = vrot.slane %v1324, %v1328
        %v1330 = vlaneseq
        %v1331 = vshrl.u32 %v1330, 7
        %v1332 = vsub.s32 1, %v1331
        %v1333 = vrot.slane %v1324, %v1332
        %v1344 = vunpack.c.l.b16 %v1316
        %v1345 = vunpack.c.h.b16 %v1316
        %v1346 = vunpack.c.l.b16 %v1317
        %v1347 = vunpack.c.h.b16 %v1317
        %v1348 = vunpack.c.l.b16 %v1318
        %v1349 = vunpack.c.h.b16 %v1318
        %v1350 = vunpack.c.l.b16 %v1319
        %v1351 = vunpack.c.h.b16 %v1319
        %v1352 = vunpack.c.l.b16 %v1320
        %v1353 = vunpack.c.h.b16 %v1320
        %v1354 = vunpack.c.l.b16 %v1321
        %v1355 = vunpack.c.h.b16 %v1321
        %v1356 = vunpack.c.l.b16 %v1322
        %v1357 = vunpack.c.h.b16 %v1322
        %v1358 = vunpack.c.l.b16 %v1323
        %v1359 = vunpack.c.h.b16 %v1323
        %v1360 = vpack.c.b16 %v1346, %v1344
        %v1361 = vpack.c.b16 %v1347, %v1345
        %v1362 = vpack.c.b16 %v1350, %v1348
        %v1363 = vpack.c.b16 %v1351, %v1349
        %v1364 = vpack.c.b16 %v1354, %v1352
        %v1365 = vpack.c.b16 %v1355, %v1353
        %v1366 = vpack.c.b16 %v1358, %v1356
        %v1367 = vpack.c.b16 %v1359, %v1357
        %v1377 = vsel %vm1270, %v1315, 0
        %1379 = vmatprep.subr.bf16.mxu0 0
        %1380 = vmatpush1.bf16.msra.mxu0 0
        %1381 = vmatprep.subr.bf16.mxu0 0
        %1382 = vmatpush1.bf16.msra.mxu0 0
        %1383 = vmatprep.subr.bf16.mxu0 0
        %1384 = vmatpush1.bf16.msra.mxu0 0
        %1385 = vmatprep.subr.bf16.mxu0 0
        %1386 = vmatpush1.bf16.msra.mxu0 0
        %1387 = vmatprep.subr.bf16.mxu0 %v1367
        %1388 = vmatpush1.bf16.msra.mxu0 %v1366
        %1389 = vmatprep.subr.bf16.mxu0 %v1365
        %1390 = vmatpush1.bf16.msra.mxu0 %v1364
        %1391 = vmatprep.subr.bf16.mxu0 %v1363
        %1392 = vmatpush1.bf16.msra.mxu0 %v1362
        %1393 = vmatprep.subr.bf16.mxu0 %v1361
        %1394 = vmatpush1.bf16.msra.mxu0 %v1360
        %1395 = vmatprep.subr.bf16.mxu0 0
        %1396 = vmatpush2.bf16.msra.mxu0 0
        %1397 = vmatprep.subr.bf16.mxu0 0
        %1398 = vmatpush2.bf16.msra.mxu0 0
        %1399 = vmatprep.subr.bf16.mxu0 0
        %1400 = vmatpush2.bf16.msra.mxu0 0
        %1401 = vmatprep.subr.bf16.mxu0 0
        %1402 = vmatpush2.bf16.msra.mxu0 0
        %1403 = vmatprep.subr.bf16.mxu0 0
        %1404 = vmatpush2.bf16.msra.mxu0 0
        %1405 = vmatprep.subr.bf16.mxu0 0
        %1406 = vmatpush2.bf16.msra.mxu0 0
        %1407 = vmatprep.subr.bf16.mxu0 0
        %1408 = vmatpush2.bf16.msra.mxu0 0
        %1409 = vmatprep.subr.bf16.mxu0 0
        %1410 = vmatpush2.bf16.msra.mxu0 0
        %1411 = vmatprep.mubr.bf16.mxu0 0
        %1412 = vmatmul.mubr.bf16.gmra.mxu0 %v1377
        %v1413 = vpop.f32.mrf.mxu0
        %v1414 = vadd.f32 %v1329, %v1413
        %v1415 = vpop.f32.mrf.mxu0
        %v1416 = vadd.f32 %v1333, %v1415
        %v1417 = vpop.f32.mrf.mxu0
        %v1418 = vpop.f32.mrf.mxu0
        %1419 = vdwg.mxu0
        %v1420 = vmul.f32 %v1309, 0.35355338
        %v1421 = vmul.f32 %v1414, 0.35355338
        %v1422 = vpack.c.bf16 %v1420, %v1420
        %v1423 = vpack.c.bf16 %v1421, %v1421
        %v1424 = vpack.c.bf16 %v1309, %v1309
        %v1425 = vpack.c.bf16 %v1414, %v1414
        %v1426 = vpack.c.bf16 %v1311, %v1311
        %v1427 = vpack.c.bf16 %v1416, %v1416
        %1429 = vrot.lane.b32.xlu0 %v1424, 64
        %v1430 = vpop.permute.xlu0 %1429
        %vm1431 = vcmask 64512
        %v1433 = vsel %vm1431, %v1422, 0
        %v1436 = vsel %vm1431, %v1430, 0
        %1438 = vmatprep.subr.bf16.mxu0 0
        %1439 = vmatpush1.bf16.xpose.msra.mxu0 0
        %1440 = vmatprep.subr.bf16.mxu0 0
        %1441 = vmatpush1.bf16.xpose.msra.mxu0 0
        %1442 = vmatprep.subr.bf16.mxu0 0
        %1443 = vmatpush1.bf16.xpose.msra.mxu0 0
        %1444 = vmatprep.subr.bf16.mxu0 0
        %1445 = vmatpush1.bf16.xpose.msra.mxu0 0
        %1446 = vmatprep.subr.bf16.mxu0 0
        %1447 = vmatpush1.bf16.xpose.msra.mxu0 0
        %1448 = vmatprep.subr.bf16.mxu0 0
        %1449 = vmatpush1.bf16.xpose.msra.mxu0 0
        %1450 = vmatprep.subr.bf16.mxu0 0
        %1451 = vmatpush1.bf16.xpose.msra.mxu0 0
        %1452 = vmatprep.subr.bf16.mxu0 0
        %1453 = vmatpush1.bf16.xpose.msra.mxu0 %v1436
        %1454 = vmatprep.subr.bf16.mxu0 0
        %1455 = vmatpush2.bf16.xpose.msra.mxu0 0
        %1456 = vmatprep.subr.bf16.mxu0 0
        %1457 = vmatpush2.bf16.xpose.msra.mxu0 0
        %1458 = vmatprep.subr.bf16.mxu0 0
        %1459 = vmatpush2.bf16.xpose.msra.mxu0 0
        %1460 = vmatprep.subr.bf16.mxu0 0
        %1461 = vmatpush2.bf16.xpose.msra.mxu0 0
        %1462 = vmatprep.subr.bf16.mxu0 0
        %1463 = vmatpush2.bf16.xpose.msra.mxu0 0
        %1464 = vmatprep.subr.bf16.mxu0 0
        %1465 = vmatpush2.bf16.xpose.msra.mxu0 0
        %1466 = vmatprep.subr.bf16.mxu0 0
        %1467 = vmatpush2.bf16.xpose.msra.mxu0 0
        %1468 = vmatprep.subr.bf16.mxu0 0
        %1469 = vmatpush2.bf16.xpose.msra.mxu0 0
        %1470 = vmatprep.mubr.bf16.mxu0 0
        %1471 = vmatmul.mubr.bf16.gmra.mxu0 %v1433
        %v1472 = vpop.f32.mrf.mxu0
        %v1473 = vadd.f32 0.0, %v1472
        %v1474 = vpop.f32.mrf.mxu0
        %v1475 = vpop.f32.mrf.mxu0
        %v1476 = vpop.f32.mrf.mxu0
        %1477 = vdwg.mxu0
        %1479 = vrot.lane.b32.xlu0 %v1425, 64
        %v1480 = vpop.permute.xlu0 %1479
        %v1482 = vsel %vm1431, %v1423, 0
        %v1485 = vsel %vm1431, %v1480, 0
        %1487 = vmatprep.subr.bf16.mxu0 0
        %1488 = vmatpush1.bf16.xpose.msra.mxu0 0
        %1489 = vmatprep.subr.bf16.mxu0 0
        %1490 = vmatpush1.bf16.xpose.msra.mxu0 0
        %1491 = vmatprep.subr.bf16.mxu0 0
        %1492 = vmatpush1.bf16.xpose.msra.mxu0 0
        %1493 = vmatprep.subr.bf16.mxu0 0
        %1494 = vmatpush1.bf16.xpose.msra.mxu0 0
        %1495 = vmatprep.subr.bf16.mxu0 0
        %1496 = vmatpush1.bf16.xpose.msra.mxu0 0
        %1497 = vmatprep.subr.bf16.mxu0 0
        %1498 = vmatpush1.bf16.xpose.msra.mxu0 0
        %1499 = vmatprep.subr.bf16.mxu0 0
        %1500 = vmatpush1.bf16.xpose.msra.mxu0 0
        %1501 = vmatprep.subr.bf16.mxu0 0
        %1502 = vmatpush1.bf16.xpose.msra.mxu0 %v1485
        %1503 = vmatprep.subr.bf16.mxu0 0
        %1504 = vmatpush2.bf16.xpose.msra.mxu0 0
        %1505 = vmatprep.subr.bf16.mxu0 0
        %1506 = vmatpush2.bf16.xpose.msra.mxu0 0
        %1507 = vmatprep.subr.bf16.mxu0 0
        %1508 = vmatpush2.bf16.xpose.msra.mxu0 0
        %1509 = vmatprep.subr.bf16.mxu0 0
        %1510 = vmatpush2.bf16.xpose.msra.mxu0 0
        %1511 = vmatprep.subr.bf16.mxu0 0
        %1512 = vmatpush2.bf16.xpose.msra.mxu0 0
        %1513 = vmatprep.subr.bf16.mxu0 0
        %1514 = vmatpush2.bf16.xpose.msra.mxu0 0
        %1515 = vmatprep.subr.bf16.mxu0 0
        %1516 = vmatpush2.bf16.xpose.msra.mxu0 0
        %1517 = vmatprep.subr.bf16.mxu0 0
        %1518 = vmatpush2.bf16.xpose.msra.mxu0 0
        %1519 = vmatprep.mubr.bf16.mxu0 0
        %1520 = vmatmul.mubr.bf16.gmra.mxu0 %v1482
        %v1521 = vpop.f32.mrf.mxu0
        %v1522 = vadd.f32 0.0, %v1521
        %v1523 = vpop.f32.mrf.mxu0
        %v1524 = vpop.f32.mrf.mxu0
        %v1525 = vpop.f32.mrf.mxu0
        %1526 = vdwg.mxu0
        %v1527 = vsel %vm1206, 1, 0
        %vm1528 = vcmp.eq.s32.totalorder %v1527, 1
        %v1529 = vsel %vm1528, -1e+30, %v1473
        %v1530 = vsel %vm1528, -1e+30, %v1522
        %v1531 = vsel %vm1431, %v1529, -inf
        %1532 = vmax.xlane.f32.xlu0 %v1531
        %v1533 = vpop.xlane.xlu0 %1532
        %v1534 = vsel %vm1431, %v1530, -inf
        %1535 = vmax.xlane.f32.xlu0 %v1534
        %v1536 = vpop.xlane.xlu0 %1535
        %v1537 = vsub.f32 %v1529, %v1533
        %v1538 = vsub.f32 %v1530, %v1536
        %v1539 = vmul.f32 %v1537, 1.442695
        %v1540 = vpow.pop %v1539
        %v1541 = vmul.f32 %v1538, 1.442695
        %v1542 = vpow.pop %v1541
        %v1543 = vsel %vm1431, %v1540, 0.0
        %1544 = vadd.xlane.f32.xlu0 %v1543
        %v1545 = vpop.xlane.xlu0 %1544
        %v1546 = vsel %vm1431, %v1542, 0.0
        %1547 = vadd.xlane.f32.xlu0 %v1546
        %v1548 = vpop.xlane.xlu0 %1547
        %v1549 = vrcp.pop %v1545
        %v1550 = vrcp.pop %v1548
        %v1551 = vmul.f32 %v1540, %v1549
        %v1552 = vmul.f32 %v1542, %v1550
        %v1553 = vpack.c.bf16 %v1551, %v1551
        %v1554 = vpack.c.bf16 %v1552, %v1552
        %v1556 = vsel %vm1431, %v1553, 0
        %vm1558 = vcmask 1043456
        %v1560 = vsel %vm1558, %v1426, 0
        %1562 = vmatprep.subr.bf16.mxu0 0
        %1563 = vmatpush1.bf16.msra.mxu0 0
        %1564 = vmatprep.subr.bf16.mxu0 0
        %1565 = vmatpush1.bf16.msra.mxu0 0
        %1566 = vmatprep.subr.bf16.mxu0 0
        %1567 = vmatpush1.bf16.msra.mxu0 0
        %1568 = vmatprep.subr.bf16.mxu0 0
        %1569 = vmatpush1.bf16.msra.mxu0 0
        %1570 = vmatprep.subr.bf16.mxu0 0
        %1571 = vmatpush1.bf16.msra.mxu0 0
        %1572 = vmatprep.subr.bf16.mxu0 0
        %1573 = vmatpush1.bf16.msra.mxu0 0
        %1574 = vmatprep.subr.bf16.mxu0 0
        %1575 = vmatpush1.bf16.msra.mxu0 0
        %1576 = vmatprep.subr.bf16.mxu0 0
        %1577 = vmatpush1.bf16.msra.mxu0 %v1560
        %1578 = vmatprep.subr.bf16.mxu0 0
        %1579 = vmatpush2.bf16.msra.mxu0 0
        %1580 = vmatprep.subr.bf16.mxu0 0
        %1581 = vmatpush2.bf16.msra.mxu0 0
        %1582 = vmatprep.subr.bf16.mxu0 0
        %1583 = vmatpush2.bf16.msra.mxu0 0
        %1584 = vmatprep.subr.bf16.mxu0 0
        %1585 = vmatpush2.bf16.msra.mxu0 0
        %1586 = vmatprep.subr.bf16.mxu0 0
        %1587 = vmatpush2.bf16.msra.mxu0 0
        %1588 = vmatprep.subr.bf16.mxu0 0
        %1589 = vmatpush2.bf16.msra.mxu0 0
        %1590 = vmatprep.subr.bf16.mxu0 0
        %1591 = vmatpush2.bf16.msra.mxu0 0
        %1592 = vmatprep.subr.bf16.mxu0 0
        %1593 = vmatpush2.bf16.msra.mxu0 0
        %1594 = vmatprep.mubr.bf16.mxu0 0
        %1595 = vmatmul.mubr.bf16.gmra.mxu0 %v1556
        %v1596 = vpop.f32.mrf.mxu0
        %v1597 = vadd.f32 0.0, %v1596
        %v1598 = vpop.f32.mrf.mxu0
        %v1599 = vpop.f32.mrf.mxu0
        %v1600 = vpop.f32.mrf.mxu0
        %1601 = vdwg.mxu0
        %v1603 = vsel %vm1431, %v1554, 0
        %v1606 = vsel %vm1558, %v1427, 0
        %1608 = vmatprep.subr.bf16.mxu0 0
        %1609 = vmatpush1.bf16.msra.mxu0 0
        %1610 = vmatprep.subr.bf16.mxu0 0
        %1611 = vmatpush1.bf16.msra.mxu0 0
        %1612 = vmatprep.subr.bf16.mxu0 0
        %1613 = vmatpush1.bf16.msra.mxu0 0
        %1614 = vmatprep.subr.bf16.mxu0 0
        %1615 = vmatpush1.bf16.msra.mxu0 0
        %1616 = vmatprep.subr.bf16.mxu0 0
        %1617 = vmatpush1.bf16.msra.mxu0 0
        %1618 = vmatprep.subr.bf16.mxu0 0
        %1619 = vmatpush1.bf16.msra.mxu0 0
        %1620 = vmatprep.subr.bf16.mxu0 0
        %1621 = vmatpush1.bf16.msra.mxu0 0
        %1622 = vmatprep.subr.bf16.mxu0 0
        %1623 = vmatpush1.bf16.msra.mxu0 %v1606
        %1624 = vmatprep.subr.bf16.mxu0 0
        %1625 = vmatpush2.bf16.msra.mxu0 0
        %1626 = vmatprep.subr.bf16.mxu0 0
        %1627 = vmatpush2.bf16.msra.mxu0 0
        %1628 = vmatprep.subr.bf16.mxu0 0
        %1629 = vmatpush2.bf16.msra.mxu0 0
        %1630 = vmatprep.subr.bf16.mxu0 0
        %1631 = vmatpush2.bf16.msra.mxu0 0
        %1632 = vmatprep.subr.bf16.mxu0 0
        %1633 = vmatpush2.bf16.msra.mxu0 0
        %1634 = vmatprep.subr.bf16.mxu0 0
        %1635 = vmatpush2.bf16.msra.mxu0 0
        %1636 = vmatprep.subr.bf16.mxu0 0
        %1637 = vmatpush2.bf16.msra.mxu0 0
        %1638 = vmatprep.subr.bf16.mxu0 0
        %1639 = vmatpush2.bf16.msra.mxu0 0
        %1640 = vmatprep.mubr.bf16.mxu0 0
        %1641 = vmatmul.mubr.bf16.gmra.mxu0 %v1603
        %v1642 = vpop.f32.mrf.mxu0
        %v1643 = vadd.f32 0.0, %v1642
        %v1644 = vpop.f32.mrf.mxu0
        %v1645 = vpop.f32.mrf.mxu0
        %v1646 = vpop.f32.mrf.mxu0
        %1647 = vdwg.mxu0
        %1649 = vrot.lane.b32.xlu0 %v1422, 120
        %v1650 = vpop.permute.xlu0 %1649
        %1651 = vrot.lane.b32.xlu0 %v1424, 56
        %v1652 = vpop.permute.xlu0 %1651
        %v1654 = vsel %vm1431, %v1650, 0
        %v1657 = vsel %vm1431, %v1652, 0
        %1659 = vmatprep.subr.bf16.mxu0 0
        %1660 = vmatpush1.bf16.xpose.msra.mxu0 0
        %1661 = vmatprep.subr.bf16.mxu0 0
        %1662 = vmatpush1.bf16.xpose.msra.mxu0 0
        %1663 = vmatprep.subr.bf16.mxu0 0
        %1664 = vmatpush1.bf16.xpose.msra.mxu0 0
        %1665 = vmatprep.subr.bf16.mxu0 0
        %1666 = vmatpush1.bf16.xpose.msra.mxu0 0
        %1667 = vmatprep.subr.bf16.mxu0 0
        %1668 = vmatpush1.bf16.xpose.msra.mxu0 0
        %1669 = vmatprep.subr.bf16.mxu0 0
        %1670 = vmatpush1.bf16.xpose.msra.mxu0 0
        %1671 = vmatprep.subr.bf16.mxu0 0
        %1672 = vmatpush1.bf16.xpose.msra.mxu0 0
        %1673 = vmatprep.subr.bf16.mxu0 0
        %1674 = vmatpush1.bf16.xpose.msra.mxu0 %v1657
        %1675 = vmatprep.subr.bf16.mxu0 0
        %1676 = vmatpush2.bf16.xpose.msra.mxu0 0
        %1677 = vmatprep.subr.bf16.mxu0 0
        %1678 = vmatpush2.bf16.xpose.msra.mxu0 0
        %1679 = vmatprep.subr.bf16.mxu0 0
        %1680 = vmatpush2.bf16.xpose.msra.mxu0 0
        %1681 = vmatprep.subr.bf16.mxu0 0
        %1682 = vmatpush2.bf16.xpose.msra.mxu0 0
        %1683 = vmatprep.subr.bf16.mxu0 0
        %1684 = vmatpush2.bf16.xpose.msra.mxu0 0
        %1685 = vmatprep.subr.bf16.mxu0 0
        %1686 = vmatpush2.bf16.xpose.msra.mxu0 0
        %1687 = vmatprep.subr.bf16.mxu0 0
        %1688 = vmatpush2.bf16.xpose.msra.mxu0 0
        %1689 = vmatprep.subr.bf16.mxu0 0
        %1690 = vmatpush2.bf16.xpose.msra.mxu0 0
        %1691 = vmatprep.mubr.bf16.mxu0 0
        %1692 = vmatmul.mubr.bf16.gmra.mxu0 %v1654
        %v1693 = vpop.f32.mrf.mxu0
        %v1694 = vadd.f32 0.0, %v1693
        %v1695 = vpop.f32.mrf.mxu0
        %v1696 = vpop.f32.mrf.mxu0
        %v1697 = vpop.f32.mrf.mxu0
        %1698 = vdwg.mxu0
        %1700 = vrot.lane.b32.xlu0 %v1423, 120
        %v1701 = vpop.permute.xlu0 %1700
        %1702 = vrot.lane.b32.xlu0 %v1425, 56
        %v1703 = vpop.permute.xlu0 %1702
        %v1705 = vsel %vm1431, %v1701, 0
        %v1708 = vsel %vm1431, %v1703, 0
        %1710 = vmatprep.subr.bf16.mxu0 0
        %1711 = vmatpush1.bf16.xpose.msra.mxu0 0
        %1712 = vmatprep.subr.bf16.mxu0 0
        %1713 = vmatpush1.bf16.xpose.msra.mxu0 0
        %1714 = vmatprep.subr.bf16.mxu0 0
        %1715 = vmatpush1.bf16.xpose.msra.mxu0 0
        %1716 = vmatprep.subr.bf16.mxu0 0
        %1717 = vmatpush1.bf16.xpose.msra.mxu0 0
        %1718 = vmatprep.subr.bf16.mxu0 0
        %1719 = vmatpush1.bf16.xpose.msra.mxu0 0
        %1720 = vmatprep.subr.bf16.mxu0 0
        %1721 = vmatpush1.bf16.xpose.msra.mxu0 0
        %1722 = vmatprep.subr.bf16.mxu0 0
        %1723 = vmatpush1.bf16.xpose.msra.mxu0 0
        %1724 = vmatprep.subr.bf16.mxu0 0
        %1725 = vmatpush1.bf16.xpose.msra.mxu0 %v1708
        %1726 = vmatprep.subr.bf16.mxu0 0
        %1727 = vmatpush2.bf16.xpose.msra.mxu0 0
        %1728 = vmatprep.subr.bf16.mxu0 0
        %1729 = vmatpush2.bf16.xpose.msra.mxu0 0
        %1730 = vmatprep.subr.bf16.mxu0 0
        %1731 = vmatpush2.bf16.xpose.msra.mxu0 0
        %1732 = vmatprep.subr.bf16.mxu0 0
        %1733 = vmatpush2.bf16.xpose.msra.mxu0 0
        %1734 = vmatprep.subr.bf16.mxu0 0
        %1735 = vmatpush2.bf16.xpose.msra.mxu0 0
        %1736 = vmatprep.subr.bf16.mxu0 0
        %1737 = vmatpush2.bf16.xpose.msra.mxu0 0
        %1738 = vmatprep.subr.bf16.mxu0 0
        %1739 = vmatpush2.bf16.xpose.msra.mxu0 0
        %1740 = vmatprep.subr.bf16.mxu0 0
        %1741 = vmatpush2.bf16.xpose.msra.mxu0 0
        %1742 = vmatprep.mubr.bf16.mxu0 0
        %1743 = vmatmul.mubr.bf16.gmra.mxu0 %v1705
        %v1744 = vpop.f32.mrf.mxu0
        %v1745 = vadd.f32 0.0, %v1744
        %v1746 = vpop.f32.mrf.mxu0
        %v1747 = vpop.f32.mrf.mxu0
        %v1748 = vpop.f32.mrf.mxu0
        %1749 = vdwg.mxu0
        %v1750 = vsel %vm1528, -1e+30, %v1694
        %v1751 = vsel %vm1528, -1e+30, %v1745
        %v1752 = vsel %vm1431, %v1750, -inf
        %1753 = vmax.xlane.f32.xlu0 %v1752
        %v1754 = vpop.xlane.xlu0 %1753
        %v1755 = vsel %vm1431, %v1751, -inf
        %1756 = vmax.xlane.f32.xlu0 %v1755
        %v1757 = vpop.xlane.xlu0 %1756
        %v1758 = vsub.f32 %v1750, %v1754
        %v1759 = vsub.f32 %v1751, %v1757
        %v1760 = vmul.f32 %v1758, 1.442695
        %v1761 = vpow.pop %v1760
        %v1762 = vmul.f32 %v1759, 1.442695
        %v1763 = vpow.pop %v1762
        %v1764 = vsel %vm1431, %v1761, 0.0
        %1765 = vadd.xlane.f32.xlu0 %v1764
        %v1766 = vpop.xlane.xlu0 %1765
        %v1767 = vsel %vm1431, %v1763, 0.0
        %1768 = vadd.xlane.f32.xlu0 %v1767
        %v1769 = vpop.xlane.xlu0 %1768
        %v1770 = vrcp.pop %v1766
        %v1771 = vrcp.pop %v1769
        %v1772 = vmul.f32 %v1761, %v1770
        %v1773 = vmul.f32 %v1763, %v1771
        %v1774 = vpack.c.bf16 %v1772, %v1772
        %v1775 = vpack.c.bf16 %v1773, %v1773
        %1777 = vrot.lane.b32.xlu0 %v1426, 120
        %v1778 = vpop.permute.xlu0 %1777
        %v1780 = vsel %vm1431, %v1774, 0
        %v1783 = vsel %vm1558, %v1778, 0
        %1785 = vmatprep.subr.bf16.mxu0 0
        %1786 = vmatpush1.bf16.msra.mxu0 0
        %1787 = vmatprep.subr.bf16.mxu0 0
        %1788 = vmatpush1.bf16.msra.mxu0 0
        %1789 = vmatprep.subr.bf16.mxu0 0
        %1790 = vmatpush1.bf16.msra.mxu0 0
        %1791 = vmatprep.subr.bf16.mxu0 0
        %1792 = vmatpush1.bf16.msra.mxu0 0
        %1793 = vmatprep.subr.bf16.mxu0 0
        %1794 = vmatpush1.bf16.msra.mxu0 0
        %1795 = vmatprep.subr.bf16.mxu0 0
        %1796 = vmatpush1.bf16.msra.mxu0 0
        %1797 = vmatprep.subr.bf16.mxu0 0
        %1798 = vmatpush1.bf16.msra.mxu0 0
        %1799 = vmatprep.subr.bf16.mxu0 0
        %1800 = vmatpush1.bf16.msra.mxu0 %v1783
        %1801 = vmatprep.subr.bf16.mxu0 0
        %1802 = vmatpush2.bf16.msra.mxu0 0
        %1803 = vmatprep.subr.bf16.mxu0 0
        %1804 = vmatpush2.bf16.msra.mxu0 0
        %1805 = vmatprep.subr.bf16.mxu0 0
        %1806 = vmatpush2.bf16.msra.mxu0 0
        %1807 = vmatprep.subr.bf16.mxu0 0
        %1808 = vmatpush2.bf16.msra.mxu0 0
        %1809 = vmatprep.subr.bf16.mxu0 0
        %1810 = vmatpush2.bf16.msra.mxu0 0
        %1811 = vmatprep.subr.bf16.mxu0 0
        %1812 = vmatpush2.bf16.msra.mxu0 0
        %1813 = vmatprep.subr.bf16.mxu0 0
        %1814 = vmatpush2.bf16.msra.mxu0 0
        %1815 = vmatprep.subr.bf16.mxu0 0
        %1816 = vmatpush2.bf16.msra.mxu0 0
        %1817 = vmatprep.mubr.bf16.mxu0 0
        %1818 = vmatmul.mubr.bf16.gmra.mxu0 %v1780
        %v1819 = vpop.f32.mrf.mxu0
        %v1820 = vadd.f32 0.0, %v1819
        %v1821 = vpop.f32.mrf.mxu0
        %v1822 = vpop.f32.mrf.mxu0
        %v1823 = vpop.f32.mrf.mxu0
        %1824 = vdwg.mxu0
        %1826 = vrot.lane.b32.xlu0 %v1427, 120
        %v1827 = vpop.permute.xlu0 %1826
        %v1829 = vsel %vm1431, %v1775, 0
        %v1832 = vsel %vm1558, %v1827, 0
        %1834 = vmatprep.subr.bf16.mxu0 0
        %1835 = vmatpush1.bf16.msra.mxu0 0
        %1836 = vmatprep.subr.bf16.mxu0 0
        %1837 = vmatpush1.bf16.msra.mxu0 0
        %1838 = vmatprep.subr.bf16.mxu0 0
        %1839 = vmatpush1.bf16.msra.mxu0 0
        %1840 = vmatprep.subr.bf16.mxu0 0
        %1841 = vmatpush1.bf16.msra.mxu0 0
        %1842 = vmatprep.subr.bf16.mxu0 0
        %1843 = vmatpush1.bf16.msra.mxu0 0
        %1844 = vmatprep.subr.bf16.mxu0 0
        %1845 = vmatpush1.bf16.msra.mxu0 0
        %1846 = vmatprep.subr.bf16.mxu0 0
        %1847 = vmatpush1.bf16.msra.mxu0 0
        %1848 = vmatprep.subr.bf16.mxu0 0
        %1849 = vmatpush1.bf16.msra.mxu0 %v1832
        %1850 = vmatprep.subr.bf16.mxu0 0
        %1851 = vmatpush2.bf16.msra.mxu0 0
        %1852 = vmatprep.subr.bf16.mxu0 0
        %1853 = vmatpush2.bf16.msra.mxu0 0
        %1854 = vmatprep.subr.bf16.mxu0 0
        %1855 = vmatpush2.bf16.msra.mxu0 0
        %1856 = vmatprep.subr.bf16.mxu0 0
        %1857 = vmatpush2.bf16.msra.mxu0 0
        %1858 = vmatprep.subr.bf16.mxu0 0
        %1859 = vmatpush2.bf16.msra.mxu0 0
        %1860 = vmatprep.subr.bf16.mxu0 0
        %1861 = vmatpush2.bf16.msra.mxu0 0
        %1862 = vmatprep.subr.bf16.mxu0 0
        %1863 = vmatpush2.bf16.msra.mxu0 0
        %1864 = vmatprep.subr.bf16.mxu0 0
        %1865 = vmatpush2.bf16.msra.mxu0 0
        %1866 = vmatprep.mubr.bf16.mxu0 0
        %1867 = vmatmul.mubr.bf16.gmra.mxu0 %v1829
        %v1868 = vpop.f32.mrf.mxu0
        %v1869 = vadd.f32 0.0, %v1868
        %v1870 = vpop.f32.mrf.mxu0
        %v1871 = vpop.f32.mrf.mxu0
        %v1872 = vpop.f32.mrf.mxu0
        %1873 = vdwg.mxu0
        %1874 = vrot.lane.b32.xlu0 %v1422, 112
        %v1875 = vpop.permute.xlu0 %1874
        %1876 = vrot.lane.b32.xlu0 %v1424, 48
        %v1877 = vpop.permute.xlu0 %1876
        %v1879 = vsel %vm1431, %v1875, 0
        %v1882 = vsel %vm1431, %v1877, 0
        %1884 = vmatprep.subr.bf16.mxu0 0
        %1885 = vmatpush1.bf16.xpose.msra.mxu0 0
        %1886 = vmatprep.subr.bf16.mxu0 0
        %1887 = vmatpush1.bf16.xpose.msra.mxu0 0
        %1888 = vmatprep.subr.bf16.mxu0 0
        %1889 = vmatpush1.bf16.xpose.msra.mxu0 0
        %1890 = vmatprep.subr.bf16.mxu0 0
        %1891 = vmatpush1.bf16.xpose.msra.mxu0 0
        %1892 = vmatprep.subr.bf16.mxu0 0
        %1893 = vmatpush1.bf16.xpose.msra.mxu0 0
        %1894 = vmatprep.subr.bf16.mxu0 0
        %1895 = vmatpush1.bf16.xpose.msra.mxu0 0
        %1896 = vmatprep.subr.bf16.mxu0 0
        %1897 = vmatpush1.bf16.xpose.msra.mxu0 0
        %1898 = vmatprep.subr.bf16.mxu0 0
        %1899 = vmatpush1.bf16.xpose.msra.mxu0 %v1882
        %1900 = vmatprep.subr.bf16.mxu0 0
        %1901 = vmatpush2.bf16.xpose.msra.mxu0 0
        %1902 = vmatprep.subr.bf16.mxu0 0
        %1903 = vmatpush2.bf16.xpose.msra.mxu0 0
        %1904 = vmatprep.subr.bf16.mxu0 0
        %1905 = vmatpush2.bf16.xpose.msra.mxu0 0
        %1906 = vmatprep.subr.bf16.mxu0 0
        %1907 = vmatpush2.bf16.xpose.msra.mxu0 0
        %1908 = vmatprep.subr.bf16.mxu0 0
        %1909 = vmatpush2.bf16.xpose.msra.mxu0 0
        %1910 = vmatprep.subr.bf16.mxu0 0
        %1911 = vmatpush2.bf16.xpose.msra.mxu0 0
        %1912 = vmatprep.subr.bf16.mxu0 0
        %1913 = vmatpush2.bf16.xpose.msra.mxu0 0
        %1914 = vmatprep.subr.bf16.mxu0 0
        %1915 = vmatpush2.bf16.xpose.msra.mxu0 0
        %1916 = vmatprep.mubr.bf16.mxu0 0
        %1917 = vmatmul.mubr.bf16.gmra.mxu0 %v1879
        %v1918 = vpop.f32.mrf.mxu0
        %v1919 = vadd.f32 0.0, %v1918
        %v1920 = vpop.f32.mrf.mxu0
        %v1921 = vpop.f32.mrf.mxu0
        %v1922 = vpop.f32.mrf.mxu0
        %1923 = vdwg.mxu0
        %1924 = vrot.lane.b32.xlu0 %v1423, 112
        %v1925 = vpop.permute.xlu0 %1924
        %1926 = vrot.lane.b32.xlu0 %v1425, 48
        %v1927 = vpop.permute.xlu0 %1926
        %v1929 = vsel %vm1431, %v1925, 0
        %v1932 = vsel %vm1431, %v1927, 0
        %1934 = vmatprep.subr.bf16.mxu0 0
        %1935 = vmatpush1.bf16.xpose.msra.mxu0 0
        %1936 = vmatprep.subr.bf16.mxu0 0
        %1937 = vmatpush1.bf16.xpose.msra.mxu0 0
        %1938 = vmatprep.subr.bf16.mxu0 0
        %1939 = vmatpush1.bf16.xpose.msra.mxu0 0
        %1940 = vmatprep.subr.bf16.mxu0 0
        %1941 = vmatpush1.bf16.xpose.msra.mxu0 0
        %1942 = vmatprep.subr.bf16.mxu0 0
        %1943 = vmatpush1.bf16.xpose.msra.mxu0 0
        %1944 = vmatprep.subr.bf16.mxu0 0
        %1945 = vmatpush1.bf16.xpose.msra.mxu0 0
        %1946 = vmatprep.subr.bf16.mxu0 0
        %1947 = vmatpush1.bf16.xpose.msra.mxu0 0
        %1948 = vmatprep.subr.bf16.mxu0 0
        %1949 = vmatpush1.bf16.xpose.msra.mxu0 %v1932
        %1950 = vmatprep.subr.bf16.mxu0 0
        %1951 = vmatpush2.bf16.xpose.msra.mxu0 0
        %1952 = vmatprep.subr.bf16.mxu0 0
        %1953 = vmatpush2.bf16.xpose.msra.mxu0 0
        %1954 = vmatprep.subr.bf16.mxu0 0
        %1955 = vmatpush2.bf16.xpose.msra.mxu0 0
        %1956 = vmatprep.subr.bf16.mxu0 0
        %1957 = vmatpush2.bf16.xpose.msra.mxu0 0
        %1958 = vmatprep.subr.bf16.mxu0 0
        %1959 = vmatpush2.bf16.xpose.msra.mxu0 0
        %1960 = vmatprep.subr.bf16.mxu0 0
        %1961 = vmatpush2.bf16.xpose.msra.mxu0 0
        %1962 = vmatprep.subr.bf16.mxu0 0
        %1963 = vmatpush2.bf16.xpose.msra.mxu0 0
        %1964 = vmatprep.subr.bf16.mxu0 0
        %1965 = vmatpush2.bf16.xpose.msra.mxu0 0
        %1966 = vmatprep.mubr.bf16.mxu0 0
        %1967 = vmatmul.mubr.bf16.gmra.mxu0 %v1929
        %v1968 = vpop.f32.mrf.mxu0
        %v1969 = vadd.f32 0.0, %v1968
        %v1970 = vpop.f32.mrf.mxu0
        %v1971 = vpop.f32.mrf.mxu0
        %v1972 = vpop.f32.mrf.mxu0
        %1973 = vdwg.mxu0
        %v1974 = vsel %vm1528, -1e+30, %v1919
        %v1975 = vsel %vm1528, -1e+30, %v1969
        %v1976 = vsel %vm1431, %v1974, -inf
        %1977 = vmax.xlane.f32.xlu0 %v1976
        %v1978 = vpop.xlane.xlu0 %1977
        %v1979 = vsel %vm1431, %v1975, -inf
        %1980 = vmax.xlane.f32.xlu0 %v1979
        %v1981 = vpop.xlane.xlu0 %1980
        %v1982 = vsub.f32 %v1974, %v1978
        %v1983 = vsub.f32 %v1975, %v1981
        %v1984 = vmul.f32 %v1982, 1.442695
        %v1985 = vpow.pop %v1984
        %v1986 = vmul.f32 %v1983, 1.442695
        %v1987 = vpow.pop %v1986
        %v1988 = vsel %vm1431, %v1985, 0.0
        %1989 = vadd.xlane.f32.xlu0 %v1988
        %v1990 = vpop.xlane.xlu0 %1989
        %v1991 = vsel %vm1431, %v1987, 0.0
        %1992 = vadd.xlane.f32.xlu0 %v1991
        %v1993 = vpop.xlane.xlu0 %1992
        %v1994 = vrcp.pop %v1990
        %v1995 = vrcp.pop %v1993
        %v1996 = vmul.f32 %v1985, %v1994
        %v1997 = vmul.f32 %v1987, %v1995
        %v1998 = vpack.c.bf16 %v1996, %v1996
        %v1999 = vpack.c.bf16 %v1997, %v1997
        %2000 = vrot.lane.b32.xlu0 %v1426, 112
        %v2001 = vpop.permute.xlu0 %2000
        %v2003 = vsel %vm1431, %v1998, 0
        %v2006 = vsel %vm1558, %v2001, 0
        %2008 = vmatprep.subr.bf16.mxu0 0
        %2009 = vmatpush1.bf16.msra.mxu0 0
        %2010 = vmatprep.subr.bf16.mxu0 0
        %2011 = vmatpush1.bf16.msra.mxu0 0
        %2012 = vmatprep.subr.bf16.mxu0 0
        %2013 = vmatpush1.bf16.msra.mxu0 0
        %2014 = vmatprep.subr.bf16.mxu0 0
        %2015 = vmatpush1.bf16.msra.mxu0 0
        %2016 = vmatprep.subr.bf16.mxu0 0
        %2017 = vmatpush1.bf16.msra.mxu0 0
        %2018 = vmatprep.subr.bf16.mxu0 0
        %2019 = vmatpush1.bf16.msra.mxu0 0
        %2020 = vmatprep.subr.bf16.mxu0 0
        %2021 = vmatpush1.bf16.msra.mxu0 0
        %2022 = vmatprep.subr.bf16.mxu0 0
        %2023 = vmatpush1.bf16.msra.mxu0 %v2006
        %2024 = vmatprep.subr.bf16.mxu0 0
        %2025 = vmatpush2.bf16.msra.mxu0 0
        %2026 = vmatprep.subr.bf16.mxu0 0
        %2027 = vmatpush2.bf16.msra.mxu0 0
        %2028 = vmatprep.subr.bf16.mxu0 0
        %2029 = vmatpush2.bf16.msra.mxu0 0
        %2030 = vmatprep.subr.bf16.mxu0 0
        %2031 = vmatpush2.bf16.msra.mxu0 0
        %2032 = vmatprep.subr.bf16.mxu0 0
        %2033 = vmatpush2.bf16.msra.mxu0 0
        %2034 = vmatprep.subr.bf16.mxu0 0
        %2035 = vmatpush2.bf16.msra.mxu0 0
        %2036 = vmatprep.subr.bf16.mxu0 0
        %2037 = vmatpush2.bf16.msra.mxu0 0
        %2038 = vmatprep.subr.bf16.mxu0 0
        %2039 = vmatpush2.bf16.msra.mxu0 0
        %2040 = vmatprep.mubr.bf16.mxu0 0
        %2041 = vmatmul.mubr.bf16.gmra.mxu0 %v2003
        %v2042 = vpop.f32.mrf.mxu0
        %v2043 = vadd.f32 0.0, %v2042
        %v2044 = vpop.f32.mrf.mxu0
        %v2045 = vpop.f32.mrf.mxu0
        %v2046 = vpop.f32.mrf.mxu0
        %2047 = vdwg.mxu0
        %2048 = vrot.lane.b32.xlu0 %v1427, 112
        %v2049 = vpop.permute.xlu0 %2048
        %v2051 = vsel %vm1431, %v1999, 0
        %v2054 = vsel %vm1558, %v2049, 0
        %2056 = vmatprep.subr.bf16.mxu0 0
        %2057 = vmatpush1.bf16.msra.mxu0 0
        %2058 = vmatprep.subr.bf16.mxu0 0
        %2059 = vmatpush1.bf16.msra.mxu0 0
        %2060 = vmatprep.subr.bf16.mxu0 0
        %2061 = vmatpush1.bf16.msra.mxu0 0
        %2062 = vmatprep.subr.bf16.mxu0 0
        %2063 = vmatpush1.bf16.msra.mxu0 0
        %2064 = vmatprep.subr.bf16.mxu0 0
        %2065 = vmatpush1.bf16.msra.mxu0 0
        %2066 = vmatprep.subr.bf16.mxu0 0
        %2067 = vmatpush1.bf16.msra.mxu0 0
        %2068 = vmatprep.subr.bf16.mxu0 0
        %2069 = vmatpush1.bf16.msra.mxu0 0
        %2070 = vmatprep.subr.bf16.mxu0 0
        %2071 = vmatpush1.bf16.msra.mxu0 %v2054
        %2072 = vmatprep.subr.bf16.mxu0 0
        %2073 = vmatpush2.bf16.msra.mxu0 0
        %2074 = vmatprep.subr.bf16.mxu0 0
        %2075 = vmatpush2.bf16.msra.mxu0 0
        %2076 = vmatprep.subr.bf16.mxu0 0
        %2077 = vmatpush2.bf16.msra.mxu0 0
        %2078 = vmatprep.subr.bf16.mxu0 0
        %2079 = vmatpush2.bf16.msra.mxu0 0
        %2080 = vmatprep.subr.bf16.mxu0 0
        %2081 = vmatpush2.bf16.msra.mxu0 0
        %2082 = vmatprep.subr.bf16.mxu0 0
        %2083 = vmatpush2.bf16.msra.mxu0 0
        %2084 = vmatprep.subr.bf16.mxu0 0
        %2085 = vmatpush2.bf16.msra.mxu0 0
        %2086 = vmatprep.subr.bf16.mxu0 0
        %2087 = vmatpush2.bf16.msra.mxu0 0
        %2088 = vmatprep.mubr.bf16.mxu0 0
        %2089 = vmatmul.mubr.bf16.gmra.mxu0 %v2051
        %v2090 = vpop.f32.mrf.mxu0
        %v2091 = vadd.f32 0.0, %v2090
        %v2092 = vpop.f32.mrf.mxu0
        %v2093 = vpop.f32.mrf.mxu0
        %v2094 = vpop.f32.mrf.mxu0
        %2095 = vdwg.mxu0
        %2096 = vrot.lane.b32.xlu0 %v1422, 104
        %v2097 = vpop.permute.xlu0 %2096
        %2098 = vrot.lane.b32.xlu0 %v1424, 40
        %v2099 = vpop.permute.xlu0 %2098
        %v2101 = vsel %vm1431, %v2097, 0
        %v2104 = vsel %vm1431, %v2099, 0
        %2106 = vmatprep.subr.bf16.mxu0 0
        %2107 = vmatpush1.bf16.xpose.msra.mxu0 0
        %2108 = vmatprep.subr.bf16.mxu0 0
        %2109 = vmatpush1.bf16.xpose.msra.mxu0 0
        %2110 = vmatprep.subr.bf16.mxu0 0
        %2111 = vmatpush1.bf16.xpose.msra.mxu0 0
        %2112 = vmatprep.subr.bf16.mxu0 0
        %2113 = vmatpush1.bf16.xpose.msra.mxu0 0
        %2114 = vmatprep.subr.bf16.mxu0 0
        %2115 = vmatpush1.bf16.xpose.msra.mxu0 0
        %2116 = vmatprep.subr.bf16.mxu0 0
        %2117 = vmatpush1.bf16.xpose.msra.mxu0 0
        %2118 = vmatprep.subr.bf16.mxu0 0
        %2119 = vmatpush1.bf16.xpose.msra.mxu0 0
        %2120 = vmatprep.subr.bf16.mxu0 0
        %2121 = vmatpush1.bf16.xpose.msra.mxu0 %v2104
        %2122 = vmatprep.subr.bf16.mxu0 0
        %2123 = vmatpush2.bf16.xpose.msra.mxu0 0
        %2124 = vmatprep.subr.bf16.mxu0 0
        %2125 = vmatpush2.bf16.xpose.msra.mxu0 0
        %2126 = vmatprep.subr.bf16.mxu0 0
        %2127 = vmatpush2.bf16.xpose.msra.mxu0 0
        %2128 = vmatprep.subr.bf16.mxu0 0
        %2129 = vmatpush2.bf16.xpose.msra.mxu0 0
        %2130 = vmatprep.subr.bf16.mxu0 0
        %2131 = vmatpush2.bf16.xpose.msra.mxu0 0
        %2132 = vmatprep.subr.bf16.mxu0 0
        %2133 = vmatpush2.bf16.xpose.msra.mxu0 0
        %2134 = vmatprep.subr.bf16.mxu0 0
        %2135 = vmatpush2.bf16.xpose.msra.mxu0 0
        %2136 = vmatprep.subr.bf16.mxu0 0
        %2137 = vmatpush2.bf16.xpose.msra.mxu0 0
        %2138 = vmatprep.mubr.bf16.mxu0 0
        %2139 = vmatmul.mubr.bf16.gmra.mxu0 %v2101
        %v2140 = vpop.f32.mrf.mxu0
        %v2141 = vadd.f32 0.0, %v2140
        %v2142 = vpop.f32.mrf.mxu0
        %v2143 = vpop.f32.mrf.mxu0
        %v2144 = vpop.f32.mrf.mxu0
        %2145 = vdwg.mxu0
        %2146 = vrot.lane.b32.xlu0 %v1423, 104
        %v2147 = vpop.permute.xlu0 %2146
        %2148 = vrot.lane.b32.xlu0 %v1425, 40
        %v2149 = vpop.permute.xlu0 %2148
        %v2151 = vsel %vm1431, %v2147, 0
        %v2154 = vsel %vm1431, %v2149, 0
        %2156 = vmatprep.subr.bf16.mxu0 0
        %2157 = vmatpush1.bf16.xpose.msra.mxu0 0
        %2158 = vmatprep.subr.bf16.mxu0 0
        %2159 = vmatpush1.bf16.xpose.msra.mxu0 0
        %2160 = vmatprep.subr.bf16.mxu0 0
        %2161 = vmatpush1.bf16.xpose.msra.mxu0 0
        %2162 = vmatprep.subr.bf16.mxu0 0
        %2163 = vmatpush1.bf16.xpose.msra.mxu0 0
        %2164 = vmatprep.subr.bf16.mxu0 0
        %2165 = vmatpush1.bf16.xpose.msra.mxu0 0
        %2166 = vmatprep.subr.bf16.mxu0 0
        %2167 = vmatpush1.bf16.xpose.msra.mxu0 0
        %2168 = vmatprep.subr.bf16.mxu0 0
        %2169 = vmatpush1.bf16.xpose.msra.mxu0 0
        %2170 = vmatprep.subr.bf16.mxu0 0
        %2171 = vmatpush1.bf16.xpose.msra.mxu0 %v2154
        %2172 = vmatprep.subr.bf16.mxu0 0
        %2173 = vmatpush2.bf16.xpose.msra.mxu0 0
        %2174 = vmatprep.subr.bf16.mxu0 0
        %2175 = vmatpush2.bf16.xpose.msra.mxu0 0
        %2176 = vmatprep.subr.bf16.mxu0 0
        %2177 = vmatpush2.bf16.xpose.msra.mxu0 0
        %2178 = vmatprep.subr.bf16.mxu0 0
        %2179 = vmatpush2.bf16.xpose.msra.mxu0 0
        %2180 = vmatprep.subr.bf16.mxu0 0
        %2181 = vmatpush2.bf16.xpose.msra.mxu0 0
        %2182 = vmatprep.subr.bf16.mxu0 0
        %2183 = vmatpush2.bf16.xpose.msra.mxu0 0
        %2184 = vmatprep.subr.bf16.mxu0 0
        %2185 = vmatpush2.bf16.xpose.msra.mxu0 0
        %2186 = vmatprep.subr.bf16.mxu0 0
        %2187 = vmatpush2.bf16.xpose.msra.mxu0 0
        %2188 = vmatprep.mubr.bf16.mxu0 0
        %2189 = vmatmul.mubr.bf16.gmra.mxu0 %v2151
        %v2190 = vpop.f32.mrf.mxu0
        %v2191 = vadd.f32 0.0, %v2190
        %v2192 = vpop.f32.mrf.mxu0
        %v2193 = vpop.f32.mrf.mxu0
        %v2194 = vpop.f32.mrf.mxu0
        %2195 = vdwg.mxu0
        %v2196 = vsel %vm1528, -1e+30, %v2141
        %v2197 = vsel %vm1528, -1e+30, %v2191
        %v2198 = vsel %vm1431, %v2196, -inf
        %2199 = vmax.xlane.f32.xlu0 %v2198
        %v2200 = vpop.xlane.xlu0 %2199
        %v2201 = vsel %vm1431, %v2197, -inf
        %2202 = vmax.xlane.f32.xlu0 %v2201
        %v2203 = vpop.xlane.xlu0 %2202
        %v2204 = vsub.f32 %v2196, %v2200
        %v2205 = vsub.f32 %v2197, %v2203
        %v2206 = vmul.f32 %v2204, 1.442695
        %v2207 = vpow.pop %v2206
        %v2208 = vmul.f32 %v2205, 1.442695
        %v2209 = vpow.pop %v2208
        %v2210 = vsel %vm1431, %v2207, 0.0
        %2211 = vadd.xlane.f32.xlu0 %v2210
        %v2212 = vpop.xlane.xlu0 %2211
        %v2213 = vsel %vm1431, %v2209, 0.0
        %2214 = vadd.xlane.f32.xlu0 %v2213
        %v2215 = vpop.xlane.xlu0 %2214
        %v2216 = vrcp.pop %v2212
        %v2217 = vrcp.pop %v2215
        %v2218 = vmul.f32 %v2207, %v2216
        %v2219 = vmul.f32 %v2209, %v2217
        %v2220 = vpack.c.bf16 %v2218, %v2218
        %v2221 = vpack.c.bf16 %v2219, %v2219
        %2222 = vrot.lane.b32.xlu0 %v1426, 104
        %v2223 = vpop.permute.xlu0 %2222
        %v2225 = vsel %vm1431, %v2220, 0
        %v2228 = vsel %vm1558, %v2223, 0
        %2230 = vmatprep.subr.bf16.mxu0 0
        %2231 = vmatpush1.bf16.msra.mxu0 0
        %2232 = vmatprep.subr.bf16.mxu0 0
        %2233 = vmatpush1.bf16.msra.mxu0 0
        %2234 = vmatprep.subr.bf16.mxu0 0
        %2235 = vmatpush1.bf16.msra.mxu0 0
        %2236 = vmatprep.subr.bf16.mxu0 0
        %2237 = vmatpush1.bf16.msra.mxu0 0
        %2238 = vmatprep.subr.bf16.mxu0 0
        %2239 = vmatpush1.bf16.msra.mxu0 0
        %2240 = vmatprep.subr.bf16.mxu0 0
        %2241 = vmatpush1.bf16.msra.mxu0 0
        %2242 = vmatprep.subr.bf16.mxu0 0
        %2243 = vmatpush1.bf16.msra.mxu0 0
        %2244 = vmatprep.subr.bf16.mxu0 0
        %2245 = vmatpush1.bf16.msra.mxu0 %v2228
        %2246 = vmatprep.subr.bf16.mxu0 0
        %2247 = vmatpush2.bf16.msra.mxu0 0
        %2248 = vmatprep.subr.bf16.mxu0 0
        %2249 = vmatpush2.bf16.msra.mxu0 0
        %2250 = vmatprep.subr.bf16.mxu0 0
        %2251 = vmatpush2.bf16.msra.mxu0 0
        %2252 = vmatprep.subr.bf16.mxu0 0
        %2253 = vmatpush2.bf16.msra.mxu0 0
        %2254 = vmatprep.subr.bf16.mxu0 0
        %2255 = vmatpush2.bf16.msra.mxu0 0
        %2256 = vmatprep.subr.bf16.mxu0 0
        %2257 = vmatpush2.bf16.msra.mxu0 0
        %2258 = vmatprep.subr.bf16.mxu0 0
        %2259 = vmatpush2.bf16.msra.mxu0 0
        %2260 = vmatprep.subr.bf16.mxu0 0
        %2261 = vmatpush2.bf16.msra.mxu0 0
        %2262 = vmatprep.mubr.bf16.mxu0 0
        %2263 = vmatmul.mubr.bf16.gmra.mxu0 %v2225
        %v2264 = vpop.f32.mrf.mxu0
        %v2265 = vadd.f32 0.0, %v2264
        %v2266 = vpop.f32.mrf.mxu0
        %v2267 = vpop.f32.mrf.mxu0
        %v2268 = vpop.f32.mrf.mxu0
        %2269 = vdwg.mxu0
        %2270 = vrot.lane.b32.xlu0 %v1427, 104
        %v2271 = vpop.permute.xlu0 %2270
        %v2273 = vsel %vm1431, %v2221, 0
        %v2276 = vsel %vm1558, %v2271, 0
        %2278 = vmatprep.subr.bf16.mxu0 0
        %2279 = vmatpush1.bf16.msra.mxu0 0
        %2280 = vmatprep.subr.bf16.mxu0 0
        %2281 = vmatpush1.bf16.msra.mxu0 0
        %2282 = vmatprep.subr.bf16.mxu0 0
        %2283 = vmatpush1.bf16.msra.mxu0 0
        %2284 = vmatprep.subr.bf16.mxu0 0
        %2285 = vmatpush1.bf16.msra.mxu0 0
        %2286 = vmatprep.subr.bf16.mxu0 0
        %2287 = vmatpush1.bf16.msra.mxu0 0
        %2288 = vmatprep.subr.bf16.mxu0 0
        %2289 = vmatpush1.bf16.msra.mxu0 0
        %2290 = vmatprep.subr.bf16.mxu0 0
        %2291 = vmatpush1.bf16.msra.mxu0 0
        %2292 = vmatprep.subr.bf16.mxu0 0
        %2293 = vmatpush1.bf16.msra.mxu0 %v2276
        %2294 = vmatprep.subr.bf16.mxu0 0
        %2295 = vmatpush2.bf16.msra.mxu0 0
        %2296 = vmatprep.subr.bf16.mxu0 0
        %2297 = vmatpush2.bf16.msra.mxu0 0
        %2298 = vmatprep.subr.bf16.mxu0 0
        %2299 = vmatpush2.bf16.msra.mxu0 0
        %2300 = vmatprep.subr.bf16.mxu0 0
        %2301 = vmatpush2.bf16.msra.mxu0 0
        %2302 = vmatprep.subr.bf16.mxu0 0
        %2303 = vmatpush2.bf16.msra.mxu0 0
        %2304 = vmatprep.subr.bf16.mxu0 0
        %2305 = vmatpush2.bf16.msra.mxu0 0
        %2306 = vmatprep.subr.bf16.mxu0 0
        %2307 = vmatpush2.bf16.msra.mxu0 0
        %2308 = vmatprep.subr.bf16.mxu0 0
        %2309 = vmatpush2.bf16.msra.mxu0 0
        %2310 = vmatprep.mubr.bf16.mxu0 0
        %2311 = vmatmul.mubr.bf16.gmra.mxu0 %v2273
        %v2312 = vpop.f32.mrf.mxu0
        %v2313 = vadd.f32 0.0, %v2312
        %v2314 = vpop.f32.mrf.mxu0
        %v2315 = vpop.f32.mrf.mxu0
        %v2316 = vpop.f32.mrf.mxu0
        %2317 = vdwg.mxu0
        %2318 = vrot.lane.b32.xlu0 %v1422, 96
        %v2319 = vpop.permute.xlu0 %2318
        %2320 = vrot.lane.b32.xlu0 %v1424, 32
        %v2321 = vpop.permute.xlu0 %2320
        %v2323 = vsel %vm1431, %v2319, 0
        %v2326 = vsel %vm1431, %v2321, 0
        %2328 = vmatprep.subr.bf16.mxu0 0
        %2329 = vmatpush1.bf16.xpose.msra.mxu0 0
        %2330 = vmatprep.subr.bf16.mxu0 0
        %2331 = vmatpush1.bf16.xpose.msra.mxu0 0
        %2332 = vmatprep.subr.bf16.mxu0 0
        %2333 = vmatpush1.bf16.xpose.msra.mxu0 0
        %2334 = vmatprep.subr.bf16.mxu0 0
        %2335 = vmatpush1.bf16.xpose.msra.mxu0 0
        %2336 = vmatprep.subr.bf16.mxu0 0
        %2337 = vmatpush1.bf16.xpose.msra.mxu0 0
        %2338 = vmatprep.subr.bf16.mxu0 0
        %2339 = vmatpush1.bf16.xpose.msra.mxu0 0
        %2340 = vmatprep.subr.bf16.mxu0 0
        %2341 = vmatpush1.bf16.xpose.msra.mxu0 0
        %2342 = vmatprep.subr.bf16.mxu0 0
        %2343 = vmatpush1.bf16.xpose.msra.mxu0 %v2326
        %2344 = vmatprep.subr.bf16.mxu0 0
        %2345 = vmatpush2.bf16.xpose.msra.mxu0 0
        %2346 = vmatprep.subr.bf16.mxu0 0
        %2347 = vmatpush2.bf16.xpose.msra.mxu0 0
        %2348 = vmatprep.subr.bf16.mxu0 0
        %2349 = vmatpush2.bf16.xpose.msra.mxu0 0
        %2350 = vmatprep.subr.bf16.mxu0 0
        %2351 = vmatpush2.bf16.xpose.msra.mxu0 0
        %2352 = vmatprep.subr.bf16.mxu0 0
        %2353 = vmatpush2.bf16.xpose.msra.mxu0 0
        %2354 = vmatprep.subr.bf16.mxu0 0
        %2355 = vmatpush2.bf16.xpose.msra.mxu0 0
        %2356 = vmatprep.subr.bf16.mxu0 0
        %2357 = vmatpush2.bf16.xpose.msra.mxu0 0
        %2358 = vmatprep.subr.bf16.mxu0 0
        %2359 = vmatpush2.bf16.xpose.msra.mxu0 0
        %2360 = vmatprep.mubr.bf16.mxu0 0
        %2361 = vmatmul.mubr.bf16.gmra.mxu0 %v2323
        %v2362 = vpop.f32.mrf.mxu0
        %v2363 = vadd.f32 0.0, %v2362
        %v2364 = vpop.f32.mrf.mxu0
        %v2365 = vpop.f32.mrf.mxu0
        %v2366 = vpop.f32.mrf.mxu0
        %2367 = vdwg.mxu0
        %2368 = vrot.lane.b32.xlu0 %v1423, 96
        %v2369 = vpop.permute.xlu0 %2368
        %2370 = vrot.lane.b32.xlu0 %v1425, 32
        %v2371 = vpop.permute.xlu0 %2370
        %v2373 = vsel %vm1431, %v2369, 0
        %v2376 = vsel %vm1431, %v2371, 0
        %2378 = vmatprep.subr.bf16.mxu0 0
        %2379 = vmatpush1.bf16.xpose.msra.mxu0 0
        %2380 = vmatprep.subr.bf16.mxu0 0
        %2381 = vmatpush1.bf16.xpose.msra.mxu0 0
        %2382 = vmatprep.subr.bf16.mxu0 0
        %2383 = vmatpush1.bf16.xpose.msra.mxu0 0
        %2384 = vmatprep.subr.bf16.mxu0 0
        %2385 = vmatpush1.bf16.xpose.msra.mxu0 0
        %2386 = vmatprep.subr.bf16.mxu0 0
        %2387 = vmatpush1.bf16.xpose.msra.mxu0 0
        %2388 = vmatprep.subr.bf16.mxu0 0
        %2389 = vmatpush1.bf16.xpose.msra.mxu0 0
        %2390 = vmatprep.subr.bf16.mxu0 0
        %2391 = vmatpush1.bf16.xpose.msra.mxu0 0
        %2392 = vmatprep.subr.bf16.mxu0 0
        %2393 = vmatpush1.bf16.xpose.msra.mxu0 %v2376
        %2394 = vmatprep.subr.bf16.mxu0 0
        %2395 = vmatpush2.bf16.xpose.msra.mxu0 0
        %2396 = vmatprep.subr.bf16.mxu0 0
        %2397 = vmatpush2.bf16.xpose.msra.mxu0 0
        %2398 = vmatprep.subr.bf16.mxu0 0
        %2399 = vmatpush2.bf16.xpose.msra.mxu0 0
        %2400 = vmatprep.subr.bf16.mxu0 0
        %2401 = vmatpush2.bf16.xpose.msra.mxu0 0
        %2402 = vmatprep.subr.bf16.mxu0 0
        %2403 = vmatpush2.bf16.xpose.msra.mxu0 0
        %2404 = vmatprep.subr.bf16.mxu0 0
        %2405 = vmatpush2.bf16.xpose.msra.mxu0 0
        %2406 = vmatprep.subr.bf16.mxu0 0
        %2407 = vmatpush2.bf16.xpose.msra.mxu0 0
        %2408 = vmatprep.subr.bf16.mxu0 0
        %2409 = vmatpush2.bf16.xpose.msra.mxu0 0
        %2410 = vmatprep.mubr.bf16.mxu0 0
        %2411 = vmatmul.mubr.bf16.gmra.mxu0 %v2373
        %v2412 = vpop.f32.mrf.mxu0
        %v2413 = vadd.f32 0.0, %v2412
        %v2414 = vpop.f32.mrf.mxu0
        %v2415 = vpop.f32.mrf.mxu0
        %v2416 = vpop.f32.mrf.mxu0
        %2417 = vdwg.mxu0
        %v2418 = vsel %vm1528, -1e+30, %v2363
        %v2419 = vsel %vm1528, -1e+30, %v2413
        %v2420 = vsel %vm1431, %v2418, -inf
        %2421 = vmax.xlane.f32.xlu0 %v2420
        %v2422 = vpop.xlane.xlu0 %2421
        %v2423 = vsel %vm1431, %v2419, -inf
        %2424 = vmax.xlane.f32.xlu0 %v2423
        %v2425 = vpop.xlane.xlu0 %2424
        %v2426 = vsub.f32 %v2418, %v2422
        %v2427 = vsub.f32 %v2419, %v2425
        %v2428 = vmul.f32 %v2426, 1.442695
        %v2429 = vpow.pop %v2428
        %v2430 = vmul.f32 %v2427, 1.442695
        %v2431 = vpow.pop %v2430
        %v2432 = vsel %vm1431, %v2429, 0.0
        %2433 = vadd.xlane.f32.xlu0 %v2432
        %v2434 = vpop.xlane.xlu0 %2433
        %v2435 = vsel %vm1431, %v2431, 0.0
        %2436 = vadd.xlane.f32.xlu0 %v2435
        %v2437 = vpop.xlane.xlu0 %2436
        %v2438 = vrcp.pop %v2434
        %v2439 = vrcp.pop %v2437
        %v2440 = vmul.f32 %v2429, %v2438
        %v2441 = vmul.f32 %v2431, %v2439
        %v2442 = vpack.c.bf16 %v2440, %v2440
        %v2443 = vpack.c.bf16 %v2441, %v2441
        %2444 = vrot.lane.b32.xlu0 %v1426, 96
        %v2445 = vpop.permute.xlu0 %2444
        %v2447 = vsel %vm1431, %v2442, 0
        %v2450 = vsel %vm1558, %v2445, 0
        %2452 = vmatprep.subr.bf16.mxu0 0
        %2453 = vmatpush1.bf16.msra.mxu0 0
        %2454 = vmatprep.subr.bf16.mxu0 0
        %2455 = vmatpush1.bf16.msra.mxu0 0
        %2456 = vmatprep.subr.bf16.mxu0 0
        %2457 = vmatpush1.bf16.msra.mxu0 0
        %2458 = vmatprep.subr.bf16.mxu0 0
        %2459 = vmatpush1.bf16.msra.mxu0 0
        %2460 = vmatprep.subr.bf16.mxu0 0
        %2461 = vmatpush1.bf16.msra.mxu0 0
        %2462 = vmatprep.subr.bf16.mxu0 0
        %2463 = vmatpush1.bf16.msra.mxu0 0
        %2464 = vmatprep.subr.bf16.mxu0 0
        %2465 = vmatpush1.bf16.msra.mxu0 0
        %2466 = vmatprep.subr.bf16.mxu0 0
        %2467 = vmatpush1.bf16.msra.mxu0 %v2450
        %2468 = vmatprep.subr.bf16.mxu0 0
        %2469 = vmatpush2.bf16.msra.mxu0 0
        %2470 = vmatprep.subr.bf16.mxu0 0
        %2471 = vmatpush2.bf16.msra.mxu0 0
        %2472 = vmatprep.subr.bf16.mxu0 0
        %2473 = vmatpush2.bf16.msra.mxu0 0
        %2474 = vmatprep.subr.bf16.mxu0 0
        %2475 = vmatpush2.bf16.msra.mxu0 0
        %2476 = vmatprep.subr.bf16.mxu0 0
        %2477 = vmatpush2.bf16.msra.mxu0 0
        %2478 = vmatprep.subr.bf16.mxu0 0
        %2479 = vmatpush2.bf16.msra.mxu0 0
        %2480 = vmatprep.subr.bf16.mxu0 0
        %2481 = vmatpush2.bf16.msra.mxu0 0
        %2482 = vmatprep.subr.bf16.mxu0 0
        %2483 = vmatpush2.bf16.msra.mxu0 0
        %2484 = vmatprep.mubr.bf16.mxu0 0
        %2485 = vmatmul.mubr.bf16.gmra.mxu0 %v2447
        %v2486 = vpop.f32.mrf.mxu0
        %v2487 = vadd.f32 0.0, %v2486
        %v2488 = vpop.f32.mrf.mxu0
        %v2489 = vpop.f32.mrf.mxu0
        %v2490 = vpop.f32.mrf.mxu0
        %2491 = vdwg.mxu0
        %2492 = vrot.lane.b32.xlu0 %v1427, 96
        %v2493 = vpop.permute.xlu0 %2492
        %v2495 = vsel %vm1431, %v2443, 0
        %v2498 = vsel %vm1558, %v2493, 0
        %2500 = vmatprep.subr.bf16.mxu0 0
        %2501 = vmatpush1.bf16.msra.mxu0 0
        %2502 = vmatprep.subr.bf16.mxu0 0
        %2503 = vmatpush1.bf16.msra.mxu0 0
        %2504 = vmatprep.subr.bf16.mxu0 0
        %2505 = vmatpush1.bf16.msra.mxu0 0
        %2506 = vmatprep.subr.bf16.mxu0 0
        %2507 = vmatpush1.bf16.msra.mxu0 0
        %2508 = vmatprep.subr.bf16.mxu0 0
        %2509 = vmatpush1.bf16.msra.mxu0 0
        %2510 = vmatprep.subr.bf16.mxu0 0
        %2511 = vmatpush1.bf16.msra.mxu0 0
        %2512 = vmatprep.subr.bf16.mxu0 0
        %2513 = vmatpush1.bf16.msra.mxu0 0
        %2514 = vmatprep.subr.bf16.mxu0 0
        %2515 = vmatpush1.bf16.msra.mxu0 %v2498
        %2516 = vmatprep.subr.bf16.mxu0 0
        %2517 = vmatpush2.bf16.msra.mxu0 0
        %2518 = vmatprep.subr.bf16.mxu0 0
        %2519 = vmatpush2.bf16.msra.mxu0 0
        %2520 = vmatprep.subr.bf16.mxu0 0
        %2521 = vmatpush2.bf16.msra.mxu0 0
        %2522 = vmatprep.subr.bf16.mxu0 0
        %2523 = vmatpush2.bf16.msra.mxu0 0
        %2524 = vmatprep.subr.bf16.mxu0 0
        %2525 = vmatpush2.bf16.msra.mxu0 0
        %2526 = vmatprep.subr.bf16.mxu0 0
        %2527 = vmatpush2.bf16.msra.mxu0 0
        %2528 = vmatprep.subr.bf16.mxu0 0
        %2529 = vmatpush2.bf16.msra.mxu0 0
        %2530 = vmatprep.subr.bf16.mxu0 0
        %2531 = vmatpush2.bf16.msra.mxu0 0
        %2532 = vmatprep.mubr.bf16.mxu0 0
        %2533 = vmatmul.mubr.bf16.gmra.mxu0 %v2495
        %v2534 = vpop.f32.mrf.mxu0
        %v2535 = vadd.f32 0.0, %v2534
        %v2536 = vpop.f32.mrf.mxu0
        %v2537 = vpop.f32.mrf.mxu0
        %v2538 = vpop.f32.mrf.mxu0
        %2539 = vdwg.mxu0
        %2540 = vrot.lane.b32.xlu0 %v1422, 88
        %v2541 = vpop.permute.xlu0 %2540
        %2542 = vrot.lane.b32.xlu0 %v1424, 24
        %v2543 = vpop.permute.xlu0 %2542
        %v2545 = vsel %vm1431, %v2541, 0
        %v2548 = vsel %vm1431, %v2543, 0
        %2550 = vmatprep.subr.bf16.mxu0 0
        %2551 = vmatpush1.bf16.xpose.msra.mxu0 0
        %2552 = vmatprep.subr.bf16.mxu0 0
        %2553 = vmatpush1.bf16.xpose.msra.mxu0 0
        %2554 = vmatprep.subr.bf16.mxu0 0
        %2555 = vmatpush1.bf16.xpose.msra.mxu0 0
        %2556 = vmatprep.subr.bf16.mxu0 0
        %2557 = vmatpush1.bf16.xpose.msra.mxu0 0
        %2558 = vmatprep.subr.bf16.mxu0 0
        %2559 = vmatpush1.bf16.xpose.msra.mxu0 0
        %2560 = vmatprep.subr.bf16.mxu0 0
        %2561 = vmatpush1.bf16.xpose.msra.mxu0 0
        %2562 = vmatprep.subr.bf16.mxu0 0
        %2563 = vmatpush1.bf16.xpose.msra.mxu0 0
        %2564 = vmatprep.subr.bf16.mxu0 0
        %2565 = vmatpush1.bf16.xpose.msra.mxu0 %v2548
        %2566 = vmatprep.subr.bf16.mxu0 0
        %2567 = vmatpush2.bf16.xpose.msra.mxu0 0
        %2568 = vmatprep.subr.bf16.mxu0 0
        %2569 = vmatpush2.bf16.xpose.msra.mxu0 0
        %2570 = vmatprep.subr.bf16.mxu0 0
        %2571 = vmatpush2.bf16.xpose.msra.mxu0 0
        %2572 = vmatprep.subr.bf16.mxu0 0
        %2573 = vmatpush2.bf16.xpose.msra.mxu0 0
        %2574 = vmatprep.subr.bf16.mxu0 0
        %2575 = vmatpush2.bf16.xpose.msra.mxu0 0
        %2576 = vmatprep.subr.bf16.mxu0 0
        %2577 = vmatpush2.bf16.xpose.msra.mxu0 0
        %2578 = vmatprep.subr.bf16.mxu0 0
        %2579 = vmatpush2.bf16.xpose.msra.mxu0 0
        %2580 = vmatprep.subr.bf16.mxu0 0
        %2581 = vmatpush2.bf16.xpose.msra.mxu0 0
        %2582 = vmatprep.mubr.bf16.mxu0 0
        %2583 = vmatmul.mubr.bf16.gmra.mxu0 %v2545
        %v2584 = vpop.f32.mrf.mxu0
        %v2585 = vadd.f32 0.0, %v2584
        %v2586 = vpop.f32.mrf.mxu0
        %v2587 = vpop.f32.mrf.mxu0
        %v2588 = vpop.f32.mrf.mxu0
        %2589 = vdwg.mxu0
        %2590 = vrot.lane.b32.xlu0 %v1423, 88
        %v2591 = vpop.permute.xlu0 %2590
        %2592 = vrot.lane.b32.xlu0 %v1425, 24
        %v2593 = vpop.permute.xlu0 %2592
        %v2595 = vsel %vm1431, %v2591, 0
        %v2598 = vsel %vm1431, %v2593, 0
        %2600 = vmatprep.subr.bf16.mxu0 0
        %2601 = vmatpush1.bf16.xpose.msra.mxu0 0
        %2602 = vmatprep.subr.bf16.mxu0 0
        %2603 = vmatpush1.bf16.xpose.msra.mxu0 0
        %2604 = vmatprep.subr.bf16.mxu0 0
        %2605 = vmatpush1.bf16.xpose.msra.mxu0 0
        %2606 = vmatprep.subr.bf16.mxu0 0
        %2607 = vmatpush1.bf16.xpose.msra.mxu0 0
        %2608 = vmatprep.subr.bf16.mxu0 0
        %2609 = vmatpush1.bf16.xpose.msra.mxu0 0
        %2610 = vmatprep.subr.bf16.mxu0 0
        %2611 = vmatpush1.bf16.xpose.msra.mxu0 0
        %2612 = vmatprep.subr.bf16.mxu0 0
        %2613 = vmatpush1.bf16.xpose.msra.mxu0 0
        %2614 = vmatprep.subr.bf16.mxu0 0
        %2615 = vmatpush1.bf16.xpose.msra.mxu0 %v2598
        %2616 = vmatprep.subr.bf16.mxu0 0
        %2617 = vmatpush2.bf16.xpose.msra.mxu0 0
        %2618 = vmatprep.subr.bf16.mxu0 0
        %2619 = vmatpush2.bf16.xpose.msra.mxu0 0
        %2620 = vmatprep.subr.bf16.mxu0 0
        %2621 = vmatpush2.bf16.xpose.msra.mxu0 0
        %2622 = vmatprep.subr.bf16.mxu0 0
        %2623 = vmatpush2.bf16.xpose.msra.mxu0 0
        %2624 = vmatprep.subr.bf16.mxu0 0
        %2625 = vmatpush2.bf16.xpose.msra.mxu0 0
        %2626 = vmatprep.subr.bf16.mxu0 0
        %2627 = vmatpush2.bf16.xpose.msra.mxu0 0
        %2628 = vmatprep.subr.bf16.mxu0 0
        %2629 = vmatpush2.bf16.xpose.msra.mxu0 0
        %2630 = vmatprep.subr.bf16.mxu0 0
        %2631 = vmatpush2.bf16.xpose.msra.mxu0 0
        %2632 = vmatprep.mubr.bf16.mxu0 0
        %2633 = vmatmul.mubr.bf16.gmra.mxu0 %v2595
        %v2634 = vpop.f32.mrf.mxu0
        %v2635 = vadd.f32 0.0, %v2634
        %v2636 = vpop.f32.mrf.mxu0
        %v2637 = vpop.f32.mrf.mxu0
        %v2638 = vpop.f32.mrf.mxu0
        %2639 = vdwg.mxu0
        %v2640 = vsel %vm1528, -1e+30, %v2585
        %v2641 = vsel %vm1528, -1e+30, %v2635
        %v2642 = vsel %vm1431, %v2640, -inf
        %2643 = vmax.xlane.f32.xlu0 %v2642
        %v2644 = vpop.xlane.xlu0 %2643
        %v2645 = vsel %vm1431, %v2641, -inf
        %2646 = vmax.xlane.f32.xlu0 %v2645
        %v2647 = vpop.xlane.xlu0 %2646
        %v2648 = vsub.f32 %v2640, %v2644
        %v2649 = vsub.f32 %v2641, %v2647
        %v2650 = vmul.f32 %v2648, 1.442695
        %v2651 = vpow.pop %v2650
        %v2652 = vmul.f32 %v2649, 1.442695
        %v2653 = vpow.pop %v2652
        %v2654 = vsel %vm1431, %v2651, 0.0
        %2655 = vadd.xlane.f32.xlu0 %v2654
        %v2656 = vpop.xlane.xlu0 %2655
        %v2657 = vsel %vm1431, %v2653, 0.0
        %2658 = vadd.xlane.f32.xlu0 %v2657
        %v2659 = vpop.xlane.xlu0 %2658
        %v2660 = vrcp.pop %v2656
        %v2661 = vrcp.pop %v2659
        %v2662 = vmul.f32 %v2651, %v2660
        %v2663 = vmul.f32 %v2653, %v2661
        %v2664 = vpack.c.bf16 %v2662, %v2662
        %v2665 = vpack.c.bf16 %v2663, %v2663
        %2666 = vrot.lane.b32.xlu0 %v1426, 88
        %v2667 = vpop.permute.xlu0 %2666
        %v2669 = vsel %vm1431, %v2664, 0
        %v2672 = vsel %vm1558, %v2667, 0
        %2674 = vmatprep.subr.bf16.mxu0 0
        %2675 = vmatpush1.bf16.msra.mxu0 0
        %2676 = vmatprep.subr.bf16.mxu0 0
        %2677 = vmatpush1.bf16.msra.mxu0 0
        %2678 = vmatprep.subr.bf16.mxu0 0
        %2679 = vmatpush1.bf16.msra.mxu0 0
        %2680 = vmatprep.subr.bf16.mxu0 0
        %2681 = vmatpush1.bf16.msra.mxu0 0
        %2682 = vmatprep.subr.bf16.mxu0 0
        %2683 = vmatpush1.bf16.msra.mxu0 0
        %2684 = vmatprep.subr.bf16.mxu0 0
        %2685 = vmatpush1.bf16.msra.mxu0 0
        %2686 = vmatprep.subr.bf16.mxu0 0
        %2687 = vmatpush1.bf16.msra.mxu0 0
        %2688 = vmatprep.subr.bf16.mxu0 0
        %2689 = vmatpush1.bf16.msra.mxu0 %v2672
        %2690 = vmatprep.subr.bf16.mxu0 0
        %2691 = vmatpush2.bf16.msra.mxu0 0
        %2692 = vmatprep.subr.bf16.mxu0 0
        %2693 = vmatpush2.bf16.msra.mxu0 0
        %2694 = vmatprep.subr.bf16.mxu0 0
        %2695 = vmatpush2.bf16.msra.mxu0 0
        %2696 = vmatprep.subr.bf16.mxu0 0
        %2697 = vmatpush2.bf16.msra.mxu0 0
        %2698 = vmatprep.subr.bf16.mxu0 0
        %2699 = vmatpush2.bf16.msra.mxu0 0
        %2700 = vmatprep.subr.bf16.mxu0 0
        %2701 = vmatpush2.bf16.msra.mxu0 0
        %2702 = vmatprep.subr.bf16.mxu0 0
        %2703 = vmatpush2.bf16.msra.mxu0 0
        %2704 = vmatprep.subr.bf16.mxu0 0
        %2705 = vmatpush2.bf16.msra.mxu0 0
        %2706 = vmatprep.mubr.bf16.mxu0 0
        %2707 = vmatmul.mubr.bf16.gmra.mxu0 %v2669
        %v2708 = vpop.f32.mrf.mxu0
        %v2709 = vadd.f32 0.0, %v2708
        %v2710 = vpop.f32.mrf.mxu0
        %v2711 = vpop.f32.mrf.mxu0
        %v2712 = vpop.f32.mrf.mxu0
        %2713 = vdwg.mxu0
        %2714 = vrot.lane.b32.xlu0 %v1427, 88
        %v2715 = vpop.permute.xlu0 %2714
        %v2717 = vsel %vm1431, %v2665, 0
        %v2720 = vsel %vm1558, %v2715, 0
        %2722 = vmatprep.subr.bf16.mxu0 0
        %2723 = vmatpush1.bf16.msra.mxu0 0
        %2724 = vmatprep.subr.bf16.mxu0 0
        %2725 = vmatpush1.bf16.msra.mxu0 0
        %2726 = vmatprep.subr.bf16.mxu0 0
        %2727 = vmatpush1.bf16.msra.mxu0 0
        %2728 = vmatprep.subr.bf16.mxu0 0
        %2729 = vmatpush1.bf16.msra.mxu0 0
        %2730 = vmatprep.subr.bf16.mxu0 0
        %2731 = vmatpush1.bf16.msra.mxu0 0
        %2732 = vmatprep.subr.bf16.mxu0 0
        %2733 = vmatpush1.bf16.msra.mxu0 0
        %2734 = vmatprep.subr.bf16.mxu0 0
        %2735 = vmatpush1.bf16.msra.mxu0 0
        %2736 = vmatprep.subr.bf16.mxu0 0
        %2737 = vmatpush1.bf16.msra.mxu0 %v2720
        %2738 = vmatprep.subr.bf16.mxu0 0
        %2739 = vmatpush2.bf16.msra.mxu0 0
        %2740 = vmatprep.subr.bf16.mxu0 0
        %2741 = vmatpush2.bf16.msra.mxu0 0
        %2742 = vmatprep.subr.bf16.mxu0 0
        %2743 = vmatpush2.bf16.msra.mxu0 0
        %2744 = vmatprep.subr.bf16.mxu0 0
        %2745 = vmatpush2.bf16.msra.mxu0 0
        %2746 = vmatprep.subr.bf16.mxu0 0
        %2747 = vmatpush2.bf16.msra.mxu0 0
        %2748 = vmatprep.subr.bf16.mxu0 0
        %2749 = vmatpush2.bf16.msra.mxu0 0
        %2750 = vmatprep.subr.bf16.mxu0 0
        %2751 = vmatpush2.bf16.msra.mxu0 0
        %2752 = vmatprep.subr.bf16.mxu0 0
        %2753 = vmatpush2.bf16.msra.mxu0 0
        %2754 = vmatprep.mubr.bf16.mxu0 0
        %2755 = vmatmul.mubr.bf16.gmra.mxu0 %v2717
        %v2756 = vpop.f32.mrf.mxu0
        %v2757 = vadd.f32 0.0, %v2756
        %v2758 = vpop.f32.mrf.mxu0
        %v2759 = vpop.f32.mrf.mxu0
        %v2760 = vpop.f32.mrf.mxu0
        %2761 = vdwg.mxu0
        %2762 = vrot.lane.b32.xlu0 %v1422, 80
        %v2763 = vpop.permute.xlu0 %2762
        %2764 = vrot.lane.b32.xlu0 %v1424, 16
        %v2765 = vpop.permute.xlu0 %2764
        %v2767 = vsel %vm1431, %v2763, 0
        %v2770 = vsel %vm1431, %v2765, 0
        %2772 = vmatprep.subr.bf16.mxu0 0
        %2773 = vmatpush1.bf16.xpose.msra.mxu0 0
        %2774 = vmatprep.subr.bf16.mxu0 0
        %2775 = vmatpush1.bf16.xpose.msra.mxu0 0
        %2776 = vmatprep.subr.bf16.mxu0 0
        %2777 = vmatpush1.bf16.xpose.msra.mxu0 0
        %2778 = vmatprep.subr.bf16.mxu0 0
        %2779 = vmatpush1.bf16.xpose.msra.mxu0 0
        %2780 = vmatprep.subr.bf16.mxu0 0
        %2781 = vmatpush1.bf16.xpose.msra.mxu0 0
        %2782 = vmatprep.subr.bf16.mxu0 0
        %2783 = vmatpush1.bf16.xpose.msra.mxu0 0
        %2784 = vmatprep.subr.bf16.mxu0 0
        %2785 = vmatpush1.bf16.xpose.msra.mxu0 0
        %2786 = vmatprep.subr.bf16.mxu0 0
        %2787 = vmatpush1.bf16.xpose.msra.mxu0 %v2770
        %2788 = vmatprep.subr.bf16.mxu0 0
        %2789 = vmatpush2.bf16.xpose.msra.mxu0 0
        %2790 = vmatprep.subr.bf16.mxu0 0
        %2791 = vmatpush2.bf16.xpose.msra.mxu0 0
        %2792 = vmatprep.subr.bf16.mxu0 0
        %2793 = vmatpush2.bf16.xpose.msra.mxu0 0
        %2794 = vmatprep.subr.bf16.mxu0 0
        %2795 = vmatpush2.bf16.xpose.msra.mxu0 0
        %2796 = vmatprep.subr.bf16.mxu0 0
        %2797 = vmatpush2.bf16.xpose.msra.mxu0 0
        %2798 = vmatprep.subr.bf16.mxu0 0
        %2799 = vmatpush2.bf16.xpose.msra.mxu0 0
        %2800 = vmatprep.subr.bf16.mxu0 0
        %2801 = vmatpush2.bf16.xpose.msra.mxu0 0
        %2802 = vmatprep.subr.bf16.mxu0 0
        %2803 = vmatpush2.bf16.xpose.msra.mxu0 0
        %2804 = vmatprep.mubr.bf16.mxu0 0
        %2805 = vmatmul.mubr.bf16.gmra.mxu0 %v2767
        %v2806 = vpop.f32.mrf.mxu0
        %v2807 = vadd.f32 0.0, %v2806
        %v2808 = vpop.f32.mrf.mxu0
        %v2809 = vpop.f32.mrf.mxu0
        %v2810 = vpop.f32.mrf.mxu0
        %2811 = vdwg.mxu0
        %2812 = vrot.lane.b32.xlu0 %v1423, 80
        %v2813 = vpop.permute.xlu0 %2812
        %2814 = vrot.lane.b32.xlu0 %v1425, 16
        %v2815 = vpop.permute.xlu0 %2814
        %v2817 = vsel %vm1431, %v2813, 0
        %v2820 = vsel %vm1431, %v2815, 0
        %2822 = vmatprep.subr.bf16.mxu0 0
        %2823 = vmatpush1.bf16.xpose.msra.mxu0 0
        %2824 = vmatprep.subr.bf16.mxu0 0
        %2825 = vmatpush1.bf16.xpose.msra.mxu0 0
        %2826 = vmatprep.subr.bf16.mxu0 0
        %2827 = vmatpush1.bf16.xpose.msra.mxu0 0
        %2828 = vmatprep.subr.bf16.mxu0 0
        %2829 = vmatpush1.bf16.xpose.msra.mxu0 0
        %2830 = vmatprep.subr.bf16.mxu0 0
        %2831 = vmatpush1.bf16.xpose.msra.mxu0 0
        %2832 = vmatprep.subr.bf16.mxu0 0
        %2833 = vmatpush1.bf16.xpose.msra.mxu0 0
        %2834 = vmatprep.subr.bf16.mxu0 0
        %2835 = vmatpush1.bf16.xpose.msra.mxu0 0
        %2836 = vmatprep.subr.bf16.mxu0 0
        %2837 = vmatpush1.bf16.xpose.msra.mxu0 %v2820
        %2838 = vmatprep.subr.bf16.mxu0 0
        %2839 = vmatpush2.bf16.xpose.msra.mxu0 0
        %2840 = vmatprep.subr.bf16.mxu0 0
        %2841 = vmatpush2.bf16.xpose.msra.mxu0 0
        %2842 = vmatprep.subr.bf16.mxu0 0
        %2843 = vmatpush2.bf16.xpose.msra.mxu0 0
        %2844 = vmatprep.subr.bf16.mxu0 0
        %2845 = vmatpush2.bf16.xpose.msra.mxu0 0
        %2846 = vmatprep.subr.bf16.mxu0 0
        %2847 = vmatpush2.bf16.xpose.msra.mxu0 0
        %2848 = vmatprep.subr.bf16.mxu0 0
        %2849 = vmatpush2.bf16.xpose.msra.mxu0 0
        %2850 = vmatprep.subr.bf16.mxu0 0
        %2851 = vmatpush2.bf16.xpose.msra.mxu0 0
        %2852 = vmatprep.subr.bf16.mxu0 0
        %2853 = vmatpush2.bf16.xpose.msra.mxu0 0
        %2854 = vmatprep.mubr.bf16.mxu0 0
        %2855 = vmatmul.mubr.bf16.gmra.mxu0 %v2817
        %v2856 = vpop.f32.mrf.mxu0
        %v2857 = vadd.f32 0.0, %v2856
        %v2858 = vpop.f32.mrf.mxu0
        %v2859 = vpop.f32.mrf.mxu0
        %v2860 = vpop.f32.mrf.mxu0
        %2861 = vdwg.mxu0
        %v2862 = vsel %vm1528, -1e+30, %v2807
        %v2863 = vsel %vm1528, -1e+30, %v2857
        %v2864 = vsel %vm1431, %v2862, -inf
        %2865 = vmax.xlane.f32.xlu0 %v2864
        %v2866 = vpop.xlane.xlu0 %2865
        %v2867 = vsel %vm1431, %v2863, -inf
        %2868 = vmax.xlane.f32.xlu0 %v2867
        %v2869 = vpop.xlane.xlu0 %2868
        %v2870 = vsub.f32 %v2862, %v2866
        %v2871 = vsub.f32 %v2863, %v2869
        %v2872 = vmul.f32 %v2870, 1.442695
        %v2873 = vpow.pop %v2872
        %v2874 = vmul.f32 %v2871, 1.442695
        %v2875 = vpow.pop %v2874
        %v2876 = vsel %vm1431, %v2873, 0.0
        %2877 = vadd.xlane.f32.xlu0 %v2876
        %v2878 = vpop.xlane.xlu0 %2877
        %v2879 = vsel %vm1431, %v2875, 0.0
        %2880 = vadd.xlane.f32.xlu0 %v2879
        %v2881 = vpop.xlane.xlu0 %2880
        %v2882 = vrcp.pop %v2878
        %v2883 = vrcp.pop %v2881
        %v2884 = vmul.f32 %v2873, %v2882
        %v2885 = vmul.f32 %v2875, %v2883
        %v2886 = vpack.c.bf16 %v2884, %v2884
        %v2887 = vpack.c.bf16 %v2885, %v2885
        %2888 = vrot.lane.b32.xlu0 %v1426, 80
        %v2889 = vpop.permute.xlu0 %2888
        %v2891 = vsel %vm1431, %v2886, 0
        %v2894 = vsel %vm1558, %v2889, 0
        %2896 = vmatprep.subr.bf16.mxu0 0
        %2897 = vmatpush1.bf16.msra.mxu0 0
        %2898 = vmatprep.subr.bf16.mxu0 0
        %2899 = vmatpush1.bf16.msra.mxu0 0
        %2900 = vmatprep.subr.bf16.mxu0 0
        %2901 = vmatpush1.bf16.msra.mxu0 0
        %2902 = vmatprep.subr.bf16.mxu0 0
        %2903 = vmatpush1.bf16.msra.mxu0 0
        %2904 = vmatprep.subr.bf16.mxu0 0
        %2905 = vmatpush1.bf16.msra.mxu0 0
        %2906 = vmatprep.subr.bf16.mxu0 0
        %2907 = vmatpush1.bf16.msra.mxu0 0
        %2908 = vmatprep.subr.bf16.mxu0 0
        %2909 = vmatpush1.bf16.msra.mxu0 0
        %2910 = vmatprep.subr.bf16.mxu0 0
        %2911 = vmatpush1.bf16.msra.mxu0 %v2894
        %2912 = vmatprep.subr.bf16.mxu0 0
        %2913 = vmatpush2.bf16.msra.mxu0 0
        %2914 = vmatprep.subr.bf16.mxu0 0
        %2915 = vmatpush2.bf16.msra.mxu0 0
        %2916 = vmatprep.subr.bf16.mxu0 0
        %2917 = vmatpush2.bf16.msra.mxu0 0
        %2918 = vmatprep.subr.bf16.mxu0 0
        %2919 = vmatpush2.bf16.msra.mxu0 0
        %2920 = vmatprep.subr.bf16.mxu0 0
        %2921 = vmatpush2.bf16.msra.mxu0 0
        %2922 = vmatprep.subr.bf16.mxu0 0
        %2923 = vmatpush2.bf16.msra.mxu0 0
        %2924 = vmatprep.subr.bf16.mxu0 0
        %2925 = vmatpush2.bf16.msra.mxu0 0
        %2926 = vmatprep.subr.bf16.mxu0 0
        %2927 = vmatpush2.bf16.msra.mxu0 0
        %2928 = vmatprep.mubr.bf16.mxu0 0
        %2929 = vmatmul.mubr.bf16.gmra.mxu0 %v2891
        %v2930 = vpop.f32.mrf.mxu0
        %v2931 = vadd.f32 0.0, %v2930
        %v2932 = vpop.f32.mrf.mxu0
        %v2933 = vpop.f32.mrf.mxu0
        %v2934 = vpop.f32.mrf.mxu0
        %2935 = vdwg.mxu0
        %2936 = vrot.lane.b32.xlu0 %v1427, 80
        %v2937 = vpop.permute.xlu0 %2936
        %v2939 = vsel %vm1431, %v2887, 0
        %v2942 = vsel %vm1558, %v2937, 0
        %2944 = vmatprep.subr.bf16.mxu0 0
        %2945 = vmatpush1.bf16.msra.mxu0 0
        %2946 = vmatprep.subr.bf16.mxu0 0
        %2947 = vmatpush1.bf16.msra.mxu0 0
        %2948 = vmatprep.subr.bf16.mxu0 0
        %2949 = vmatpush1.bf16.msra.mxu0 0
        %2950 = vmatprep.subr.bf16.mxu0 0
        %2951 = vmatpush1.bf16.msra.mxu0 0
        %2952 = vmatprep.subr.bf16.mxu0 0
        %2953 = vmatpush1.bf16.msra.mxu0 0
        %2954 = vmatprep.subr.bf16.mxu0 0
        %2955 = vmatpush1.bf16.msra.mxu0 0
        %2956 = vmatprep.subr.bf16.mxu0 0
        %2957 = vmatpush1.bf16.msra.mxu0 0
        %2958 = vmatprep.subr.bf16.mxu0 0
        %2959 = vmatpush1.bf16.msra.mxu0 %v2942
        %2960 = vmatprep.subr.bf16.mxu0 0
        %2961 = vmatpush2.bf16.msra.mxu0 0
        %2962 = vmatprep.subr.bf16.mxu0 0
        %2963 = vmatpush2.bf16.msra.mxu0 0
        %2964 = vmatprep.subr.bf16.mxu0 0
        %2965 = vmatpush2.bf16.msra.mxu0 0
        %2966 = vmatprep.subr.bf16.mxu0 0
        %2967 = vmatpush2.bf16.msra.mxu0 0
        %2968 = vmatprep.subr.bf16.mxu0 0
        %2969 = vmatpush2.bf16.msra.mxu0 0
        %2970 = vmatprep.subr.bf16.mxu0 0
        %2971 = vmatpush2.bf16.msra.mxu0 0
        %2972 = vmatprep.subr.bf16.mxu0 0
        %2973 = vmatpush2.bf16.msra.mxu0 0
        %2974 = vmatprep.subr.bf16.mxu0 0
        %2975 = vmatpush2.bf16.msra.mxu0 0
        %2976 = vmatprep.mubr.bf16.mxu0 0
        %2977 = vmatmul.mubr.bf16.gmra.mxu0 %v2939
        %v2978 = vpop.f32.mrf.mxu0
        %v2979 = vadd.f32 0.0, %v2978
        %v2980 = vpop.f32.mrf.mxu0
        %v2981 = vpop.f32.mrf.mxu0
        %v2982 = vpop.f32.mrf.mxu0
        %2983 = vdwg.mxu0
        %2984 = vrot.lane.b32.xlu0 %v1422, 72
        %v2985 = vpop.permute.xlu0 %2984
        %2986 = vrot.lane.b32.xlu0 %v1424, 8
        %v2987 = vpop.permute.xlu0 %2986
        %v2989 = vsel %vm1431, %v2985, 0
        %v2992 = vsel %vm1431, %v2987, 0
        %2994 = vmatprep.subr.bf16.mxu0 0
        %2995 = vmatpush1.bf16.xpose.msra.mxu0 0
        %2996 = vmatprep.subr.bf16.mxu0 0
        %2997 = vmatpush1.bf16.xpose.msra.mxu0 0
        %2998 = vmatprep.subr.bf16.mxu0 0
        %2999 = vmatpush1.bf16.xpose.msra.mxu0 0
        %3000 = vmatprep.subr.bf16.mxu0 0
        %3001 = vmatpush1.bf16.xpose.msra.mxu0 0
        %3002 = vmatprep.subr.bf16.mxu0 0
        %3003 = vmatpush1.bf16.xpose.msra.mxu0 0
        %3004 = vmatprep.subr.bf16.mxu0 0
        %3005 = vmatpush1.bf16.xpose.msra.mxu0 0
        %3006 = vmatprep.subr.bf16.mxu0 0
        %3007 = vmatpush1.bf16.xpose.msra.mxu0 0
        %3008 = vmatprep.subr.bf16.mxu0 0
        %3009 = vmatpush1.bf16.xpose.msra.mxu0 %v2992
        %3010 = vmatprep.subr.bf16.mxu0 0
        %3011 = vmatpush2.bf16.xpose.msra.mxu0 0
        %3012 = vmatprep.subr.bf16.mxu0 0
        %3013 = vmatpush2.bf16.xpose.msra.mxu0 0
        %3014 = vmatprep.subr.bf16.mxu0 0
        %3015 = vmatpush2.bf16.xpose.msra.mxu0 0
        %3016 = vmatprep.subr.bf16.mxu0 0
        %3017 = vmatpush2.bf16.xpose.msra.mxu0 0
        %3018 = vmatprep.subr.bf16.mxu0 0
        %3019 = vmatpush2.bf16.xpose.msra.mxu0 0
        %3020 = vmatprep.subr.bf16.mxu0 0
        %3021 = vmatpush2.bf16.xpose.msra.mxu0 0
        %3022 = vmatprep.subr.bf16.mxu0 0
        %3023 = vmatpush2.bf16.xpose.msra.mxu0 0
        %3024 = vmatprep.subr.bf16.mxu0 0
        %3025 = vmatpush2.bf16.xpose.msra.mxu0 0
        %3026 = vmatprep.mubr.bf16.mxu0 0
        %3027 = vmatmul.mubr.bf16.gmra.mxu0 %v2989
        %v3028 = vpop.f32.mrf.mxu0
        %v3029 = vadd.f32 0.0, %v3028
        %v3030 = vpop.f32.mrf.mxu0
        %v3031 = vpop.f32.mrf.mxu0
        %v3032 = vpop.f32.mrf.mxu0
        %3033 = vdwg.mxu0
        %3034 = vrot.lane.b32.xlu0 %v1423, 72
        %v3035 = vpop.permute.xlu0 %3034
        %3036 = vrot.lane.b32.xlu0 %v1425, 8
        %v3037 = vpop.permute.xlu0 %3036
        %v3039 = vsel %vm1431, %v3035, 0
        %v3042 = vsel %vm1431, %v3037, 0
        %3044 = vmatprep.subr.bf16.mxu0 0
        %3045 = vmatpush1.bf16.xpose.msra.mxu0 0
        %3046 = vmatprep.subr.bf16.mxu0 0
        %3047 = vmatpush1.bf16.xpose.msra.mxu0 0
        %3048 = vmatprep.subr.bf16.mxu0 0
        %3049 = vmatpush1.bf16.xpose.msra.mxu0 0
        %3050 = vmatprep.subr.bf16.mxu0 0
        %3051 = vmatpush1.bf16.xpose.msra.mxu0 0
        %3052 = vmatprep.subr.bf16.mxu0 0
        %3053 = vmatpush1.bf16.xpose.msra.mxu0 0
        %3054 = vmatprep.subr.bf16.mxu0 0
        %3055 = vmatpush1.bf16.xpose.msra.mxu0 0
        %3056 = vmatprep.subr.bf16.mxu0 0
        %3057 = vmatpush1.bf16.xpose.msra.mxu0 0
        %3058 = vmatprep.subr.bf16.mxu0 0
        %3059 = vmatpush1.bf16.xpose.msra.mxu0 %v3042
        %3060 = vmatprep.subr.bf16.mxu0 0
        %3061 = vmatpush2.bf16.xpose.msra.mxu0 0
        %3062 = vmatprep.subr.bf16.mxu0 0
        %3063 = vmatpush2.bf16.xpose.msra.mxu0 0
        %3064 = vmatprep.subr.bf16.mxu0 0
        %3065 = vmatpush2.bf16.xpose.msra.mxu0 0
        %3066 = vmatprep.subr.bf16.mxu0 0
        %3067 = vmatpush2.bf16.xpose.msra.mxu0 0
        %3068 = vmatprep.subr.bf16.mxu0 0
        %3069 = vmatpush2.bf16.xpose.msra.mxu0 0
        %3070 = vmatprep.subr.bf16.mxu0 0
        %3071 = vmatpush2.bf16.xpose.msra.mxu0 0
        %3072 = vmatprep.subr.bf16.mxu0 0
        %3073 = vmatpush2.bf16.xpose.msra.mxu0 0
        %3074 = vmatprep.subr.bf16.mxu0 0
        %3075 = vmatpush2.bf16.xpose.msra.mxu0 0
        %3076 = vmatprep.mubr.bf16.mxu0 0
        %3077 = vmatmul.mubr.bf16.gmra.mxu0 %v3039
        %v3078 = vpop.f32.mrf.mxu0
        %v3079 = vadd.f32 0.0, %v3078
        %v3080 = vpop.f32.mrf.mxu0
        %v3081 = vpop.f32.mrf.mxu0
        %v3082 = vpop.f32.mrf.mxu0
        %3083 = vdwg.mxu0
        %v3084 = vsel %vm1528, -1e+30, %v3029
        %v3085 = vsel %vm1528, -1e+30, %v3079
        %v3086 = vsel %vm1431, %v3084, -inf
        %3087 = vmax.xlane.f32.xlu0 %v3086
        %v3088 = vpop.xlane.xlu0 %3087
        %v3089 = vsel %vm1431, %v3085, -inf
        %3090 = vmax.xlane.f32.xlu0 %v3089
        %v3091 = vpop.xlane.xlu0 %3090
        %v3092 = vsub.f32 %v3084, %v3088
        %v3093 = vsub.f32 %v3085, %v3091
        %v3094 = vmul.f32 %v3092, 1.442695
        %v3095 = vpow.pop %v3094
        %v3096 = vmul.f32 %v3093, 1.442695
        %v3097 = vpow.pop %v3096
        %v3098 = vsel %vm1431, %v3095, 0.0
        %3099 = vadd.xlane.f32.xlu0 %v3098
        %v3100 = vpop.xlane.xlu0 %3099
        %v3101 = vsel %vm1431, %v3097, 0.0
        %3102 = vadd.xlane.f32.xlu0 %v3101
        %v3103 = vpop.xlane.xlu0 %3102
        %v3104 = vrcp.pop %v3100
        %v3105 = vrcp.pop %v3103
        %v3106 = vmul.f32 %v3095, %v3104
        %v3107 = vmul.f32 %v3097, %v3105
        %v3108 = vpack.c.bf16 %v3106, %v3106
        %v3109 = vpack.c.bf16 %v3107, %v3107
        %3110 = vrot.lane.b32.xlu0 %v1426, 72
        %v3111 = vpop.permute.xlu0 %3110
        %v3113 = vsel %vm1431, %v3108, 0
        %v3116 = vsel %vm1558, %v3111, 0
        %3118 = vmatprep.subr.bf16.mxu0 0
        %3119 = vmatpush1.bf16.msra.mxu0 0
        %3120 = vmatprep.subr.bf16.mxu0 0
        %3121 = vmatpush1.bf16.msra.mxu0 0
        %3122 = vmatprep.subr.bf16.mxu0 0
        %3123 = vmatpush1.bf16.msra.mxu0 0
        %3124 = vmatprep.subr.bf16.mxu0 0
        %3125 = vmatpush1.bf16.msra.mxu0 0
        %3126 = vmatprep.subr.bf16.mxu0 0
        %3127 = vmatpush1.bf16.msra.mxu0 0
        %3128 = vmatprep.subr.bf16.mxu0 0
        %3129 = vmatpush1.bf16.msra.mxu0 0
        %3130 = vmatprep.subr.bf16.mxu0 0
        %3131 = vmatpush1.bf16.msra.mxu0 0
        %3132 = vmatprep.subr.bf16.mxu0 0
        %3133 = vmatpush1.bf16.msra.mxu0 %v3116
        %3134 = vmatprep.subr.bf16.mxu0 0
        %3135 = vmatpush2.bf16.msra.mxu0 0
        %3136 = vmatprep.subr.bf16.mxu0 0
        %3137 = vmatpush2.bf16.msra.mxu0 0
        %3138 = vmatprep.subr.bf16.mxu0 0
        %3139 = vmatpush2.bf16.msra.mxu0 0
        %3140 = vmatprep.subr.bf16.mxu0 0
        %3141 = vmatpush2.bf16.msra.mxu0 0
        %3142 = vmatprep.subr.bf16.mxu0 0
        %3143 = vmatpush2.bf16.msra.mxu0 0
        %3144 = vmatprep.subr.bf16.mxu0 0
        %3145 = vmatpush2.bf16.msra.mxu0 0
        %3146 = vmatprep.subr.bf16.mxu0 0
        %3147 = vmatpush2.bf16.msra.mxu0 0
        %3148 = vmatprep.subr.bf16.mxu0 0
        %3149 = vmatpush2.bf16.msra.mxu0 0
        %3150 = vmatprep.mubr.bf16.mxu0 0
        %3151 = vmatmul.mubr.bf16.gmra.mxu0 %v3113
        %v3152 = vpop.f32.mrf.mxu0
        %v3153 = vadd.f32 0.0, %v3152
        %v3154 = vpop.f32.mrf.mxu0
        %v3155 = vpop.f32.mrf.mxu0
        %v3156 = vpop.f32.mrf.mxu0
        %3157 = vdwg.mxu0
        %3158 = vrot.lane.b32.xlu0 %v1427, 72
        %v3159 = vpop.permute.xlu0 %3158
        %v3161 = vsel %vm1431, %v3109, 0
        %v3164 = vsel %vm1558, %v3159, 0
        %3166 = vmatprep.subr.bf16.mxu0 0
        %3167 = vmatpush1.bf16.msra.mxu0 0
        %3168 = vmatprep.subr.bf16.mxu0 0
        %3169 = vmatpush1.bf16.msra.mxu0 0
        %3170 = vmatprep.subr.bf16.mxu0 0
        %3171 = vmatpush1.bf16.msra.mxu0 0
        %3172 = vmatprep.subr.bf16.mxu0 0
        %3173 = vmatpush1.bf16.msra.mxu0 0
        %3174 = vmatprep.subr.bf16.mxu0 0
        %3175 = vmatpush1.bf16.msra.mxu0 0
        %3176 = vmatprep.subr.bf16.mxu0 0
        %3177 = vmatpush1.bf16.msra.mxu0 0
        %3178 = vmatprep.subr.bf16.mxu0 0
        %3179 = vmatpush1.bf16.msra.mxu0 0
        %3180 = vmatprep.subr.bf16.mxu0 0
        %3181 = vmatpush1.bf16.msra.mxu0 %v3164
        %3182 = vmatprep.subr.bf16.mxu0 0
        %3183 = vmatpush2.bf16.msra.mxu0 0
        %3184 = vmatprep.subr.bf16.mxu0 0
        %3185 = vmatpush2.bf16.msra.mxu0 0
        %3186 = vmatprep.subr.bf16.mxu0 0
        %3187 = vmatpush2.bf16.msra.mxu0 0
        %3188 = vmatprep.subr.bf16.mxu0 0
        %3189 = vmatpush2.bf16.msra.mxu0 0
        %3190 = vmatprep.subr.bf16.mxu0 0
        %3191 = vmatpush2.bf16.msra.mxu0 0
        %3192 = vmatprep.subr.bf16.mxu0 0
        %3193 = vmatpush2.bf16.msra.mxu0 0
        %3194 = vmatprep.subr.bf16.mxu0 0
        %3195 = vmatpush2.bf16.msra.mxu0 0
        %3196 = vmatprep.subr.bf16.mxu0 0
        %3197 = vmatpush2.bf16.msra.mxu0 0
        %3198 = vmatprep.mubr.bf16.mxu0 0
        %3199 = vmatmul.mubr.bf16.gmra.mxu0 %v3161
        %v3200 = vpop.f32.mrf.mxu0
        %v3201 = vadd.f32 0.0, %v3200
        %v3202 = vpop.f32.mrf.mxu0
        %v3203 = vpop.f32.mrf.mxu0
        %v3204 = vpop.f32.mrf.mxu0
        %3205 = vdwg.mxu0
        %3208 = vrot.lane.b32.xlu0 %v1820, 8
        %v3209 = vpop.permute.xlu0 %3208
        %3210 = vrot.lane.b32.xlu0 %v1869, 8
        %v3211 = vpop.permute.xlu0 %3210
        %3216 = vrot.lane.b32.xlu0 %v2043, 16
        %v3217 = vpop.permute.xlu0 %3216
        %3218 = vrot.lane.b32.xlu0 %v2091, 16
        %v3219 = vpop.permute.xlu0 %3218
        %3224 = vrot.lane.b32.xlu0 %v2265, 24
        %v3225 = vpop.permute.xlu0 %3224
        %3226 = vrot.lane.b32.xlu0 %v2313, 24
        %v3227 = vpop.permute.xlu0 %3226
        %3232 = vrot.lane.b32.xlu0 %v2487, 32
        %v3233 = vpop.permute.xlu0 %3232
        %3234 = vrot.lane.b32.xlu0 %v2535, 32
        %v3235 = vpop.permute.xlu0 %3234
        %3240 = vrot.lane.b32.xlu0 %v2709, 40
        %v3241 = vpop.permute.xlu0 %3240
        %3242 = vrot.lane.b32.xlu0 %v2757, 40
        %v3243 = vpop.permute.xlu0 %3242
        %3248 = vrot.lane.b32.xlu0 %v2931, 48
        %v3249 = vpop.permute.xlu0 %3248
        %3250 = vrot.lane.b32.xlu0 %v2979, 48
        %v3251 = vpop.permute.xlu0 %3250
        %3256 = vrot.lane.b32.xlu0 %v3153, 56
        %v3257 = vpop.permute.xlu0 %3256
        %3258 = vrot.lane.b32.xlu0 %v3201, 56
        %v3259 = vpop.permute.xlu0 %3258
        %v3262 = vsel %vm1431, %v1597, %v3209
        %v3263 = vsel %vm1431, %v1643, %v3211
        %vm3264 = vcmask 130048
        %v3265 = vsel %vm3264, %v3262, %v3217
        %v3266 = vsel %vm3264, %v3263, %v3219
        %vm3267 = vcmask 195584
        %v3268 = vsel %vm3267, %v3265, %v3225
        %v3269 = vsel %vm3267, %v3266, %v3227
        %vm3270 = vcmask 261120
        %v3271 = vsel %vm3270, %v3268, %v3233
        %v3272 = vsel %vm3270, %v3269, %v3235
        %vm3273 = vcmask 326656
        %v3274 = vsel %vm3273, %v3271, %v3241
        %v3275 = vsel %vm3273, %v3272, %v3243
        %vm3276 = vcmask 392192
        %v3277 = vsel %vm3276, %v3274, %v3249
        %v3278 = vsel %vm3276, %v3275, %v3251
        %vm3279 = vcmask 457728
        %v3280 = vsel %vm3279, %v3277, %v3257
        %v3281 = vsel %vm3279, %v3278, %v3259
        %v3282 = vpack.c.bf16 %v3280, %v3280
        %v3283 = vld [vmem:[#allocation9] sm:$0xf]
        %v3284 = vld [vmem:[#allocation9 + $0x4] sm:$0xf]
        %v3285 = vld [vmem:[#allocation9 + $0x8] sm:$0xf]
        %v3286 = vld [vmem:[#allocation9 + $0xc] sm:$0xf]
        %v3287 = vld [vmem:[#allocation9 + $0x10] sm:$0xf]
        %v3288 = vld [vmem:[#allocation9 + $0x14] sm:$0xf]
        %v3289 = vld [vmem:[#allocation9 + $0x18] sm:$0xf]
        %v3290 = vld [vmem:[#allocation9 + $0x1c] sm:$0xf]
        %v3291 = vld [vmem:[#allocation11] sm:$0x1]
        %v3293 = vlaneseq
        %v3294 = vshrl.u32 %v3293, 7
        %v3295 = vsub.s32 0, %v3294
        %v3296 = vrot.slane %v3291, %v3295
        %v3306 = vunpack.c.l.b16 %v3283
        %v3307 = vunpack.c.l.b16 %v3284
        %v3308 = vunpack.c.l.b16 %v3285
        %v3309 = vunpack.c.l.b16 %v3286
        %v3310 = vunpack.c.l.b16 %v3287
        %v3311 = vunpack.c.l.b16 %v3288
        %v3312 = vunpack.c.l.b16 %v3289
        %v3313 = vunpack.c.l.b16 %v3290
        %v3314 = vpack.c.b16 %v3307, %v3306
        %v3315 = vpack.c.b16 %v3309, %v3308
        %v3316 = vpack.c.b16 %v3311, %v3310
        %v3317 = vpack.c.b16 %v3313, %v3312
        %v3323 = vsel %vm1270, %v3282, 0
        %3325 = vmatprep.subr.bf16.mxu0 0
        %3326 = vmatpush1.bf16.msra.mxu0 0
        %3327 = vmatprep.subr.bf16.mxu0 0
        %3328 = vmatpush1.bf16.msra.mxu0 0
        %3329 = vmatprep.subr.bf16.mxu0 0
        %3330 = vmatpush1.bf16.msra.mxu0 0
        %3331 = vmatprep.subr.bf16.mxu0 0
        %3332 = vmatpush1.bf16.msra.mxu0 0
        %3333 = vmatprep.subr.bf16.mxu0 0
        %3334 = vmatpush1.bf16.msra.mxu0 %v3317
        %3335 = vmatprep.subr.bf16.mxu0 0
        %3336 = vmatpush1.bf16.msra.mxu0 %v3316
        %3337 = vmatprep.subr.bf16.mxu0 0
        %3338 = vmatpush1.bf16.msra.mxu0 %v3315
        %3339 = vmatprep.subr.bf16.mxu0 0
        %3340 = vmatpush1.bf16.msra.mxu0 %v3314
        %3341 = vmatprep.subr.bf16.mxu0 0
        %3342 = vmatpush2.bf16.msra.mxu0 0
        %3343 = vmatprep.subr.bf16.mxu0 0
        %3344 = vmatpush2.bf16.msra.mxu0 0
        %3345 = vmatprep.subr.bf16.mxu0 0
        %3346 = vmatpush2.bf16.msra.mxu0 0
        %3347 = vmatprep.subr.bf16.mxu0 0
        %3348 = vmatpush2.bf16.msra.mxu0 0
        %3349 = vmatprep.subr.bf16.mxu0 0
        %3350 = vmatpush2.bf16.msra.mxu0 0
        %3351 = vmatprep.subr.bf16.mxu0 0
        %3352 = vmatpush2.bf16.msra.mxu0 0
        %3353 = vmatprep.subr.bf16.mxu0 0
        %3354 = vmatpush2.bf16.msra.mxu0 0
        %3355 = vmatprep.subr.bf16.mxu0 0
        %3356 = vmatpush2.bf16.msra.mxu0 0
        %3357 = vmatprep.mubr.bf16.mxu0 0
        %3358 = vmatmul.mubr.bf16.gmra.mxu0 %v3323
        %v3359 = vpop.f32.mrf.mxu0
        %v3360 = vadd.f32 %v3296, %v3359
        %v3361 = vpop.f32.mrf.mxu0
        %v3362 = vpop.f32.mrf.mxu0
        %v3363 = vpop.f32.mrf.mxu0
        %3364 = vdwg.mxu0
        %v3365 = vpack.c.bf16 %v3281, %v3281
        %v3366 = vld [vmem:[#allocation15] sm:$0xf]
        %v3367 = vld [vmem:[#allocation15 + $0x4] sm:$0xf]
        %v3368 = vld [vmem:[#allocation15 + $0x8] sm:$0xf]
        %v3369 = vld [vmem:[#allocation15 + $0xc] sm:$0xf]
        %v3370 = vld [vmem:[#allocation15 + $0x10] sm:$0xf]
        %v3371 = vld [vmem:[#allocation15 + $0x14] sm:$0xf]
        %v3372 = vld [vmem:[#allocation15 + $0x18] sm:$0xf]
        %v3373 = vld [vmem:[#allocation15 + $0x1c] sm:$0xf]
        %v3374 = vld [vmem:[#allocation17] sm:$0x1]
        %v3376 = vlaneseq
        %v3377 = vshrl.u32 %v3376, 7
        %v3378 = vsub.s32 0, %v3377
        %v3379 = vrot.slane %v3374, %v3378
        %v3389 = vunpack.c.l.b16 %v3366
        %v3390 = vunpack.c.l.b16 %v3367
        %v3391 = vunpack.c.l.b16 %v3368
        %v3392 = vunpack.c.l.b16 %v3369
        %v3393 = vunpack.c.l.b16 %v3370
        %v3394 = vunpack.c.l.b16 %v3371
        %v3395 = vunpack.c.l.b16 %v3372
        %v3396 = vunpack.c.l.b16 %v3373
        %v3397 = vpack.c.b16 %v3390, %v3389
        %v3398 = vpack.c.b16 %v3392, %v3391
        %v3399 = vpack.c.b16 %v3394, %v3393
        %v3400 = vpack.c.b16 %v3396, %v3395
        %v3406 = vsel %vm1270, %v3365, 0
        %3408 = vmatprep.subr.bf16.mxu0 0
        %3409 = vmatpush1.bf16.msra.mxu0 0
        %3410 = vmatprep.subr.bf16.mxu0 0
        %3411 = vmatpush1.bf16.msra.mxu0 0
        %3412 = vmatprep.subr.bf16.mxu0 0
        %3413 = vmatpush1.bf16.msra.mxu0 0
        %3414 = vmatprep.subr.bf16.mxu0 0
        %3415 = vmatpush1.bf16.msra.mxu0 0
        %3416 = vmatprep.subr.bf16.mxu0 0
        %3417 = vmatpush1.bf16.msra.mxu0 %v3400
        %3418 = vmatprep.subr.bf16.mxu0 0
        %3419 = vmatpush1.bf16.msra.mxu0 %v3399
        %3420 = vmatprep.subr.bf16.mxu0 0
        %3421 = vmatpush1.bf16.msra.mxu0 %v3398
        %3422 = vmatprep.subr.bf16.mxu0 0
        %3423 = vmatpush1.bf16.msra.mxu0 %v3397
        %3424 = vmatprep.subr.bf16.mxu0 0
        %3425 = vmatpush2.bf16.msra.mxu0 0
        %3426 = vmatprep.subr.bf16.mxu0 0
        %3427 = vmatpush2.bf16.msra.mxu0 0
        %3428 = vmatprep.subr.bf16.mxu0 0
        %3429 = vmatpush2.bf16.msra.mxu0 0
        %3430 = vmatprep.subr.bf16.mxu0 0
        %3431 = vmatpush2.bf16.msra.mxu0 0
        %3432 = vmatprep.subr.bf16.mxu0 0
        %3433 = vmatpush2.bf16.msra.mxu0 0
        %3434 = vmatprep.subr.bf16.mxu0 0
        %3435 = vmatpush2.bf16.msra.mxu0 0
        %3436 = vmatprep.subr.bf16.mxu0 0
        %3437 = vmatpush2.bf16.msra.mxu0 0
        %3438 = vmatprep.subr.bf16.mxu0 0
        %3439 = vmatpush2.bf16.msra.mxu0 0
        %3440 = vmatprep.mubr.bf16.mxu0 0
        %3441 = vmatmul.mubr.bf16.gmra.mxu0 %v3406
        %v3442 = vpop.f32.mrf.mxu0
        %v3443 = vadd.f32 %v3379, %v3442
        %v3444 = vpop.f32.mrf.mxu0
        %v3445 = vpop.f32.mrf.mxu0
        %v3446 = vpop.f32.mrf.mxu0
        %3447 = vdwg.mxu0
        %v3448 = vld [vmem:[#allocation27] sm:$0xf]
        %v3449 = vld [vmem:[#allocation27 + $0x4] sm:$0xf]
        %v3450 = vld [vmem:[#allocation27 + $0x8] sm:$0xf]
        %v3451 = vld [vmem:[#allocation27 + $0xc] sm:$0xf]
        %v3452 = vld [vmem:[#allocation27 + $0x10] sm:$0xf]
        %v3453 = vld [vmem:[#allocation27 + $0x14] sm:$0xf]
        %v3454 = vld [vmem:[#allocation27 + $0x18] sm:$0xf]
        %v3455 = vld [vmem:[#allocation27 + $0x1c] sm:$0xf]
        %v3456 = vld [vmem:[#allocation29] sm:$0x1]
        %v3457 = vld [vmem:[%s37] sm:$0xf]
        %v3458 = vld [vmem:[%s37 + $0x4] sm:$0xf]
        %v3459 = vld [vmem:[%s37 + $0x8] sm:$0xf]
        %v3460 = vld [vmem:[%s37 + $0xc] sm:$0xf]
        %v3461 = vld [vmem:[%s37 + $0x10] sm:$0xf]
        %v3462 = vld [vmem:[%s37 + $0x14] sm:$0xf]
        %v3463 = vld [vmem:[%s37 + $0x18] sm:$0xf]
        %v3464 = vld [vmem:[%s37 + $0x1c] sm:$0xf]
        %v3465 = vld [vmem:[%s39] sm:$0x1]
        %v3466 = vpack.c.bf16 %v3443, %v3360
        %v3468 = vlaneseq
        %v3469 = vshrl.u32 %v3468, 7
        %v3470 = vsub.s32 0, %v3469
        %v3471 = vrot.slane %v3456, %v3470
        %v3481 = vunpack.c.l.b16 %v3448
        %v3482 = vunpack.c.l.b16 %v3449
        %v3483 = vunpack.c.l.b16 %v3450
        %v3484 = vunpack.c.l.b16 %v3451
        %v3485 = vunpack.c.l.b16 %v3452
        %v3486 = vunpack.c.l.b16 %v3453
        %v3487 = vunpack.c.l.b16 %v3454
        %v3488 = vunpack.c.l.b16 %v3455
        %v3489 = vpack.c.b16 %v3482, %v3481
        %v3490 = vpack.c.b16 %v3484, %v3483
        %v3491 = vpack.c.b16 %v3486, %v3485
        %v3492 = vpack.c.b16 %v3488, %v3487
        %v3498 = vsel %vm1270, %v3466, 0
        %3500 = vmatprep.subr.bf16.mxu0 0
        %3501 = vmatpush1.bf16.msra.mxu0 0
        %3502 = vmatprep.subr.bf16.mxu0 0
        %3503 = vmatpush1.bf16.msra.mxu0 0
        %3504 = vmatprep.subr.bf16.mxu0 0
        %3505 = vmatpush1.bf16.msra.mxu0 0
        %3506 = vmatprep.subr.bf16.mxu0 0
        %3507 = vmatpush1.bf16.msra.mxu0 0
        %3508 = vmatprep.subr.bf16.mxu0 0
        %3509 = vmatpush1.bf16.msra.mxu0 %v3492
        %3510 = vmatprep.subr.bf16.mxu0 0
        %3511 = vmatpush1.bf16.msra.mxu0 %v3491
        %3512 = vmatprep.subr.bf16.mxu0 0
        %3513 = vmatpush1.bf16.msra.mxu0 %v3490
        %3514 = vmatprep.subr.bf16.mxu0 0
        %3515 = vmatpush1.bf16.msra.mxu0 %v3489
        %3516 = vmatprep.subr.bf16.mxu0 0
        %3517 = vmatpush2.bf16.msra.mxu0 0
        %3518 = vmatprep.subr.bf16.mxu0 0
        %3519 = vmatpush2.bf16.msra.mxu0 0
        %3520 = vmatprep.subr.bf16.mxu0 0
        %3521 = vmatpush2.bf16.msra.mxu0 0
        %3522 = vmatprep.subr.bf16.mxu0 0
        %3523 = vmatpush2.bf16.msra.mxu0 0
        %3524 = vmatprep.subr.bf16.mxu0 0
        %3525 = vmatpush2.bf16.msra.mxu0 0
        %3526 = vmatprep.subr.bf16.mxu0 0
        %3527 = vmatpush2.bf16.msra.mxu0 0
        %3528 = vmatprep.subr.bf16.mxu0 0
        %3529 = vmatpush2.bf16.msra.mxu0 0
        %3530 = vmatprep.subr.bf16.mxu0 0
        %3531 = vmatpush2.bf16.msra.mxu0 0
        %3532 = vmatprep.mubr.bf16.mxu0 0
        %3533 = vmatmul.mubr.bf16.gmra.mxu0 %v3498
        %v3534 = vpop.f32.mrf.mxu0
        %v3535 = vadd.f32 %v3471, %v3534
        %v3536 = vpop.f32.mrf.mxu0
        %v3537 = vpop.f32.mrf.mxu0
        %v3538 = vadd.f32 %v3471, %v3537
        %v3539 = vpop.f32.mrf.mxu0
        %3540 = vdwg.mxu0
        %v3541 = vmax.f32 %v3535, 0.0
        %v3542 = vmax.f32 %v3538, 0.0
        %v3543 = vpack.c.bf16 %v3542, %v3541
        %v3545 = vlaneseq
        %v3546 = vshrl.u32 %v3545, 7
        %v3547 = vsub.s32 0, %v3546
        %v3548 = vrot.slane %v3465, %v3547
        %v3558 = vunpack.c.l.b16 %v3457
        %v3559 = vunpack.c.l.b16 %v3458
        %v3560 = vunpack.c.l.b16 %v3459
        %v3561 = vunpack.c.l.b16 %v3460
        %v3562 = vunpack.c.l.b16 %v3461
        %v3563 = vunpack.c.l.b16 %v3462
        %v3564 = vunpack.c.l.b16 %v3463
        %v3565 = vunpack.c.l.b16 %v3464
        %v3566 = vpack.c.b16 %v3559, %v3558
        %v3567 = vpack.c.b16 %v3561, %v3560
        %v3568 = vpack.c.b16 %v3563, %v3562
        %v3569 = vpack.c.b16 %v3565, %v3564
        %v3575 = vsel %vm1270, %v3543, 0
        %3577 = vmatprep.subr.bf16.mxu0 0
        %3578 = vmatpush1.bf16.msra.mxu0 0
        %3579 = vmatprep.subr.bf16.mxu0 0
        %3580 = vmatpush1.bf16.msra.mxu0 0
        %3581 = vmatprep.subr.bf16.mxu0 0
        %3582 = vmatpush1.bf16.msra.mxu0 0
        %3583 = vmatprep.subr.bf16.mxu0 0
        %3584 = vmatpush1.bf16.msra.mxu0 0
        %3585 = vmatprep.subr.bf16.mxu0 0
        %3586 = vmatpush1.bf16.msra.mxu0 %v3569
        %3587 = vmatprep.subr.bf16.mxu0 0
        %3588 = vmatpush1.bf16.msra.mxu0 %v3568
        %3589 = vmatprep.subr.bf16.mxu0 0
        %3590 = vmatpush1.bf16.msra.mxu0 %v3567
        %3591 = vmatprep.subr.bf16.mxu0 0
        %3592 = vmatpush1.bf16.msra.mxu0 %v3566
        %3593 = vmatprep.subr.bf16.mxu0 0
        %3594 = vmatpush2.bf16.msra.mxu0 0
        %3595 = vmatprep.subr.bf16.mxu0 0
        %3596 = vmatpush2.bf16.msra.mxu0 0
        %3597 = vmatprep.subr.bf16.mxu0 0
        %3598 = vmatpush2.bf16.msra.mxu0 0
        %3599 = vmatprep.subr.bf16.mxu0 0
        %3600 = vmatpush2.bf16.msra.mxu0 0
        %3601 = vmatprep.subr.bf16.mxu0 0
        %3602 = vmatpush2.bf16.msra.mxu0 0
        %3603 = vmatprep.subr.bf16.mxu0 0
        %3604 = vmatpush2.bf16.msra.mxu0 0
        %3605 = vmatprep.subr.bf16.mxu0 0
        %3606 = vmatpush2.bf16.msra.mxu0 0
        %3607 = vmatprep.subr.bf16.mxu0 0
        %3608 = vmatpush2.bf16.msra.mxu0 0
        %3609 = vmatprep.mubr.bf16.mxu0 0
        %3610 = vmatmul.mubr.bf16.gmra.mxu0 %v3575
        %v3611 = vpop.f32.mrf.mxu0
        %v3612 = vadd.f32 %v3548, %v3611
        %v3613 = vpop.f32.mrf.mxu0
        %v3614 = vpop.f32.mrf.mxu0
        %v3615 = vadd.f32 %v3548, %v3614
        %v3616 = vpop.f32.mrf.mxu0
        %3617 = vdwg.mxu0
        %v3618 = vadd.f32 %v3612, %v1201
        %v3619 = vadd.f32 %v3615, %v1200
        %v3620 = vsel %vm1270, %v3618, 0.0
        %3621 = vadd.xlane.f32.xlu0 %v3620
        %v3622 = vpop.xlane.xlu0 %3621
        %v3623 = vsel %vm1270, %v3619, 0.0
        %3624 = vadd.xlane.f32.xlu0 %v3623
        %v3625 = vpop.xlane.xlu0 %3624
        %v3626 = vrcp.pop 64.0
        %v3627 = vmul.f32 %v3622, %v3626
        %v3628 = vmul.f32 %v3625, %v3626
        %v3629 = vsub.f32 %v3618, %v3627
        %v3630 = vsub.f32 %v3619, %v3628
        %v3631 = vmul.f32 %v3629, %v3629
        %v3632 = vmul.f32 %v3630, %v3630
        %v3633 = vsel %vm1270, %v3631, 0.0
        %3634 = vadd.xlane.f32.xlu0 %v3633
        %v3635 = vpop.xlane.xlu0 %3634
        %v3636 = vsel %vm1270, %v3632, 0.0
        %3637 = vadd.xlane.f32.xlu0 %v3636
        %v3638 = vpop.xlane.xlu0 %3637
        %v3639 = vmul.f32 %v3635, %v3626
        %v3640 = vmul.f32 %v3638, %v3626
        %v3641 = vadd.f32 %v3639, 1e-05
        %v3642 = vadd.f32 %v3640, 1e-05
        %v3643 = vrsqrt.pop %v3641
        %v3644 = vrsqrt.pop %v3642
        %v3645 = vmul.f32 %v3629, %v3643
        %v3646 = vmul.f32 %v3630, %v3644
        %v3648 = vlaneseq
        %v3649 = vshrl.u32 %v3648, 7
        %v3650 = vsub.s32 0, %v3649
        %v3651 = vrot.slane %v1207, %v3650
        %v3653 = vmul.f32 %v3645, %v3651
        %v3654 = vmul.f32 %v3646, %v3651
        %v3656 = vlaneseq
        %v3657 = vshrl.u32 %v3656, 7
        %v3658 = vsub.s32 0, %v3657
        %v3659 = vrot.slane %v1208, %v3658
        %v3661 = vadd.f32 %v3653, %v3659
        %v3662 = vadd.f32 %v3654, %v3659
        %v3663 = vpack.c.bf16 %v3661, %v3661
        %v3664 = vld [vmem:[#allocation18] sm:$0xf]
        %v3665 = vld [vmem:[#allocation18 + $0x4] sm:$0xf]
        %v3666 = vld [vmem:[#allocation18 + $0x8] sm:$0xf]
        %v3667 = vld [vmem:[#allocation18 + $0xc] sm:$0xf]
        %v3668 = vld [vmem:[#allocation18 + $0x10] sm:$0xf]
        %v3669 = vld [vmem:[#allocation18 + $0x14] sm:$0xf]
        %v3670 = vld [vmem:[#allocation18 + $0x18] sm:$0xf]
        %v3671 = vld [vmem:[#allocation18 + $0x1c] sm:$0xf]
        %v3672 = vld [vmem:[#allocation20] sm:$0x1]
        %v3674 = vlaneseq
        %v3675 = vshrl.u32 %v3674, 7
        %v3676 = vsub.s32 0, %v3675
        %v3677 = vrot.slane %v3672, %v3676
        %v3687 = vunpack.c.l.b16 %v3664
        %v3688 = vunpack.c.l.b16 %v3665
        %v3689 = vunpack.c.l.b16 %v3666
        %v3690 = vunpack.c.l.b16 %v3667
        %v3691 = vunpack.c.l.b16 %v3668
        %v3692 = vunpack.c.l.b16 %v3669
        %v3693 = vunpack.c.l.b16 %v3670
        %v3694 = vunpack.c.l.b16 %v3671
        %v3695 = vpack.c.b16 %v3688, %v3687
        %v3696 = vpack.c.b16 %v3690, %v3689
        %v3697 = vpack.c.b16 %v3692, %v3691
        %v3698 = vpack.c.b16 %v3694, %v3693
        %v3704 = vsel %vm1270, %v3663, 0
        %3706 = vmatprep.subr.bf16.mxu0 0
        %3707 = vmatpush1.bf16.msra.mxu0 0
        %3708 = vmatprep.subr.bf16.mxu0 0
        %3709 = vmatpush1.bf16.msra.mxu0 0
        %3710 = vmatprep.subr.bf16.mxu0 0
        %3711 = vmatpush1.bf16.msra.mxu0 0
        %3712 = vmatprep.subr.bf16.mxu0 0
        %3713 = vmatpush1.bf16.msra.mxu0 0
        %3714 = vmatprep.subr.bf16.mxu0 0
        %3715 = vmatpush1.bf16.msra.mxu0 %v3698
        %3716 = vmatprep.subr.bf16.mxu0 0
        %3717 = vmatpush1.bf16.msra.mxu0 %v3697
        %3718 = vmatprep.subr.bf16.mxu0 0
        %3719 = vmatpush1.bf16.msra.mxu0 %v3696
        %3720 = vmatprep.subr.bf16.mxu0 0
        %3721 = vmatpush1.bf16.msra.mxu0 %v3695
        %3722 = vmatprep.subr.bf16.mxu0 0
        %3723 = vmatpush2.bf16.msra.mxu0 0
        %3724 = vmatprep.subr.bf16.mxu0 0
        %3725 = vmatpush2.bf16.msra.mxu0 0
        %3726 = vmatprep.subr.bf16.mxu0 0
        %3727 = vmatpush2.bf16.msra.mxu0 0
        %3728 = vmatprep.subr.bf16.mxu0 0
        %3729 = vmatpush2.bf16.msra.mxu0 0
        %3730 = vmatprep.subr.bf16.mxu0 0
        %3731 = vmatpush2.bf16.msra.mxu0 0
        %3732 = vmatprep.subr.bf16.mxu0 0
        %3733 = vmatpush2.bf16.msra.mxu0 0
        %3734 = vmatprep.subr.bf16.mxu0 0
        %3735 = vmatpush2.bf16.msra.mxu0 0
        %3736 = vmatprep.subr.bf16.mxu0 0
        %3737 = vmatpush2.bf16.msra.mxu0 0
        %3738 = vmatprep.mubr.bf16.mxu0 0
        %3739 = vmatmul.mubr.bf16.gmra.mxu0 %v3704
        %v3740 = vpop.f32.mrf.mxu0
        %v3741 = vadd.f32 %v3677, %v3740
        %v3742 = vpop.f32.mrf.mxu0
        %v3743 = vpop.f32.mrf.mxu0
        %v3744 = vpop.f32.mrf.mxu0
        %3745 = vdwg.mxu0
        %v3746 = vpack.c.bf16 %v3662, %v3662
        %v3747 = vld [vmem:[#allocation21] sm:$0xf]
        %v3748 = vld [vmem:[#allocation21 + $0x4] sm:$0xf]
        %v3749 = vld [vmem:[#allocation21 + $0x8] sm:$0xf]
        %v3750 = vld [vmem:[#allocation21 + $0xc] sm:$0xf]
        %v3751 = vld [vmem:[#allocation21 + $0x10] sm:$0xf]
        %v3752 = vld [vmem:[#allocation21 + $0x14] sm:$0xf]
        %v3753 = vld [vmem:[#allocation21 + $0x18] sm:$0xf]
        %v3754 = vld [vmem:[#allocation21 + $0x1c] sm:$0xf]
        %v3755 = vld [vmem:[#allocation23] sm:$0x1]
        %v3757 = vlaneseq
        %v3758 = vshrl.u32 %v3757, 7
        %v3759 = vsub.s32 0, %v3758
        %v3760 = vrot.slane %v3755, %v3759
        %v3770 = vunpack.c.l.b16 %v3747
        %v3771 = vunpack.c.l.b16 %v3748
        %v3772 = vunpack.c.l.b16 %v3749
        %v3773 = vunpack.c.l.b16 %v3750
        %v3774 = vunpack.c.l.b16 %v3751
        %v3775 = vunpack.c.l.b16 %v3752
        %v3776 = vunpack.c.l.b16 %v3753
        %v3777 = vunpack.c.l.b16 %v3754
        %v3778 = vpack.c.b16 %v3771, %v3770
        %v3779 = vpack.c.b16 %v3773, %v3772
        %v3780 = vpack.c.b16 %v3775, %v3774
        %v3781 = vpack.c.b16 %v3777, %v3776
        %v3787 = vsel %vm1270, %v3746, 0
        %3789 = vmatprep.subr.bf16.mxu0 0
        %3790 = vmatpush1.bf16.msra.mxu0 0
        %3791 = vmatprep.subr.bf16.mxu0 0
        %3792 = vmatpush1.bf16.msra.mxu0 0
        %3793 = vmatprep.subr.bf16.mxu0 0
        %3794 = vmatpush1.bf16.msra.mxu0 0
        %3795 = vmatprep.subr.bf16.mxu0 0
        %3796 = vmatpush1.bf16.msra.mxu0 0
        %3797 = vmatprep.subr.bf16.mxu0 0
        %3798 = vmatpush1.bf16.msra.mxu0 %v3781
        %3799 = vmatprep.subr.bf16.mxu0 0
        %3800 = vmatpush1.bf16.msra.mxu0 %v3780
        %3801 = vmatprep.subr.bf16.mxu0 0
        %3802 = vmatpush1.bf16.msra.mxu0 %v3779
        %3803 = vmatprep.subr.bf16.mxu0 0
        %3804 = vmatpush1.bf16.msra.mxu0 %v3778
        %3805 = vmatprep.subr.bf16.mxu0 0
        %3806 = vmatpush2.bf16.msra.mxu0 0
        %3807 = vmatprep.subr.bf16.mxu0 0
        %3808 = vmatpush2.bf16.msra.mxu0 0
        %3809 = vmatprep.subr.bf16.mxu0 0
        %3810 = vmatpush2.bf16.msra.mxu0 0
        %3811 = vmatprep.subr.bf16.mxu0 0
        %3812 = vmatpush2.bf16.msra.mxu0 0
        %3813 = vmatprep.subr.bf16.mxu0 0
        %3814 = vmatpush2.bf16.msra.mxu0 0
        %3815 = vmatprep.subr.bf16.mxu0 0
        %3816 = vmatpush2.bf16.msra.mxu0 0
        %3817 = vmatprep.subr.bf16.mxu0 0
        %3818 = vmatpush2.bf16.msra.mxu0 0
        %3819 = vmatprep.subr.bf16.mxu0 0
        %3820 = vmatpush2.bf16.msra.mxu0 0
        %3821 = vmatprep.mubr.bf16.mxu0 0
        %3822 = vmatmul.mubr.bf16.gmra.mxu0 %v3787
        %v3823 = vpop.f32.mrf.mxu0
        %v3824 = vadd.f32 %v3760, %v3823
        %v3825 = vpop.f32.mrf.mxu0
        %v3826 = vpop.f32.mrf.mxu0
        %v3827 = vpop.f32.mrf.mxu0
        %3828 = vdwg.mxu0
        %v3829 = vmul.f32 %v3741, 0.35355338
        %v3830 = vpack.c.bf16 %v3829, %v3829
        %v3831 = vpack.c.bf16 %v3741, %v3741
        %v3832 = vpack.c.bf16 %v3824, %v3824
        %3834 = vrot.lane.b32.xlu0 %v3831, 64
        %v3835 = vpop.permute.xlu0 %3834
        %v3837 = vsel %vm1431, %v3830, 0
        %v3840 = vsel %vm1431, %v3835, 0
        %3842 = vmatprep.subr.bf16.mxu0 0
        %3843 = vmatpush1.bf16.xpose.msra.mxu0 0
        %3844 = vmatprep.subr.bf16.mxu0 0
        %3845 = vmatpush1.bf16.xpose.msra.mxu0 0
        %3846 = vmatprep.subr.bf16.mxu0 0
        %3847 = vmatpush1.bf16.xpose.msra.mxu0 0
        %3848 = vmatprep.subr.bf16.mxu0 0
        %3849 = vmatpush1.bf16.xpose.msra.mxu0 0
        %3850 = vmatprep.subr.bf16.mxu0 0
        %3851 = vmatpush1.bf16.xpose.msra.mxu0 0
        %3852 = vmatprep.subr.bf16.mxu0 0
        %3853 = vmatpush1.bf16.xpose.msra.mxu0 0
        %3854 = vmatprep.subr.bf16.mxu0 0
        %3855 = vmatpush1.bf16.xpose.msra.mxu0 0
        %3856 = vmatprep.subr.bf16.mxu0 0
        %3857 = vmatpush1.bf16.xpose.msra.mxu0 %v3840
        %3858 = vmatprep.subr.bf16.mxu0 0
        %3859 = vmatpush2.bf16.xpose.msra.mxu0 0
        %3860 = vmatprep.subr.bf16.mxu0 0
        %3861 = vmatpush2.bf16.xpose.msra.mxu0 0
        %3862 = vmatprep.subr.bf16.mxu0 0
        %3863 = vmatpush2.bf16.xpose.msra.mxu0 0
        %3864 = vmatprep.subr.bf16.mxu0 0
        %3865 = vmatpush2.bf16.xpose.msra.mxu0 0
        %3866 = vmatprep.subr.bf16.mxu0 0
        %3867 = vmatpush2.bf16.xpose.msra.mxu0 0
        %3868 = vmatprep.subr.bf16.mxu0 0
        %3869 = vmatpush2.bf16.xpose.msra.mxu0 0
        %3870 = vmatprep.subr.bf16.mxu0 0
        %3871 = vmatpush2.bf16.xpose.msra.mxu0 0
        %3872 = vmatprep.subr.bf16.mxu0 0
        %3873 = vmatpush2.bf16.xpose.msra.mxu0 0
        %3874 = vmatprep.mubr.bf16.mxu0 0
        %3875 = vmatmul.mubr.bf16.gmra.mxu0 %v3837
        %v3876 = vpop.f32.mrf.mxu0
        %v3877 = vadd.f32 0.0, %v3876
        %v3878 = vpop.f32.mrf.mxu0
        %v3879 = vpop.f32.mrf.mxu0
        %v3880 = vpop.f32.mrf.mxu0
        %3881 = vdwg.mxu0
        %v3882 = vsel %vm1206, -1e+30, %v3877
        %v3883 = vsel %vm1431, %v3882, -inf
        %3884 = vmax.xlane.f32.xlu0 %v3883
        %v3885 = vpop.xlane.xlu0 %3884
        %v3886 = vsub.f32 %v3882, %v3885
        %v3887 = vmul.f32 %v3886, 1.442695
        %v3888 = vpow.pop %v3887
        %v3889 = vsel %vm1431, %v3888, 0.0
        %3890 = vadd.xlane.f32.xlu0 %v3889
        %v3891 = vpop.xlane.xlu0 %3890
        %v3892 = vrcp.pop %v3891
        %v3893 = vmul.f32 %v3888, %v3892
        %v3894 = vadd.f32 %v3893, 0.0
        %v3895 = vpack.c.bf16 %v3893, %v3893
        %v3897 = vsel %vm1431, %v3895, 0
        %v3900 = vsel %vm1558, %v3832, 0
        %3902 = vmatprep.subr.bf16.mxu0 0
        %3903 = vmatpush1.bf16.msra.mxu0 0
        %3904 = vmatprep.subr.bf16.mxu0 0
        %3905 = vmatpush1.bf16.msra.mxu0 0
        %3906 = vmatprep.subr.bf16.mxu0 0
        %3907 = vmatpush1.bf16.msra.mxu0 0
        %3908 = vmatprep.subr.bf16.mxu0 0
        %3909 = vmatpush1.bf16.msra.mxu0 0
        %3910 = vmatprep.subr.bf16.mxu0 0
        %3911 = vmatpush1.bf16.msra.mxu0 0
        %3912 = vmatprep.subr.bf16.mxu0 0
        %3913 = vmatpush1.bf16.msra.mxu0 0
        %3914 = vmatprep.subr.bf16.mxu0 0
        %3915 = vmatpush1.bf16.msra.mxu0 0
        %3916 = vmatprep.subr.bf16.mxu0 0
        %3917 = vmatpush1.bf16.msra.mxu0 %v3900
        %3918 = vmatprep.subr.bf16.mxu0 0
        %3919 = vmatpush2.bf16.msra.mxu0 0
        %3920 = vmatprep.subr.bf16.mxu0 0
        %3921 = vmatpush2.bf16.msra.mxu0 0
        %3922 = vmatprep.subr.bf16.mxu0 0
        %3923 = vmatpush2.bf16.msra.mxu0 0
        %3924 = vmatprep.subr.bf16.mxu0 0
        %3925 = vmatpush2.bf16.msra.mxu0 0
        %3926 = vmatprep.subr.bf16.mxu0 0
        %3927 = vmatpush2.bf16.msra.mxu0 0
        %3928 = vmatprep.subr.bf16.mxu0 0
        %3929 = vmatpush2.bf16.msra.mxu0 0
        %3930 = vmatprep.subr.bf16.mxu0 0
        %3931 = vmatpush2.bf16.msra.mxu0 0
        %3932 = vmatprep.subr.bf16.mxu0 0
        %3933 = vmatpush2.bf16.msra.mxu0 0
        %3934 = vmatprep.mubr.bf16.mxu0 0
        %3935 = vmatmul.mubr.bf16.gmra.mxu0 %v3897
        %v3936 = vpop.f32.mrf.mxu0
        %v3937 = vadd.f32 0.0, %v3936
        %v3938 = vpop.f32.mrf.mxu0
        %v3939 = vpop.f32.mrf.mxu0
        %v3940 = vpop.f32.mrf.mxu0
        %3941 = vdwg.mxu0
        %3943 = vrot.lane.b32.xlu0 %v3830, 120
        %v3944 = vpop.permute.xlu0 %3943
        %3945 = vrot.lane.b32.xlu0 %v3831, 56
        %v3946 = vpop.permute.xlu0 %3945
        %v3948 = vsel %vm1431, %v3944, 0
        %v3951 = vsel %vm1431, %v3946, 0
        %3953 = vmatprep.subr.bf16.mxu0 0
        %3954 = vmatpush1.bf16.xpose.msra.mxu0 0
        %3955 = vmatprep.subr.bf16.mxu0 0
        %3956 = vmatpush1.bf16.xpose.msra.mxu0 0
        %3957 = vmatprep.subr.bf16.mxu0 0
        %3958 = vmatpush1.bf16.xpose.msra.mxu0 0
        %3959 = vmatprep.subr.bf16.mxu0 0
        %3960 = vmatpush1.bf16.xpose.msra.mxu0 0
        %3961 = vmatprep.subr.bf16.mxu0 0
        %3962 = vmatpush1.bf16.xpose.msra.mxu0 0
        %3963 = vmatprep.subr.bf16.mxu0 0
        %3964 = vmatpush1.bf16.xpose.msra.mxu0 0
        %3965 = vmatprep.subr.bf16.mxu0 0
        %3966 = vmatpush1.bf16.xpose.msra.mxu0 0
        %3967 = vmatprep.subr.bf16.mxu0 0
        %3968 = vmatpush1.bf16.xpose.msra.mxu0 %v3951
        %3969 = vmatprep.subr.bf16.mxu0 0
        %3970 = vmatpush2.bf16.xpose.msra.mxu0 0
        %3971 = vmatprep.subr.bf16.mxu0 0
        %3972 = vmatpush2.bf16.xpose.msra.mxu0 0
        %3973 = vmatprep.subr.bf16.mxu0 0
        %3974 = vmatpush2.bf16.xpose.msra.mxu0 0
        %3975 = vmatprep.subr.bf16.mxu0 0
        %3976 = vmatpush2.bf16.xpose.msra.mxu0 0
        %3977 = vmatprep.subr.bf16.mxu0 0
        %3978 = vmatpush2.bf16.xpose.msra.mxu0 0
        %3979 = vmatprep.subr.bf16.mxu0 0
        %3980 = vmatpush2.bf16.xpose.msra.mxu0 0
        %3981 = vmatprep.subr.bf16.mxu0 0
        %3982 = vmatpush2.bf16.xpose.msra.mxu0 0
        %3983 = vmatprep.subr.bf16.mxu0 0
        %3984 = vmatpush2.bf16.xpose.msra.mxu0 0
        %3985 = vmatprep.mubr.bf16.mxu0 0
        %3986 = vmatmul.mubr.bf16.gmra.mxu0 %v3948
        %v3987 = vpop.f32.mrf.mxu0
        %v3988 = vadd.f32 0.0, %v3987
        %v3989 = vpop.f32.mrf.mxu0
        %v3990 = vpop.f32.mrf.mxu0
        %v3991 = vpop.f32.mrf.mxu0
        %3992 = vdwg.mxu0
        %v3993 = vsel %vm1206, -1e+30, %v3988
        %v3994 = vsel %vm1431, %v3993, -inf
        %3995 = vmax.xlane.f32.xlu0 %v3994
        %v3996 = vpop.xlane.xlu0 %3995
        %v3997 = vsub.f32 %v3993, %v3996
        %v3998 = vmul.f32 %v3997, 1.442695
        %v3999 = vpow.pop %v3998
        %v4000 = vsel %vm1431, %v3999, 0.0
        %4001 = vadd.xlane.f32.xlu0 %v4000
        %v4002 = vpop.xlane.xlu0 %4001
        %v4003 = vrcp.pop %v4002
        %v4004 = vmul.f32 %v3999, %v4003
        %v4005 = vadd.f32 %v3894, %v4004
        %v4006 = vpack.c.bf16 %v4004, %v4004
        %4008 = vrot.lane.b32.xlu0 %v3832, 120
        %v4009 = vpop.permute.xlu0 %4008
        %v4011 = vsel %vm1431, %v4006, 0
        %v4014 = vsel %vm1558, %v4009, 0
        %4016 = vmatprep.subr.bf16.mxu0 0
        %4017 = vmatpush1.bf16.msra.mxu0 0
        %4018 = vmatprep.subr.bf16.mxu0 0
        %4019 = vmatpush1.bf16.msra.mxu0 0
        %4020 = vmatprep.subr.bf16.mxu0 0
        %4021 = vmatpush1.bf16.msra.mxu0 0
        %4022 = vmatprep.subr.bf16.mxu0 0
        %4023 = vmatpush1.bf16.msra.mxu0 0
        %4024 = vmatprep.subr.bf16.mxu0 0
        %4025 = vmatpush1.bf16.msra.mxu0 0
        %4026 = vmatprep.subr.bf16.mxu0 0
        %4027 = vmatpush1.bf16.msra.mxu0 0
        %4028 = vmatprep.subr.bf16.mxu0 0
        %4029 = vmatpush1.bf16.msra.mxu0 0
        %4030 = vmatprep.subr.bf16.mxu0 0
        %4031 = vmatpush1.bf16.msra.mxu0 %v4014
        %4032 = vmatprep.subr.bf16.mxu0 0
        %4033 = vmatpush2.bf16.msra.mxu0 0
        %4034 = vmatprep.subr.bf16.mxu0 0
        %4035 = vmatpush2.bf16.msra.mxu0 0
        %4036 = vmatprep.subr.bf16.mxu0 0
        %4037 = vmatpush2.bf16.msra.mxu0 0
        %4038 = vmatprep.subr.bf16.mxu0 0
        %4039 = vmatpush2.bf16.msra.mxu0 0
        %4040 = vmatprep.subr.bf16.mxu0 0
        %4041 = vmatpush2.bf16.msra.mxu0 0
        %4042 = vmatprep.subr.bf16.mxu0 0
        %4043 = vmatpush2.bf16.msra.mxu0 0
        %4044 = vmatprep.subr.bf16.mxu0 0
        %4045 = vmatpush2.bf16.msra.mxu0 0
        %4046 = vmatprep.subr.bf16.mxu0 0
        %4047 = vmatpush2.bf16.msra.mxu0 0
        %4048 = vmatprep.mubr.bf16.mxu0 0
        %4049 = vmatmul.mubr.bf16.gmra.mxu0 %v4011
        %v4050 = vpop.f32.mrf.mxu0
        %v4051 = vadd.f32 0.0, %v4050
        %v4052 = vpop.f32.mrf.mxu0
        %v4053 = vpop.f32.mrf.mxu0
        %v4054 = vpop.f32.mrf.mxu0
        %4055 = vdwg.mxu0
        %4056 = vrot.lane.b32.xlu0 %v3830, 112
        %v4057 = vpop.permute.xlu0 %4056
        %4058 = vrot.lane.b32.xlu0 %v3831, 48
        %v4059 = vpop.permute.xlu0 %4058
        %v4061 = vsel %vm1431, %v4057, 0
        %v4064 = vsel %vm1431, %v4059, 0
        %4066 = vmatprep.subr.bf16.mxu0 0
        %4067 = vmatpush1.bf16.xpose.msra.mxu0 0
        %4068 = vmatprep.subr.bf16.mxu0 0
        %4069 = vmatpush1.bf16.xpose.msra.mxu0 0
        %4070 = vmatprep.subr.bf16.mxu0 0
        %4071 = vmatpush1.bf16.xpose.msra.mxu0 0
        %4072 = vmatprep.subr.bf16.mxu0 0
        %4073 = vmatpush1.bf16.xpose.msra.mxu0 0
        %4074 = vmatprep.subr.bf16.mxu0 0
        %4075 = vmatpush1.bf16.xpose.msra.mxu0 0
        %4076 = vmatprep.subr.bf16.mxu0 0
        %4077 = vmatpush1.bf16.xpose.msra.mxu0 0
        %4078 = vmatprep.subr.bf16.mxu0 0
        %4079 = vmatpush1.bf16.xpose.msra.mxu0 0
        %4080 = vmatprep.subr.bf16.mxu0 0
        %4081 = vmatpush1.bf16.xpose.msra.mxu0 %v4064
        %4082 = vmatprep.subr.bf16.mxu0 0
        %4083 = vmatpush2.bf16.xpose.msra.mxu0 0
        %4084 = vmatprep.subr.bf16.mxu0 0
        %4085 = vmatpush2.bf16.xpose.msra.mxu0 0
        %4086 = vmatprep.subr.bf16.mxu0 0
        %4087 = vmatpush2.bf16.xpose.msra.mxu0 0
        %4088 = vmatprep.subr.bf16.mxu0 0
        %4089 = vmatpush2.bf16.xpose.msra.mxu0 0
        %4090 = vmatprep.subr.bf16.mxu0 0
        %4091 = vmatpush2.bf16.xpose.msra.mxu0 0
        %4092 = vmatprep.subr.bf16.mxu0 0
        %4093 = vmatpush2.bf16.xpose.msra.mxu0 0
        %4094 = vmatprep.subr.bf16.mxu0 0
        %4095 = vmatpush2.bf16.xpose.msra.mxu0 0
        %4096 = vmatprep.subr.bf16.mxu0 0
        %4097 = vmatpush2.bf16.xpose.msra.mxu0 0
        %4098 = vmatprep.mubr.bf16.mxu0 0
        %4099 = vmatmul.mubr.bf16.gmra.mxu0 %v4061
        %v4100 = vpop.f32.mrf.mxu0
        %v4101 = vadd.f32 0.0, %v4100
        %v4102 = vpop.f32.mrf.mxu0
        %v4103 = vpop.f32.mrf.mxu0
        %v4104 = vpop.f32.mrf.mxu0
        %4105 = vdwg.mxu0
        %v4106 = vsel %vm1206, -1e+30, %v4101
        %v4107 = vsel %vm1431, %v4106, -inf
        %4108 = vmax.xlane.f32.xlu0 %v4107
        %v4109 = vpop.xlane.xlu0 %4108
        %v4110 = vsub.f32 %v4106, %v4109
        %v4111 = vmul.f32 %v4110, 1.442695
        %v4112 = vpow.pop %v4111
        %v4113 = vsel %vm1431, %v4112, 0.0
        %4114 = vadd.xlane.f32.xlu0 %v4113
        %v4115 = vpop.xlane.xlu0 %4114
        %v4116 = vrcp.pop %v4115
        %v4117 = vmul.f32 %v4112, %v4116
        %v4118 = vadd.f32 %v4005, %v4117
        %v4119 = vpack.c.bf16 %v4117, %v4117
        %4120 = vrot.lane.b32.xlu0 %v3832, 112
        %v4121 = vpop.permute.xlu0 %4120
        %v4123 = vsel %vm1431, %v4119, 0
        %v4126 = vsel %vm1558, %v4121, 0
        %4128 = vmatprep.subr.bf16.mxu0 0
        %4129 = vmatpush1.bf16.msra.mxu0 0
        %4130 = vmatprep.subr.bf16.mxu0 0
        %4131 = vmatpush1.bf16.msra.mxu0 0
        %4132 = vmatprep.subr.bf16.mxu0 0
        %4133 = vmatpush1.bf16.msra.mxu0 0
        %4134 = vmatprep.subr.bf16.mxu0 0
        %4135 = vmatpush1.bf16.msra.mxu0 0
        %4136 = vmatprep.subr.bf16.mxu0 0
        %4137 = vmatpush1.bf16.msra.mxu0 0
        %4138 = vmatprep.subr.bf16.mxu0 0
        %4139 = vmatpush1.bf16.msra.mxu0 0
        %4140 = vmatprep.subr.bf16.mxu0 0
        %4141 = vmatpush1.bf16.msra.mxu0 0
        %4142 = vmatprep.subr.bf16.mxu0 0
        %4143 = vmatpush1.bf16.msra.mxu0 %v4126
        %4144 = vmatprep.subr.bf16.mxu0 0
        %4145 = vmatpush2.bf16.msra.mxu0 0
        %4146 = vmatprep.subr.bf16.mxu0 0
        %4147 = vmatpush2.bf16.msra.mxu0 0
        %4148 = vmatprep.subr.bf16.mxu0 0
        %4149 = vmatpush2.bf16.msra.mxu0 0
        %4150 = vmatprep.subr.bf16.mxu0 0
        %4151 = vmatpush2.bf16.msra.mxu0 0
        %4152 = vmatprep.subr.bf16.mxu0 0
        %4153 = vmatpush2.bf16.msra.mxu0 0
        %4154 = vmatprep.subr.bf16.mxu0 0
        %4155 = vmatpush2.bf16.msra.mxu0 0
        %4156 = vmatprep.subr.bf16.mxu0 0
        %4157 = vmatpush2.bf16.msra.mxu0 0
        %4158 = vmatprep.subr.bf16.mxu0 0
        %4159 = vmatpush2.bf16.msra.mxu0 0
        %4160 = vmatprep.mubr.bf16.mxu0 0
        %4161 = vmatmul.mubr.bf16.gmra.mxu0 %v4123
        %v4162 = vpop.f32.mrf.mxu0
        %v4163 = vadd.f32 0.0, %v4162
        %v4164 = vpop.f32.mrf.mxu0
        %v4165 = vpop.f32.mrf.mxu0
        %v4166 = vpop.f32.mrf.mxu0
        %4167 = vdwg.mxu0
        %4168 = vrot.lane.b32.xlu0 %v3830, 104
        %v4169 = vpop.permute.xlu0 %4168
        %4170 = vrot.lane.b32.xlu0 %v3831, 40
        %v4171 = vpop.permute.xlu0 %4170
        %v4173 = vsel %vm1431, %v4169, 0
        %v4176 = vsel %vm1431, %v4171, 0
        %4178 = vmatprep.subr.bf16.mxu0 0
        %4179 = vmatpush1.bf16.xpose.msra.mxu0 0
        %4180 = vmatprep.subr.bf16.mxu0 0
        %4181 = vmatpush1.bf16.xpose.msra.mxu0 0
        %4182 = vmatprep.subr.bf16.mxu0 0
        %4183 = vmatpush1.bf16.xpose.msra.mxu0 0
        %4184 = vmatprep.subr.bf16.mxu0 0
        %4185 = vmatpush1.bf16.xpose.msra.mxu0 0
        %4186 = vmatprep.subr.bf16.mxu0 0
        %4187 = vmatpush1.bf16.xpose.msra.mxu0 0
        %4188 = vmatprep.subr.bf16.mxu0 0
        %4189 = vmatpush1.bf16.xpose.msra.mxu0 0
        %4190 = vmatprep.subr.bf16.mxu0 0
        %4191 = vmatpush1.bf16.xpose.msra.mxu0 0
        %4192 = vmatprep.subr.bf16.mxu0 0
        %4193 = vmatpush1.bf16.xpose.msra.mxu0 %v4176
        %4194 = vmatprep.subr.bf16.mxu0 0
        %4195 = vmatpush2.bf16.xpose.msra.mxu0 0
        %4196 = vmatprep.subr.bf16.mxu0 0
        %4197 = vmatpush2.bf16.xpose.msra.mxu0 0
        %4198 = vmatprep.subr.bf16.mxu0 0
        %4199 = vmatpush2.bf16.xpose.msra.mxu0 0
        %4200 = vmatprep.subr.bf16.mxu0 0
        %4201 = vmatpush2.bf16.xpose.msra.mxu0 0
        %4202 = vmatprep.subr.bf16.mxu0 0
        %4203 = vmatpush2.bf16.xpose.msra.mxu0 0
        %4204 = vmatprep.subr.bf16.mxu0 0
        %4205 = vmatpush2.bf16.xpose.msra.mxu0 0
        %4206 = vmatprep.subr.bf16.mxu0 0
        %4207 = vmatpush2.bf16.xpose.msra.mxu0 0
        %4208 = vmatprep.subr.bf16.mxu0 0
        %4209 = vmatpush2.bf16.xpose.msra.mxu0 0
        %4210 = vmatprep.mubr.bf16.mxu0 0
        %4211 = vmatmul.mubr.bf16.gmra.mxu0 %v4173
        %v4212 = vpop.f32.mrf.mxu0
        %v4213 = vadd.f32 0.0, %v4212
        %v4214 = vpop.f32.mrf.mxu0
        %v4215 = vpop.f32.mrf.mxu0
        %v4216 = vpop.f32.mrf.mxu0
        %4217 = vdwg.mxu0
        %v4218 = vsel %vm1206, -1e+30, %v4213
        %v4219 = vsel %vm1431, %v4218, -inf
        %4220 = vmax.xlane.f32.xlu0 %v4219
        %v4221 = vpop.xlane.xlu0 %4220
        %v4222 = vsub.f32 %v4218, %v4221
        %v4223 = vmul.f32 %v4222, 1.442695
        %v4224 = vpow.pop %v4223
        %v4225 = vsel %vm1431, %v4224, 0.0
        %4226 = vadd.xlane.f32.xlu0 %v4225
        %v4227 = vpop.xlane.xlu0 %4226
        %v4228 = vrcp.pop %v4227
        %v4229 = vmul.f32 %v4224, %v4228
        %v4230 = vadd.f32 %v4118, %v4229
        %v4231 = vpack.c.bf16 %v4229, %v4229
        %4232 = vrot.lane.b32.xlu0 %v3832, 104
        %v4233 = vpop.permute.xlu0 %4232
        %v4235 = vsel %vm1431, %v4231, 0
        %v4238 = vsel %vm1558, %v4233, 0
        %4240 = vmatprep.subr.bf16.mxu0 0
        %4241 = vmatpush1.bf16.msra.mxu0 0
        %4242 = vmatprep.subr.bf16.mxu0 0
        %4243 = vmatpush1.bf16.msra.mxu0 0
        %4244 = vmatprep.subr.bf16.mxu0 0
        %4245 = vmatpush1.bf16.msra.mxu0 0
        %4246 = vmatprep.subr.bf16.mxu0 0
        %4247 = vmatpush1.bf16.msra.mxu0 0
        %4248 = vmatprep.subr.bf16.mxu0 0
        %4249 = vmatpush1.bf16.msra.mxu0 0
        %4250 = vmatprep.subr.bf16.mxu0 0
        %4251 = vmatpush1.bf16.msra.mxu0 0
        %4252 = vmatprep.subr.bf16.mxu0 0
        %4253 = vmatpush1.bf16.msra.mxu0 0
        %4254 = vmatprep.subr.bf16.mxu0 0
        %4255 = vmatpush1.bf16.msra.mxu0 %v4238
        %4256 = vmatprep.subr.bf16.mxu0 0
        %4257 = vmatpush2.bf16.msra.mxu0 0
        %4258 = vmatprep.subr.bf16.mxu0 0
        %4259 = vmatpush2.bf16.msra.mxu0 0
        %4260 = vmatprep.subr.bf16.mxu0 0
        %4261 = vmatpush2.bf16.msra.mxu0 0
        %4262 = vmatprep.subr.bf16.mxu0 0
        %4263 = vmatpush2.bf16.msra.mxu0 0
        %4264 = vmatprep.subr.bf16.mxu0 0
        %4265 = vmatpush2.bf16.msra.mxu0 0
        %4266 = vmatprep.subr.bf16.mxu0 0
        %4267 = vmatpush2.bf16.msra.mxu0 0
        %4268 = vmatprep.subr.bf16.mxu0 0
        %4269 = vmatpush2.bf16.msra.mxu0 0
        %4270 = vmatprep.subr.bf16.mxu0 0
        %4271 = vmatpush2.bf16.msra.mxu0 0
        %4272 = vmatprep.mubr.bf16.mxu0 0
        %4273 = vmatmul.mubr.bf16.gmra.mxu0 %v4235
        %v4274 = vpop.f32.mrf.mxu0
        %v4275 = vadd.f32 0.0, %v4274
        %v4276 = vpop.f32.mrf.mxu0
        %v4277 = vpop.f32.mrf.mxu0
        %v4278 = vpop.f32.mrf.mxu0
        %4279 = vdwg.mxu0
        %4280 = vrot.lane.b32.xlu0 %v3830, 96
        %v4281 = vpop.permute.xlu0 %4280
        %4282 = vrot.lane.b32.xlu0 %v3831, 32
        %v4283 = vpop.permute.xlu0 %4282
        %v4285 = vsel %vm1431, %v4281, 0
        %v4288 = vsel %vm1431, %v4283, 0
        %4290 = vmatprep.subr.bf16.mxu0 0
        %4291 = vmatpush1.bf16.xpose.msra.mxu0 0
        %4292 = vmatprep.subr.bf16.mxu0 0
        %4293 = vmatpush1.bf16.xpose.msra.mxu0 0
        %4294 = vmatprep.subr.bf16.mxu0 0
        %4295 = vmatpush1.bf16.xpose.msra.mxu0 0
        %4296 = vmatprep.subr.bf16.mxu0 0
        %4297 = vmatpush1.bf16.xpose.msra.mxu0 0
        %4298 = vmatprep.subr.bf16.mxu0 0
        %4299 = vmatpush1.bf16.xpose.msra.mxu0 0
        %4300 = vmatprep.subr.bf16.mxu0 0
        %4301 = vmatpush1.bf16.xpose.msra.mxu0 0
        %4302 = vmatprep.subr.bf16.mxu0 0
        %4303 = vmatpush1.bf16.xpose.msra.mxu0 0
        %4304 = vmatprep.subr.bf16.mxu0 0
        %4305 = vmatpush1.bf16.xpose.msra.mxu0 %v4288
        %4306 = vmatprep.subr.bf16.mxu0 0
        %4307 = vmatpush2.bf16.xpose.msra.mxu0 0
        %4308 = vmatprep.subr.bf16.mxu0 0
        %4309 = vmatpush2.bf16.xpose.msra.mxu0 0
        %4310 = vmatprep.subr.bf16.mxu0 0
        %4311 = vmatpush2.bf16.xpose.msra.mxu0 0
        %4312 = vmatprep.subr.bf16.mxu0 0
        %4313 = vmatpush2.bf16.xpose.msra.mxu0 0
        %4314 = vmatprep.subr.bf16.mxu0 0
        %4315 = vmatpush2.bf16.xpose.msra.mxu0 0
        %4316 = vmatprep.subr.bf16.mxu0 0
        %4317 = vmatpush2.bf16.xpose.msra.mxu0 0
        %4318 = vmatprep.subr.bf16.mxu0 0
        %4319 = vmatpush2.bf16.xpose.msra.mxu0 0
        %4320 = vmatprep.subr.bf16.mxu0 0
        %4321 = vmatpush2.bf16.xpose.msra.mxu0 0
        %4322 = vmatprep.mubr.bf16.mxu0 0
        %4323 = vmatmul.mubr.bf16.gmra.mxu0 %v4285
        %v4324 = vpop.f32.mrf.mxu0
        %v4325 = vadd.f32 0.0, %v4324
        %v4326 = vpop.f32.mrf.mxu0
        %v4327 = vpop.f32.mrf.mxu0
        %v4328 = vpop.f32.mrf.mxu0
        %4329 = vdwg.mxu0
        %v4330 = vsel %vm1206, -1e+30, %v4325
        %v4331 = vsel %vm1431, %v4330, -inf
        %4332 = vmax.xlane.f32.xlu0 %v4331
        %v4333 = vpop.xlane.xlu0 %4332
        %v4334 = vsub.f32 %v4330, %v4333
        %v4335 = vmul.f32 %v4334, 1.442695
        %v4336 = vpow.pop %v4335
        %v4337 = vsel %vm1431, %v4336, 0.0
        %4338 = vadd.xlane.f32.xlu0 %v4337
        %v4339 = vpop.xlane.xlu0 %4338
        %v4340 = vrcp.pop %v4339
        %v4341 = vmul.f32 %v4336, %v4340
        %v4342 = vadd.f32 %v4230, %v4341
        %v4343 = vpack.c.bf16 %v4341, %v4341
        %4344 = vrot.lane.b32.xlu0 %v3832, 96
        %v4345 = vpop.permute.xlu0 %4344
        %v4347 = vsel %vm1431, %v4343, 0
        %v4350 = vsel %vm1558, %v4345, 0
        %4352 = vmatprep.subr.bf16.mxu0 0
        %4353 = vmatpush1.bf16.msra.mxu0 0
        %4354 = vmatprep.subr.bf16.mxu0 0
        %4355 = vmatpush1.bf16.msra.mxu0 0
        %4356 = vmatprep.subr.bf16.mxu0 0
        %4357 = vmatpush1.bf16.msra.mxu0 0
        %4358 = vmatprep.subr.bf16.mxu0 0
        %4359 = vmatpush1.bf16.msra.mxu0 0
        %4360 = vmatprep.subr.bf16.mxu0 0
        %4361 = vmatpush1.bf16.msra.mxu0 0
        %4362 = vmatprep.subr.bf16.mxu0 0
        %4363 = vmatpush1.bf16.msra.mxu0 0
        %4364 = vmatprep.subr.bf16.mxu0 0
        %4365 = vmatpush1.bf16.msra.mxu0 0
        %4366 = vmatprep.subr.bf16.mxu0 0
        %4367 = vmatpush1.bf16.msra.mxu0 %v4350
        %4368 = vmatprep.subr.bf16.mxu0 0
        %4369 = vmatpush2.bf16.msra.mxu0 0
        %4370 = vmatprep.subr.bf16.mxu0 0
        %4371 = vmatpush2.bf16.msra.mxu0 0
        %4372 = vmatprep.subr.bf16.mxu0 0
        %4373 = vmatpush2.bf16.msra.mxu0 0
        %4374 = vmatprep.subr.bf16.mxu0 0
        %4375 = vmatpush2.bf16.msra.mxu0 0
        %4376 = vmatprep.subr.bf16.mxu0 0
        %4377 = vmatpush2.bf16.msra.mxu0 0
        %4378 = vmatprep.subr.bf16.mxu0 0
        %4379 = vmatpush2.bf16.msra.mxu0 0
        %4380 = vmatprep.subr.bf16.mxu0 0
        %4381 = vmatpush2.bf16.msra.mxu0 0
        %4382 = vmatprep.subr.bf16.mxu0 0
        %4383 = vmatpush2.bf16.msra.mxu0 0
        %4384 = vmatprep.mubr.bf16.mxu0 0
        %4385 = vmatmul.mubr.bf16.gmra.mxu0 %v4347
        %v4386 = vpop.f32.mrf.mxu0
        %v4387 = vadd.f32 0.0, %v4386
        %v4388 = vpop.f32.mrf.mxu0
        %v4389 = vpop.f32.mrf.mxu0
        %v4390 = vpop.f32.mrf.mxu0
        %4391 = vdwg.mxu0
        %4392 = vrot.lane.b32.xlu0 %v3830, 88
        %v4393 = vpop.permute.xlu0 %4392
        %4394 = vrot.lane.b32.xlu0 %v3831, 24
        %v4395 = vpop.permute.xlu0 %4394
        %v4397 = vsel %vm1431, %v4393, 0
        %v4400 = vsel %vm1431, %v4395, 0
        %4402 = vmatprep.subr.bf16.mxu0 0
        %4403 = vmatpush1.bf16.xpose.msra.mxu0 0
        %4404 = vmatprep.subr.bf16.mxu0 0
        %4405 = vmatpush1.bf16.xpose.msra.mxu0 0
        %4406 = vmatprep.subr.bf16.mxu0 0
        %4407 = vmatpush1.bf16.xpose.msra.mxu0 0
        %4408 = vmatprep.subr.bf16.mxu0 0
        %4409 = vmatpush1.bf16.xpose.msra.mxu0 0
        %4410 = vmatprep.subr.bf16.mxu0 0
        %4411 = vmatpush1.bf16.xpose.msra.mxu0 0
        %4412 = vmatprep.subr.bf16.mxu0 0
        %4413 = vmatpush1.bf16.xpose.msra.mxu0 0
        %4414 = vmatprep.subr.bf16.mxu0 0
        %4415 = vmatpush1.bf16.xpose.msra.mxu0 0
        %4416 = vmatprep.subr.bf16.mxu0 0
        %4417 = vmatpush1.bf16.xpose.msra.mxu0 %v4400
        %4418 = vmatprep.subr.bf16.mxu0 0
        %4419 = vmatpush2.bf16.xpose.msra.mxu0 0
        %4420 = vmatprep.subr.bf16.mxu0 0
        %4421 = vmatpush2.bf16.xpose.msra.mxu0 0
        %4422 = vmatprep.subr.bf16.mxu0 0
        %4423 = vmatpush2.bf16.xpose.msra.mxu0 0
        %4424 = vmatprep.subr.bf16.mxu0 0
        %4425 = vmatpush2.bf16.xpose.msra.mxu0 0
        %4426 = vmatprep.subr.bf16.mxu0 0
        %4427 = vmatpush2.bf16.xpose.msra.mxu0 0
        %4428 = vmatprep.subr.bf16.mxu0 0
        %4429 = vmatpush2.bf16.xpose.msra.mxu0 0
        %4430 = vmatprep.subr.bf16.mxu0 0
        %4431 = vmatpush2.bf16.xpose.msra.mxu0 0
        %4432 = vmatprep.subr.bf16.mxu0 0
        %4433 = vmatpush2.bf16.xpose.msra.mxu0 0
        %4434 = vmatprep.mubr.bf16.mxu0 0
        %4435 = vmatmul.mubr.bf16.gmra.mxu0 %v4397
        %v4436 = vpop.f32.mrf.mxu0
        %v4437 = vadd.f32 0.0, %v4436
        %v4438 = vpop.f32.mrf.mxu0
        %v4439 = vpop.f32.mrf.mxu0
        %v4440 = vpop.f32.mrf.mxu0
        %4441 = vdwg.mxu0
        %v4442 = vsel %vm1206, -1e+30, %v4437
        %v4443 = vsel %vm1431, %v4442, -inf
        %4444 = vmax.xlane.f32.xlu0 %v4443
        %v4445 = vpop.xlane.xlu0 %4444
        %v4446 = vsub.f32 %v4442, %v4445
        %v4447 = vmul.f32 %v4446, 1.442695
        %v4448 = vpow.pop %v4447
        %v4449 = vsel %vm1431, %v4448, 0.0
        %4450 = vadd.xlane.f32.xlu0 %v4449
        %v4451 = vpop.xlane.xlu0 %4450
        %v4452 = vrcp.pop %v4451
        %v4453 = vmul.f32 %v4448, %v4452
        %v4454 = vadd.f32 %v4342, %v4453
        %v4455 = vpack.c.bf16 %v4453, %v4453
        %4456 = vrot.lane.b32.xlu0 %v3832, 88
        %v4457 = vpop.permute.xlu0 %4456
        %v4459 = vsel %vm1431, %v4455, 0
        %v4462 = vsel %vm1558, %v4457, 0
        %4464 = vmatprep.subr.bf16.mxu0 0
        %4465 = vmatpush1.bf16.msra.mxu0 0
        %4466 = vmatprep.subr.bf16.mxu0 0
        %4467 = vmatpush1.bf16.msra.mxu0 0
        %4468 = vmatprep.subr.bf16.mxu0 0
        %4469 = vmatpush1.bf16.msra.mxu0 0
        %4470 = vmatprep.subr.bf16.mxu0 0
        %4471 = vmatpush1.bf16.msra.mxu0 0
        %4472 = vmatprep.subr.bf16.mxu0 0
        %4473 = vmatpush1.bf16.msra.mxu0 0
        %4474 = vmatprep.subr.bf16.mxu0 0
        %4475 = vmatpush1.bf16.msra.mxu0 0
        %4476 = vmatprep.subr.bf16.mxu0 0
        %4477 = vmatpush1.bf16.msra.mxu0 0
        %4478 = vmatprep.subr.bf16.mxu0 0
        %4479 = vmatpush1.bf16.msra.mxu0 %v4462
        %4480 = vmatprep.subr.bf16.mxu0 0
        %4481 = vmatpush2.bf16.msra.mxu0 0
        %4482 = vmatprep.subr.bf16.mxu0 0
        %4483 = vmatpush2.bf16.msra.mxu0 0
        %4484 = vmatprep.subr.bf16.mxu0 0
        %4485 = vmatpush2.bf16.msra.mxu0 0
        %4486 = vmatprep.subr.bf16.mxu0 0
        %4487 = vmatpush2.bf16.msra.mxu0 0
        %4488 = vmatprep.subr.bf16.mxu0 0
        %4489 = vmatpush2.bf16.msra.mxu0 0
        %4490 = vmatprep.subr.bf16.mxu0 0
        %4491 = vmatpush2.bf16.msra.mxu0 0
        %4492 = vmatprep.subr.bf16.mxu0 0
        %4493 = vmatpush2.bf16.msra.mxu0 0
        %4494 = vmatprep.subr.bf16.mxu0 0
        %4495 = vmatpush2.bf16.msra.mxu0 0
        %4496 = vmatprep.mubr.bf16.mxu0 0
        %4497 = vmatmul.mubr.bf16.gmra.mxu0 %v4459
        %v4498 = vpop.f32.mrf.mxu0
        %v4499 = vadd.f32 0.0, %v4498
        %v4500 = vpop.f32.mrf.mxu0
        %v4501 = vpop.f32.mrf.mxu0
        %v4502 = vpop.f32.mrf.mxu0
        %4503 = vdwg.mxu0
        %4504 = vrot.lane.b32.xlu0 %v3830, 80
        %v4505 = vpop.permute.xlu0 %4504
        %4506 = vrot.lane.b32.xlu0 %v3831, 16
        %v4507 = vpop.permute.xlu0 %4506
        %v4509 = vsel %vm1431, %v4505, 0
        %v4512 = vsel %vm1431, %v4507, 0
        %4514 = vmatprep.subr.bf16.mxu0 0
        %4515 = vmatpush1.bf16.xpose.msra.mxu0 0
        %4516 = vmatprep.subr.bf16.mxu0 0
        %4517 = vmatpush1.bf16.xpose.msra.mxu0 0
        %4518 = vmatprep.subr.bf16.mxu0 0
        %4519 = vmatpush1.bf16.xpose.msra.mxu0 0
        %4520 = vmatprep.subr.bf16.mxu0 0
        %4521 = vmatpush1.bf16.xpose.msra.mxu0 0
        %4522 = vmatprep.subr.bf16.mxu0 0
        %4523 = vmatpush1.bf16.xpose.msra.mxu0 0
        %4524 = vmatprep.subr.bf16.mxu0 0
        %4525 = vmatpush1.bf16.xpose.msra.mxu0 0
        %4526 = vmatprep.subr.bf16.mxu0 0
        %4527 = vmatpush1.bf16.xpose.msra.mxu0 0
        %4528 = vmatprep.subr.bf16.mxu0 0
        %4529 = vmatpush1.bf16.xpose.msra.mxu0 %v4512
        %4530 = vmatprep.subr.bf16.mxu0 0
        %4531 = vmatpush2.bf16.xpose.msra.mxu0 0
        %4532 = vmatprep.subr.bf16.mxu0 0
        %4533 = vmatpush2.bf16.xpose.msra.mxu0 0
        %4534 = vmatprep.subr.bf16.mxu0 0
        %4535 = vmatpush2.bf16.xpose.msra.mxu0 0
        %4536 = vmatprep.subr.bf16.mxu0 0
        %4537 = vmatpush2.bf16.xpose.msra.mxu0 0
        %4538 = vmatprep.subr.bf16.mxu0 0
        %4539 = vmatpush2.bf16.xpose.msra.mxu0 0
        %4540 = vmatprep.subr.bf16.mxu0 0
        %4541 = vmatpush2.bf16.xpose.msra.mxu0 0
        %4542 = vmatprep.subr.bf16.mxu0 0
        %4543 = vmatpush2.bf16.xpose.msra.mxu0 0
        %4544 = vmatprep.subr.bf16.mxu0 0
        %4545 = vmatpush2.bf16.xpose.msra.mxu0 0
        %4546 = vmatprep.mubr.bf16.mxu0 0
        %4547 = vmatmul.mubr.bf16.gmra.mxu0 %v4509
        %v4548 = vpop.f32.mrf.mxu0
        %v4549 = vadd.f32 0.0, %v4548
        %v4550 = vpop.f32.mrf.mxu0
        %v4551 = vpop.f32.mrf.mxu0
        %v4552 = vpop.f32.mrf.mxu0
        %4553 = vdwg.mxu0
        %v4554 = vsel %vm1206, -1e+30, %v4549
        %v4555 = vsel %vm1431, %v4554, -inf
        %4556 = vmax.xlane.f32.xlu0 %v4555
        %v4557 = vpop.xlane.xlu0 %4556
        %v4558 = vsub.f32 %v4554, %v4557
        %v4559 = vmul.f32 %v4558, 1.442695
        %v4560 = vpow.pop %v4559
        %v4561 = vsel %vm1431, %v4560, 0.0
        %4562 = vadd.xlane.f32.xlu0 %v4561
        %v4563 = vpop.xlane.xlu0 %4562
        %v4564 = vrcp.pop %v4563
        %v4565 = vmul.f32 %v4560, %v4564
        %v4566 = vadd.f32 %v4454, %v4565
        %v4567 = vpack.c.bf16 %v4565, %v4565
        %4568 = vrot.lane.b32.xlu0 %v3832, 80
        %v4569 = vpop.permute.xlu0 %4568
        %v4571 = vsel %vm1431, %v4567, 0
        %v4574 = vsel %vm1558, %v4569, 0
        %4576 = vmatprep.subr.bf16.mxu0 0
        %4577 = vmatpush1.bf16.msra.mxu0 0
        %4578 = vmatprep.subr.bf16.mxu0 0
        %4579 = vmatpush1.bf16.msra.mxu0 0
        %4580 = vmatprep.subr.bf16.mxu0 0
        %4581 = vmatpush1.bf16.msra.mxu0 0
        %4582 = vmatprep.subr.bf16.mxu0 0
        %4583 = vmatpush1.bf16.msra.mxu0 0
        %4584 = vmatprep.subr.bf16.mxu0 0
        %4585 = vmatpush1.bf16.msra.mxu0 0
        %4586 = vmatprep.subr.bf16.mxu0 0
        %4587 = vmatpush1.bf16.msra.mxu0 0
        %4588 = vmatprep.subr.bf16.mxu0 0
        %4589 = vmatpush1.bf16.msra.mxu0 0
        %4590 = vmatprep.subr.bf16.mxu0 0
        %4591 = vmatpush1.bf16.msra.mxu0 %v4574
        %4592 = vmatprep.subr.bf16.mxu0 0
        %4593 = vmatpush2.bf16.msra.mxu0 0
        %4594 = vmatprep.subr.bf16.mxu0 0
        %4595 = vmatpush2.bf16.msra.mxu0 0
        %4596 = vmatprep.subr.bf16.mxu0 0
        %4597 = vmatpush2.bf16.msra.mxu0 0
        %4598 = vmatprep.subr.bf16.mxu0 0
        %4599 = vmatpush2.bf16.msra.mxu0 0
        %4600 = vmatprep.subr.bf16.mxu0 0
        %4601 = vmatpush2.bf16.msra.mxu0 0
        %4602 = vmatprep.subr.bf16.mxu0 0
        %4603 = vmatpush2.bf16.msra.mxu0 0
        %4604 = vmatprep.subr.bf16.mxu0 0
        %4605 = vmatpush2.bf16.msra.mxu0 0
        %4606 = vmatprep.subr.bf16.mxu0 0
        %4607 = vmatpush2.bf16.msra.mxu0 0
        %4608 = vmatprep.mubr.bf16.mxu0 0
        %4609 = vmatmul.mubr.bf16.gmra.mxu0 %v4571
        %v4610 = vpop.f32.mrf.mxu0
        %v4611 = vadd.f32 0.0, %v4610
        %v4612 = vpop.f32.mrf.mxu0
        %v4613 = vpop.f32.mrf.mxu0
        %v4614 = vpop.f32.mrf.mxu0
        %4615 = vdwg.mxu0
        %4616 = vrot.lane.b32.xlu0 %v3830, 72
        %v4617 = vpop.permute.xlu0 %4616
        %4618 = vrot.lane.b32.xlu0 %v3831, 8
        %v4619 = vpop.permute.xlu0 %4618
        %v4621 = vsel %vm1431, %v4617, 0
        %v4624 = vsel %vm1431, %v4619, 0
        %4626 = vmatprep.subr.bf16.mxu0 0
        %4627 = vmatpush1.bf16.xpose.msra.mxu0 0
        %4628 = vmatprep.subr.bf16.mxu0 0
        %4629 = vmatpush1.bf16.xpose.msra.mxu0 0
        %4630 = vmatprep.subr.bf16.mxu0 0
        %4631 = vmatpush1.bf16.xpose.msra.mxu0 0
        %4632 = vmatprep.subr.bf16.mxu0 0
        %4633 = vmatpush1.bf16.xpose.msra.mxu0 0
        %4634 = vmatprep.subr.bf16.mxu0 0
        %4635 = vmatpush1.bf16.xpose.msra.mxu0 0
        %4636 = vmatprep.subr.bf16.mxu0 0
        %4637 = vmatpush1.bf16.xpose.msra.mxu0 0
        %4638 = vmatprep.subr.bf16.mxu0 0
        %4639 = vmatpush1.bf16.xpose.msra.mxu0 0
        %4640 = vmatprep.subr.bf16.mxu0 0
        %4641 = vmatpush1.bf16.xpose.msra.mxu0 %v4624
        %4642 = vmatprep.subr.bf16.mxu0 0
        %4643 = vmatpush2.bf16.xpose.msra.mxu0 0
        %4644 = vmatprep.subr.bf16.mxu0 0
        %4645 = vmatpush2.bf16.xpose.msra.mxu0 0
        %4646 = vmatprep.subr.bf16.mxu0 0
        %4647 = vmatpush2.bf16.xpose.msra.mxu0 0
        %4648 = vmatprep.subr.bf16.mxu0 0
        %4649 = vmatpush2.bf16.xpose.msra.mxu0 0
        %4650 = vmatprep.subr.bf16.mxu0 0
        %4651 = vmatpush2.bf16.xpose.msra.mxu0 0
        %4652 = vmatprep.subr.bf16.mxu0 0
        %4653 = vmatpush2.bf16.xpose.msra.mxu0 0
        %4654 = vmatprep.subr.bf16.mxu0 0
        %4655 = vmatpush2.bf16.xpose.msra.mxu0 0
        %4656 = vmatprep.subr.bf16.mxu0 0
        %4657 = vmatpush2.bf16.xpose.msra.mxu0 0
        %4658 = vmatprep.mubr.bf16.mxu0 0
        %4659 = vmatmul.mubr.bf16.gmra.mxu0 %v4621
        %v4660 = vpop.f32.mrf.mxu0
        %v4661 = vadd.f32 0.0, %v4660
        %v4662 = vpop.f32.mrf.mxu0
        %v4663 = vpop.f32.mrf.mxu0
        %v4664 = vpop.f32.mrf.mxu0
        %4665 = vdwg.mxu0
        %v4666 = vsel %vm1206, -1e+30, %v4661
        %v4667 = vsel %vm1431, %v4666, -inf
        %4668 = vmax.xlane.f32.xlu0 %v4667
        %v4669 = vpop.xlane.xlu0 %4668
        %v4670 = vsub.f32 %v4666, %v4669
        %v4671 = vmul.f32 %v4670, 1.442695
        %v4672 = vpow.pop %v4671
        %v4673 = vsel %vm1431, %v4672, 0.0
        %4674 = vadd.xlane.f32.xlu0 %v4673
        %v4675 = vpop.xlane.xlu0 %4674
        %v4676 = vrcp.pop %v4675
        %v4677 = vmul.f32 %v4672, %v4676
        %v4678 = vadd.f32 %v4566, %v4677
        %v4679 = vpack.c.bf16 %v4677, %v4677
        %4680 = vrot.lane.b32.xlu0 %v3832, 72
        %v4681 = vpop.permute.xlu0 %4680
        %v4683 = vsel %vm1431, %v4679, 0
        %v4686 = vsel %vm1558, %v4681, 0
        %4688 = vmatprep.subr.bf16.mxu0 0
        %4689 = vmatpush1.bf16.msra.mxu0 0
        %4690 = vmatprep.subr.bf16.mxu0 0
        %4691 = vmatpush1.bf16.msra.mxu0 0
        %4692 = vmatprep.subr.bf16.mxu0 0
        %4693 = vmatpush1.bf16.msra.mxu0 0
        %4694 = vmatprep.subr.bf16.mxu0 0
        %4695 = vmatpush1.bf16.msra.mxu0 0
        %4696 = vmatprep.subr.bf16.mxu0 0
        %4697 = vmatpush1.bf16.msra.mxu0 0
        %4698 = vmatprep.subr.bf16.mxu0 0
        %4699 = vmatpush1.bf16.msra.mxu0 0
        %4700 = vmatprep.subr.bf16.mxu0 0
        %4701 = vmatpush1.bf16.msra.mxu0 0
        %4702 = vmatprep.subr.bf16.mxu0 0
        %4703 = vmatpush1.bf16.msra.mxu0 %v4686
        %4704 = vmatprep.subr.bf16.mxu0 0
        %4705 = vmatpush2.bf16.msra.mxu0 0
        %4706 = vmatprep.subr.bf16.mxu0 0
        %4707 = vmatpush2.bf16.msra.mxu0 0
        %4708 = vmatprep.subr.bf16.mxu0 0
        %4709 = vmatpush2.bf16.msra.mxu0 0
        %4710 = vmatprep.subr.bf16.mxu0 0
        %4711 = vmatpush2.bf16.msra.mxu0 0
        %4712 = vmatprep.subr.bf16.mxu0 0
        %4713 = vmatpush2.bf16.msra.mxu0 0
        %4714 = vmatprep.subr.bf16.mxu0 0
        %4715 = vmatpush2.bf16.msra.mxu0 0
        %4716 = vmatprep.subr.bf16.mxu0 0
        %4717 = vmatpush2.bf16.msra.mxu0 0
        %4718 = vmatprep.subr.bf16.mxu0 0
        %4719 = vmatpush2.bf16.msra.mxu0 0
        %4720 = vmatprep.mubr.bf16.mxu0 0
        %4721 = vmatmul.mubr.bf16.gmra.mxu0 %v4683
        %v4722 = vpop.f32.mrf.mxu0
        %v4723 = vadd.f32 0.0, %v4722
        %v4724 = vpop.f32.mrf.mxu0
        %v4725 = vpop.f32.mrf.mxu0
        %v4726 = vpop.f32.mrf.mxu0
        %4727 = vdwg.mxu0
        %4729 = vrot.lane.b32.xlu0 %v4051, 8
        %v4730 = vpop.permute.xlu0 %4729
        %4733 = vrot.lane.b32.xlu0 %v4163, 16
        %v4734 = vpop.permute.xlu0 %4733
        %4737 = vrot.lane.b32.xlu0 %v4275, 24
        %v4738 = vpop.permute.xlu0 %4737
        %4741 = vrot.lane.b32.xlu0 %v4387, 32
        %v4742 = vpop.permute.xlu0 %4741
        %4745 = vrot.lane.b32.xlu0 %v4499, 40
        %v4746 = vpop.permute.xlu0 %4745
        %4749 = vrot.lane.b32.xlu0 %v4611, 48
        %v4750 = vpop.permute.xlu0 %4749
        %4753 = vrot.lane.b32.xlu0 %v4723, 56
        %v4754 = vpop.permute.xlu0 %4753
        %v4756 = vsel %vm1431, %v3937, %v4730
        %v4757 = vsel %vm3264, %v4756, %v4734
        %v4758 = vsel %vm3267, %v4757, %v4738
        %v4759 = vsel %vm3270, %v4758, %v4742
        %v4760 = vsel %vm3273, %v4759, %v4746
        %v4761 = vsel %vm3276, %v4760, %v4750
        %v4762 = vsel %vm3279, %v4761, %v4754
        %v4763 = vmul.f32 %v4678, 0.125
        %v4764 = vpack.c.bf16 %v4762, %v4762
        %v4765 = vld [vmem:[#allocation24] sm:$0xf]
        %v4766 = vld [vmem:[#allocation24 + $0x4] sm:$0xf]
        %v4767 = vld [vmem:[#allocation24 + $0x8] sm:$0xf]
        %v4768 = vld [vmem:[#allocation24 + $0xc] sm:$0xf]
        %v4769 = vld [vmem:[#allocation24 + $0x10] sm:$0xf]
        %v4770 = vld [vmem:[#allocation24 + $0x14] sm:$0xf]
        %v4771 = vld [vmem:[#allocation24 + $0x18] sm:$0xf]
        %v4772 = vld [vmem:[#allocation24 + $0x1c] sm:$0xf]
        %v4773 = vld [vmem:[#allocation26] sm:$0x1]
        %v4775 = vlaneseq
        %v4776 = vshrl.u32 %v4775, 7
        %v4777 = vsub.s32 0, %v4776
        %v4778 = vrot.slane %v4773, %v4777
        %v4788 = vunpack.c.l.b16 %v4765
        %v4789 = vunpack.c.l.b16 %v4766
        %v4790 = vunpack.c.l.b16 %v4767
        %v4791 = vunpack.c.l.b16 %v4768
        %v4792 = vunpack.c.l.b16 %v4769
        %v4793 = vunpack.c.l.b16 %v4770
        %v4794 = vunpack.c.l.b16 %v4771
        %v4795 = vunpack.c.l.b16 %v4772
        %v4796 = vpack.c.b16 %v4789, %v4788
        %v4797 = vpack.c.b16 %v4791, %v4790
        %v4798 = vpack.c.b16 %v4793, %v4792
        %v4799 = vpack.c.b16 %v4795, %v4794
        %v4805 = vsel %vm1270, %v4764, 0
        %4807 = vmatprep.subr.bf16.mxu0 0
        %4808 = vmatpush1.bf16.msra.mxu0 0
        %4809 = vmatprep.subr.bf16.mxu0 0
        %4810 = vmatpush1.bf16.msra.mxu0 0
        %4811 = vmatprep.subr.bf16.mxu0 0
        %4812 = vmatpush1.bf16.msra.mxu0 0
        %4813 = vmatprep.subr.bf16.mxu0 0
        %4814 = vmatpush1.bf16.msra.mxu0 0
        %4815 = vmatprep.subr.bf16.mxu0 0
        %4816 = vmatpush1.bf16.msra.mxu0 %v4799
        %4817 = vmatprep.subr.bf16.mxu0 0
        %4818 = vmatpush1.bf16.msra.mxu0 %v4798
        %4819 = vmatprep.subr.bf16.mxu0 0
        %4820 = vmatpush1.bf16.msra.mxu0 %v4797
        %4821 = vmatprep.subr.bf16.mxu0 0
        %4822 = vmatpush1.bf16.msra.mxu0 %v4796
        %4823 = vmatprep.subr.bf16.mxu0 0
        %4824 = vmatpush2.bf16.msra.mxu0 0
        %4825 = vmatprep.subr.bf16.mxu0 0
        %4826 = vmatpush2.bf16.msra.mxu0 0
        %4827 = vmatprep.subr.bf16.mxu0 0
        %4828 = vmatpush2.bf16.msra.mxu0 0
        %4829 = vmatprep.subr.bf16.mxu0 0
        %4830 = vmatpush2.bf16.msra.mxu0 0
        %4831 = vmatprep.subr.bf16.mxu0 0
        %4832 = vmatpush2.bf16.msra.mxu0 0
        %4833 = vmatprep.subr.bf16.mxu0 0
        %4834 = vmatpush2.bf16.msra.mxu0 0
        %4835 = vmatprep.subr.bf16.mxu0 0
        %4836 = vmatpush2.bf16.msra.mxu0 0
        %4837 = vmatprep.subr.bf16.mxu0 0
        %4838 = vmatpush2.bf16.msra.mxu0 0
        %4839 = vmatprep.mubr.bf16.mxu0 0
        %4840 = vmatmul.mubr.bf16.gmra.mxu0 %v4805
        %v4841 = vpop.f32.mrf.mxu0
        %v4842 = vadd.f32 %v4778, %v4841
        %v4843 = vpop.f32.mrf.mxu0
        %v4844 = vpop.f32.mrf.mxu0
        %v4845 = vpop.f32.mrf.mxu0
        %4846 = vdwg.mxu0
        %v4847 = vadd.f32 %v4842, %v3662
        %v4848 = vsel %vm1270, %v4847, 0.0
        %4849 = vadd.xlane.f32.xlu0 %v4848
        %v4850 = vpop.xlane.xlu0 %4849
        %v4851 = vmul.f32 %v4850, %v3626
        %v4852 = vsub.f32 %v4847, %v4851
        %v4853 = vmul.f32 %v4852, %v4852
        %v4854 = vsel %vm1270, %v4853, 0.0
        %4855 = vadd.xlane.f32.xlu0 %v4854
        %v4856 = vpop.xlane.xlu0 %4855
        %v4857 = vmul.f32 %v4856, %v3626
        %v4858 = vadd.f32 %v4857, 1e-05
        %v4859 = vrsqrt.pop %v4858
        %v4860 = vmul.f32 %v4852, %v4859
        %v4861 = vmul.f32 %v4860, %v3651
        %v4862 = vadd.f32 %v4861, %v3659
        %v4863 = vld [vmem:[#allocation30] sm:$0xf]
        %v4864 = vld [vmem:[#allocation30 + $0x4] sm:$0xf]
        %v4865 = vld [vmem:[#allocation30 + $0x8] sm:$0xf]
        %v4866 = vld [vmem:[#allocation30 + $0xc] sm:$0xf]
        %v4867 = vld [vmem:[#allocation30 + $0x10] sm:$0xf]
        %v4868 = vld [vmem:[#allocation30 + $0x14] sm:$0xf]
        %v4869 = vld [vmem:[#allocation30 + $0x18] sm:$0xf]
        %v4870 = vld [vmem:[#allocation30 + $0x1c] sm:$0xf]
        %v4871 = vld [vmem:[%s43] sm:$0x1]
        %v4872 = vld [vmem:[#allocation32] sm:$0xf]
        %v4873 = vld [vmem:[#allocation32 + $0x4] sm:$0xf]
        %v4874 = vld [vmem:[#allocation32 + $0x8] sm:$0xf]
        %v4875 = vld [vmem:[#allocation32 + $0xc] sm:$0xf]
        %v4876 = vld [vmem:[#allocation32 + $0x10] sm:$0xf]
        %v4877 = vld [vmem:[#allocation32 + $0x14] sm:$0xf]
        %v4878 = vld [vmem:[#allocation32 + $0x18] sm:$0xf]
        %v4879 = vld [vmem:[#allocation32 + $0x1c] sm:$0xf]
        %v4880 = vld [vmem:[%s47] sm:$0x1]
        %v4881 = vpack.c.bf16 %v4862, %v4862
        %v4883 = vlaneseq
        %v4884 = vshrl.u32 %v4883, 7
        %v4885 = vsub.s32 0, %v4884
        %v4886 = vrot.slane %v4871, %v4885
        %v4896 = vunpack.c.l.b16 %v4863
        %v4897 = vunpack.c.l.b16 %v4864
        %v4898 = vunpack.c.l.b16 %v4865
        %v4899 = vunpack.c.l.b16 %v4866
        %v4900 = vunpack.c.l.b16 %v4867
        %v4901 = vunpack.c.l.b16 %v4868
        %v4902 = vunpack.c.l.b16 %v4869
        %v4903 = vunpack.c.l.b16 %v4870
        %v4904 = vpack.c.b16 %v4897, %v4896
        %v4905 = vpack.c.b16 %v4899, %v4898
        %v4906 = vpack.c.b16 %v4901, %v4900
        %v4907 = vpack.c.b16 %v4903, %v4902
        %v4913 = vsel %vm1270, %v4881, 0
        %4915 = vmatprep.subr.bf16.mxu0 0
        %4916 = vmatpush1.bf16.msra.mxu0 0
        %4917 = vmatprep.subr.bf16.mxu0 0
        %4918 = vmatpush1.bf16.msra.mxu0 0
        %4919 = vmatprep.subr.bf16.mxu0 0
        %4920 = vmatpush1.bf16.msra.mxu0 0
        %4921 = vmatprep.subr.bf16.mxu0 0
        %4922 = vmatpush1.bf16.msra.mxu0 0
        %4923 = vmatprep.subr.bf16.mxu0 0
        %4924 = vmatpush1.bf16.msra.mxu0 %v4907
        %4925 = vmatprep.subr.bf16.mxu0 0
        %4926 = vmatpush1.bf16.msra.mxu0 %v4906
        %4927 = vmatprep.subr.bf16.mxu0 0
        %4928 = vmatpush1.bf16.msra.mxu0 %v4905
        %4929 = vmatprep.subr.bf16.mxu0 0
        %4930 = vmatpush1.bf16.msra.mxu0 %v4904
        %4931 = vmatprep.subr.bf16.mxu0 0
        %4932 = vmatpush2.bf16.msra.mxu0 0
        %4933 = vmatprep.subr.bf16.mxu0 0
        %4934 = vmatpush2.bf16.msra.mxu0 0
        %4935 = vmatprep.subr.bf16.mxu0 0
        %4936 = vmatpush2.bf16.msra.mxu0 0
        %4937 = vmatprep.subr.bf16.mxu0 0
        %4938 = vmatpush2.bf16.msra.mxu0 0
        %4939 = vmatprep.subr.bf16.mxu0 0
        %4940 = vmatpush2.bf16.msra.mxu0 0
        %4941 = vmatprep.subr.bf16.mxu0 0
        %4942 = vmatpush2.bf16.msra.mxu0 0
        %4943 = vmatprep.subr.bf16.mxu0 0
        %4944 = vmatpush2.bf16.msra.mxu0 0
        %4945 = vmatprep.subr.bf16.mxu0 0
        %4946 = vmatpush2.bf16.msra.mxu0 0
        %4947 = vmatprep.mubr.bf16.mxu0 0
        %4948 = vmatmul.mubr.bf16.gmra.mxu0 %v4913
        %v4949 = vpop.f32.mrf.mxu0
        %v4950 = vadd.f32 %v4886, %v4949
        %v4951 = vpop.f32.mrf.mxu0
        %v4952 = vpop.f32.mrf.mxu0
        %v4953 = vpop.f32.mrf.mxu0
        %4954 = vdwg.mxu0
        %v4955 = vmax.f32 %v4950, 0.0
        %v4956 = vpack.c.bf16 %v4955, %v4955
        %v4958 = vlaneseq
        %v4959 = vshrl.u32 %v4958, 7
        %v4960 = vsub.s32 0, %v4959
        %v4961 = vrot.slane %v4880, %v4960
        %v4971 = vunpack.c.l.b16 %v4872
        %v4972 = vunpack.c.l.b16 %v4873
        %v4973 = vunpack.c.l.b16 %v4874
        %v4974 = vunpack.c.l.b16 %v4875
        %v4975 = vunpack.c.l.b16 %v4876
        %v4976 = vunpack.c.l.b16 %v4877
        %v4977 = vunpack.c.l.b16 %v4878
        %v4978 = vunpack.c.l.b16 %v4879
        %v4979 = vpack.c.b16 %v4972, %v4971
        %v4980 = vpack.c.b16 %v4974, %v4973
        %v4981 = vpack.c.b16 %v4976, %v4975
        %v4982 = vpack.c.b16 %v4978, %v4977
        %v4988 = vsel %vm1270, %v4956, 0
        %4990 = vmatprep.subr.bf16.mxu0 0
        %4991 = vmatpush1.bf16.msra.mxu0 0
        %4992 = vmatprep.subr.bf16.mxu0 0
        %4993 = vmatpush1.bf16.msra.mxu0 0
        %4994 = vmatprep.subr.bf16.mxu0 0
        %4995 = vmatpush1.bf16.msra.mxu0 0
        %4996 = vmatprep.subr.bf16.mxu0 0
        %4997 = vmatpush1.bf16.msra.mxu0 0
        %4998 = vmatprep.subr.bf16.mxu0 0
        %4999 = vmatpush1.bf16.msra.mxu0 %v4982
        %5000 = vmatprep.subr.bf16.mxu0 0
        %5001 = vmatpush1.bf16.msra.mxu0 %v4981
        %5002 = vmatprep.subr.bf16.mxu0 0
        %5003 = vmatpush1.bf16.msra.mxu0 %v4980
        %5004 = vmatprep.subr.bf16.mxu0 0
        %5005 = vmatpush1.bf16.msra.mxu0 %v4979
        %5006 = vmatprep.subr.bf16.mxu0 0
        %5007 = vmatpush2.bf16.msra.mxu0 0
        %5008 = vmatprep.subr.bf16.mxu0 0
        %5009 = vmatpush2.bf16.msra.mxu0 0
        %5010 = vmatprep.subr.bf16.mxu0 0
        %5011 = vmatpush2.bf16.msra.mxu0 0
        %5012 = vmatprep.subr.bf16.mxu0 0
        %5013 = vmatpush2.bf16.msra.mxu0 0
        %5014 = vmatprep.subr.bf16.mxu0 0
        %5015 = vmatpush2.bf16.msra.mxu0 0
        %5016 = vmatprep.subr.bf16.mxu0 0
        %5017 = vmatpush2.bf16.msra.mxu0 0
        %5018 = vmatprep.subr.bf16.mxu0 0
        %5019 = vmatpush2.bf16.msra.mxu0 0
        %5020 = vmatprep.subr.bf16.mxu0 0
        %5021 = vmatpush2.bf16.msra.mxu0 0
        %5022 = vmatprep.mubr.bf16.mxu0 0
        %5023 = vmatmul.mubr.bf16.gmra.mxu0 %v4988
        %v5024 = vpop.f32.mrf.mxu0
        %v5025 = vadd.f32 %v4961, %v5024
        %v5026 = vpop.f32.mrf.mxu0
        %v5027 = vpop.f32.mrf.mxu0
        %v5028 = vpop.f32.mrf.mxu0
        %5029 = vdwg.mxu0
        %v5030 = vadd.f32 %v5025, %v4862
        %v5031 = vsel %vm1270, %v5030, 0.0
        %5032 = vadd.xlane.f32.xlu0 %v5031
        %v5033 = vpop.xlane.xlu0 %5032
        %v5034 = vmul.f32 %v5033, %v3626
        %v5035 = vsub.f32 %v5030, %v5034
        %v5036 = vmul.f32 %v5035, %v5035
        %v5037 = vsel %vm1270, %v5036, 0.0
        %5038 = vadd.xlane.f32.xlu0 %v5037
        %v5039 = vpop.xlane.xlu0 %5038
        %v5040 = vmul.f32 %v5039, %v3626
        %v5041 = vadd.f32 %v5040, 1e-05
        %v5042 = vrsqrt.pop %v5041
        %v5043 = vmul.f32 %v5035, %v5042
        %v5044 = vmul.f32 %v5043, %v3651
        %v5045 = vadd.f32 %v5044, %v3659
        %v5046 = vld [vmem:[%s53] sm:$0x1]
        %v5048 = vlaneseq
        %v5049 = vshrl.u32 %v5048, 7
        %v5050 = vsub.s32 0, %v5049
        %v5051 = vrot.slane %v5046, %v5050
        %v5053 = vmul.f32 %v5045, %v5051
        %v5054 = vsel %vm1270, %v5053, 0.0
        %5055 = vadd.xlane.f32.xlu0 %v5054
        %v5056 = vpop.xlane.xlu0 %5055
        %v5057 = vld [vmem:[#allocation2] sm:$0x1]
        %5059 = vset.pattern.permute.xlu0 0
        %5060 = vperm.xlu0 %5059, %v5057
        %v5061 = vpop.permute.xlu0 %5060
        %v5063 = vlaneseq
        %v5064 = vshrl.u32 %v5063, 7
        %v5065 = vsub.s32 0, %v5064
        %v5066 = vrot.slane %v5061, %v5065
        %v5067 = vadd.f32 %v5056, %v5066
        %v5069 = vlaneseq
        %v5070 = vshrl.u32 %v5069, 7
        %v5071 = vsub.s32 %v1205, %v5070
        %v5072 = vrot.slane %v5067, %v5071
        %vm5074 = vcmask 57344
        %5075 = vst.msk [vmem:[%s1191] sm:$0x1] %vm5074, %v5072
        %5076 = vst.msk [vmem:[%s1198] sm:$0xff] %vm1431, %v4763
        %s5077 = sand.u32 %s699, 1
        %s5078 = scalar_lea.sflag [#allocation5], %s5077
        %s5079 = sand.u32 %s699, 1
        %s5080 = scalar_lea.vmem [#allocation33], %s5079
        %s5081 = sand.u32 %s725, 1
        %s5082 = scalar_lea.sflag [#allocation35], %s5081
        %s5083 = sand.u32 %s725, 1
        %s5084 = smul.addr %s5083, 8
        %s5085 = scalar_lea.vmem [#allocation34], %s5084
        // Predicated region
        $region209: #{tpu_custom_call.1} parent=131 // pred_check
          %p5086 = pneg %p709
        $region210: #{tpu_custom_call.1} parent=131 // pred_check_branch
          %5088 = sbr.rel (%p5086) target = $region212
        $region211: #{tpu_custom_call.1} parent=131 // pred_region
          %s5090 = ssub.s32 16, 16
          %5091 = vsyncadd %s5078, %s5090
          %s5092 = smul.addr %s93, 16
          %s5093 = scalar_lea.hbm %s57, %s5092
          %s5095 = sshll.u32 %s5080, 4
          %s5096 = int_to_ptr.vmem [resolvable:$true] %s5095
          %5098 = dma.vmem_to_hbm [thread:$0]  %s5096, 16, %s5093, %s5078
        $region212: #{tpu_custom_call.1} parent=131 // pred_fallthru
          _
        // Predicated region
        $region213: #{tpu_custom_call.1} parent=131 // pred_check
          %p5099 = pneg %p735
        $region214: #{tpu_custom_call.1} parent=131 // pred_check_branch
          %5101 = sbr.rel (%p5099) target = $region216
        $region215: #{tpu_custom_call.1} parent=131 // pred_region
          %s5103 = ssub.s32 128, 128
          %5104 = vsyncadd %s5082, %s5103
          %s5105 = smul.addr %s93, 128
          %s5106 = scalar_lea.hbm %s59, %s5105
          %s5108 = sshll.u32 %s5085, 4
          %s5109 = int_to_ptr.vmem [resolvable:$true] %s5108
          %5111 = dma.vmem_to_hbm [thread:$0]  %s5109, 128, %s5106, %s5082
        $region216: #{tpu_custom_call.1} parent=131 // pred_fallthru
          _
      $region132: #{tpu_custom_call.1} parent=5 // pred_fallthru
        _
      %p5112 = scmp.le.s32.totalorder 2, %s88
      // Predicated region
      $region217: #{tpu_custom_call.1} parent=5 // pred_check
        %p5113 = pneg %p5112
      $region218: #{tpu_custom_call.1} parent=5 // pred_check_branch
        %5115 = sbr.rel (%p5113) target = $region220
      $region219: #{tpu_custom_call.1} parent=5 // pred_region
        %s5116 = ssub.s32 %s88, 2
        // Predicated region
        $region221: #{tpu_custom_call.1} parent=219 // pred_check
          %p5117 = pneg %p715
        $region222: #{tpu_custom_call.1} parent=219 // pred_check_branch
          %5119 = sbr.rel (%p5117) target = $region224
        $region223: #{tpu_custom_call.1} parent=219 // pred_region
          %s5120 = sand.u32 %s700, 1
          %s5121 = scalar_lea.sflag [#allocation5], %s5120
          %s5122 = sand.u32 %s700, 1
          %s5123 = scalar_lea.vmem [#allocation33], %s5122
          %5124 = dma.done %s5121, 16
        $region224: #{tpu_custom_call.1} parent=219 // pred_fallthru
          _
        // Predicated region
        $region225: #{tpu_custom_call.1} parent=219 // pred_check
          %p5125 = pneg %p741
        $region226: #{tpu_custom_call.1} parent=219 // pred_check_branch
          %5127 = sbr.rel (%p5125) target = $region228
        $region227: #{tpu_custom_call.1} parent=219 // pred_region
          %s5128 = sand.u32 %s726, 1
          %s5129 = scalar_lea.sflag [#allocation35], %s5128
          %s5130 = sand.u32 %s726, 1
          %s5131 = smul.addr %s5130, 8
          %s5132 = scalar_lea.vmem [#allocation34], %s5131
          %5133 = dma.done %s5129, 128
        $region228: #{tpu_custom_call.1} parent=219 // pred_fallthru
          _
      $region220: #{tpu_custom_call.1} parent=5 // pred_fallthru
        _
    $region6: #{tpu_custom_call.1} parent=1 // loop_footer
      %s92 = sadd.s32 1, %s88
    $region7: #{tpu_custom_call.1} parent=1 // loop_footer_branch
      %87 = sbr.rel target = $region3
    $region8: #{tpu_custom_call.1} parent=1 // loop_exit
      _
    %5134 = vsyncpa [#allocation4], 1
    %s5135 = scalar_lea.sflag [#allocation4], 1
    %5136 = vsyncpa %s5135, 1
    %5137 = vsyncpa [#allocation7], 1
    %s5138 = scalar_lea.sflag [#allocation7], 1
    %5139 = vsyncpa %s5138, 1
    %5140 = vsyncpa [#allocation10], 1
    %5141 = vsyncpa [#allocation13], 1
    %5142 = vsyncpa [#allocation16], 1
    %5143 = vsyncpa [#allocation19], 1
    %5144 = vsyncpa [#allocation22], 1
    %5145 = vsyncpa [#allocation25], 1
    %5146 = vsyncpa [#allocation28], 1
    %5147 = vsyncpa [#allocation31], 1
    %5148 = vsyncpa [#allocation5], 1
    %s5149 = scalar_lea.sflag [#allocation5], 1
    %5150 = vsyncpa %s5149, 1
    %5151 = vsyncpa [#allocation35], 1
    %s5152 = scalar_lea.sflag [#allocation35], 1
    %5153 = vsyncpa %s5152, 1

</llo_original>
